<compile_context>
chip_gen: v5e
topology: v5e:2x2
jax: 0.10.0
libtpu: 0.0.40
codegen_flags: <defaults>
</compile_context>

<pallas_src>
import functools
import numpy as np
import jax
import jax.numpy as jnp
from jax.experimental import pallas as pl
from jax.experimental.pallas import tpu as pltpu


def flat(w, k, s):
    """Conv (kernel k, stride s, no pad) followed by MaxPool2d(2) output size."""
    x = np.floor((w - k) / s) + 1
    y = np.floor((x - 2) / 2) + 1
    return int(y)


def _round_up(x, m):
    return ((x + m - 1) // m) * m


CONV_CFG = (
    dict(kh=8, kw=4, cin=1, cout=32),     # conv1 / bn1
    dict(kh=5, kw=2, cin=32, cout=64),    # conv2 / bn2
    dict(kh=3, kw=2, cin=64, cout=128),   # conv3 / bn3
)


def conv_geometry(h_in, w_in):
    """Static per-layer geometry (true & lane-padded widths)."""
    geos = []
    H, W = h_in, w_in
    prev_npad = None
    for i, cfg in enumerate(CONV_CFG):
        kh, kw, cin, cout = cfg['kh'], cfg['kw'], cfg['cin'], cfg['cout']
        WCp = _round_up(W * cin, 128) if i == 0 else prev_npad
        assert WCp % cin == 0, "padded lane width must be a multiple of cin"
        Wp = WCp // cin                      # padded column count of the input
        OH, OW = H - kh + 1, W - kw + 1
        PH, PW = OH // 2, OW // 2
        assert PH >= 1 and PW >= 1, "input too small for this conv stack"
        Npad = _round_up(PW * cout, 128)     # lane-padded output row width
        # The odd-H zero-pad row must never feed a row band (review concern).
        assert 2 * PH + kh - 1 <= H
        geos.append(dict(kh=kh, kw=kw, cin=cin, cout=cout, H=H, W=W,
                         Wp=Wp, WCp=WCp, OH=OH, OW=OW, PH=PH, PW=PW, Npad=Npad))
        H, W, prev_npad = PH, PW, Npad
    return geos


# ---------------------------- Pallas kernels ----------------------------

def _conv_bn_relu_pool_kernel(x_ref, w_ref, t_ref, o_ref, *, kh, PH, Npad, Bblk):
    """Fused Conv2d + BatchNorm(folded) + ReLU + MaxPool2d(2), banded-weight form.

    x_ref: (Bblk, Hh, 2*WCp) bf16 -- rows de-interleaved by H parity; lanes
           [0, WCp) = even rows, [WCp, 2*WCp) = odd rows, WCp % 128 == 0.
    w_ref: (kh*WCp, 2*Npad) bf16 -- banded/Toeplitz weight, BN scale folded,
           columns ordered (w-parity b, pooled col q, cout).
    t_ref: (1, Npad) f32 -- per-(q, cout) folded conv-bias + BN shift (0 in pad).
    o_ref: (Bblk, PH, Npad) bf16 -- pooled output, lane-dense (Npad % 128 == 0).
    """
    WCp = x_ref.shape[-1] // 2
    w = w_ref[...]
    shift = t_ref[...]                                   # (1, Npad) f32
    for n in range(Bblk):
        # kh+1 full-width row bands (lane-aligned slices, no sub-128 extracts).
        bands = [x_ref[n, pl.ds(s // 2, PH), pl.ds((s % 2) * WCp, WCp)]
                 for s in range(kh + 1)]                 # each (PH, WCp) bf16
        res = None
        for a in range(2):                               # pool-window H parity
            lhs = jnp.concatenate([bands[a + di] for di in range(kh)], axis=-1)
            r = jnp.dot(lhs, w, preferred_element_type=jnp.float32)  # (PH, 2*Npad)
            res = r if res is None else jnp.maximum(res, r)          # max over H parity
        # max over W parity: lane-aligned halves of N (Npad % 128 == 0).
        pooled = jnp.maximum(res[:, :Npad], res[:, Npad:])
        # relu(max(conv) + shift) == max over window of relu(conv + shift); f32
        # epilogue, single bf16 downcast at the store.
        o_ref[n] = jnp.maximum(pooled + shift, 0.0).astype(o_ref.dtype)


def _fc_head_kernel(x_ref, w1_ref, b1_ref, w3_ref, b3_ref, o_ref, acc_ref):
    """fc1 (K-tiled) + ReLU + (dropout=identity) + fc3 in one kernel.

    Grid axis 0 tiles the fc1 reduction dimension; acc_ref is the resident
    f32 accumulator.  fc3 (N=1) is a VPU row-reduction.
    """
    k = pl.program_id(0)

    @pl.when(k == 0)
    def _():
        acc_ref[...] = jnp.zeros_like(acc_ref)

    acc_ref[...] += jnp.dot(x_ref[...], w1_ref[...],
                            preferred_element_type=jnp.float32)

    @pl.when(k == pl.num_programs(0) - 1)
    def _():
        h = jnp.maximum(acc_ref[...] + b1_ref[...], 0.0)          # (B, 512) f32
        # TODO(synk): Dropout(p=0.25) identity (inference mode).
        out = jnp.sum(h * w3_ref[...], axis=-1, keepdims=True) + b3_ref[...]
        o_ref[...] = out.astype(o_ref.dtype)


# ------------------------------ wrappers ------------------------------

def _pick_bblk(B, cap=4):
    """Largest divisor of B (<= cap) that still leaves >= 2 grid steps."""
    best = 1
    for c in range(1, min(B, cap) + 1):
        if B % c == 0 and B // c >= 2:
            best = c
    return best


def conv_block(x, wb, t, geo, bblk):
    # x: (B, H, WCp) bf16, lane-dense; wb: (kh*WCp, 2*Npad) bf16; t: (1, Npad) f32
    B, H, WCp = x.shape
    assert H == geo['H'] and WCp == geo['WCp'] and B % bblk == 0
    kh, PH, Npad = geo['kh'], geo['PH'], geo['Npad']
    Hp = H + (H % 2)
    if Hp != H:                                   # pad H to even (row never read)
        x = jnp.pad(x, ((0, 0), (0, 1), (0, 0)))
    xr = x.reshape(B, Hp // 2, 2 * WCp)           # free row de-interleave

    kern = functools.partial(_conv_bn_relu_pool_kernel,
                             kh=kh, PH=PH, Npad=Npad, Bblk=bblk)
    return pl.pallas_call(
        kern,
        out_shape=jax.ShapeDtypeStruct((B, PH, Npad), jnp.bfloat16),
        grid=(B // bblk,),
        in_specs=[
            pl.BlockSpec((bblk, Hp // 2, 2 * WCp), lambda i: (i, 0, 0)),
            pl.BlockSpec((kh * WCp, 2 * Npad), lambda i: (0, 0)),
            pl.BlockSpec((1, Npad), lambda i: (0, 0)),
        ],
        out_specs=pl.BlockSpec((bblk, PH, Npad), lambda i: (i, 0, 0)),
        compiler_params=pltpu.CompilerParams(
            dimension_semantics=("parallel",),
            vmem_limit_bytes=32 * 1024 * 1024),
    )(xr, wb, t)


def fc_head(x, w1, b1, w3t, b3, tk=2048):
    B, F = x.shape
    H1 = w1.shape[1]
    if F > tk:                                    # K-tile the fc1 reduction axis
        Fp = _round_up(F, tk)
        if Fp != F:
            x = jnp.pad(x, ((0, 0), (0, Fp - F)))
            w1 = jnp.pad(w1, ((0, Fp - F), (0, 0)))
        F = Fp
    else:
        tk = F
    nk = F // tk
    return pl.pallas_call(
        _fc_head_kernel,
        out_shape=jax.ShapeDtypeStruct((B, 1), jnp.float32),
        grid=(nk,),
        in_specs=[
            pl.BlockSpec((B, tk), lambda k: (0, k)),
            pl.BlockSpec((tk, H1), lambda k: (k, 0)),
            pl.BlockSpec((1, H1), lambda k: (0, 0)),
            pl.BlockSpec((1, H1), lambda k: (0, 0)),
            pl.BlockSpec((1, 1), lambda k: (0, 0)),
        ],
        out_specs=pl.BlockSpec((B, 1), lambda k: (0, 0)),
        scratch_shapes=[pltpu.VMEM((B, H1), jnp.float32)],
        compiler_params=pltpu.CompilerParams(
            dimension_semantics=("arbitrary",),
            vmem_limit_bytes=32 * 1024 * 1024),
    )(x, w1, b1, w3t, b3)


# ------------------------------ parameters ------------------------------

def _make_banded_weight(wconv, scale, geo):
    """Banded/Toeplitz weight (kh*WCp, 2*Npad), BN scale folded in.

    Column layout: col = b*Npad + q*cout + co  (b = W-parity, q = pooled col).
    Row layout:    row = di*WCp + wi*cin + ci  (matching the kernel's LHS).
    """
    kh, kw, cin, cout = geo['kh'], geo['kw'], geo['cin'], geo['cout']
    WCp, PW, Npad = geo['WCp'], geo['PW'], geo['Npad']
    wb = np.zeros((kh * WCp, 2 * Npad), np.float32)
    wsc = np.asarray(wconv) * np.asarray(scale)[:, None, None, None]  # (co,ci,kh,kw)
    for b in range(2):
        for q in range(PW):
            j = 2 * q + b                          # conv output column
            cols = b * Npad + q * cout + np.arange(cout)
            for dj in range(kw):
                wi = j + dj                        # input column (< true W <= Wp)
                rows = (np.arange(kh)[:, None] * WCp + wi * cin
                        + np.arange(cin)[None, :]).reshape(-1)
                blk = wsc[:, :, :, dj].transpose(2, 1, 0)       # (kh, cin, cout)
                wb[np.ix_(rows, cols)] = blk.reshape(kh * cin, cout)
    return wb


def init_params(key, geos):
    ks = jax.random.split(key, 2 * len(geos) + 4)
    eps = 1e-5
    p = {}
    for i, g in enumerate(geos):
        cout, cin, kh, kw = g['cout'], g['cin'], g['kh'], g['kw']
        wconv = np.asarray(jax.random.normal(ks[2 * i], (cout, cin, kh, kw),
                                             jnp.float32)) * 0.05
        bias = np.asarray(jax.random.normal(ks[2 * i + 1], (cout,),
                                            jnp.float32)) * 0.05
        # Eval-mode BatchNorm with default init folded into weight + shift.
        gamma = np.ones((cout,), np.float32)
        beta = np.zeros((cout,), np.float32)
        mean = np.zeros((cout,), np.float32)
        var = np.ones((cout,), np.float32)
        scale = gamma / np.sqrt(var + eps)
        shift = beta + (bias - mean) * scale
        wb = _make_banded_weight(wconv, scale, g)
        t = np.zeros((1, g['Npad']), np.float32)
        t[0, :g['PW'] * cout] = np.tile(shift, g['PW'])
        p[f'w{i}'] = jnp.asarray(wb, jnp.bfloat16)
        p[f't{i}'] = jnp.asarray(t, jnp.float32)

    h3, w3, C3 = geos[-1]['PH'], geos[-1]['PW'], geos[-1]['cout']
    fc1_in = h3 * w3 * C3
    fc1_w_torch = np.asarray(jax.random.normal(ks[-4], (fc1_in, 512),
                                               jnp.float32)) * 0.05
    # Fold the NCHW-flatten transpose into a row permutation of fc1's weight:
    # our activation flattens in (h, w, c) order, torch flattens (c, h, w).
    hh, ww, cc = np.meshgrid(np.arange(h3), np.arange(w3), np.arange(C3),
                             indexing='ij')
    perm = (cc * (h3 * w3) + hh * w3 + ww).reshape(-1)
    p['fc1_w'] = jnp.asarray(fc1_w_torch[perm, :], jnp.bfloat16)
    p['fc1_b'] = jnp.asarray(
        np.asarray(jax.random.normal(ks[-3], (1, 512), jnp.float32)) * 0.05)
    p['fc3_wt'] = jnp.asarray(
        np.asarray(jax.random.normal(ks[-2], (1, 512), jnp.float32)) * 0.05)
    p['fc3_b'] = jnp.asarray(
        np.asarray(jax.random.normal(ks[-1], (1, 1), jnp.float32)) * 0.05)
    return p


# ------------------------------ forward ------------------------------

def cnn_forward(params, x, geos, bblk):
    # x: (B, H, W) f32; torch does x.unsqueeze(1) -> NCHW with C=1; here the
    # equivalent channels-last layout is (B, H, W*1), lane-padded to 128.
    B = x.shape[0]
    g0 = geos[0]
    x = x.astype(jnp.bfloat16)                           # cast before the DMA
    pad = g0['WCp'] - g0['W'] * g0['cin']
    if pad:
        x = jnp.pad(x, ((0, 0), (0, 0), (0, pad)))
    for i, g in enumerate(geos):
        x = conv_block(x, params[f'w{i}'], params[f't{i}'], g, bblk)
    g_last = geos[-1]
    true_w = g_last['PW'] * g_last['cout']
    if g_last['Npad'] != true_w:                         # drop lane padding
        x = x[:, :, :true_w]
    x = x.reshape(B, -1)            # (h, w, c) flat; fc1_w rows already permuted
    return fc_head(x, params['fc1_w'], params['fc1_b'],
                   params['fc3_wt'], params['fc3_b'])    # fc1+relu+[dropout]+fc3


if __name__ == "__main__":
    # Small version of the module's (1500, 22) input grid; width kept at 22.
    B, H_IN, W_IN = 2, 64, 22
    h3 = flat(flat(flat(H_IN, 8, 1), 5, 1), 3, 1)   # -> 5
    w3 = flat(flat(flat(W_IN, 4, 1), 2, 1), 2, 1)   # -> 1

    geos = conv_geometry(H_IN, W_IN)
    assert geos[-1]['PH'] == h3 and geos[-1]['PW'] == w3
    bblk = _pick_bblk(B)

    key = jax.random.PRNGKey(0)
    pkey, xkey = jax.random.split(key)
    params = init_params(pkey, geos)
    x = jax.random.normal(xkey, (B, H_IN, W_IN), jnp.float32)

    fwd = jax.jit(lambda p, xx: cnn_forward(p, xx, geos, bblk))
    out = jax.block_until_ready(fwd(params, x))
    assert out.shape == (B, 1) and out.dtype == jnp.float32
    print("KERNEL_OK")
</pallas_src>

<mosaic_0001>
module attributes {stable_mosaic.version = 11 : i64} {
  func.func @_conv_bn_relu_pool_kernel(%arg0: i32, %arg1: memref<1x6x512xbf16, #tpu.memory_space<vmem>>, %arg2: memref<768x256xbf16, #tpu.memory_space<vmem>>, %arg3: memref<1x128xf32, #tpu.memory_space<vmem>>, %arg4: memref<1x5x128xbf16, #tpu.memory_space<vmem>>) attributes {dimension_semantics = [#tpu.dimension_semantics<parallel>], iteration_bounds = array<i64: 2>, scalar_prefetch = 0 : i64, scratch_operands = 0 : i64, tpu.core_type = #tpu.core_type<tc>, window_params = [{transform_indices = @transform_0, window_bounds = array<i64: 1, 6, 512>}, {pipeline_mode = #tpu.pipeline_mode<synchronous>, transform_indices = @transform_1, window_bounds = array<i64: 768, 256>}, {pipeline_mode = #tpu.pipeline_mode<synchronous>, transform_indices = @transform_2, window_bounds = array<i64: 1, 128>}, {transform_indices = @transform_3, window_bounds = array<i64: 1, 5, 128>}]} {
    %c0 = arith.constant 0 : index
    %c0_0 = arith.constant 0 : index
    %0 = vector.load %arg2[%c0, %c0_0] : memref<768x256xbf16, #tpu.memory_space<vmem>>, vector<768x256xbf16>
    %c0_1 = arith.constant 0 : index
    %c0_2 = arith.constant 0 : index
    %1 = vector.load %arg3[%c0_1, %c0_2] : memref<1x128xf32, #tpu.memory_space<vmem>>, vector<1x128xf32>
    %c0_3 = arith.constant 0 : index
    %c0_4 = arith.constant 0 : index
    %c0_5 = arith.constant 0 : index
    %2 = vector.load %arg1[%c0_3, %c0_4, %c0_5] : memref<1x6x512xbf16, #tpu.memory_space<vmem>>, vector<1x5x256xbf16>
    %3 = vector.shape_cast %2 : vector<1x5x256xbf16> to vector<5x256xbf16>
    %c0_6 = arith.constant 0 : index
    %c0_7 = arith.constant 0 : index
    %c256 = arith.constant 256 : index
    %4 = vector.load %arg1[%c0_6, %c0_7, %c256] : memref<1x6x512xbf16, #tpu.memory_space<vmem>>, vector<1x5x256xbf16>
    %5 = vector.shape_cast %4 : vector<1x5x256xbf16> to vector<5x256xbf16>
    %c0_8 = arith.constant 0 : index
    %c1 = arith.constant 1 : index
    %c0_9 = arith.constant 0 : index
    %6 = vector.load %arg1[%c0_8, %c1, %c0_9] : memref<1x6x512xbf16, #tpu.memory_space<vmem>>, vector<1x5x256xbf16>
    %7 = vector.shape_cast %6 : vector<1x5x256xbf16> to vector<5x256xbf16>
    %c0_10 = arith.constant 0 : index
    %c1_11 = arith.constant 1 : index
    %c256_12 = arith.constant 256 : index
    %8 = vector.load %arg1[%c0_10, %c1_11, %c256_12] : memref<1x6x512xbf16, #tpu.memory_space<vmem>>, vector<1x5x256xbf16>
    %9 = vector.shape_cast %8 : vector<1x5x256xbf16> to vector<5x256xbf16>
    %10 = tpu.concatenate %3, %5, %7 in 1 : vector<5x256xbf16>, vector<5x256xbf16>, vector<5x256xbf16> -> vector<5x768xbf16>
    %cst = arith.constant dense<0.000000e+00> : vector<5x256xf32>
    %11 = tpu.matmul %10, %0, %cst {dimension_numbers = #tpu.dot_dimension_numbers<[1], [0], [0], [1], [0, 0, 1, 1], [], []>} : vector<5x768xbf16>, vector<768x256xbf16>, vector<5x256xf32> -> vector<5x256xf32>
    %12 = tpu.concatenate %5, %7, %9 in 1 : vector<5x256xbf16>, vector<5x256xbf16>, vector<5x256xbf16> -> vector<5x768xbf16>
    %cst_13 = arith.constant dense<0.000000e+00> : vector<5x256xf32>
    %13 = tpu.matmul %12, %0, %cst_13 {dimension_numbers = #tpu.dot_dimension_numbers<[1], [0], [0], [1], [0, 0, 1, 1], [], []>} : vector<5x768xbf16>, vector<768x256xbf16>, vector<5x256xf32> -> vector<5x256xf32>
    %14 = arith.maximumf %11, %13 : vector<5x256xf32>
    %15 = vector.extract_strided_slice %14 {offsets = [0, 0], sizes = [5, 128], strides = [1, 1]} : vector<5x256xf32> to vector<5x128xf32>
    %16 = vector.extract_strided_slice %14 {offsets = [0, 128], sizes = [5, 128], strides = [1, 1]} : vector<5x256xf32> to vector<5x128xf32>
    %17 = arith.maximumf %15, %16 : vector<5x128xf32>
    %18 = vector.broadcast %1 : vector<1x128xf32> to vector<5x128xf32>
    %19 = arith.addf %17, %18 : vector<5x128xf32>
    %cst_14 = arith.constant 0.000000e+00 : f32
    %20 = vector.broadcast %cst_14 : f32 to vector<5x128xf32>
    %21 = arith.maximumf %19, %20 : vector<5x128xf32>
    %22 = arith.truncf %21 : vector<5x128xf32> to vector<5x128xbf16>
    %c0_15 = arith.constant 0 : index
    %c0_16 = arith.constant 0 : index
    %c0_17 = arith.constant 0 : index
    %23 = vector.load %arg4[%c0_15, %c0_16, %c0_17] : memref<1x5x128xbf16, #tpu.memory_space<vmem>>, vector<1x5x128xbf16>
    %24 = vector.shape_cast %23 : vector<1x5x128xbf16> to vector<5x128xbf16>
    %25 = vector.shape_cast %22 : vector<5x128xbf16> to vector<1x5x128xbf16>
    tpu.vector_store %arg4[%c0_15, %c0_16, %c0_17], %25 {strides = array<i32>} : memref<1x5x128xbf16, #tpu.memory_space<vmem>>, vector<1x5x128xbf16>,
    return
  }
  func.func @transform_0(%arg0: i32) -> (i32, i32, i32) {
    %c0_i32 = arith.constant 0 : i32
    %c0_i32_0 = arith.constant 0 : i32
    %c0_i32_1 = arith.constant 0 : i32
    return %arg0, %c0_i32, %c0_i32_0 : i32, i32, i32
  }
  func.func @transform_1(%arg0: i32) -> (i32, i32) {
    %c0_i32 = arith.constant 0 : i32
    %c0_i32_0 = arith.constant 0 : i32
    %c0_i32_1 = arith.constant 0 : i32
    return %c0_i32, %c0_i32_0 : i32, i32
  }
  func.func @transform_2(%arg0: i32) -> (i32, i32) {
    %c0_i32 = arith.constant 0 : i32
    %c0_i32_0 = arith.constant 0 : i32
    %c0_i32_1 = arith.constant 0 : i32
    return %c0_i32, %c0_i32_0 : i32, i32
  }
  func.func @transform_3(%arg0: i32) -> (i32, i32, i32) {
    %c0_i32 = arith.constant 0 : i32
    %c0_i32_0 = arith.constant 0 : i32
    %c0_i32_1 = arith.constant 0 : i32
    return %arg0, %c0_i32, %c0_i32_0 : i32, i32, i32
  }
}

module attributes {stable_mosaic.version = 11 : i64} {
  func.func @_conv_bn_relu_pool_kernel(%arg0: i32, %arg1: memref<1x14x768xbf16, #tpu.memory_space<vmem>>, %arg2: memref<1920x512xbf16, #tpu.memory_space<vmem>>, %arg3: memref<1x256xf32, #tpu.memory_space<vmem>>, %arg4: memref<1x12x256xbf16, #tpu.memory_space<vmem>>) attributes {dimension_semantics = [#tpu.dimension_semantics<parallel>], iteration_bounds = array<i64: 2>, scalar_prefetch = 0 : i64, scratch_operands = 0 : i64, tpu.core_type = #tpu.core_type<tc>, window_params = [{transform_indices = @transform_0, window_bounds = array<i64: 1, 14, 768>}, {pipeline_mode = #tpu.pipeline_mode<synchronous>, transform_indices = @transform_1, window_bounds = array<i64: 1920, 512>}, {pipeline_mode = #tpu.pipeline_mode<synchronous>, transform_indices = @transform_2, window_bounds = array<i64: 1, 256>}, {transform_indices = @transform_3, window_bounds = array<i64: 1, 12, 256>}]} {
    %c0 = arith.constant 0 : index
    %c0_0 = arith.constant 0 : index
    %0 = vector.load %arg2[%c0, %c0_0] : memref<1920x512xbf16, #tpu.memory_space<vmem>>, vector<1920x512xbf16>
    %c0_1 = arith.constant 0 : index
    %c0_2 = arith.constant 0 : index
    %1 = vector.load %arg3[%c0_1, %c0_2] : memref<1x256xf32, #tpu.memory_space<vmem>>, vector<1x256xf32>
    %c0_3 = arith.constant 0 : index
    %c0_4 = arith.constant 0 : index
    %c0_5 = arith.constant 0 : index
    %2 = vector.load %arg1[%c0_3, %c0_4, %c0_5] : memref<1x14x768xbf16, #tpu.memory_space<vmem>>, vector<1x12x384xbf16>
    %3 = vector.shape_cast %2 : vector<1x12x384xbf16> to vector<12x384xbf16>
    %c0_6 = arith.constant 0 : index
    %c0_7 = arith.constant 0 : index
    %c384 = arith.constant 384 : index
    %4 = vector.load %arg1[%c0_6, %c0_7, %c384] : memref<1x14x768xbf16, #tpu.memory_space<vmem>>, vector<1x12x384xbf16>
    %5 = vector.shape_cast %4 : vector<1x12x384xbf16> to vector<12x384xbf16>
    %c0_8 = arith.constant 0 : index
    %c1 = arith.constant 1 : index
    %c0_9 = arith.constant 0 : index
    %6 = vector.load %arg1[%c0_8, %c1, %c0_9] : memref<1x14x768xbf16, #tpu.memory_space<vmem>>, vector<1x12x384xbf16>
    %7 = vector.shape_cast %6 : vector<1x12x384xbf16> to vector<12x384xbf16>
    %c0_10 = arith.constant 0 : index
    %c1_11 = arith.constant 1 : index
    %c384_12 = arith.constant 384 : index
    %8 = vector.load %arg1[%c0_10, %c1_11, %c384_12] : memref<1x14x768xbf16, #tpu.memory_space<vmem>>, vector<1x12x384xbf16>
    %9 = vector.shape_cast %8 : vector<1x12x384xbf16> to vector<12x384xbf16>
    %c0_13 = arith.constant 0 : index
    %c2 = arith.constant 2 : index
    %c0_14 = arith.constant 0 : index
    %10 = vector.load %arg1[%c0_13, %c2, %c0_14] : memref<1x14x768xbf16, #tpu.memory_space<vmem>>, vector<1x12x384xbf16>
    %11 = vector.shape_cast %10 : vector<1x12x384xbf16> to vector<12x384xbf16>
    %c0_15 = arith.constant 0 : index
    %c2_16 = arith.constant 2 : index
    %c384_17 = arith.constant 384 : index
    %12 = vector.load %arg1[%c0_15, %c2_16, %c384_17] : memref<1x14x768xbf16, #tpu.memory_space<vmem>>, vector<1x12x384xbf16>
    %13 = vector.shape_cast %12 : vector<1x12x384xbf16> to vector<12x384xbf16>
    %14 = tpu.concatenate %3, %5, %7, %9, %11 in 1 : vector<12x384xbf16>, vector<12x384xbf16>, vector<12x384xbf16>, vector<12x384xbf16>, vector<12x384xbf16> -> vector<12x1920xbf16>
    %cst = arith.constant dense<0.000000e+00> : vector<12x512xf32>
    %15 = tpu.matmul %14, %0, %cst {dimension_numbers = #tpu.dot_dimension_numbers<[1], [0], [0], [1], [0, 0, 1, 1], [], []>} : vector<12x1920xbf16>, vector<1920x512xbf16>, vector<12x512xf32> -> vector<12x512xf32>
    %16 = tpu.concatenate %5, %7, %9, %11, %13 in 1 : vector<12x384xbf16>, vector<12x384xbf16>, vector<12x384xbf16>, vector<12x384xbf16>, vector<12x384xbf16> -> vector<12x1920xbf16>
    %cst_18 = arith.constant dense<0.000000e+00> : vector<12x512xf32>
    %17 = tpu.matmul %16, %0, %cst_18 {dimension_numbers = #tpu.dot_dimension_numbers<[1], [0], [0], [1], [0, 0, 1, 1], [], []>} : vector<12x1920xbf16>, vector<1920x512xbf16>, vector<12x512xf32> -> vector<12x512xf32>
    %18 = arith.maximumf %15, %17 : vector<12x512xf32>
    %19 = vector.extract_strided_slice %18 {offsets = [0, 0], sizes = [12, 256], strides = [1, 1]} : vector<12x512xf32> to vector<12x256xf32>
    %20 = vector.extract_strided_slice %18 {offsets = [0, 256], sizes = [12, 256], strides = [1, 1]} : vector<12x512xf32> to vector<12x256xf32>
    %21 = arith.maximumf %19, %20 : vector<12x256xf32>
    %22 = vector.broadcast %1 : vector<1x256xf32> to vector<12x256xf32>
    %23 = arith.addf %21, %22 : vector<12x256xf32>
    %cst_19 = arith.constant 0.000000e+00 : f32
    %24 = vector.broadcast %cst_19 : f32 to vector<12x256xf32>
    %25 = arith.maximumf %23, %24 : vector<12x256xf32>
    %26 = arith.truncf %25 : vector<12x256xf32> to vector<12x256xbf16>
    %c0_20 = arith.constant 0 : index
    %c0_21 = arith.constant 0 : index
    %c0_22 = arith.constant 0 : index
    %27 = vector.load %arg4[%c0_20, %c0_21, %c0_22] : memref<1x12x256xbf16, #tpu.memory_space<vmem>>, vector<1x12x256xbf16>
    %28 = vector.shape_cast %27 : vector<1x12x256xbf16> to vector<12x256xbf16>
    %29 = vector.shape_cast %26 : vector<12x256xbf16> to vector<1x12x256xbf16>
    tpu.vector_store %arg4[%c0_20, %c0_21, %c0_22], %29 {strides = array<i32>} : memref<1x12x256xbf16, #tpu.memory_space<vmem>>, vector<1x12x256xbf16>,
    return
  }
  func.func @transform_0(%arg0: i32) -> (i32, i32, i32) {
    %c0_i32 = arith.constant 0 : i32
    %c0_i32_0 = arith.constant 0 : i32
    %c0_i32_1 = arith.constant 0 : i32
    return %arg0, %c0_i32, %c0_i32_0 : i32, i32, i32
  }
  func.func @transform_1(%arg0: i32) -> (i32, i32) {
    %c0_i32 = arith.constant 0 : i32
    %c0_i32_0 = arith.constant 0 : i32
    %c0_i32_1 = arith.constant 0 : i32
    return %c0_i32, %c0_i32_0 : i32, i32
  }
  func.func @transform_2(%arg0: i32) -> (i32, i32) {
    %c0_i32 = arith.constant 0 : i32
    %c0_i32_0 = arith.constant 0 : i32
    %c0_i32_1 = arith.constant 0 : i32
    return %c0_i32, %c0_i32_0 : i32, i32
  }
  func.func @transform_3(%arg0: i32) -> (i32, i32, i32) {
    %c0_i32 = arith.constant 0 : i32
    %c0_i32_0 = arith.constant 0 : i32
    %c0_i32_1 = arith.constant 0 : i32
    return %arg0, %c0_i32, %c0_i32_0 : i32, i32, i32
  }
}

module attributes {stable_mosaic.version = 11 : i64} {
  func.func @_conv_bn_relu_pool_kernel(%arg0: i32, %arg1: memref<1x32x256xbf16, #tpu.memory_space<vmem>>, %arg2: memref<1024x768xbf16, #tpu.memory_space<vmem>>, %arg3: memref<1x384xf32, #tpu.memory_space<vmem>>, %arg4: memref<1x28x384xbf16, #tpu.memory_space<vmem>>) attributes {dimension_semantics = [#tpu.dimension_semantics<parallel>], iteration_bounds = array<i64: 2>, scalar_prefetch = 0 : i64, scratch_operands = 0 : i64, tpu.core_type = #tpu.core_type<tc>, window_params = [{transform_indices = @transform_0, window_bounds = array<i64: 1, 32, 256>}, {pipeline_mode = #tpu.pipeline_mode<synchronous>, transform_indices = @transform_1, window_bounds = array<i64: 1024, 768>}, {pipeline_mode = #tpu.pipeline_mode<synchronous>, transform_indices = @transform_2, window_bounds = array<i64: 1, 384>}, {transform_indices = @transform_3, window_bounds = array<i64: 1, 28, 384>}]} {
    %c0 = arith.constant 0 : index
    %c0_0 = arith.constant 0 : index
    %0 = vector.load %arg2[%c0, %c0_0] : memref<1024x768xbf16, #tpu.memory_space<vmem>>, vector<1024x768xbf16>
    %c0_1 = arith.constant 0 : index
    %c0_2 = arith.constant 0 : index
    %1 = vector.load %arg3[%c0_1, %c0_2] : memref<1x384xf32, #tpu.memory_space<vmem>>, vector<1x384xf32>
    %c0_3 = arith.constant 0 : index
    %c0_4 = arith.constant 0 : index
    %c0_5 = arith.constant 0 : index
    %2 = vector.load %arg1[%c0_3, %c0_4, %c0_5] : memref<1x32x256xbf16, #tpu.memory_space<vmem>>, vector<1x28x128xbf16>
    %3 = vector.shape_cast %2 : vector<1x28x128xbf16> to vector<28x128xbf16>
    %c0_6 = arith.constant 0 : index
    %c0_7 = arith.constant 0 : index
    %c128 = arith.constant 128 : index
    %4 = vector.load %arg1[%c0_6, %c0_7, %c128] : memref<1x32x256xbf16, #tpu.memory_space<vmem>>, vector<1x28x128xbf16>
    %5 = vector.shape_cast %4 : vector<1x28x128xbf16> to vector<28x128xbf16>
    %c0_8 = arith.constant 0 : index
    %c1 = arith.constant 1 : index
    %c0_9 = arith.constant 0 : index
    %6 = vector.load %arg1[%c0_8, %c1, %c0_9] : memref<1x32x256xbf16, #tpu.memory_space<vmem>>, vector<1x28x128xbf16>
    %7 = vector.shape_cast %6 : vector<1x28x128xbf16> to vector<28x128xbf16>
    %c0_10 = arith.constant 0 : index
    %c1_11 = arith.constant 1 : index
    %c128_12 = arith.constant 128 : index
    %8 = vector.load %arg1[%c0_10, %c1_11, %c128_12] : memref<1x32x256xbf16, #tpu.memory_space<vmem>>, vector<1x28x128xbf16>
    %9 = vector.shape_cast %8 : vector<1x28x128xbf16> to vector<28x128xbf16>
    %c0_13 = arith.constant 0 : index
    %c2 = arith.constant 2 : index
    %c0_14 = arith.constant 0 : index
    %10 = vector.load %arg1[%c0_13, %c2, %c0_14] : memref<1x32x256xbf16, #tpu.memory_space<vmem>>, vector<1x28x128xbf16>
    %11 = vector.shape_cast %10 : vector<1x28x128xbf16> to vector<28x128xbf16>
    %c0_15 = arith.constant 0 : index
    %c2_16 = arith.constant 2 : index
    %c128_17 = arith.constant 128 : index
    %12 = vector.load %arg1[%c0_15, %c2_16, %c128_17] : memref<1x32x256xbf16, #tpu.memory_space<vmem>>, vector<1x28x128xbf16>
    %13 = vector.shape_cast %12 : vector<1x28x128xbf16> to vector<28x128xbf16>
    %c0_18 = arith.constant 0 : index
    %c3 = arith.constant 3 : index
    %c0_19 = arith.constant 0 : index
    %14 = vector.load %arg1[%c0_18, %c3, %c0_19] : memref<1x32x256xbf16, #tpu.memory_space<vmem>>, vector<1x28x128xbf16>
    %15 = vector.shape_cast %14 : vector<1x28x128xbf16> to vector<28x128xbf16>
    %c0_20 = arith.constant 0 : index
    %c3_21 = arith.constant 3 : index
    %c128_22 = arith.constant 128 : index
    %16 = vector.load %arg1[%c0_20, %c3_21, %c128_22] : memref<1x32x256xbf16, #tpu.memory_space<vmem>>, vector<1x28x128xbf16>
    %17 = vector.shape_cast %16 : vector<1x28x128xbf16> to vector<28x128xbf16>
    %c0_23 = arith.constant 0 : index
    %c4 = arith.constant 4 : index
    %c0_24 = arith.constant 0 : index
    %18 = vector.load %arg1[%c0_23, %c4, %c0_24] : memref<1x32x256xbf16, #tpu.memory_space<vmem>>, vector<1x28x128xbf16>
    %19 = vector.shape_cast %18 : vector<1x28x128xbf16> to vector<28x128xbf16>
    %20 = tpu.concatenate %3, %5, %7, %9, %11, %13, %15, %17 in 1 : vector<28x128xbf16>, vector<28x128xbf16>, vector<28x128xbf16>, vector<28x128xbf16>, vector<28x128xbf16>, vector<28x128xbf16>, vector<28x128xbf16>, vector<28x128xbf16> -> vector<28x1024xbf16>
    %cst = arith.constant dense<0.000000e+00> : vector<28x768xf32>
    %21 = tpu.matmul %20, %0, %cst {dimension_numbers = #tpu.dot_dimension_numbers<[1], [0], [0], [1], [0, 0, 1, 1], [], []>} : vector<28x1024xbf16>, vector<1024x768xbf16>, vector<28x768xf32> -> vector<28x768xf32>
    %22 = tpu.concatenate %5, %7, %9, %11, %13, %15, %17, %19 in 1 : vector<28x128xbf16>, vector<28x128xbf16>, vector<28x128xbf16>, vector<28x128xbf16>, vector<28x128xbf16>, vector<28x128xbf16>, vector<28x128xbf16>, vector<28x128xbf16> -> vector<28x1024xbf16>
    %cst_25 = arith.constant dense<0.000000e+00> : vector<28x768xf32>
    %23 = tpu.matmul %22, %0, %cst_25 {dimension_numbers = #tpu.dot_dimension_numbers<[1], [0], [0], [1], [0, 0, 1, 1], [], []>} : vector<28x1024xbf16>, vector<1024x768xbf16>, vector<28x768xf32> -> vector<28x768xf32>
    %24 = arith.maximumf %21, %23 : vector<28x768xf32>
    %25 = vector.extract_strided_slice %24 {offsets = [0, 0], sizes = [28, 384], strides = [1, 1]} : vector<28x768xf32> to vector<28x384xf32>
    %26 = vector.extract_strided_slice %24 {offsets = [0, 384], sizes = [28, 384], strides = [1, 1]} : vector<28x768xf32> to vector<28x384xf32>
    %27 = arith.maximumf %25, %26 : vector<28x384xf32>
    %28 = vector.broadcast %1 : vector<1x384xf32> to vector<28x384xf32>
    %29 = arith.addf %27, %28 : vector<28x384xf32>
    %cst_26 = arith.constant 0.000000e+00 : f32
    %30 = vector.broadcast %cst_26 : f32 to vector<28x384xf32>
    %31 = arith.maximumf %29, %30 : vector<28x384xf32>
    %32 = arith.truncf %31 : vector<28x384xf32> to vector<28x384xbf16>
    %c0_27 = arith.constant 0 : index
    %c0_28 = arith.constant 0 : index
    %c0_29 = arith.constant 0 : index
    %33 = vector.load %arg4[%c0_27, %c0_28, %c0_29] : memref<1x28x384xbf16, #tpu.memory_space<vmem>>, vector<1x28x384xbf16>
    %34 = vector.shape_cast %33 : vector<1x28x384xbf16> to vector<28x384xbf16>
    %35 = vector.shape_cast %32 : vector<28x384xbf16> to vector<1x28x384xbf16>
    tpu.vector_store %arg4[%c0_27, %c0_28, %c0_29], %35 {strides = array<i32>} : memref<1x28x384xbf16, #tpu.memory_space<vmem>>, vector<1x28x384xbf16>,
    return
  }
  func.func @transform_0(%arg0: i32) -> (i32, i32, i32) {
    %c0_i32 = arith.constant 0 : i32
    %c0_i32_0 = arith.constant 0 : i32
    %c0_i32_1 = arith.constant 0 : i32
    return %arg0, %c0_i32, %c0_i32_0 : i32, i32, i32
  }
  func.func @transform_1(%arg0: i32) -> (i32, i32) {
    %c0_i32 = arith.constant 0 : i32
    %c0_i32_0 = arith.constant 0 : i32
    %c0_i32_1 = arith.constant 0 : i32
    return %c0_i32, %c0_i32_0 : i32, i32
  }
  func.func @transform_2(%arg0: i32) -> (i32, i32) {
    %c0_i32 = arith.constant 0 : i32
    %c0_i32_0 = arith.constant 0 : i32
    %c0_i32_1 = arith.constant 0 : i32
    return %c0_i32, %c0_i32_0 : i32, i32
  }
  func.func @transform_3(%arg0: i32) -> (i32, i32, i32) {
    %c0_i32 = arith.constant 0 : i32
    %c0_i32_0 = arith.constant 0 : i32
    %c0_i32_1 = arith.constant 0 : i32
    return %arg0, %c0_i32, %c0_i32_0 : i32, i32, i32
  }
}

module attributes {stable_mosaic.version = 11 : i64} {
  func.func @_fc_head_kernel(%arg0: i32, %arg1: memref<2x640xbf16, #tpu.memory_space<vmem>>, %arg2: memref<640x512xbf16, #tpu.memory_space<vmem>>, %arg3: memref<1x512xf32, #tpu.memory_space<vmem>>, %arg4: memref<1x512xf32, #tpu.memory_space<vmem>>, %arg5: memref<1x1xf32, #tpu.memory_space<vmem>>, %arg6: memref<2x1xf32, #tpu.memory_space<vmem>>, %arg7: memref<2x512xf32, #tpu.memory_space<vmem>>) attributes {dimension_semantics = [#tpu.dimension_semantics<arbitrary>], iteration_bounds = array<i64: 1>, scalar_prefetch = 0 : i64, scratch_operands = 1 : i64, tpu.core_type = #tpu.core_type<tc>, window_params = [{transform_indices = @transform_0, window_bounds = array<i64: 2, 640>}, {transform_indices = @transform_1, window_bounds = array<i64: 640, 512>}, {pipeline_mode = #tpu.pipeline_mode<synchronous>, transform_indices = @transform_2, window_bounds = array<i64: 1, 512>}, {pipeline_mode = #tpu.pipeline_mode<synchronous>, transform_indices = @transform_3, window_bounds = array<i64: 1, 512>}, {pipeline_mode = #tpu.pipeline_mode<synchronous>, transform_indices = @transform_4, window_bounds = array<i64: 1, 1>}, {pipeline_mode = #tpu.pipeline_mode<synchronous>, transform_indices = @transform_5, window_bounds = array<i64: 2, 1>}]} {
    %c0_i32 = arith.constant 0 : i32
    %0 = arith.cmpi eq, %arg0, %c0_i32 : i32
    %1 = arith.extui %0 : i1 to i32
    %c0_i32_0 = arith.constant 0 : i32
    %2 = arith.cmpi ne, %1, %c0_i32_0 : i32
    scf.if %2 {
      %cst_10 = arith.constant 0.000000e+00 : f32
      %12 = vector.broadcast %cst_10 : f32 to vector<2x512xf32>
      %c0_11 = arith.constant 0 : index
      %c0_12 = arith.constant 0 : index
      %13 = vector.load %arg7[%c0_11, %c0_12] : memref<2x512xf32, #tpu.memory_space<vmem>>, vector<2x512xf32>
      tpu.vector_store %arg7[%c0_11, %c0_12], %12 {strides = array<i32>} : memref<2x512xf32, #tpu.memory_space<vmem>>, vector<2x512xf32>,
    } else {
    }
    %c0 = arith.constant 0 : index
    %c0_1 = arith.constant 0 : index
    %3 = vector.load %arg7[%c0, %c0_1] : memref<2x512xf32, #tpu.memory_space<vmem>>, vector<2x512xf32>
    %c0_2 = arith.constant 0 : index
    %c0_3 = arith.constant 0 : index
    %4 = vector.load %arg1[%c0_2, %c0_3] : memref<2x640xbf16, #tpu.memory_space<vmem>>, vector<2x640xbf16>
    %c0_4 = arith.constant 0 : index
    %c0_5 = arith.constant 0 : index
    %5 = vector.load %arg2[%c0_4, %c0_5] : memref<640x512xbf16, #tpu.memory_space<vmem>>, vector<640x512xbf16>
    %cst = arith.constant dense<0.000000e+00> : vector<2x512xf32>
    %6 = tpu.matmul %4, %5, %cst {dimension_numbers = #tpu.dot_dimension_numbers<[1], [0], [0], [1], [0, 0, 1, 1], [], []>} : vector<2x640xbf16>, vector<640x512xbf16>, vector<2x512xf32> -> vector<2x512xf32>
    %7 = arith.addf %3, %6 : vector<2x512xf32>
    %c0_6 = arith.constant 0 : index
    %c0_7 = arith.constant 0 : index
    %8 = vector.load %arg7[%c0_6, %c0_7] : memref<2x512xf32, #tpu.memory_space<vmem>>, vector<2x512xf32>
    tpu.vector_store %arg7[%c0_6, %c0_7], %7 {strides = array<i32>} : memref<2x512xf32, #tpu.memory_space<vmem>>, vector<2x512xf32>,
    %c0_i32_8 = arith.constant 0 : i32
    %9 = arith.cmpi eq, %arg0, %c0_i32_8 : i32
    %10 = arith.extui %9 : i1 to i32
    %c0_i32_9 = arith.constant 0 : i32
    %11 = arith.cmpi ne, %10, %c0_i32_9 : i32
    scf.if %11 {
      %c0_10 = arith.constant 0 : index
      %c0_11 = arith.constant 0 : index
      %12 = vector.load %arg7[%c0_10, %c0_11] : memref<2x512xf32, #tpu.memory_space<vmem>>, vector<2x512xf32>
      %c0_12 = arith.constant 0 : index
      %c0_13 = arith.constant 0 : index
      %13 = vector.load %arg3[%c0_12, %c0_13] : memref<1x512xf32, #tpu.memory_space<vmem>>, vector<1x512xf32>
      %14 = vector.broadcast %13 : vector<1x512xf32> to vector<2x512xf32>
      %15 = arith.addf %12, %14 : vector<2x512xf32>
      %cst_14 = arith.constant 0.000000e+00 : f32
      %16 = vector.broadcast %cst_14 : f32 to vector<2x512xf32>
      %17 = arith.maximumf %15, %16 : vector<2x512xf32>
      %c0_15 = arith.constant 0 : index
      %c0_16 = arith.constant 0 : index
      %18 = vector.load %arg4[%c0_15, %c0_16] : memref<1x512xf32, #tpu.memory_space<vmem>>, vector<1x512xf32>
      %19 = vector.broadcast %18 : vector<1x512xf32> to vector<2x512xf32>
      %20 = arith.mulf %17, %19 : vector<2x512xf32>
      %cst_17 = arith.constant dense<0.000000e+00> : vector<2xf32>
      %21 = vector.multi_reduction <add>, %20, %cst_17 [1] : vector<2x512xf32> to vector<2xf32>
      %22 = vector.shape_cast %21 : vector<2xf32> to vector<2x1xf32>
      %c0_18 = arith.constant 0 : index
      %c0_19 = arith.constant 0 : index
      %23 = vector.load %arg5[%c0_18, %c0_19] : memref<1x1xf32, #tpu.memory_space<vmem>>, vector<1x1xf32>
      %24 = vector.broadcast %23 : vector<1x1xf32> to vector<2x1xf32>
      %25 = arith.addf %22, %24 : vector<2x1xf32>
      %c0_20 = arith.constant 0 : index
      %c0_21 = arith.constant 0 : index
      %26 = vector.load %arg6[%c0_20, %c0_21] : memref<2x1xf32, #tpu.memory_space<vmem>>, vector<2x1xf32>
      tpu.vector_store %arg6[%c0_20, %c0_21], %25 {strides = array<i32>} : memref<2x1xf32, #tpu.memory_space<vmem>>, vector<2x1xf32>,
    } else {
    }
    return
  }
  func.func @transform_0(%arg0: i32) -> (i32, i32) {
    %c0_i32 = arith.constant 0 : i32
    %c0_i32_0 = arith.constant 0 : i32
    return %c0_i32, %arg0 : i32, i32
  }
  func.func @transform_1(%arg0: i32) -> (i32, i32) {
    %c0_i32 = arith.constant 0 : i32
    %c0_i32_0 = arith.constant 0 : i32
    return %arg0, %c0_i32 : i32, i32
  }
  func.func @transform_2(%arg0: i32) -> (i32, i32) {
    %c0_i32 = arith.constant 0 : i32
    %c0_i32_0 = arith.constant 0 : i32
    %c0_i32_1 = arith.constant 0 : i32
    return %c0_i32, %c0_i32_0 : i32, i32
  }
  func.func @transform_3(%arg0: i32) -> (i32, i32) {
    %c0_i32 = arith.constant 0 : i32
    %c0_i32_0 = arith.constant 0 : i32
    %c0_i32_1 = arith.constant 0 : i32
    return %c0_i32, %c0_i32_0 : i32, i32
  }
  func.func @transform_4(%arg0: i32) -> (i32, i32) {
    %c0_i32 = arith.constant 0 : i32
    %c0_i32_0 = arith.constant 0 : i32
    %c0_i32_1 = arith.constant 0 : i32
    return %c0_i32, %c0_i32_0 : i32, i32
  }
  func.func @transform_5(%arg0: i32) -> (i32, i32) {
    %c0_i32 = arith.constant 0 : i32
    %c0_i32_0 = arith.constant 0 : i32
    %c0_i32_1 = arith.constant 0 : i32
    return %c0_i32, %c0_i32_0 : i32, i32
  }
}

</mosaic_0001>

<llo_original>
// kernel: _lambda_.6
$region0: #{_lambda_.6}
  #allocation0 [shape = 'u32[]', space=smem, size = 0x4, offset = 0x4, fixed_abs, tag = 'smem constant byte address 0x4 - core index']
  #allocation1 [shape = 'u32[72,128]{1,0:T(1,128)}', space=vmem, size = 0x9000, scoped, tag = 'internal scratch']
  %s0 = inlined_call_operand.vmem [shape: bf16[2,6,512], index: 0, kind: input, shape index: {}]
  %s1 = inlined_call_operand.hbm [shape: bf16[768,256], index: 1, kind: input, shape index: {}]
  %s2 = inlined_call_operand.hbm [shape: f32[1,128], index: 2, kind: input, shape index: {}]
  %s3 = inlined_call_operand.vmem [shape: bf16[2,5,128], index: 3, kind: output, shape index: {}]
  %s4 = sld [smem:[#allocation0]]
  $region53: #{_lambda_.6} parent=0
    _
  %s6 = ssub.s32 1, %s4
  %s7 = scalar_select 0, %s6, %s4
  $region1: #{_lambda_.6} parent=0
    #allocation2 [shape = 'u8[393216]{0}', space=vmem, size = 0x60000, scoped, tag = 'input window, operand 1, single buffered']
    #allocation3 [shape = 's32[2]{0}', space=sflag, size = 0x8, scoped, tag = 'scoped memory for _lambda_.6']
    #allocation4 [shape = 'u8[512]{0}', space=vmem, size = 0x400, scoped, tag = 'input window, operand 2, single buffered']
    #allocation5 [shape = 's32[1]{0}', space=sflag, size = 0x4, scoped, tag = 'scoped memory for _lambda_.6']
    %8 = vsyncpa [#allocation3], 0
    %9 = vsyncpa [#allocation5], 0
    loop: start=0, step=1, limit=4
    $region2: #{_lambda_.6} parent=1 // loop_pre_header
      _
    $region3: #{_lambda_.6} parent=1 // loop_header
      %s11 = sphi 0, %s15
      %p12 = scmp.ge.s32.totalorder %s11, 4
      %s21 = sphi 0, %s23
      %s24 = sphi 0, %s21
      %s25 = sphi 0, %s24
      %s41 = sphi 0, %s25
      %s45 = sphi 0, %s45
      %s47 = sphi 0, %s45
      %s48 = sphi 0, %s47
      %s62 = sphi 0, %s48
      %s66 = sphi 0, %s66
      %s68 = sphi 0, %s66
      %s69 = sphi 0, %s68
      %s83 = sphi 0, %s69
      %s89 = sphi 0, %s91
      %s92 = sphi 0, %s89
      %s93 = sphi 0, %s92
      %s109 = sphi 0, %s93
    $region4: #{_lambda_.6} parent=1 // loop_header_branch
      %14 = sbr.rel (%p12) target = $region8
    $region5: #{_lambda_.6} parent=1 // loop_body
      %s16 = ssub.s32 %s11, 1
      %s17 = ssub.s32 %s11, 2
      %s18 = sadd.s32 %s11, 1
      %s19 = ssub.s32 %s11, %s18
      %p20 = scmp.eq.s32.totalorder %s19, 0
      %s22 = sadd.s32 %s21, 1
      %s23 = scalar_select %p20, %s21, %s22
      %p26 = pneg %p20
      %p27 = scmp.eq.s32.totalorder %s11, 1
      %p28 = por %p26, %p27
      %p29 = scmp.ne.s32.totalorder %s21, %s24
      %p30 = scmp.eq.s32.totalorder %s11, 0
      %p31 = por %p29, %p30
      %p32 = scmp.ne.s32.totalorder %s21, %s24
      %p33 = scmp.eq.s32.totalorder %s16, 1
      %p34 = por %p32, %p33
      %p35 = scmp.ne.s32.totalorder %s24, %s25
      %p36 = scmp.eq.s32.totalorder %s16, 0
      %p37 = por %p35, %p36
      %p38 = scmp.ne.s32.totalorder %s24, %s25
      %p39 = scmp.eq.s32.totalorder %s17, 1
      %p40 = por %p38, %p39
      %p42 = scmp.ne.s32.totalorder %s25, %s41
      %p43 = scmp.eq.s32.totalorder %s17, 0
      %p44 = por %p42, %p43
      %s46 = sadd.s32 %s45, 1
      %p49 = scmp.eq.s32.totalorder %s11, 1
      %p50 = scmp.ne.s32.totalorder %s45, %s47
      %p51 = scmp.eq.s32.totalorder %s11, 0
      %p52 = por %p50, %p51
      %p53 = scmp.ne.s32.totalorder %s45, %s47
      %p54 = scmp.eq.s32.totalorder %s16, 1
      %p55 = por %p53, %p54
      %p56 = scmp.ne.s32.totalorder %s47, %s48
      %p57 = scmp.eq.s32.totalorder %s16, 0
      %p58 = por %p56, %p57
      %p59 = scmp.ne.s32.totalorder %s47, %s48
      %p60 = scmp.eq.s32.totalorder %s17, 1
      %p61 = por %p59, %p60
      %p63 = scmp.ne.s32.totalorder %s48, %s62
      %p64 = scmp.eq.s32.totalorder %s17, 0
      %p65 = por %p63, %p64
      %s67 = sadd.s32 %s66, 1
      %p70 = scmp.eq.s32.totalorder %s11, 1
      %p71 = scmp.ne.s32.totalorder %s66, %s68
      %p72 = scmp.eq.s32.totalorder %s11, 0
      %p73 = por %p71, %p72
      %p74 = scmp.ne.s32.totalorder %s66, %s68
      %p75 = scmp.eq.s32.totalorder %s16, 1
      %p76 = por %p74, %p75
      %p77 = scmp.ne.s32.totalorder %s68, %s69
      %p78 = scmp.eq.s32.totalorder %s16, 0
      %p79 = por %p77, %p78
      %p80 = scmp.ne.s32.totalorder %s68, %s69
      %p81 = scmp.eq.s32.totalorder %s17, 1
      %p82 = por %p80, %p81
      %p84 = scmp.ne.s32.totalorder %s69, %s83
      %p85 = scmp.eq.s32.totalorder %s17, 0
      %p86 = por %p84, %p85
      %s87 = ssub.s32 %s11, %s18
      %p88 = scmp.eq.s32.totalorder %s87, 0
      %s90 = sadd.s32 %s89, 1
      %s91 = scalar_select %p88, %s89, %s90
      %p94 = pneg %p88
      %p95 = scmp.eq.s32.totalorder %s11, 1
      %p96 = por %p94, %p95
      %p97 = scmp.ne.s32.totalorder %s89, %s92
      %p98 = scmp.eq.s32.totalorder %s11, 0
      %p99 = por %p97, %p98
      %p100 = scmp.ne.s32.totalorder %s89, %s92
      %p101 = scmp.eq.s32.totalorder %s16, 1
      %p102 = por %p100, %p101
      %p103 = scmp.ne.s32.totalorder %s92, %s93
      %p104 = scmp.eq.s32.totalorder %s16, 0
      %p105 = por %p103, %p104
      %p106 = scmp.ne.s32.totalorder %s92, %s93
      %p107 = scmp.eq.s32.totalorder %s17, 1
      %p108 = por %p106, %p107
      %p110 = scmp.ne.s32.totalorder %s93, %s109
      %p111 = scmp.eq.s32.totalorder %s17, 0
      %p112 = por %p110, %p111
      %p113 = scmp.le.s32.totalorder 1, %s11
      %p114 = scmp.lt.s32.totalorder %s11, 3
      %p115 = pnand %p113, %p114
      %p116 = pneg %p115
      // Predicated region
      $region9: #{_lambda_.6} parent=5 // pred_check
        _
      $region10: #{_lambda_.6} parent=5 // pred_check_branch
        %118 = sbr.rel (%p115) target = $region12
      $region11: #{_lambda_.6} parent=5 // pred_region
        %s119 = ssub.s32 %s11, 1
        // Predicated region
        $region13: #{_lambda_.6} parent=11 // pred_check
          %p120 = pneg %p58
        $region14: #{_lambda_.6} parent=11 // pred_check_branch
          %122 = sbr.rel (%p120) target = $region16
        $region15: #{_lambda_.6} parent=11 // pred_region
          %124 = vsyncadd [#allocation3], 0
          %s125 = sshll.u32 %s1, 4
          %s126 = int_to_ptr.hbm [resolvable:$true] %s125
          %s127 = sshll.u32 [#allocation2], 4
          %s128 = int_to_ptr.vmem [resolvable:$true] %s127
          %133 = dma.hbm_to_vmem [thread:$0]  %s126, 12288, %s128, [#allocation3], 128, 128, 8
        $region16: #{_lambda_.6} parent=11 // pred_fallthru
          _
        // Predicated region
        $region17: #{_lambda_.6} parent=11 // pred_check
          %p134 = pneg %p79
        $region18: #{_lambda_.6} parent=11 // pred_check_branch
          %136 = sbr.rel (%p134) target = $region20
        $region19: #{_lambda_.6} parent=11 // pred_region
          %138 = vsyncadd [#allocation5], 0
          %s140 = sshll.u32 %s2, 4
          %s141 = int_to_ptr.hbm [resolvable:$true] %s140
          %s142 = sshll.u32 [#allocation4], 4
          %s143 = int_to_ptr.vmem [resolvable:$true] %s142
          %145 = dma.hbm_to_vmem [thread:$0]  %s141, 16, %s143, [#allocation5]
        $region20: #{_lambda_.6} parent=11 // pred_fallthru
          _
      $region12: #{_lambda_.6} parent=5 // pred_fallthru
        _
      %p146 = scmp.lt.s32.totalorder %s11, 2
      // Predicated region
      $region21: #{_lambda_.6} parent=5 // pred_check
        %p147 = pneg %p146
      $region22: #{_lambda_.6} parent=5 // pred_check_branch
        %149 = sbr.rel (%p147) target = $region24
      $region23: #{_lambda_.6} parent=5 // pred_region
        // Predicated region
        $region25: #{_lambda_.6} parent=23 // pred_check
          %p150 = pneg %p31
        $region26: #{_lambda_.6} parent=23 // pred_check_branch
          %152 = sbr.rel (%p150) target = $region28
        $region27: #{_lambda_.6} parent=23 // pred_region
          %p153 = scmp.lt.s32.totalorder %s11, 1
          %s154 = scalar_select %p153, %s11, 1
          %s155 = smul.addr %s154, 4
          %s156 = smul.addr %s155, 4
          %s157 = scalar_lea.vmem %s0, %s156
        $region28: #{_lambda_.6} parent=23 // pred_fallthru
          _
      $region24: #{_lambda_.6} parent=5 // pred_fallthru
        _
      %p158 = scmp.le.s32.totalorder 1, %s11
      %p159 = scmp.lt.s32.totalorder %s11, 3
      %p160 = pnand %p158, %p159
      %p161 = pneg %p160
      // Predicated region
      $region29: #{_lambda_.6} parent=5 // pred_check
        _
      $region30: #{_lambda_.6} parent=5 // pred_check_branch
        %163 = sbr.rel (%p160) target = $region32
      $region31: #{_lambda_.6} parent=5 // pred_region
        %s164 = ssub.s32 %s11, 1
        // Predicated region
        $region33: #{_lambda_.6} parent=31 // pred_check
          %p165 = pneg %p58
        $region34: #{_lambda_.6} parent=31 // pred_check_branch
          %167 = sbr.rel (%p165) target = $region36
        $region35: #{_lambda_.6} parent=31 // pred_region
          %169 = dma.done [#allocation3], 12288
        $region36: #{_lambda_.6} parent=31 // pred_fallthru
          _
        // Predicated region
        $region37: #{_lambda_.6} parent=31 // pred_check
          %p170 = pneg %p79
        $region38: #{_lambda_.6} parent=31 // pred_check_branch
          %172 = sbr.rel (%p170) target = $region40
        $region39: #{_lambda_.6} parent=31 // pred_region
          %174 = dma.done [#allocation5], 16
        $region40: #{_lambda_.6} parent=31 // pred_fallthru
          _
        %p175 = scmp.lt.s32.totalorder %s16, 1
        %s176 = scalar_select %p175, %s16, 1
        %s177 = smul.addr %s176, 4
        %s178 = smul.addr %s177, 4
        %s179 = scalar_lea.vmem %s0, %s178
        %p180 = pneg %p37
        %p181 = pneg %p34
        %p182 = pneg %p58
        %p183 = pneg %p55
        %p184 = pneg %p79
        %p185 = pneg %p76
        %p186 = pneg %p105
        %p187 = pneg %p102
        %p188 = scmp.lt.s32.totalorder %s16, 1
        %s189 = scalar_select %p188, %s16, 1
        %s190 = smul.addr %s189, 4
        %s191 = scalar_lea.vmem %s3, %s190
        %p192 = scmp.lt.s32.totalorder %s16, 1
        %s193 = scalar_select %p192, %s16, 1
        %s194 = smul.addr %s193, 4
        %s195 = smul.addr %s194, 4
        %s196 = scalar_lea.vmem %s0, %s195
        %p197 = scmp.lt.s32.totalorder %s16, 1
        %s198 = scalar_select %p197, %s16, 1
        %s199 = smul.addr %s198, 4
        %s200 = scalar_lea.vmem %s3, %s199
        %v201 = vld [vmem:[#allocation2] sm:$0xff]
        %v202 = vld [vmem:[#allocation2 + $0x8] sm:$0xff]
        %v203 = vld [vmem:[#allocation2 + $0x10] sm:$0xff]
        %v204 = vld [vmem:[#allocation2 + $0x18] sm:$0xff]
        %v205 = vld [vmem:[#allocation2 + $0x20] sm:$0xff]
        %v206 = vld [vmem:[#allocation2 + $0x28] sm:$0xff]
        %v207 = vld [vmem:[#allocation2 + $0x30] sm:$0xff]
        %v208 = vld [vmem:[#allocation2 + $0x38] sm:$0xff]
        %v209 = vld [vmem:[#allocation2 + $0x40] sm:$0xff]
        %v210 = vld [vmem:[#allocation2 + $0x48] sm:$0xff]
        %v211 = vld [vmem:[#allocation2 + $0x50] sm:$0xff]
        %v212 = vld [vmem:[#allocation2 + $0x58] sm:$0xff]
        %v213 = vld [vmem:[#allocation2 + $0x60] sm:$0xff]
        %v214 = vld [vmem:[#allocation2 + $0x68] sm:$0xff]
        %v215 = vld [vmem:[#allocation2 + $0x70] sm:$0xff]
        %v216 = vld [vmem:[#allocation2 + $0x78] sm:$0xff]
        %v217 = vld [vmem:[#allocation2 + $0x80] sm:$0xff]
        %v218 = vld [vmem:[#allocation2 + $0x88] sm:$0xff]
        %v219 = vld [vmem:[#allocation2 + $0x90] sm:$0xff]
        %v220 = vld [vmem:[#allocation2 + $0x98] sm:$0xff]
        %v221 = vld [vmem:[#allocation2 + $0xa0] sm:$0xff]
        %v222 = vld [vmem:[#allocation2 + $0xa8] sm:$0xff]
        %v223 = vld [vmem:[#allocation2 + $0xb0] sm:$0xff]
        %v224 = vld [vmem:[#allocation2 + $0xb8] sm:$0xff]
        %v225 = vld [vmem:[#allocation2 + $0xc0] sm:$0xff]
        %v226 = vld [vmem:[#allocation2 + $0xc8] sm:$0xff]
        %v227 = vld [vmem:[#allocation2 + $0xd0] sm:$0xff]
        %v228 = vld [vmem:[#allocation2 + $0xd8] sm:$0xff]
        %v229 = vld [vmem:[#allocation2 + $0xe0] sm:$0xff]
        %v230 = vld [vmem:[#allocation2 + $0xe8] sm:$0xff]
        %v231 = vld [vmem:[#allocation2 + $0xf0] sm:$0xff]
        %v232 = vld [vmem:[#allocation2 + $0xf8] sm:$0xff]
        %v233 = vld [vmem:[#allocation2 + $0x100] sm:$0xff]
        %v234 = vld [vmem:[#allocation2 + $0x108] sm:$0xff]
        %v235 = vld [vmem:[#allocation2 + $0x110] sm:$0xff]
        %v236 = vld [vmem:[#allocation2 + $0x118] sm:$0xff]
        %v237 = vld [vmem:[#allocation2 + $0x120] sm:$0xff]
        %v238 = vld [vmem:[#allocation2 + $0x128] sm:$0xff]
        %v239 = vld [vmem:[#allocation2 + $0x130] sm:$0xff]
        %v240 = vld [vmem:[#allocation2 + $0x138] sm:$0xff]
        %v241 = vld [vmem:[#allocation2 + $0x140] sm:$0xff]
        %v242 = vld [vmem:[#allocation2 + $0x148] sm:$0xff]
        %v243 = vld [vmem:[#allocation2 + $0x150] sm:$0xff]
        %v244 = vld [vmem:[#allocation2 + $0x158] sm:$0xff]
        %v245 = vld [vmem:[#allocation2 + $0x160] sm:$0xff]
        %v246 = vld [vmem:[#allocation2 + $0x168] sm:$0xff]
        %v247 = vld [vmem:[#allocation2 + $0x170] sm:$0xff]
        %v248 = vld [vmem:[#allocation2 + $0x178] sm:$0xff]
        %v249 = vld [vmem:[#allocation2 + $0x180] sm:$0xff]
        %v250 = vld [vmem:[#allocation2 + $0x188] sm:$0xff]
        %v251 = vld [vmem:[#allocation2 + $0x190] sm:$0xff]
        %v252 = vld [vmem:[#allocation2 + $0x198] sm:$0xff]
        %v253 = vld [vmem:[#allocation2 + $0x1a0] sm:$0xff]
        %v254 = vld [vmem:[#allocation2 + $0x1a8] sm:$0xff]
        %v255 = vld [vmem:[#allocation2 + $0x1b0] sm:$0xff]
        %v256 = vld [vmem:[#allocation2 + $0x1b8] sm:$0xff]
        %v257 = vld [vmem:[#allocation2 + $0x1c0] sm:$0xff]
        %v258 = vld [vmem:[#allocation2 + $0x1c8] sm:$0xff]
        %v259 = vld [vmem:[#allocation2 + $0x1d0] sm:$0xff]
        %v260 = vld [vmem:[#allocation2 + $0x1d8] sm:$0xff]
        %v261 = vld [vmem:[#allocation2 + $0x1e0] sm:$0xff]
        %v262 = vld [vmem:[#allocation2 + $0x1e8] sm:$0xff]
        %v263 = vld [vmem:[#allocation2 + $0x1f0] sm:$0xff]
        %v264 = vld [vmem:[#allocation2 + $0x1f8] sm:$0xff]
        %v265 = vld [vmem:[#allocation2 + $0x200] sm:$0xff]
        %v266 = vld [vmem:[#allocation2 + $0x208] sm:$0xff]
        %v267 = vld [vmem:[#allocation2 + $0x210] sm:$0xff]
        %v268 = vld [vmem:[#allocation2 + $0x218] sm:$0xff]
        %v269 = vld [vmem:[#allocation2 + $0x220] sm:$0xff]
        %v270 = vld [vmem:[#allocation2 + $0x228] sm:$0xff]
        %v271 = vld [vmem:[#allocation2 + $0x230] sm:$0xff]
        %v272 = vld [vmem:[#allocation2 + $0x238] sm:$0xff]
        %v273 = vld [vmem:[#allocation2 + $0x240] sm:$0xff]
        %v274 = vld [vmem:[#allocation2 + $0x248] sm:$0xff]
        %v275 = vld [vmem:[#allocation2 + $0x250] sm:$0xff]
        %v276 = vld [vmem:[#allocation2 + $0x258] sm:$0xff]
        %v277 = vld [vmem:[#allocation2 + $0x260] sm:$0xff]
        %v278 = vld [vmem:[#allocation2 + $0x268] sm:$0xff]
        %v279 = vld [vmem:[#allocation2 + $0x270] sm:$0xff]
        %v280 = vld [vmem:[#allocation2 + $0x278] sm:$0xff]
        %v281 = vld [vmem:[#allocation2 + $0x280] sm:$0xff]
        %v282 = vld [vmem:[#allocation2 + $0x288] sm:$0xff]
        %v283 = vld [vmem:[#allocation2 + $0x290] sm:$0xff]
        %v284 = vld [vmem:[#allocation2 + $0x298] sm:$0xff]
        %v285 = vld [vmem:[#allocation2 + $0x2a0] sm:$0xff]
        %v286 = vld [vmem:[#allocation2 + $0x2a8] sm:$0xff]
        %v287 = vld [vmem:[#allocation2 + $0x2b0] sm:$0xff]
        %v288 = vld [vmem:[#allocation2 + $0x2b8] sm:$0xff]
        %v289 = vld [vmem:[#allocation2 + $0x2c0] sm:$0xff]
        %v290 = vld [vmem:[#allocation2 + $0x2c8] sm:$0xff]
        %v291 = vld [vmem:[#allocation2 + $0x2d0] sm:$0xff]
        %v292 = vld [vmem:[#allocation2 + $0x2d8] sm:$0xff]
        %v293 = vld [vmem:[#allocation2 + $0x2e0] sm:$0xff]
        %v294 = vld [vmem:[#allocation2 + $0x2e8] sm:$0xff]
        %v295 = vld [vmem:[#allocation2 + $0x2f0] sm:$0xff]
        %v296 = vld [vmem:[#allocation2 + $0x2f8] sm:$0xff]
        %v297 = vld [vmem:[#allocation4] sm:$0x1]
        %v298 = vld [vmem:[%s196] sm:$0x77]
        %v299 = vld [vmem:[%s196 + $0x8] sm:$0x77]
        %v301 = vunpack.c.l.b16 %v298
        %v302 = vunpack.c.h.b16 %v298
        %v303 = vpack.c.b16 %v301, %v301
        %v304 = vpack.c.b16 %v302, %v302
        %v308 = vunpack.c.l.b16 %v299
        %v309 = vunpack.c.h.b16 %v299
        %v310 = vpack.c.b16 %v308, %v308
        %v311 = vpack.c.b16 %v309, %v309
        %v315 = vshrl.u32 %v303, 16
        %v317 = vshll.u32 %v303, 16
        %v319 = vrot.slane %v317, 1
        %v320 = vor.u32 %v315, %v319
        %v322 = vshrl.u32 %v304, 16
        %v324 = vshll.u32 %v304, 16
        %v326 = vrot.slane %v324, 1
        %v327 = vor.u32 %v322, %v326
        %v426 = vunpack.c.l.b16 %v201
        %v427 = vunpack.c.h.b16 %v201
        %v428 = vunpack.c.l.b16 %v202
        %v429 = vunpack.c.h.b16 %v202
        %v430 = vunpack.c.l.b16 %v203
        %v431 = vunpack.c.h.b16 %v203
        %v432 = vunpack.c.l.b16 %v204
        %v433 = vunpack.c.h.b16 %v204
        %v434 = vunpack.c.l.b16 %v205
        %v435 = vunpack.c.h.b16 %v205
        %v436 = vunpack.c.l.b16 %v206
        %v437 = vunpack.c.h.b16 %v206
        %v438 = vunpack.c.l.b16 %v207
        %v439 = vunpack.c.h.b16 %v207
        %v440 = vunpack.c.l.b16 %v208
        %v441 = vunpack.c.h.b16 %v208
        %v442 = vunpack.c.l.b16 %v209
        %v443 = vunpack.c.h.b16 %v209
        %v444 = vunpack.c.l.b16 %v210
        %v445 = vunpack.c.h.b16 %v210
        %v446 = vunpack.c.l.b16 %v211
        %v447 = vunpack.c.h.b16 %v211
        %v448 = vunpack.c.l.b16 %v212
        %v449 = vunpack.c.h.b16 %v212
        %v450 = vunpack.c.l.b16 %v213
        %v451 = vunpack.c.h.b16 %v213
        %v452 = vunpack.c.l.b16 %v214
        %v453 = vunpack.c.h.b16 %v214
        %v454 = vunpack.c.l.b16 %v215
        %v455 = vunpack.c.h.b16 %v215
        %v456 = vunpack.c.l.b16 %v216
        %v457 = vunpack.c.h.b16 %v216
        %v458 = vunpack.c.l.b16 %v217
        %v459 = vunpack.c.h.b16 %v217
        %v460 = vunpack.c.l.b16 %v218
        %v461 = vunpack.c.h.b16 %v218
        %v462 = vunpack.c.l.b16 %v219
        %v463 = vunpack.c.h.b16 %v219
        %v464 = vunpack.c.l.b16 %v220
        %v465 = vunpack.c.h.b16 %v220
        %v466 = vunpack.c.l.b16 %v221
        %v467 = vunpack.c.h.b16 %v221
        %v468 = vunpack.c.l.b16 %v222
        %v469 = vunpack.c.h.b16 %v222
        %v470 = vunpack.c.l.b16 %v223
        %v471 = vunpack.c.h.b16 %v223
        %v472 = vunpack.c.l.b16 %v224
        %v473 = vunpack.c.h.b16 %v224
        %v474 = vunpack.c.l.b16 %v225
        %v475 = vunpack.c.h.b16 %v225
        %v476 = vunpack.c.l.b16 %v226
        %v477 = vunpack.c.h.b16 %v226
        %v478 = vunpack.c.l.b16 %v227
        %v479 = vunpack.c.h.b16 %v227
        %v480 = vunpack.c.l.b16 %v228
        %v481 = vunpack.c.h.b16 %v228
        %v482 = vunpack.c.l.b16 %v229
        %v483 = vunpack.c.h.b16 %v229
        %v484 = vunpack.c.l.b16 %v230
        %v485 = vunpack.c.h.b16 %v230
        %v486 = vunpack.c.l.b16 %v231
        %v487 = vunpack.c.h.b16 %v231
        %v488 = vunpack.c.l.b16 %v232
        %v489 = vunpack.c.h.b16 %v232
        %v490 = vunpack.c.l.b16 %v233
        %v491 = vunpack.c.h.b16 %v233
        %v492 = vunpack.c.l.b16 %v234
        %v493 = vunpack.c.h.b16 %v234
        %v494 = vunpack.c.l.b16 %v235
        %v495 = vunpack.c.h.b16 %v235
        %v496 = vunpack.c.l.b16 %v236
        %v497 = vunpack.c.h.b16 %v236
        %v498 = vunpack.c.l.b16 %v237
        %v499 = vunpack.c.h.b16 %v237
        %v500 = vunpack.c.l.b16 %v238
        %v501 = vunpack.c.h.b16 %v238
        %v502 = vunpack.c.l.b16 %v239
        %v503 = vunpack.c.h.b16 %v239
        %v504 = vunpack.c.l.b16 %v240
        %v505 = vunpack.c.h.b16 %v240
        %v506 = vunpack.c.l.b16 %v241
        %v507 = vunpack.c.h.b16 %v241
        %v508 = vunpack.c.l.b16 %v242
        %v509 = vunpack.c.h.b16 %v242
        %v510 = vunpack.c.l.b16 %v243
        %v511 = vunpack.c.h.b16 %v243
        %v512 = vunpack.c.l.b16 %v244
        %v513 = vunpack.c.h.b16 %v244
        %v514 = vunpack.c.l.b16 %v245
        %v515 = vunpack.c.h.b16 %v245
        %v516 = vunpack.c.l.b16 %v246
        %v517 = vunpack.c.h.b16 %v246
        %v518 = vunpack.c.l.b16 %v247
        %v519 = vunpack.c.h.b16 %v247
        %v520 = vunpack.c.l.b16 %v248
        %v521 = vunpack.c.h.b16 %v248
        %v522 = vunpack.c.l.b16 %v249
        %v523 = vunpack.c.h.b16 %v249
        %v524 = vunpack.c.l.b16 %v250
        %v525 = vunpack.c.h.b16 %v250
        %v526 = vunpack.c.l.b16 %v251
        %v527 = vunpack.c.h.b16 %v251
        %v528 = vunpack.c.l.b16 %v252
        %v529 = vunpack.c.h.b16 %v252
        %v530 = vunpack.c.l.b16 %v253
        %v531 = vunpack.c.h.b16 %v253
        %v532 = vunpack.c.l.b16 %v254
        %v533 = vunpack.c.h.b16 %v254
        %v534 = vunpack.c.l.b16 %v255
        %v535 = vunpack.c.h.b16 %v255
        %v536 = vunpack.c.l.b16 %v256
        %v537 = vunpack.c.h.b16 %v256
        %v538 = vunpack.c.l.b16 %v257
        %v539 = vunpack.c.h.b16 %v257
        %v540 = vunpack.c.l.b16 %v258
        %v541 = vunpack.c.h.b16 %v258
        %v542 = vunpack.c.l.b16 %v259
        %v543 = vunpack.c.h.b16 %v259
        %v544 = vunpack.c.l.b16 %v260
        %v545 = vunpack.c.h.b16 %v260
        %v546 = vunpack.c.l.b16 %v261
        %v547 = vunpack.c.h.b16 %v261
        %v548 = vunpack.c.l.b16 %v262
        %v549 = vunpack.c.h.b16 %v262
        %v550 = vunpack.c.l.b16 %v263
        %v551 = vunpack.c.h.b16 %v263
        %v552 = vunpack.c.l.b16 %v264
        %v553 = vunpack.c.h.b16 %v264
        %v554 = vunpack.c.l.b16 %v265
        %v555 = vunpack.c.h.b16 %v265
        %v556 = vunpack.c.l.b16 %v266
        %v557 = vunpack.c.h.b16 %v266
        %v558 = vunpack.c.l.b16 %v267
        %v559 = vunpack.c.h.b16 %v267
        %v560 = vunpack.c.l.b16 %v268
        %v561 = vunpack.c.h.b16 %v268
        %v562 = vunpack.c.l.b16 %v269
        %v563 = vunpack.c.h.b16 %v269
        %v564 = vunpack.c.l.b16 %v270
        %v565 = vunpack.c.h.b16 %v270
        %v566 = vunpack.c.l.b16 %v271
        %v567 = vunpack.c.h.b16 %v271
        %v568 = vunpack.c.l.b16 %v272
        %v569 = vunpack.c.h.b16 %v272
        %v570 = vunpack.c.l.b16 %v273
        %v571 = vunpack.c.h.b16 %v273
        %v572 = vunpack.c.l.b16 %v274
        %v573 = vunpack.c.h.b16 %v274
        %v574 = vunpack.c.l.b16 %v275
        %v575 = vunpack.c.h.b16 %v275
        %v576 = vunpack.c.l.b16 %v276
        %v577 = vunpack.c.h.b16 %v276
        %v578 = vunpack.c.l.b16 %v277
        %v579 = vunpack.c.h.b16 %v277
        %v580 = vunpack.c.l.b16 %v278
        %v581 = vunpack.c.h.b16 %v278
        %v582 = vunpack.c.l.b16 %v279
        %v583 = vunpack.c.h.b16 %v279
        %v584 = vunpack.c.l.b16 %v280
        %v585 = vunpack.c.h.b16 %v280
        %v586 = vunpack.c.l.b16 %v281
        %v587 = vunpack.c.h.b16 %v281
        %v588 = vunpack.c.l.b16 %v282
        %v589 = vunpack.c.h.b16 %v282
        %v590 = vunpack.c.l.b16 %v283
        %v591 = vunpack.c.h.b16 %v283
        %v592 = vunpack.c.l.b16 %v284
        %v593 = vunpack.c.h.b16 %v284
        %v594 = vunpack.c.l.b16 %v285
        %v595 = vunpack.c.h.b16 %v285
        %v596 = vunpack.c.l.b16 %v286
        %v597 = vunpack.c.h.b16 %v286
        %v598 = vunpack.c.l.b16 %v287
        %v599 = vunpack.c.h.b16 %v287
        %v600 = vunpack.c.l.b16 %v288
        %v601 = vunpack.c.h.b16 %v288
        %v602 = vunpack.c.l.b16 %v289
        %v603 = vunpack.c.h.b16 %v289
        %v604 = vunpack.c.l.b16 %v290
        %v605 = vunpack.c.h.b16 %v290
        %v606 = vunpack.c.l.b16 %v291
        %v607 = vunpack.c.h.b16 %v291
        %v608 = vunpack.c.l.b16 %v292
        %v609 = vunpack.c.h.b16 %v292
        %v610 = vunpack.c.l.b16 %v293
        %v611 = vunpack.c.h.b16 %v293
        %v612 = vunpack.c.l.b16 %v294
        %v613 = vunpack.c.h.b16 %v294
        %v614 = vunpack.c.l.b16 %v295
        %v615 = vunpack.c.h.b16 %v295
        %v616 = vunpack.c.l.b16 %v296
        %v617 = vunpack.c.h.b16 %v296
        %v618 = vpack.c.b16 %v428, %v426
        %v619 = vpack.c.b16 %v429, %v427
        %v620 = vpack.c.b16 %v432, %v430
        %v621 = vpack.c.b16 %v433, %v431
        %v622 = vpack.c.b16 %v436, %v434
        %v623 = vpack.c.b16 %v437, %v435
        %v624 = vpack.c.b16 %v440, %v438
        %v625 = vpack.c.b16 %v441, %v439
        %v626 = vpack.c.b16 %v444, %v442
        %v627 = vpack.c.b16 %v445, %v443
        %v628 = vpack.c.b16 %v448, %v446
        %v629 = vpack.c.b16 %v449, %v447
        %v630 = vpack.c.b16 %v452, %v450
        %v631 = vpack.c.b16 %v453, %v451
        %v632 = vpack.c.b16 %v456, %v454
        %v633 = vpack.c.b16 %v457, %v455
        %v634 = vpack.c.b16 %v460, %v458
        %v635 = vpack.c.b16 %v461, %v459
        %v636 = vpack.c.b16 %v464, %v462
        %v637 = vpack.c.b16 %v465, %v463
        %v638 = vpack.c.b16 %v468, %v466
        %v639 = vpack.c.b16 %v469, %v467
        %v640 = vpack.c.b16 %v472, %v470
        %v641 = vpack.c.b16 %v473, %v471
        %v642 = vpack.c.b16 %v476, %v474
        %v643 = vpack.c.b16 %v477, %v475
        %v644 = vpack.c.b16 %v480, %v478
        %v645 = vpack.c.b16 %v481, %v479
        %v646 = vpack.c.b16 %v484, %v482
        %v647 = vpack.c.b16 %v485, %v483
        %v648 = vpack.c.b16 %v488, %v486
        %v649 = vpack.c.b16 %v489, %v487
        %v650 = vpack.c.b16 %v492, %v490
        %v651 = vpack.c.b16 %v493, %v491
        %v652 = vpack.c.b16 %v496, %v494
        %v653 = vpack.c.b16 %v497, %v495
        %v654 = vpack.c.b16 %v500, %v498
        %v655 = vpack.c.b16 %v501, %v499
        %v656 = vpack.c.b16 %v504, %v502
        %v657 = vpack.c.b16 %v505, %v503
        %v658 = vpack.c.b16 %v508, %v506
        %v659 = vpack.c.b16 %v509, %v507
        %v660 = vpack.c.b16 %v512, %v510
        %v661 = vpack.c.b16 %v513, %v511
        %v662 = vpack.c.b16 %v516, %v514
        %v663 = vpack.c.b16 %v517, %v515
        %v664 = vpack.c.b16 %v520, %v518
        %v665 = vpack.c.b16 %v521, %v519
        %v666 = vpack.c.b16 %v524, %v522
        %v667 = vpack.c.b16 %v525, %v523
        %v668 = vpack.c.b16 %v528, %v526
        %v669 = vpack.c.b16 %v529, %v527
        %v670 = vpack.c.b16 %v532, %v530
        %v671 = vpack.c.b16 %v533, %v531
        %v672 = vpack.c.b16 %v536, %v534
        %v673 = vpack.c.b16 %v537, %v535
        %v674 = vpack.c.b16 %v540, %v538
        %v675 = vpack.c.b16 %v541, %v539
        %v676 = vpack.c.b16 %v544, %v542
        %v677 = vpack.c.b16 %v545, %v543
        %v678 = vpack.c.b16 %v548, %v546
        %v679 = vpack.c.b16 %v549, %v547
        %v680 = vpack.c.b16 %v552, %v550
        %v681 = vpack.c.b16 %v553, %v551
        %v682 = vpack.c.b16 %v556, %v554
        %v683 = vpack.c.b16 %v557, %v555
        %v684 = vpack.c.b16 %v560, %v558
        %v685 = vpack.c.b16 %v561, %v559
        %v686 = vpack.c.b16 %v564, %v562
        %v687 = vpack.c.b16 %v565, %v563
        %v688 = vpack.c.b16 %v568, %v566
        %v689 = vpack.c.b16 %v569, %v567
        %v690 = vpack.c.b16 %v572, %v570
        %v691 = vpack.c.b16 %v573, %v571
        %v692 = vpack.c.b16 %v576, %v574
        %v693 = vpack.c.b16 %v577, %v575
        %v694 = vpack.c.b16 %v580, %v578
        %v695 = vpack.c.b16 %v581, %v579
        %v696 = vpack.c.b16 %v584, %v582
        %v697 = vpack.c.b16 %v585, %v583
        %v698 = vpack.c.b16 %v588, %v586
        %v699 = vpack.c.b16 %v589, %v587
        %v700 = vpack.c.b16 %v592, %v590
        %v701 = vpack.c.b16 %v593, %v591
        %v702 = vpack.c.b16 %v596, %v594
        %v703 = vpack.c.b16 %v597, %v595
        %v704 = vpack.c.b16 %v600, %v598
        %v705 = vpack.c.b16 %v601, %v599
        %v706 = vpack.c.b16 %v604, %v602
        %v707 = vpack.c.b16 %v605, %v603
        %v708 = vpack.c.b16 %v608, %v606
        %v709 = vpack.c.b16 %v609, %v607
        %v710 = vpack.c.b16 %v612, %v610
        %v711 = vpack.c.b16 %v613, %v611
        %v712 = vpack.c.b16 %v616, %v614
        %v713 = vpack.c.b16 %v617, %v615
        %810 = vmatpush.bf16.msra.mxu0 %v632
        %811 = vmatpush.bf16.msra.mxu0 %v630
        %812 = vmatpush.bf16.msra.mxu0 %v628
        %813 = vmatpush.bf16.msra.mxu0 %v626
        %814 = vmatpush.bf16.msra.mxu0 %v624
        %815 = vmatpush.bf16.msra.mxu0 %v622
        %816 = vmatpush.bf16.msra.mxu0 %v620
        %817 = vmatpush.bf16.msra.mxu0 %v618
        %818 = vmatmul.bf16.gmra.mxu0 %v303
        %v819 = vpop.f32.mrf.mxu0
        %v820 = vadd.f32 0.0, %v819
        %v821 = vpop.f32.mrf.mxu0
        %822 = vdwg.mxu0
        %823 = vmatpush.bf16.msra.mxu0 %v648
        %824 = vmatpush.bf16.msra.mxu0 %v646
        %825 = vmatpush.bf16.msra.mxu0 %v644
        %826 = vmatpush.bf16.msra.mxu0 %v642
        %827 = vmatpush.bf16.msra.mxu0 %v640
        %828 = vmatpush.bf16.msra.mxu0 %v638
        %829 = vmatpush.bf16.msra.mxu0 %v636
        %830 = vmatpush.bf16.msra.mxu0 %v634
        %831 = vmatmul.bf16.gmra.mxu0 %v304
        %v832 = vpop.f32.mrf.mxu0
        %v833 = vadd.f32 %v820, %v832
        %v834 = vpop.f32.mrf.mxu0
        %835 = vdwg.mxu0
        %836 = vmatpush.bf16.msra.mxu0 %v664
        %837 = vmatpush.bf16.msra.mxu0 %v662
        %838 = vmatpush.bf16.msra.mxu0 %v660
        %839 = vmatpush.bf16.msra.mxu0 %v658
        %840 = vmatpush.bf16.msra.mxu0 %v656
        %841 = vmatpush.bf16.msra.mxu0 %v654
        %842 = vmatpush.bf16.msra.mxu0 %v652
        %843 = vmatpush.bf16.msra.mxu0 %v650
        %844 = vmatmul.bf16.gmra.mxu0 %v310
        %v845 = vpop.f32.mrf.mxu0
        %v846 = vadd.f32 %v833, %v845
        %v847 = vpop.f32.mrf.mxu0
        %848 = vdwg.mxu0
        %849 = vmatpush.bf16.msra.mxu0 %v680
        %850 = vmatpush.bf16.msra.mxu0 %v678
        %851 = vmatpush.bf16.msra.mxu0 %v676
        %852 = vmatpush.bf16.msra.mxu0 %v674
        %853 = vmatpush.bf16.msra.mxu0 %v672
        %854 = vmatpush.bf16.msra.mxu0 %v670
        %855 = vmatpush.bf16.msra.mxu0 %v668
        %856 = vmatpush.bf16.msra.mxu0 %v666
        %857 = vmatmul.bf16.gmra.mxu0 %v311
        %v858 = vpop.f32.mrf.mxu0
        %v859 = vadd.f32 %v846, %v858
        %v860 = vpop.f32.mrf.mxu0
        %861 = vdwg.mxu0
        %862 = vmatpush.bf16.msra.mxu0 %v696
        %863 = vmatpush.bf16.msra.mxu0 %v694
        %864 = vmatpush.bf16.msra.mxu0 %v692
        %865 = vmatpush.bf16.msra.mxu0 %v690
        %866 = vmatpush.bf16.msra.mxu0 %v688
        %867 = vmatpush.bf16.msra.mxu0 %v686
        %868 = vmatpush.bf16.msra.mxu0 %v684
        %869 = vmatpush.bf16.msra.mxu0 %v682
        %870 = vmatmul.bf16.gmra.mxu0 %v320
        %v871 = vpop.f32.mrf.mxu0
        %v872 = vadd.f32 %v859, %v871
        %v873 = vpop.f32.mrf.mxu0
        %874 = vdwg.mxu0
        %875 = vmatpush.bf16.msra.mxu0 %v712
        %876 = vmatpush.bf16.msra.mxu0 %v710
        %877 = vmatpush.bf16.msra.mxu0 %v708
        %878 = vmatpush.bf16.msra.mxu0 %v706
        %879 = vmatpush.bf16.msra.mxu0 %v704
        %880 = vmatpush.bf16.msra.mxu0 %v702
        %881 = vmatpush.bf16.msra.mxu0 %v700
        %882 = vmatpush.bf16.msra.mxu0 %v698
        %883 = vmatmul.bf16.gmra.mxu0 %v327
        %v884 = vpop.f32.mrf.mxu0
        %v885 = vadd.f32 %v872, %v884
        %v886 = vpop.f32.mrf.mxu0
        %887 = vdwg.mxu0
        %888 = vmatpush.bf16.msra.mxu0 %v633
        %889 = vmatpush.bf16.msra.mxu0 %v631
        %890 = vmatpush.bf16.msra.mxu0 %v629
        %891 = vmatpush.bf16.msra.mxu0 %v627
        %892 = vmatpush.bf16.msra.mxu0 %v625
        %893 = vmatpush.bf16.msra.mxu0 %v623
        %894 = vmatpush.bf16.msra.mxu0 %v621
        %895 = vmatpush.bf16.msra.mxu0 %v619
        %896 = vmatmul.bf16.gmra.mxu0 %v303
        %v897 = vpop.f32.mrf.mxu0
        %v898 = vadd.f32 0.0, %v897
        %v899 = vpop.f32.mrf.mxu0
        %900 = vdwg.mxu0
        %901 = vmatpush.bf16.msra.mxu0 %v649
        %902 = vmatpush.bf16.msra.mxu0 %v647
        %903 = vmatpush.bf16.msra.mxu0 %v645
        %904 = vmatpush.bf16.msra.mxu0 %v643
        %905 = vmatpush.bf16.msra.mxu0 %v641
        %906 = vmatpush.bf16.msra.mxu0 %v639
        %907 = vmatpush.bf16.msra.mxu0 %v637
        %908 = vmatpush.bf16.msra.mxu0 %v635
        %909 = vmatmul.bf16.gmra.mxu0 %v304
        %v910 = vpop.f32.mrf.mxu0
        %v911 = vadd.f32 %v898, %v910
        %v912 = vpop.f32.mrf.mxu0
        %913 = vdwg.mxu0
        %914 = vmatpush.bf16.msra.mxu0 %v665
        %915 = vmatpush.bf16.msra.mxu0 %v663
        %916 = vmatpush.bf16.msra.mxu0 %v661
        %917 = vmatpush.bf16.msra.mxu0 %v659
        %918 = vmatpush.bf16.msra.mxu0 %v657
        %919 = vmatpush.bf16.msra.mxu0 %v655
        %920 = vmatpush.bf16.msra.mxu0 %v653
        %921 = vmatpush.bf16.msra.mxu0 %v651
        %922 = vmatmul.bf16.gmra.mxu0 %v310
        %v923 = vpop.f32.mrf.mxu0
        %v924 = vadd.f32 %v911, %v923
        %v925 = vpop.f32.mrf.mxu0
        %926 = vdwg.mxu0
        %927 = vmatpush.bf16.msra.mxu0 %v681
        %928 = vmatpush.bf16.msra.mxu0 %v679
        %929 = vmatpush.bf16.msra.mxu0 %v677
        %930 = vmatpush.bf16.msra.mxu0 %v675
        %931 = vmatpush.bf16.msra.mxu0 %v673
        %932 = vmatpush.bf16.msra.mxu0 %v671
        %933 = vmatpush.bf16.msra.mxu0 %v669
        %934 = vmatpush.bf16.msra.mxu0 %v667
        %935 = vmatmul.bf16.gmra.mxu0 %v311
        %v936 = vpop.f32.mrf.mxu0
        %v937 = vadd.f32 %v924, %v936
        %v938 = vpop.f32.mrf.mxu0
        %939 = vdwg.mxu0
        %940 = vmatpush.bf16.msra.mxu0 %v697
        %941 = vmatpush.bf16.msra.mxu0 %v695
        %942 = vmatpush.bf16.msra.mxu0 %v693
        %943 = vmatpush.bf16.msra.mxu0 %v691
        %944 = vmatpush.bf16.msra.mxu0 %v689
        %945 = vmatpush.bf16.msra.mxu0 %v687
        %946 = vmatpush.bf16.msra.mxu0 %v685
        %947 = vmatpush.bf16.msra.mxu0 %v683
        %948 = vmatmul.bf16.gmra.mxu0 %v320
        %v949 = vpop.f32.mrf.mxu0
        %v950 = vadd.f32 %v937, %v949
        %v951 = vpop.f32.mrf.mxu0
        %952 = vdwg.mxu0
        %953 = vmatpush.bf16.msra.mxu0 %v713
        %954 = vmatpush.bf16.msra.mxu0 %v711
        %955 = vmatpush.bf16.msra.mxu0 %v709
        %956 = vmatpush.bf16.msra.mxu0 %v707
        %957 = vmatpush.bf16.msra.mxu0 %v705
        %958 = vmatpush.bf16.msra.mxu0 %v703
        %959 = vmatpush.bf16.msra.mxu0 %v701
        %960 = vmatpush.bf16.msra.mxu0 %v699
        %961 = vmatmul.bf16.gmra.mxu0 %v327
        %v962 = vpop.f32.mrf.mxu0
        %v963 = vadd.f32 %v950, %v962
        %v964 = vpop.f32.mrf.mxu0
        %965 = vdwg.mxu0
        %v967 = vshrl.u32 %v310, 16
        %v969 = vshll.u32 %v310, 16
        %v971 = vrot.slane %v969, 1
        %v972 = vor.u32 %v967, %v971
        %v974 = vshrl.u32 %v311, 16
        %v976 = vshll.u32 %v311, 16
        %v978 = vrot.slane %v976, 1
        %v979 = vor.u32 %v974, %v978
        %982 = vmatpush.bf16.msra.mxu0 %v632
        %983 = vmatpush.bf16.msra.mxu0 %v630
        %984 = vmatpush.bf16.msra.mxu0 %v628
        %985 = vmatpush.bf16.msra.mxu0 %v626
        %986 = vmatpush.bf16.msra.mxu0 %v624
        %987 = vmatpush.bf16.msra.mxu0 %v622
        %988 = vmatpush.bf16.msra.mxu0 %v620
        %989 = vmatpush.bf16.msra.mxu0 %v618
        %990 = vmatmul.bf16.gmra.mxu0 %v310
        %v991 = vpop.f32.mrf.mxu0
        %v992 = vadd.f32 0.0, %v991
        %v993 = vpop.f32.mrf.mxu0
        %994 = vdwg.mxu0
        %995 = vmatpush.bf16.msra.mxu0 %v648
        %996 = vmatpush.bf16.msra.mxu0 %v646
        %997 = vmatpush.bf16.msra.mxu0 %v644
        %998 = vmatpush.bf16.msra.mxu0 %v642
        %999 = vmatpush.bf16.msra.mxu0 %v640
        %1000 = vmatpush.bf16.msra.mxu0 %v638
        %1001 = vmatpush.bf16.msra.mxu0 %v636
        %1002 = vmatpush.bf16.msra.mxu0 %v634
        %1003 = vmatmul.bf16.gmra.mxu0 %v311
        %v1004 = vpop.f32.mrf.mxu0
        %v1005 = vadd.f32 %v992, %v1004
        %v1006 = vpop.f32.mrf.mxu0
        %1007 = vdwg.mxu0
        %1008 = vmatpush.bf16.msra.mxu0 %v664
        %1009 = vmatpush.bf16.msra.mxu0 %v662
        %1010 = vmatpush.bf16.msra.mxu0 %v660
        %1011 = vmatpush.bf16.msra.mxu0 %v658
        %1012 = vmatpush.bf16.msra.mxu0 %v656
        %1013 = vmatpush.bf16.msra.mxu0 %v654
        %1014 = vmatpush.bf16.msra.mxu0 %v652
        %1015 = vmatpush.bf16.msra.mxu0 %v650
        %1016 = vmatmul.bf16.gmra.mxu0 %v320
        %v1017 = vpop.f32.mrf.mxu0
        %v1018 = vadd.f32 %v1005, %v1017
        %v1019 = vpop.f32.mrf.mxu0
        %1020 = vdwg.mxu0
        %1021 = vmatpush.bf16.msra.mxu0 %v680
        %1022 = vmatpush.bf16.msra.mxu0 %v678
        %1023 = vmatpush.bf16.msra.mxu0 %v676
        %1024 = vmatpush.bf16.msra.mxu0 %v674
        %1025 = vmatpush.bf16.msra.mxu0 %v672
        %1026 = vmatpush.bf16.msra.mxu0 %v670
        %1027 = vmatpush.bf16.msra.mxu0 %v668
        %1028 = vmatpush.bf16.msra.mxu0 %v666
        %1029 = vmatmul.bf16.gmra.mxu0 %v327
        %v1030 = vpop.f32.mrf.mxu0
        %v1031 = vadd.f32 %v1018, %v1030
        %v1032 = vpop.f32.mrf.mxu0
        %1033 = vdwg.mxu0
        %1034 = vmatpush.bf16.msra.mxu0 %v696
        %1035 = vmatpush.bf16.msra.mxu0 %v694
        %1036 = vmatpush.bf16.msra.mxu0 %v692
        %1037 = vmatpush.bf16.msra.mxu0 %v690
        %1038 = vmatpush.bf16.msra.mxu0 %v688
        %1039 = vmatpush.bf16.msra.mxu0 %v686
        %1040 = vmatpush.bf16.msra.mxu0 %v684
        %1041 = vmatpush.bf16.msra.mxu0 %v682
        %1042 = vmatmul.bf16.gmra.mxu0 %v972
        %v1043 = vpop.f32.mrf.mxu0
        %v1044 = vadd.f32 %v1031, %v1043
        %v1045 = vpop.f32.mrf.mxu0
        %1046 = vdwg.mxu0
        %1047 = vmatpush.bf16.msra.mxu0 %v712
        %1048 = vmatpush.bf16.msra.mxu0 %v710
        %1049 = vmatpush.bf16.msra.mxu0 %v708
        %1050 = vmatpush.bf16.msra.mxu0 %v706
        %1051 = vmatpush.bf16.msra.mxu0 %v704
        %1052 = vmatpush.bf16.msra.mxu0 %v702
        %1053 = vmatpush.bf16.msra.mxu0 %v700
        %1054 = vmatpush.bf16.msra.mxu0 %v698
        %1055 = vmatmul.bf16.gmra.mxu0 %v979
        %v1056 = vpop.f32.mrf.mxu0
        %v1057 = vadd.f32 %v1044, %v1056
        %v1058 = vpop.f32.mrf.mxu0
        %1059 = vdwg.mxu0
        %1060 = vmatpush.bf16.msra.mxu0 %v633
        %1061 = vmatpush.bf16.msra.mxu0 %v631
        %1062 = vmatpush.bf16.msra.mxu0 %v629
        %1063 = vmatpush.bf16.msra.mxu0 %v627
        %1064 = vmatpush.bf16.msra.mxu0 %v625
        %1065 = vmatpush.bf16.msra.mxu0 %v623
        %1066 = vmatpush.bf16.msra.mxu0 %v621
        %1067 = vmatpush.bf16.msra.mxu0 %v619
        %1068 = vmatmul.bf16.gmra.mxu0 %v310
        %v1069 = vpop.f32.mrf.mxu0
        %v1070 = vadd.f32 0.0, %v1069
        %v1071 = vpop.f32.mrf.mxu0
        %1072 = vdwg.mxu0
        %1073 = vmatpush.bf16.msra.mxu0 %v649
        %1074 = vmatpush.bf16.msra.mxu0 %v647
        %1075 = vmatpush.bf16.msra.mxu0 %v645
        %1076 = vmatpush.bf16.msra.mxu0 %v643
        %1077 = vmatpush.bf16.msra.mxu0 %v641
        %1078 = vmatpush.bf16.msra.mxu0 %v639
        %1079 = vmatpush.bf16.msra.mxu0 %v637
        %1080 = vmatpush.bf16.msra.mxu0 %v635
        %1081 = vmatmul.bf16.gmra.mxu0 %v311
        %v1082 = vpop.f32.mrf.mxu0
        %v1083 = vadd.f32 %v1070, %v1082
        %v1084 = vpop.f32.mrf.mxu0
        %1085 = vdwg.mxu0
        %1086 = vmatpush.bf16.msra.mxu0 %v665
        %1087 = vmatpush.bf16.msra.mxu0 %v663
        %1088 = vmatpush.bf16.msra.mxu0 %v661
        %1089 = vmatpush.bf16.msra.mxu0 %v659
        %1090 = vmatpush.bf16.msra.mxu0 %v657
        %1091 = vmatpush.bf16.msra.mxu0 %v655
        %1092 = vmatpush.bf16.msra.mxu0 %v653
        %1093 = vmatpush.bf16.msra.mxu0 %v651
        %1094 = vmatmul.bf16.gmra.mxu0 %v320
        %v1095 = vpop.f32.mrf.mxu0
        %v1096 = vadd.f32 %v1083, %v1095
        %v1097 = vpop.f32.mrf.mxu0
        %1098 = vdwg.mxu0
        %1099 = vmatpush.bf16.msra.mxu0 %v681
        %1100 = vmatpush.bf16.msra.mxu0 %v679
        %1101 = vmatpush.bf16.msra.mxu0 %v677
        %1102 = vmatpush.bf16.msra.mxu0 %v675
        %1103 = vmatpush.bf16.msra.mxu0 %v673
        %1104 = vmatpush.bf16.msra.mxu0 %v671
        %1105 = vmatpush.bf16.msra.mxu0 %v669
        %1106 = vmatpush.bf16.msra.mxu0 %v667
        %1107 = vmatmul.bf16.gmra.mxu0 %v327
        %v1108 = vpop.f32.mrf.mxu0
        %v1109 = vadd.f32 %v1096, %v1108
        %v1110 = vpop.f32.mrf.mxu0
        %1111 = vdwg.mxu0
        %1112 = vmatpush.bf16.msra.mxu0 %v697
        %1113 = vmatpush.bf16.msra.mxu0 %v695
        %1114 = vmatpush.bf16.msra.mxu0 %v693
        %1115 = vmatpush.bf16.msra.mxu0 %v691
        %1116 = vmatpush.bf16.msra.mxu0 %v689
        %1117 = vmatpush.bf16.msra.mxu0 %v687
        %1118 = vmatpush.bf16.msra.mxu0 %v685
        %1119 = vmatpush.bf16.msra.mxu0 %v683
        %1120 = vmatmul.bf16.gmra.mxu0 %v972
        %v1121 = vpop.f32.mrf.mxu0
        %v1122 = vadd.f32 %v1109, %v1121
        %v1123 = vpop.f32.mrf.mxu0
        %1124 = vdwg.mxu0
        %1125 = vmatpush.bf16.msra.mxu0 %v713
        %1126 = vmatpush.bf16.msra.mxu0 %v711
        %1127 = vmatpush.bf16.msra.mxu0 %v709
        %1128 = vmatpush.bf16.msra.mxu0 %v707
        %1129 = vmatpush.bf16.msra.mxu0 %v705
        %1130 = vmatpush.bf16.msra.mxu0 %v703
        %1131 = vmatpush.bf16.msra.mxu0 %v701
        %1132 = vmatpush.bf16.msra.mxu0 %v699
        %1133 = vmatmul.bf16.gmra.mxu0 %v979
        %v1134 = vpop.f32.mrf.mxu0
        %v1135 = vadd.f32 %v1122, %v1134
        %v1136 = vpop.f32.mrf.mxu0
        %1137 = vdwg.mxu0
        %v1138 = vmax.f32 %v885, %v1057
        %v1139 = vmax.f32 %v963, %v1135
        %v1140 = vmax.f32 %v1138, %v1139
        %v1142 = vperm.slane %v297, 0
        %v1144 = vadd.f32 %v1140, %v1142
        %v1145 = vmax.f32 %v1144, 0.0
        %v1146 = vpack.c.bf16 %v1145, %v1145
        %vm1147 = vcmask 1042432
        %vm1148 = vsmask.f32 2304
        %vm1149 = vmand %vm1147, %vm1148
        %v1150 = vld [vmem:[%s200] sm:$0x7]
        %v1151 = vsel %vm1149, %v1146, %v1150
        %1152 = vst [vmem:[%s200] sm:$0x7] %v1151
        %p1153 = scmp.lt.s32.totalorder %s16, 1
        %s1154 = scalar_select %p1153, %s16, 1
        %s1155 = smul.addr %s1154, 4
        %s1156 = scalar_lea.vmem %s3, %s1155
        // Predicated region
        $region41: #{_lambda_.6} parent=31 // pred_check
          %p1157 = pneg %p102
        $region42: #{_lambda_.6} parent=31 // pred_check_branch
          %1159 = sbr.rel (%p1157) target = $region44
        $region43: #{_lambda_.6} parent=31 // pred_region
          _
        $region44: #{_lambda_.6} parent=31 // pred_fallthru
          _
      $region32: #{_lambda_.6} parent=5 // pred_fallthru
        _
      %p1160 = scmp.le.s32.totalorder 2, %s11
      // Predicated region
      $region45: #{_lambda_.6} parent=5 // pred_check
        %p1161 = pneg %p1160
      $region46: #{_lambda_.6} parent=5 // pred_check_branch
        %1163 = sbr.rel (%p1161) target = $region48
      $region47: #{_lambda_.6} parent=5 // pred_region
        %s1164 = ssub.s32 %s11, 2
        // Predicated region
        $region49: #{_lambda_.6} parent=47 // pred_check
          %p1165 = pneg %p108
        $region50: #{_lambda_.6} parent=47 // pred_check_branch
          %1167 = sbr.rel (%p1165) target = $region52
        $region51: #{_lambda_.6} parent=47 // pred_region
          %p1168 = scmp.lt.s32.totalorder %s17, 1
          %s1169 = scalar_select %p1168, %s17, 1
          %s1170 = smul.addr %s1169, 4
          %s1171 = scalar_lea.vmem %s3, %s1170
        $region52: #{_lambda_.6} parent=47 // pred_fallthru
          _
      $region48: #{_lambda_.6} parent=5 // pred_fallthru
        _
    $region6: #{_lambda_.6} parent=1 // loop_footer
      %s15 = sadd.s32 1, %s11
    $region7: #{_lambda_.6} parent=1 // loop_footer_branch
      %10 = sbr.rel target = $region3
    $region8: #{_lambda_.6} parent=1 // loop_exit
      _
    %1172 = vsyncpa [#allocation3], 1
    %s1173 = scalar_lea.sflag [#allocation3], 1
    %1174 = vsyncpa %s1173, 1
    %1175 = vsyncpa [#allocation5], 1

// kernel: _lambda_.7
$region0: #{_lambda_.7}
  #allocation0 [shape = 'u32[]', space=smem, size = 0x4, offset = 0x4, fixed_abs, tag = 'smem constant byte address 0x4 - core index']
  #allocation1 [shape = 'u32[72,128]{1,0:T(1,128)}', space=vmem, size = 0x9000, scoped, tag = 'internal scratch']
  #allocation2 [shape = 'f32[2,512]{1,0:T(2,128)}', space=vmem, size = 0x1000, scoped, tag = 'scratch operand']
  #allocation3 [shape = 'f32[1,1]{1,0:T(1,128)S(1)}', space=vmem, size = 0x200, scoped, tag = 'scoped memory for _lambda_.7']
  %s0 = inlined_call_operand.vmem [shape: bf16[2,640], index: 0, kind: input, shape index: {}]
  %s1 = inlined_call_operand.hbm [shape: bf16[640,512], index: 1, kind: input, shape index: {}]
  %s2 = inlined_call_operand.hbm [shape: f32[1,512], index: 2, kind: input, shape index: {}]
  %s3 = inlined_call_operand.hbm [shape: f32[1,512], index: 3, kind: input, shape index: {}]
  %s4 = inlined_call_operand.<no memory space> [shape: f32[1,1], index: 4, kind: input, shape index: {}]
  %s5 = inlined_call_operand.vmem [shape: f32[2,1], index: 5, kind: output, shape index: {}]
  %s6 = sld [smem:[#allocation0]]
  $region50: #{_lambda_.7} parent=0
    _
  %s8 = ssub.s32 1, %s6
  %s9 = scalar_select 0, %s8, %s6
  %v10 = vstv %s4
  %11 = vst [vmem:[#allocation3] sm:$0x1] %v10
  $region1: #{_lambda_.7} parent=0
    #allocation4 [shape = 'u8[655360]{0}', space=vmem, size = 0xa0000, scoped, tag = 'input window, operand 1, single buffered']
    #allocation5 [shape = 's32[1]{0}', space=sflag, size = 0x4, scoped, tag = 'scoped memory for _lambda_.7']
    #allocation6 [shape = 'u8[2048]{0}', space=vmem, size = 0x800, scoped, tag = 'input window, operand 2, single buffered']
    #allocation7 [shape = 's32[1]{0}', space=sflag, size = 0x4, scoped, tag = 'scoped memory for _lambda_.7']
    #allocation8 [shape = 'u8[2048]{0}', space=vmem, size = 0x800, scoped, tag = 'input window, operand 3, single buffered']
    %12 = vsyncpa [#allocation5], 0
    %13 = vsyncpa [#allocation7], 0
    // Predicated region
    $region2: #{_lambda_.7} parent=1 // pred_check
      _
    $region3: #{_lambda_.7} parent=1 // pred_check_branch
      %15 = sbr.rel (0) target = $region5
    $region4: #{_lambda_.7} parent=1 // pred_region
      _
    $region5: #{_lambda_.7} parent=1 // pred_fallthru
      _
    // Predicated region
    $region6: #{_lambda_.7} parent=1 // pred_check
      _
    $region7: #{_lambda_.7} parent=1 // pred_check_branch
      %17 = sbr.rel (0) target = $region9
    $region8: #{_lambda_.7} parent=1 // pred_region
      %19 = vsyncadd [#allocation5], 0
      %s20 = sshll.u32 %s1, 4
      %s21 = int_to_ptr.hbm [resolvable:$true] %s20
      %s22 = sshll.u32 [#allocation4], 4
      %s23 = int_to_ptr.vmem [resolvable:$true] %s22
      %28 = dma.hbm_to_vmem [thread:$0]  %s21, 20480, %s23, [#allocation5], 256, 256, 16
    $region9: #{_lambda_.7} parent=1 // pred_fallthru
      _
    // Predicated region
    $region10: #{_lambda_.7} parent=1 // pred_check
      _
    $region11: #{_lambda_.7} parent=1 // pred_check_branch
      %30 = sbr.rel (0) target = $region13
    $region12: #{_lambda_.7} parent=1 // pred_region
      %32 = vsyncadd [#allocation7], 0
      %s34 = sshll.u32 %s2, 4
      %s35 = int_to_ptr.hbm [resolvable:$true] %s34
      %s36 = sshll.u32 [#allocation6], 4
      %s37 = int_to_ptr.vmem [resolvable:$true] %s36
      %39 = dma.hbm_to_vmem [thread:$0]  %s35, 64, %s37, [#allocation7]
    $region13: #{_lambda_.7} parent=1 // pred_fallthru
      _
    // Predicated region
    $region14: #{_lambda_.7} parent=1 // pred_check
      _
    $region15: #{_lambda_.7} parent=1 // pred_check_branch
      %41 = sbr.rel (0) target = $region17
    $region16: #{_lambda_.7} parent=1 // pred_region
      %43 = vsyncadd [#allocation7], 0
      %s45 = sshll.u32 %s3, 4
      %s46 = int_to_ptr.hbm [resolvable:$true] %s45
      %s47 = sshll.u32 [#allocation8], 4
      %s48 = int_to_ptr.vmem [resolvable:$true] %s47
      %50 = dma.hbm_to_vmem [thread:$0]  %s46, 64, %s48, [#allocation7]
    $region17: #{_lambda_.7} parent=1 // pred_fallthru
      _
    // Predicated region
    $region18: #{_lambda_.7} parent=1 // pred_check
      _
    $region19: #{_lambda_.7} parent=1 // pred_check_branch
      %52 = sbr.rel (0) target = $region21
    $region20: #{_lambda_.7} parent=1 // pred_region
      _
    $region21: #{_lambda_.7} parent=1 // pred_fallthru
      _
    // Predicated region
    $region22: #{_lambda_.7} parent=1 // pred_check
      _
    $region23: #{_lambda_.7} parent=1 // pred_check_branch
      %54 = sbr.rel (0) target = $region25
    $region24: #{_lambda_.7} parent=1 // pred_region
      %56 = dma.done [#allocation5], 20480
    $region25: #{_lambda_.7} parent=1 // pred_fallthru
      _
    // Predicated region
    $region26: #{_lambda_.7} parent=1 // pred_check
      _
    $region27: #{_lambda_.7} parent=1 // pred_check_branch
      %58 = sbr.rel (0) target = $region29
    $region28: #{_lambda_.7} parent=1 // pred_region
      %60 = dma.done [#allocation7], 64
    $region29: #{_lambda_.7} parent=1 // pred_fallthru
      _
    // Predicated region
    $region30: #{_lambda_.7} parent=1 // pred_check
      _
    $region31: #{_lambda_.7} parent=1 // pred_check_branch
      %62 = sbr.rel (0) target = $region33
    $region32: #{_lambda_.7} parent=1 // pred_region
      %64 = dma.done [#allocation7], 64
    $region33: #{_lambda_.7} parent=1 // pred_fallthru
      _
    %p65 = scmp.eq.s32.totalorder 0, 0
    // Predicated region
    $region34: #{_lambda_.7} parent=1 // pred_check
      %p66 = pneg %p65
    $region35: #{_lambda_.7} parent=1 // pred_check_branch
      %68 = sbr.rel (%p66) target = $region37
    $region36: #{_lambda_.7} parent=1 // pred_region
      %69 = vst [vmem:[#allocation2] sm:$0xff] 0.0
    $region37: #{_lambda_.7} parent=1 // pred_fallthru
      _
    %v70 = vld [vmem:[#allocation2] sm:$0xff]
    %v71 = vld [vmem:[%s0] sm:$0x1f]
    %v72 = vld [vmem:[#allocation4] sm:$0xff]
    %v73 = vld [vmem:[#allocation4 + $0x8] sm:$0xff]
    %v74 = vld [vmem:[#allocation4 + $0x10] sm:$0xff]
    %v75 = vld [vmem:[#allocation4 + $0x18] sm:$0xff]
    %v76 = vld [vmem:[#allocation4 + $0x20] sm:$0xff]
    %v77 = vld [vmem:[#allocation4 + $0x28] sm:$0xff]
    %v78 = vld [vmem:[#allocation4 + $0x30] sm:$0xff]
    %v79 = vld [vmem:[#allocation4 + $0x38] sm:$0xff]
    %v80 = vld [vmem:[#allocation4 + $0x40] sm:$0xff]
    %v81 = vld [vmem:[#allocation4 + $0x48] sm:$0xff]
    %v82 = vld [vmem:[#allocation4 + $0x50] sm:$0xff]
    %v83 = vld [vmem:[#allocation4 + $0x58] sm:$0xff]
    %v84 = vld [vmem:[#allocation4 + $0x60] sm:$0xff]
    %v85 = vld [vmem:[#allocation4 + $0x68] sm:$0xff]
    %v86 = vld [vmem:[#allocation4 + $0x70] sm:$0xff]
    %v87 = vld [vmem:[#allocation4 + $0x78] sm:$0xff]
    %v88 = vld [vmem:[#allocation4 + $0x80] sm:$0xff]
    %v89 = vld [vmem:[#allocation4 + $0x88] sm:$0xff]
    %v90 = vld [vmem:[#allocation4 + $0x90] sm:$0xff]
    %v91 = vld [vmem:[#allocation4 + $0x98] sm:$0xff]
    %v92 = vld [vmem:[#allocation4 + $0xa0] sm:$0xff]
    %v93 = vld [vmem:[#allocation4 + $0xa8] sm:$0xff]
    %v94 = vld [vmem:[#allocation4 + $0xb0] sm:$0xff]
    %v95 = vld [vmem:[#allocation4 + $0xb8] sm:$0xff]
    %v96 = vld [vmem:[#allocation4 + $0xc0] sm:$0xff]
    %v97 = vld [vmem:[#allocation4 + $0xc8] sm:$0xff]
    %v98 = vld [vmem:[#allocation4 + $0xd0] sm:$0xff]
    %v99 = vld [vmem:[#allocation4 + $0xd8] sm:$0xff]
    %v100 = vld [vmem:[#allocation4 + $0xe0] sm:$0xff]
    %v101 = vld [vmem:[#allocation4 + $0xe8] sm:$0xff]
    %v102 = vld [vmem:[#allocation4 + $0xf0] sm:$0xff]
    %v103 = vld [vmem:[#allocation4 + $0xf8] sm:$0xff]
    %v104 = vld [vmem:[#allocation4 + $0x100] sm:$0xff]
    %v105 = vld [vmem:[#allocation4 + $0x108] sm:$0xff]
    %v106 = vld [vmem:[#allocation4 + $0x110] sm:$0xff]
    %v107 = vld [vmem:[#allocation4 + $0x118] sm:$0xff]
    %v108 = vld [vmem:[#allocation4 + $0x120] sm:$0xff]
    %v109 = vld [vmem:[#allocation4 + $0x128] sm:$0xff]
    %v110 = vld [vmem:[#allocation4 + $0x130] sm:$0xff]
    %v111 = vld [vmem:[#allocation4 + $0x138] sm:$0xff]
    %v112 = vld [vmem:[#allocation4 + $0x140] sm:$0xff]
    %v113 = vld [vmem:[#allocation4 + $0x148] sm:$0xff]
    %v114 = vld [vmem:[#allocation4 + $0x150] sm:$0xff]
    %v115 = vld [vmem:[#allocation4 + $0x158] sm:$0xff]
    %v116 = vld [vmem:[#allocation4 + $0x160] sm:$0xff]
    %v117 = vld [vmem:[#allocation4 + $0x168] sm:$0xff]
    %v118 = vld [vmem:[#allocation4 + $0x170] sm:$0xff]
    %v119 = vld [vmem:[#allocation4 + $0x178] sm:$0xff]
    %v120 = vld [vmem:[#allocation4 + $0x180] sm:$0xff]
    %v121 = vld [vmem:[#allocation4 + $0x188] sm:$0xff]
    %v122 = vld [vmem:[#allocation4 + $0x190] sm:$0xff]
    %v123 = vld [vmem:[#allocation4 + $0x198] sm:$0xff]
    %v124 = vld [vmem:[#allocation4 + $0x1a0] sm:$0xff]
    %v125 = vld [vmem:[#allocation4 + $0x1a8] sm:$0xff]
    %v126 = vld [vmem:[#allocation4 + $0x1b0] sm:$0xff]
    %v127 = vld [vmem:[#allocation4 + $0x1b8] sm:$0xff]
    %v128 = vld [vmem:[#allocation4 + $0x1c0] sm:$0xff]
    %v129 = vld [vmem:[#allocation4 + $0x1c8] sm:$0xff]
    %v130 = vld [vmem:[#allocation4 + $0x1d0] sm:$0xff]
    %v131 = vld [vmem:[#allocation4 + $0x1d8] sm:$0xff]
    %v132 = vld [vmem:[#allocation4 + $0x1e0] sm:$0xff]
    %v133 = vld [vmem:[#allocation4 + $0x1e8] sm:$0xff]
    %v134 = vld [vmem:[#allocation4 + $0x1f0] sm:$0xff]
    %v135 = vld [vmem:[#allocation4 + $0x1f8] sm:$0xff]
    %v136 = vld [vmem:[#allocation4 + $0x200] sm:$0xff]
    %v137 = vld [vmem:[#allocation4 + $0x208] sm:$0xff]
    %v138 = vld [vmem:[#allocation4 + $0x210] sm:$0xff]
    %v139 = vld [vmem:[#allocation4 + $0x218] sm:$0xff]
    %v140 = vld [vmem:[#allocation4 + $0x220] sm:$0xff]
    %v141 = vld [vmem:[#allocation4 + $0x228] sm:$0xff]
    %v142 = vld [vmem:[#allocation4 + $0x230] sm:$0xff]
    %v143 = vld [vmem:[#allocation4 + $0x238] sm:$0xff]
    %v144 = vld [vmem:[#allocation4 + $0x240] sm:$0xff]
    %v145 = vld [vmem:[#allocation4 + $0x248] sm:$0xff]
    %v146 = vld [vmem:[#allocation4 + $0x250] sm:$0xff]
    %v147 = vld [vmem:[#allocation4 + $0x258] sm:$0xff]
    %v148 = vld [vmem:[#allocation4 + $0x260] sm:$0xff]
    %v149 = vld [vmem:[#allocation4 + $0x268] sm:$0xff]
    %v150 = vld [vmem:[#allocation4 + $0x270] sm:$0xff]
    %v151 = vld [vmem:[#allocation4 + $0x278] sm:$0xff]
    %v152 = vld [vmem:[#allocation4 + $0x280] sm:$0xff]
    %v153 = vld [vmem:[#allocation4 + $0x288] sm:$0xff]
    %v154 = vld [vmem:[#allocation4 + $0x290] sm:$0xff]
    %v155 = vld [vmem:[#allocation4 + $0x298] sm:$0xff]
    %v156 = vld [vmem:[#allocation4 + $0x2a0] sm:$0xff]
    %v157 = vld [vmem:[#allocation4 + $0x2a8] sm:$0xff]
    %v158 = vld [vmem:[#allocation4 + $0x2b0] sm:$0xff]
    %v159 = vld [vmem:[#allocation4 + $0x2b8] sm:$0xff]
    %v160 = vld [vmem:[#allocation4 + $0x2c0] sm:$0xff]
    %v161 = vld [vmem:[#allocation4 + $0x2c8] sm:$0xff]
    %v162 = vld [vmem:[#allocation4 + $0x2d0] sm:$0xff]
    %v163 = vld [vmem:[#allocation4 + $0x2d8] sm:$0xff]
    %v164 = vld [vmem:[#allocation4 + $0x2e0] sm:$0xff]
    %v165 = vld [vmem:[#allocation4 + $0x2e8] sm:$0xff]
    %v166 = vld [vmem:[#allocation4 + $0x2f0] sm:$0xff]
    %v167 = vld [vmem:[#allocation4 + $0x2f8] sm:$0xff]
    %v168 = vld [vmem:[#allocation4 + $0x300] sm:$0xff]
    %v169 = vld [vmem:[#allocation4 + $0x308] sm:$0xff]
    %v170 = vld [vmem:[#allocation4 + $0x310] sm:$0xff]
    %v171 = vld [vmem:[#allocation4 + $0x318] sm:$0xff]
    %v172 = vld [vmem:[#allocation4 + $0x320] sm:$0xff]
    %v173 = vld [vmem:[#allocation4 + $0x328] sm:$0xff]
    %v174 = vld [vmem:[#allocation4 + $0x330] sm:$0xff]
    %v175 = vld [vmem:[#allocation4 + $0x338] sm:$0xff]
    %v176 = vld [vmem:[#allocation4 + $0x340] sm:$0xff]
    %v177 = vld [vmem:[#allocation4 + $0x348] sm:$0xff]
    %v178 = vld [vmem:[#allocation4 + $0x350] sm:$0xff]
    %v179 = vld [vmem:[#allocation4 + $0x358] sm:$0xff]
    %v180 = vld [vmem:[#allocation4 + $0x360] sm:$0xff]
    %v181 = vld [vmem:[#allocation4 + $0x368] sm:$0xff]
    %v182 = vld [vmem:[#allocation4 + $0x370] sm:$0xff]
    %v183 = vld [vmem:[#allocation4 + $0x378] sm:$0xff]
    %v184 = vld [vmem:[#allocation4 + $0x380] sm:$0xff]
    %v185 = vld [vmem:[#allocation4 + $0x388] sm:$0xff]
    %v186 = vld [vmem:[#allocation4 + $0x390] sm:$0xff]
    %v187 = vld [vmem:[#allocation4 + $0x398] sm:$0xff]
    %v188 = vld [vmem:[#allocation4 + $0x3a0] sm:$0xff]
    %v189 = vld [vmem:[#allocation4 + $0x3a8] sm:$0xff]
    %v190 = vld [vmem:[#allocation4 + $0x3b0] sm:$0xff]
    %v191 = vld [vmem:[#allocation4 + $0x3b8] sm:$0xff]
    %v192 = vld [vmem:[#allocation4 + $0x3c0] sm:$0xff]
    %v193 = vld [vmem:[#allocation4 + $0x3c8] sm:$0xff]
    %v194 = vld [vmem:[#allocation4 + $0x3d0] sm:$0xff]
    %v195 = vld [vmem:[#allocation4 + $0x3d8] sm:$0xff]
    %v196 = vld [vmem:[#allocation4 + $0x3e0] sm:$0xff]
    %v197 = vld [vmem:[#allocation4 + $0x3e8] sm:$0xff]
    %v198 = vld [vmem:[#allocation4 + $0x3f0] sm:$0xff]
    %v199 = vld [vmem:[#allocation4 + $0x3f8] sm:$0xff]
    %v200 = vld [vmem:[#allocation4 + $0x400] sm:$0xff]
    %v201 = vld [vmem:[#allocation4 + $0x408] sm:$0xff]
    %v202 = vld [vmem:[#allocation4 + $0x410] sm:$0xff]
    %v203 = vld [vmem:[#allocation4 + $0x418] sm:$0xff]
    %v204 = vld [vmem:[#allocation4 + $0x420] sm:$0xff]
    %v205 = vld [vmem:[#allocation4 + $0x428] sm:$0xff]
    %v206 = vld [vmem:[#allocation4 + $0x430] sm:$0xff]
    %v207 = vld [vmem:[#allocation4 + $0x438] sm:$0xff]
    %v208 = vld [vmem:[#allocation4 + $0x440] sm:$0xff]
    %v209 = vld [vmem:[#allocation4 + $0x448] sm:$0xff]
    %v210 = vld [vmem:[#allocation4 + $0x450] sm:$0xff]
    %v211 = vld [vmem:[#allocation4 + $0x458] sm:$0xff]
    %v212 = vld [vmem:[#allocation4 + $0x460] sm:$0xff]
    %v213 = vld [vmem:[#allocation4 + $0x468] sm:$0xff]
    %v214 = vld [vmem:[#allocation4 + $0x470] sm:$0xff]
    %v215 = vld [vmem:[#allocation4 + $0x478] sm:$0xff]
    %v216 = vld [vmem:[#allocation4 + $0x480] sm:$0xff]
    %v217 = vld [vmem:[#allocation4 + $0x488] sm:$0xff]
    %v218 = vld [vmem:[#allocation4 + $0x490] sm:$0xff]
    %v219 = vld [vmem:[#allocation4 + $0x498] sm:$0xff]
    %v220 = vld [vmem:[#allocation4 + $0x4a0] sm:$0xff]
    %v221 = vld [vmem:[#allocation4 + $0x4a8] sm:$0xff]
    %v222 = vld [vmem:[#allocation4 + $0x4b0] sm:$0xff]
    %v223 = vld [vmem:[#allocation4 + $0x4b8] sm:$0xff]
    %v224 = vld [vmem:[#allocation4 + $0x4c0] sm:$0xff]
    %v225 = vld [vmem:[#allocation4 + $0x4c8] sm:$0xff]
    %v226 = vld [vmem:[#allocation4 + $0x4d0] sm:$0xff]
    %v227 = vld [vmem:[#allocation4 + $0x4d8] sm:$0xff]
    %v228 = vld [vmem:[#allocation4 + $0x4e0] sm:$0xff]
    %v229 = vld [vmem:[#allocation4 + $0x4e8] sm:$0xff]
    %v230 = vld [vmem:[#allocation4 + $0x4f0] sm:$0xff]
    %v231 = vld [vmem:[#allocation4 + $0x4f8] sm:$0xff]
    %233 = vst [vmem:[#allocation1] ss:$9 sm:$0xff] %v71
    %v234 = vld [vmem:[#allocation1] sm:$0xff]
    %v235 = vld [vmem:[#allocation1 + $0x9] sm:$0xff]
    %v236 = vld [vmem:[#allocation1 + $0x12] sm:$0xff]
    %v237 = vld [vmem:[#allocation1 + $0x1b] sm:$0xff]
    %v238 = vld [vmem:[#allocation1 + $0x24] sm:$0xff]
    %v404 = vunpack.c.l.b16 %v72
    %v405 = vunpack.c.h.b16 %v72
    %v406 = vunpack.c.l.b16 %v73
    %v407 = vunpack.c.h.b16 %v73
    %v408 = vunpack.c.l.b16 %v74
    %v409 = vunpack.c.h.b16 %v74
    %v410 = vunpack.c.l.b16 %v75
    %v411 = vunpack.c.h.b16 %v75
    %v412 = vunpack.c.l.b16 %v76
    %v413 = vunpack.c.h.b16 %v76
    %v414 = vunpack.c.l.b16 %v77
    %v415 = vunpack.c.h.b16 %v77
    %v416 = vunpack.c.l.b16 %v78
    %v417 = vunpack.c.h.b16 %v78
    %v418 = vunpack.c.l.b16 %v79
    %v419 = vunpack.c.h.b16 %v79
    %v420 = vunpack.c.l.b16 %v80
    %v421 = vunpack.c.h.b16 %v80
    %v422 = vunpack.c.l.b16 %v81
    %v423 = vunpack.c.h.b16 %v81
    %v424 = vunpack.c.l.b16 %v82
    %v425 = vunpack.c.h.b16 %v82
    %v426 = vunpack.c.l.b16 %v83
    %v427 = vunpack.c.h.b16 %v83
    %v428 = vunpack.c.l.b16 %v84
    %v429 = vunpack.c.h.b16 %v84
    %v430 = vunpack.c.l.b16 %v85
    %v431 = vunpack.c.h.b16 %v85
    %v432 = vunpack.c.l.b16 %v86
    %v433 = vunpack.c.h.b16 %v86
    %v434 = vunpack.c.l.b16 %v87
    %v435 = vunpack.c.h.b16 %v87
    %v436 = vunpack.c.l.b16 %v88
    %v437 = vunpack.c.h.b16 %v88
    %v438 = vunpack.c.l.b16 %v89
    %v439 = vunpack.c.h.b16 %v89
    %v440 = vunpack.c.l.b16 %v90
    %v441 = vunpack.c.h.b16 %v90
    %v442 = vunpack.c.l.b16 %v91
    %v443 = vunpack.c.h.b16 %v91
    %v444 = vunpack.c.l.b16 %v92
    %v445 = vunpack.c.h.b16 %v92
    %v446 = vunpack.c.l.b16 %v93
    %v447 = vunpack.c.h.b16 %v93
    %v448 = vunpack.c.l.b16 %v94
    %v449 = vunpack.c.h.b16 %v94
    %v450 = vunpack.c.l.b16 %v95
    %v451 = vunpack.c.h.b16 %v95
    %v452 = vunpack.c.l.b16 %v96
    %v453 = vunpack.c.h.b16 %v96
    %v454 = vunpack.c.l.b16 %v97
    %v455 = vunpack.c.h.b16 %v97
    %v456 = vunpack.c.l.b16 %v98
    %v457 = vunpack.c.h.b16 %v98
    %v458 = vunpack.c.l.b16 %v99
    %v459 = vunpack.c.h.b16 %v99
    %v460 = vunpack.c.l.b16 %v100
    %v461 = vunpack.c.h.b16 %v100
    %v462 = vunpack.c.l.b16 %v101
    %v463 = vunpack.c.h.b16 %v101
    %v464 = vunpack.c.l.b16 %v102
    %v465 = vunpack.c.h.b16 %v102
    %v466 = vunpack.c.l.b16 %v103
    %v467 = vunpack.c.h.b16 %v103
    %v468 = vunpack.c.l.b16 %v104
    %v469 = vunpack.c.h.b16 %v104
    %v470 = vunpack.c.l.b16 %v105
    %v471 = vunpack.c.h.b16 %v105
    %v472 = vunpack.c.l.b16 %v106
    %v473 = vunpack.c.h.b16 %v106
    %v474 = vunpack.c.l.b16 %v107
    %v475 = vunpack.c.h.b16 %v107
    %v476 = vunpack.c.l.b16 %v108
    %v477 = vunpack.c.h.b16 %v108
    %v478 = vunpack.c.l.b16 %v109
    %v479 = vunpack.c.h.b16 %v109
    %v480 = vunpack.c.l.b16 %v110
    %v481 = vunpack.c.h.b16 %v110
    %v482 = vunpack.c.l.b16 %v111
    %v483 = vunpack.c.h.b16 %v111
    %v484 = vunpack.c.l.b16 %v112
    %v485 = vunpack.c.h.b16 %v112
    %v486 = vunpack.c.l.b16 %v113
    %v487 = vunpack.c.h.b16 %v113
    %v488 = vunpack.c.l.b16 %v114
    %v489 = vunpack.c.h.b16 %v114
    %v490 = vunpack.c.l.b16 %v115
    %v491 = vunpack.c.h.b16 %v115
    %v492 = vunpack.c.l.b16 %v116
    %v493 = vunpack.c.h.b16 %v116
    %v494 = vunpack.c.l.b16 %v117
    %v495 = vunpack.c.h.b16 %v117
    %v496 = vunpack.c.l.b16 %v118
    %v497 = vunpack.c.h.b16 %v118
    %v498 = vunpack.c.l.b16 %v119
    %v499 = vunpack.c.h.b16 %v119
    %v500 = vunpack.c.l.b16 %v120
    %v501 = vunpack.c.h.b16 %v120
    %v502 = vunpack.c.l.b16 %v121
    %v503 = vunpack.c.h.b16 %v121
    %v504 = vunpack.c.l.b16 %v122
    %v505 = vunpack.c.h.b16 %v122
    %v506 = vunpack.c.l.b16 %v123
    %v507 = vunpack.c.h.b16 %v123
    %v508 = vunpack.c.l.b16 %v124
    %v509 = vunpack.c.h.b16 %v124
    %v510 = vunpack.c.l.b16 %v125
    %v511 = vunpack.c.h.b16 %v125
    %v512 = vunpack.c.l.b16 %v126
    %v513 = vunpack.c.h.b16 %v126
    %v514 = vunpack.c.l.b16 %v127
    %v515 = vunpack.c.h.b16 %v127
    %v516 = vunpack.c.l.b16 %v128
    %v517 = vunpack.c.h.b16 %v128
    %v518 = vunpack.c.l.b16 %v129
    %v519 = vunpack.c.h.b16 %v129
    %v520 = vunpack.c.l.b16 %v130
    %v521 = vunpack.c.h.b16 %v130
    %v522 = vunpack.c.l.b16 %v131
    %v523 = vunpack.c.h.b16 %v131
    %v524 = vunpack.c.l.b16 %v132
    %v525 = vunpack.c.h.b16 %v132
    %v526 = vunpack.c.l.b16 %v133
    %v527 = vunpack.c.h.b16 %v133
    %v528 = vunpack.c.l.b16 %v134
    %v529 = vunpack.c.h.b16 %v134
    %v530 = vunpack.c.l.b16 %v135
    %v531 = vunpack.c.h.b16 %v135
    %v532 = vunpack.c.l.b16 %v136
    %v533 = vunpack.c.h.b16 %v136
    %v534 = vunpack.c.l.b16 %v137
    %v535 = vunpack.c.h.b16 %v137
    %v536 = vunpack.c.l.b16 %v138
    %v537 = vunpack.c.h.b16 %v138
    %v538 = vunpack.c.l.b16 %v139
    %v539 = vunpack.c.h.b16 %v139
    %v540 = vunpack.c.l.b16 %v140
    %v541 = vunpack.c.h.b16 %v140
    %v542 = vunpack.c.l.b16 %v141
    %v543 = vunpack.c.h.b16 %v141
    %v544 = vunpack.c.l.b16 %v142
    %v545 = vunpack.c.h.b16 %v142
    %v546 = vunpack.c.l.b16 %v143
    %v547 = vunpack.c.h.b16 %v143
    %v548 = vunpack.c.l.b16 %v144
    %v549 = vunpack.c.h.b16 %v144
    %v550 = vunpack.c.l.b16 %v145
    %v551 = vunpack.c.h.b16 %v145
    %v552 = vunpack.c.l.b16 %v146
    %v553 = vunpack.c.h.b16 %v146
    %v554 = vunpack.c.l.b16 %v147
    %v555 = vunpack.c.h.b16 %v147
    %v556 = vunpack.c.l.b16 %v148
    %v557 = vunpack.c.h.b16 %v148
    %v558 = vunpack.c.l.b16 %v149
    %v559 = vunpack.c.h.b16 %v149
    %v560 = vunpack.c.l.b16 %v150
    %v561 = vunpack.c.h.b16 %v150
    %v562 = vunpack.c.l.b16 %v151
    %v563 = vunpack.c.h.b16 %v151
    %v564 = vunpack.c.l.b16 %v152
    %v565 = vunpack.c.h.b16 %v152
    %v566 = vunpack.c.l.b16 %v153
    %v567 = vunpack.c.h.b16 %v153
    %v568 = vunpack.c.l.b16 %v154
    %v569 = vunpack.c.h.b16 %v154
    %v570 = vunpack.c.l.b16 %v155
    %v571 = vunpack.c.h.b16 %v155
    %v572 = vunpack.c.l.b16 %v156
    %v573 = vunpack.c.h.b16 %v156
    %v574 = vunpack.c.l.b16 %v157
    %v575 = vunpack.c.h.b16 %v157
    %v576 = vunpack.c.l.b16 %v158
    %v577 = vunpack.c.h.b16 %v158
    %v578 = vunpack.c.l.b16 %v159
    %v579 = vunpack.c.h.b16 %v159
    %v580 = vunpack.c.l.b16 %v160
    %v581 = vunpack.c.h.b16 %v160
    %v582 = vunpack.c.l.b16 %v161
    %v583 = vunpack.c.h.b16 %v161
    %v584 = vunpack.c.l.b16 %v162
    %v585 = vunpack.c.h.b16 %v162
    %v586 = vunpack.c.l.b16 %v163
    %v587 = vunpack.c.h.b16 %v163
    %v588 = vunpack.c.l.b16 %v164
    %v589 = vunpack.c.h.b16 %v164
    %v590 = vunpack.c.l.b16 %v165
    %v591 = vunpack.c.h.b16 %v165
    %v592 = vunpack.c.l.b16 %v166
    %v593 = vunpack.c.h.b16 %v166
    %v594 = vunpack.c.l.b16 %v167
    %v595 = vunpack.c.h.b16 %v167
    %v596 = vunpack.c.l.b16 %v168
    %v597 = vunpack.c.h.b16 %v168
    %v598 = vunpack.c.l.b16 %v169
    %v599 = vunpack.c.h.b16 %v169
    %v600 = vunpack.c.l.b16 %v170
    %v601 = vunpack.c.h.b16 %v170
    %v602 = vunpack.c.l.b16 %v171
    %v603 = vunpack.c.h.b16 %v171
    %v604 = vunpack.c.l.b16 %v172
    %v605 = vunpack.c.h.b16 %v172
    %v606 = vunpack.c.l.b16 %v173
    %v607 = vunpack.c.h.b16 %v173
    %v608 = vunpack.c.l.b16 %v174
    %v609 = vunpack.c.h.b16 %v174
    %v610 = vunpack.c.l.b16 %v175
    %v611 = vunpack.c.h.b16 %v175
    %v612 = vunpack.c.l.b16 %v176
    %v613 = vunpack.c.h.b16 %v176
    %v614 = vunpack.c.l.b16 %v177
    %v615 = vunpack.c.h.b16 %v177
    %v616 = vunpack.c.l.b16 %v178
    %v617 = vunpack.c.h.b16 %v178
    %v618 = vunpack.c.l.b16 %v179
    %v619 = vunpack.c.h.b16 %v179
    %v620 = vunpack.c.l.b16 %v180
    %v621 = vunpack.c.h.b16 %v180
    %v622 = vunpack.c.l.b16 %v181
    %v623 = vunpack.c.h.b16 %v181
    %v624 = vunpack.c.l.b16 %v182
    %v625 = vunpack.c.h.b16 %v182
    %v626 = vunpack.c.l.b16 %v183
    %v627 = vunpack.c.h.b16 %v183
    %v628 = vunpack.c.l.b16 %v184
    %v629 = vunpack.c.h.b16 %v184
    %v630 = vunpack.c.l.b16 %v185
    %v631 = vunpack.c.h.b16 %v185
    %v632 = vunpack.c.l.b16 %v186
    %v633 = vunpack.c.h.b16 %v186
    %v634 = vunpack.c.l.b16 %v187
    %v635 = vunpack.c.h.b16 %v187
    %v636 = vunpack.c.l.b16 %v188
    %v637 = vunpack.c.h.b16 %v188
    %v638 = vunpack.c.l.b16 %v189
    %v639 = vunpack.c.h.b16 %v189
    %v640 = vunpack.c.l.b16 %v190
    %v641 = vunpack.c.h.b16 %v190
    %v642 = vunpack.c.l.b16 %v191
    %v643 = vunpack.c.h.b16 %v191
    %v644 = vunpack.c.l.b16 %v192
    %v645 = vunpack.c.h.b16 %v192
    %v646 = vunpack.c.l.b16 %v193
    %v647 = vunpack.c.h.b16 %v193
    %v648 = vunpack.c.l.b16 %v194
    %v649 = vunpack.c.h.b16 %v194
    %v650 = vunpack.c.l.b16 %v195
    %v651 = vunpack.c.h.b16 %v195
    %v652 = vunpack.c.l.b16 %v196
    %v653 = vunpack.c.h.b16 %v196
    %v654 = vunpack.c.l.b16 %v197
    %v655 = vunpack.c.h.b16 %v197
    %v656 = vunpack.c.l.b16 %v198
    %v657 = vunpack.c.h.b16 %v198
    %v658 = vunpack.c.l.b16 %v199
    %v659 = vunpack.c.h.b16 %v199
    %v660 = vunpack.c.l.b16 %v200
    %v661 = vunpack.c.h.b16 %v200
    %v662 = vunpack.c.l.b16 %v201
    %v663 = vunpack.c.h.b16 %v201
    %v664 = vunpack.c.l.b16 %v202
    %v665 = vunpack.c.h.b16 %v202
    %v666 = vunpack.c.l.b16 %v203
    %v667 = vunpack.c.h.b16 %v203
    %v668 = vunpack.c.l.b16 %v204
    %v669 = vunpack.c.h.b16 %v204
    %v670 = vunpack.c.l.b16 %v205
    %v671 = vunpack.c.h.b16 %v205
    %v672 = vunpack.c.l.b16 %v206
    %v673 = vunpack.c.h.b16 %v206
    %v674 = vunpack.c.l.b16 %v207
    %v675 = vunpack.c.h.b16 %v207
    %v676 = vunpack.c.l.b16 %v208
    %v677 = vunpack.c.h.b16 %v208
    %v678 = vunpack.c.l.b16 %v209
    %v679 = vunpack.c.h.b16 %v209
    %v680 = vunpack.c.l.b16 %v210
    %v681 = vunpack.c.h.b16 %v210
    %v682 = vunpack.c.l.b16 %v211
    %v683 = vunpack.c.h.b16 %v211
    %v684 = vunpack.c.l.b16 %v212
    %v685 = vunpack.c.h.b16 %v212
    %v686 = vunpack.c.l.b16 %v213
    %v687 = vunpack.c.h.b16 %v213
    %v688 = vunpack.c.l.b16 %v214
    %v689 = vunpack.c.h.b16 %v214
    %v690 = vunpack.c.l.b16 %v215
    %v691 = vunpack.c.h.b16 %v215
    %v692 = vunpack.c.l.b16 %v216
    %v693 = vunpack.c.h.b16 %v216
    %v694 = vunpack.c.l.b16 %v217
    %v695 = vunpack.c.h.b16 %v217
    %v696 = vunpack.c.l.b16 %v218
    %v697 = vunpack.c.h.b16 %v218
    %v698 = vunpack.c.l.b16 %v219
    %v699 = vunpack.c.h.b16 %v219
    %v700 = vunpack.c.l.b16 %v220
    %v701 = vunpack.c.h.b16 %v220
    %v702 = vunpack.c.l.b16 %v221
    %v703 = vunpack.c.h.b16 %v221
    %v704 = vunpack.c.l.b16 %v222
    %v705 = vunpack.c.h.b16 %v222
    %v706 = vunpack.c.l.b16 %v223
    %v707 = vunpack.c.h.b16 %v223
    %v708 = vunpack.c.l.b16 %v224
    %v709 = vunpack.c.h.b16 %v224
    %v710 = vunpack.c.l.b16 %v225
    %v711 = vunpack.c.h.b16 %v225
    %v712 = vunpack.c.l.b16 %v226
    %v713 = vunpack.c.h.b16 %v226
    %v714 = vunpack.c.l.b16 %v227
    %v715 = vunpack.c.h.b16 %v227
    %v716 = vunpack.c.l.b16 %v228
    %v717 = vunpack.c.h.b16 %v228
    %v718 = vunpack.c.l.b16 %v229
    %v719 = vunpack.c.h.b16 %v229
    %v720 = vunpack.c.l.b16 %v230
    %v721 = vunpack.c.h.b16 %v230
    %v722 = vunpack.c.l.b16 %v231
    %v723 = vunpack.c.h.b16 %v231
    %v724 = vpack.c.b16 %v408, %v404
    %v725 = vpack.c.b16 %v409, %v405
    %v726 = vpack.c.b16 %v410, %v406
    %v727 = vpack.c.b16 %v411, %v407
    %v728 = vpack.c.b16 %v416, %v412
    %v729 = vpack.c.b16 %v417, %v413
    %v730 = vpack.c.b16 %v418, %v414
    %v731 = vpack.c.b16 %v419, %v415
    %v732 = vpack.c.b16 %v424, %v420
    %v733 = vpack.c.b16 %v425, %v421
    %v734 = vpack.c.b16 %v426, %v422
    %v735 = vpack.c.b16 %v427, %v423
    %v736 = vpack.c.b16 %v432, %v428
    %v737 = vpack.c.b16 %v433, %v429
    %v738 = vpack.c.b16 %v434, %v430
    %v739 = vpack.c.b16 %v435, %v431
    %v740 = vpack.c.b16 %v440, %v436
    %v741 = vpack.c.b16 %v441, %v437
    %v742 = vpack.c.b16 %v442, %v438
    %v743 = vpack.c.b16 %v443, %v439
    %v744 = vpack.c.b16 %v448, %v444
    %v745 = vpack.c.b16 %v449, %v445
    %v746 = vpack.c.b16 %v450, %v446
    %v747 = vpack.c.b16 %v451, %v447
    %v748 = vpack.c.b16 %v456, %v452
    %v749 = vpack.c.b16 %v457, %v453
    %v750 = vpack.c.b16 %v458, %v454
    %v751 = vpack.c.b16 %v459, %v455
    %v752 = vpack.c.b16 %v464, %v460
    %v753 = vpack.c.b16 %v465, %v461
    %v754 = vpack.c.b16 %v466, %v462
    %v755 = vpack.c.b16 %v467, %v463
    %v756 = vpack.c.b16 %v472, %v468
    %v757 = vpack.c.b16 %v473, %v469
    %v758 = vpack.c.b16 %v474, %v470
    %v759 = vpack.c.b16 %v475, %v471
    %v760 = vpack.c.b16 %v480, %v476
    %v761 = vpack.c.b16 %v481, %v477
    %v762 = vpack.c.b16 %v482, %v478
    %v763 = vpack.c.b16 %v483, %v479
    %v764 = vpack.c.b16 %v488, %v484
    %v765 = vpack.c.b16 %v489, %v485
    %v766 = vpack.c.b16 %v490, %v486
    %v767 = vpack.c.b16 %v491, %v487
    %v768 = vpack.c.b16 %v496, %v492
    %v769 = vpack.c.b16 %v497, %v493
    %v770 = vpack.c.b16 %v498, %v494
    %v771 = vpack.c.b16 %v499, %v495
    %v772 = vpack.c.b16 %v504, %v500
    %v773 = vpack.c.b16 %v505, %v501
    %v774 = vpack.c.b16 %v506, %v502
    %v775 = vpack.c.b16 %v507, %v503
    %v776 = vpack.c.b16 %v512, %v508
    %v777 = vpack.c.b16 %v513, %v509
    %v778 = vpack.c.b16 %v514, %v510
    %v779 = vpack.c.b16 %v515, %v511
    %v780 = vpack.c.b16 %v520, %v516
    %v781 = vpack.c.b16 %v521, %v517
    %v782 = vpack.c.b16 %v522, %v518
    %v783 = vpack.c.b16 %v523, %v519
    %v784 = vpack.c.b16 %v528, %v524
    %v785 = vpack.c.b16 %v529, %v525
    %v786 = vpack.c.b16 %v530, %v526
    %v787 = vpack.c.b16 %v531, %v527
    %v788 = vpack.c.b16 %v536, %v532
    %v789 = vpack.c.b16 %v537, %v533
    %v790 = vpack.c.b16 %v538, %v534
    %v791 = vpack.c.b16 %v539, %v535
    %v792 = vpack.c.b16 %v544, %v540
    %v793 = vpack.c.b16 %v545, %v541
    %v794 = vpack.c.b16 %v546, %v542
    %v795 = vpack.c.b16 %v547, %v543
    %v796 = vpack.c.b16 %v552, %v548
    %v797 = vpack.c.b16 %v553, %v549
    %v798 = vpack.c.b16 %v554, %v550
    %v799 = vpack.c.b16 %v555, %v551
    %v800 = vpack.c.b16 %v560, %v556
    %v801 = vpack.c.b16 %v561, %v557
    %v802 = vpack.c.b16 %v562, %v558
    %v803 = vpack.c.b16 %v563, %v559
    %v804 = vpack.c.b16 %v568, %v564
    %v805 = vpack.c.b16 %v569, %v565
    %v806 = vpack.c.b16 %v570, %v566
    %v807 = vpack.c.b16 %v571, %v567
    %v808 = vpack.c.b16 %v576, %v572
    %v809 = vpack.c.b16 %v577, %v573
    %v810 = vpack.c.b16 %v578, %v574
    %v811 = vpack.c.b16 %v579, %v575
    %v812 = vpack.c.b16 %v584, %v580
    %v813 = vpack.c.b16 %v585, %v581
    %v814 = vpack.c.b16 %v586, %v582
    %v815 = vpack.c.b16 %v587, %v583
    %v816 = vpack.c.b16 %v592, %v588
    %v817 = vpack.c.b16 %v593, %v589
    %v818 = vpack.c.b16 %v594, %v590
    %v819 = vpack.c.b16 %v595, %v591
    %v820 = vpack.c.b16 %v600, %v596
    %v821 = vpack.c.b16 %v601, %v597
    %v822 = vpack.c.b16 %v602, %v598
    %v823 = vpack.c.b16 %v603, %v599
    %v824 = vpack.c.b16 %v608, %v604
    %v825 = vpack.c.b16 %v609, %v605
    %v826 = vpack.c.b16 %v610, %v606
    %v827 = vpack.c.b16 %v611, %v607
    %v828 = vpack.c.b16 %v616, %v612
    %v829 = vpack.c.b16 %v617, %v613
    %v830 = vpack.c.b16 %v618, %v614
    %v831 = vpack.c.b16 %v619, %v615
    %v832 = vpack.c.b16 %v624, %v620
    %v833 = vpack.c.b16 %v625, %v621
    %v834 = vpack.c.b16 %v626, %v622
    %v835 = vpack.c.b16 %v627, %v623
    %v836 = vpack.c.b16 %v632, %v628
    %v837 = vpack.c.b16 %v633, %v629
    %v838 = vpack.c.b16 %v634, %v630
    %v839 = vpack.c.b16 %v635, %v631
    %v840 = vpack.c.b16 %v640, %v636
    %v841 = vpack.c.b16 %v641, %v637
    %v842 = vpack.c.b16 %v642, %v638
    %v843 = vpack.c.b16 %v643, %v639
    %v844 = vpack.c.b16 %v648, %v644
    %v845 = vpack.c.b16 %v649, %v645
    %v846 = vpack.c.b16 %v650, %v646
    %v847 = vpack.c.b16 %v651, %v647
    %v848 = vpack.c.b16 %v656, %v652
    %v849 = vpack.c.b16 %v657, %v653
    %v850 = vpack.c.b16 %v658, %v654
    %v851 = vpack.c.b16 %v659, %v655
    %v852 = vpack.c.b16 %v664, %v660
    %v853 = vpack.c.b16 %v665, %v661
    %v854 = vpack.c.b16 %v666, %v662
    %v855 = vpack.c.b16 %v667, %v663
    %v856 = vpack.c.b16 %v672, %v668
    %v857 = vpack.c.b16 %v673, %v669
    %v858 = vpack.c.b16 %v674, %v670
    %v859 = vpack.c.b16 %v675, %v671
    %v860 = vpack.c.b16 %v680, %v676
    %v861 = vpack.c.b16 %v681, %v677
    %v862 = vpack.c.b16 %v682, %v678
    %v863 = vpack.c.b16 %v683, %v679
    %v864 = vpack.c.b16 %v688, %v684
    %v865 = vpack.c.b16 %v689, %v685
    %v866 = vpack.c.b16 %v690, %v686
    %v867 = vpack.c.b16 %v691, %v687
    %v868 = vpack.c.b16 %v696, %v692
    %v869 = vpack.c.b16 %v697, %v693
    %v870 = vpack.c.b16 %v698, %v694
    %v871 = vpack.c.b16 %v699, %v695
    %v872 = vpack.c.b16 %v704, %v700
    %v873 = vpack.c.b16 %v705, %v701
    %v874 = vpack.c.b16 %v706, %v702
    %v875 = vpack.c.b16 %v707, %v703
    %v876 = vpack.c.b16 %v712, %v708
    %v877 = vpack.c.b16 %v713, %v709
    %v878 = vpack.c.b16 %v714, %v710
    %v879 = vpack.c.b16 %v715, %v711
    %v880 = vpack.c.b16 %v720, %v716
    %v881 = vpack.c.b16 %v721, %v717
    %v882 = vpack.c.b16 %v722, %v718
    %v883 = vpack.c.b16 %v723, %v719
    %1044 = vmatpush.bf16.msra.mxu0 %v752
    %1045 = vmatpush.bf16.msra.mxu0 %v748
    %1046 = vmatpush.bf16.msra.mxu0 %v744
    %1047 = vmatpush.bf16.msra.mxu0 %v740
    %1048 = vmatpush.bf16.msra.mxu0 %v736
    %1049 = vmatpush.bf16.msra.mxu0 %v732
    %1050 = vmatpush.bf16.msra.mxu0 %v728
    %1051 = vmatpush.bf16.msra.mxu0 %v724
    %1052 = vmatmul.bf16.gmra.mxu0 %v234
    %v1053 = vpop.f32.mrf.mxu0
    %v1054 = vadd.f32 0.0, %v1053
    %v1055 = vpop.f32.mrf.mxu0
    %1056 = vdwg.mxu0
    %1057 = vmatpush.bf16.msra.mxu0 %v784
    %1058 = vmatpush.bf16.msra.mxu0 %v780
    %1059 = vmatpush.bf16.msra.mxu0 %v776
    %1060 = vmatpush.bf16.msra.mxu0 %v772
    %1061 = vmatpush.bf16.msra.mxu0 %v768
    %1062 = vmatpush.bf16.msra.mxu0 %v764
    %1063 = vmatpush.bf16.msra.mxu0 %v760
    %1064 = vmatpush.bf16.msra.mxu0 %v756
    %1065 = vmatmul.bf16.gmra.mxu0 %v235
    %v1066 = vpop.f32.mrf.mxu0
    %v1067 = vadd.f32 %v1054, %v1066
    %v1068 = vpop.f32.mrf.mxu0
    %1069 = vdwg.mxu0
    %1070 = vmatpush.bf16.msra.mxu0 %v816
    %1071 = vmatpush.bf16.msra.mxu0 %v812
    %1072 = vmatpush.bf16.msra.mxu0 %v808
    %1073 = vmatpush.bf16.msra.mxu0 %v804
    %1074 = vmatpush.bf16.msra.mxu0 %v800
    %1075 = vmatpush.bf16.msra.mxu0 %v796
    %1076 = vmatpush.bf16.msra.mxu0 %v792
    %1077 = vmatpush.bf16.msra.mxu0 %v788
    %1078 = vmatmul.bf16.gmra.mxu0 %v236
    %v1079 = vpop.f32.mrf.mxu0
    %v1080 = vadd.f32 %v1067, %v1079
    %v1081 = vpop.f32.mrf.mxu0
    %1082 = vdwg.mxu0
    %1083 = vmatpush.bf16.msra.mxu0 %v848
    %1084 = vmatpush.bf16.msra.mxu0 %v844
    %1085 = vmatpush.bf16.msra.mxu0 %v840
    %1086 = vmatpush.bf16.msra.mxu0 %v836
    %1087 = vmatpush.bf16.msra.mxu0 %v832
    %1088 = vmatpush.bf16.msra.mxu0 %v828
    %1089 = vmatpush.bf16.msra.mxu0 %v824
    %1090 = vmatpush.bf16.msra.mxu0 %v820
    %1091 = vmatmul.bf16.gmra.mxu0 %v237
    %v1092 = vpop.f32.mrf.mxu0
    %v1093 = vadd.f32 %v1080, %v1092
    %v1094 = vpop.f32.mrf.mxu0
    %1095 = vdwg.mxu0
    %1096 = vmatpush.bf16.msra.mxu0 %v880
    %1097 = vmatpush.bf16.msra.mxu0 %v876
    %1098 = vmatpush.bf16.msra.mxu0 %v872
    %1099 = vmatpush.bf16.msra.mxu0 %v868
    %1100 = vmatpush.bf16.msra.mxu0 %v864
    %1101 = vmatpush.bf16.msra.mxu0 %v860
    %1102 = vmatpush.bf16.msra.mxu0 %v856
    %1103 = vmatpush.bf16.msra.mxu0 %v852
    %1104 = vmatmul.bf16.gmra.mxu0 %v238
    %v1105 = vpop.f32.mrf.mxu0
    %v1106 = vadd.f32 %v1093, %v1105
    %v1107 = vpop.f32.mrf.mxu0
    %1108 = vdwg.mxu0
    %1109 = vmatpush.bf16.msra.mxu0 %v753
    %1110 = vmatpush.bf16.msra.mxu0 %v749
    %1111 = vmatpush.bf16.msra.mxu0 %v745
    %1112 = vmatpush.bf16.msra.mxu0 %v741
    %1113 = vmatpush.bf16.msra.mxu0 %v737
    %1114 = vmatpush.bf16.msra.mxu0 %v733
    %1115 = vmatpush.bf16.msra.mxu0 %v729
    %1116 = vmatpush.bf16.msra.mxu0 %v725
    %1117 = vmatmul.bf16.gmra.mxu0 %v234
    %v1118 = vpop.f32.mrf.mxu0
    %v1119 = vadd.f32 0.0, %v1118
    %v1120 = vpop.f32.mrf.mxu0
    %1121 = vdwg.mxu0
    %1122 = vmatpush.bf16.msra.mxu0 %v785
    %1123 = vmatpush.bf16.msra.mxu0 %v781
    %1124 = vmatpush.bf16.msra.mxu0 %v777
    %1125 = vmatpush.bf16.msra.mxu0 %v773
    %1126 = vmatpush.bf16.msra.mxu0 %v769
    %1127 = vmatpush.bf16.msra.mxu0 %v765
    %1128 = vmatpush.bf16.msra.mxu0 %v761
    %1129 = vmatpush.bf16.msra.mxu0 %v757
    %1130 = vmatmul.bf16.gmra.mxu0 %v235
    %v1131 = vpop.f32.mrf.mxu0
    %v1132 = vadd.f32 %v1119, %v1131
    %v1133 = vpop.f32.mrf.mxu0
    %1134 = vdwg.mxu0
    %1135 = vmatpush.bf16.msra.mxu0 %v817
    %1136 = vmatpush.bf16.msra.mxu0 %v813
    %1137 = vmatpush.bf16.msra.mxu0 %v809
    %1138 = vmatpush.bf16.msra.mxu0 %v805
    %1139 = vmatpush.bf16.msra.mxu0 %v801
    %1140 = vmatpush.bf16.msra.mxu0 %v797
    %1141 = vmatpush.bf16.msra.mxu0 %v793
    %1142 = vmatpush.bf16.msra.mxu0 %v789
    %1143 = vmatmul.bf16.gmra.mxu0 %v236
    %v1144 = vpop.f32.mrf.mxu0
    %v1145 = vadd.f32 %v1132, %v1144
    %v1146 = vpop.f32.mrf.mxu0
    %1147 = vdwg.mxu0
    %1148 = vmatpush.bf16.msra.mxu0 %v849
    %1149 = vmatpush.bf16.msra.mxu0 %v845
    %1150 = vmatpush.bf16.msra.mxu0 %v841
    %1151 = vmatpush.bf16.msra.mxu0 %v837
    %1152 = vmatpush.bf16.msra.mxu0 %v833
    %1153 = vmatpush.bf16.msra.mxu0 %v829
    %1154 = vmatpush.bf16.msra.mxu0 %v825
    %1155 = vmatpush.bf16.msra.mxu0 %v821
    %1156 = vmatmul.bf16.gmra.mxu0 %v237
    %v1157 = vpop.f32.mrf.mxu0
    %v1158 = vadd.f32 %v1145, %v1157
    %v1159 = vpop.f32.mrf.mxu0
    %1160 = vdwg.mxu0
    %1161 = vmatpush.bf16.msra.mxu0 %v881
    %1162 = vmatpush.bf16.msra.mxu0 %v877
    %1163 = vmatpush.bf16.msra.mxu0 %v873
    %1164 = vmatpush.bf16.msra.mxu0 %v869
    %1165 = vmatpush.bf16.msra.mxu0 %v865
    %1166 = vmatpush.bf16.msra.mxu0 %v861
    %1167 = vmatpush.bf16.msra.mxu0 %v857
    %1168 = vmatpush.bf16.msra.mxu0 %v853
    %1169 = vmatmul.bf16.gmra.mxu0 %v238
    %v1170 = vpop.f32.mrf.mxu0
    %v1171 = vadd.f32 %v1158, %v1170
    %v1172 = vpop.f32.mrf.mxu0
    %1173 = vdwg.mxu0
    %1174 = vmatpush.bf16.msra.mxu0 %v754
    %1175 = vmatpush.bf16.msra.mxu0 %v750
    %1176 = vmatpush.bf16.msra.mxu0 %v746
    %1177 = vmatpush.bf16.msra.mxu0 %v742
    %1178 = vmatpush.bf16.msra.mxu0 %v738
    %1179 = vmatpush.bf16.msra.mxu0 %v734
    %1180 = vmatpush.bf16.msra.mxu0 %v730
    %1181 = vmatpush.bf16.msra.mxu0 %v726
    %1182 = vmatmul.bf16.gmra.mxu0 %v234
    %v1183 = vpop.f32.mrf.mxu0
    %v1184 = vadd.f32 0.0, %v1183
    %v1185 = vpop.f32.mrf.mxu0
    %1186 = vdwg.mxu0
    %1187 = vmatpush.bf16.msra.mxu0 %v786
    %1188 = vmatpush.bf16.msra.mxu0 %v782
    %1189 = vmatpush.bf16.msra.mxu0 %v778
    %1190 = vmatpush.bf16.msra.mxu0 %v774
    %1191 = vmatpush.bf16.msra.mxu0 %v770
    %1192 = vmatpush.bf16.msra.mxu0 %v766
    %1193 = vmatpush.bf16.msra.mxu0 %v762
    %1194 = vmatpush.bf16.msra.mxu0 %v758
    %1195 = vmatmul.bf16.gmra.mxu0 %v235
    %v1196 = vpop.f32.mrf.mxu0
    %v1197 = vadd.f32 %v1184, %v1196
    %v1198 = vpop.f32.mrf.mxu0
    %1199 = vdwg.mxu0
    %1200 = vmatpush.bf16.msra.mxu0 %v818
    %1201 = vmatpush.bf16.msra.mxu0 %v814
    %1202 = vmatpush.bf16.msra.mxu0 %v810
    %1203 = vmatpush.bf16.msra.mxu0 %v806
    %1204 = vmatpush.bf16.msra.mxu0 %v802
    %1205 = vmatpush.bf16.msra.mxu0 %v798
    %1206 = vmatpush.bf16.msra.mxu0 %v794
    %1207 = vmatpush.bf16.msra.mxu0 %v790
    %1208 = vmatmul.bf16.gmra.mxu0 %v236
    %v1209 = vpop.f32.mrf.mxu0
    %v1210 = vadd.f32 %v1197, %v1209
    %v1211 = vpop.f32.mrf.mxu0
    %1212 = vdwg.mxu0
    %1213 = vmatpush.bf16.msra.mxu0 %v850
    %1214 = vmatpush.bf16.msra.mxu0 %v846
    %1215 = vmatpush.bf16.msra.mxu0 %v842
    %1216 = vmatpush.bf16.msra.mxu0 %v838
    %1217 = vmatpush.bf16.msra.mxu0 %v834
    %1218 = vmatpush.bf16.msra.mxu0 %v830
    %1219 = vmatpush.bf16.msra.mxu0 %v826
    %1220 = vmatpush.bf16.msra.mxu0 %v822
    %1221 = vmatmul.bf16.gmra.mxu0 %v237
    %v1222 = vpop.f32.mrf.mxu0
    %v1223 = vadd.f32 %v1210, %v1222
    %v1224 = vpop.f32.mrf.mxu0
    %1225 = vdwg.mxu0
    %1226 = vmatpush.bf16.msra.mxu0 %v882
    %1227 = vmatpush.bf16.msra.mxu0 %v878
    %1228 = vmatpush.bf16.msra.mxu0 %v874
    %1229 = vmatpush.bf16.msra.mxu0 %v870
    %1230 = vmatpush.bf16.msra.mxu0 %v866
    %1231 = vmatpush.bf16.msra.mxu0 %v862
    %1232 = vmatpush.bf16.msra.mxu0 %v858
    %1233 = vmatpush.bf16.msra.mxu0 %v854
    %1234 = vmatmul.bf16.gmra.mxu0 %v238
    %v1235 = vpop.f32.mrf.mxu0
    %v1236 = vadd.f32 %v1223, %v1235
    %v1237 = vpop.f32.mrf.mxu0
    %1238 = vdwg.mxu0
    %1239 = vmatpush.bf16.msra.mxu0 %v755
    %1240 = vmatpush.bf16.msra.mxu0 %v751
    %1241 = vmatpush.bf16.msra.mxu0 %v747
    %1242 = vmatpush.bf16.msra.mxu0 %v743
    %1243 = vmatpush.bf16.msra.mxu0 %v739
    %1244 = vmatpush.bf16.msra.mxu0 %v735
    %1245 = vmatpush.bf16.msra.mxu0 %v731
    %1246 = vmatpush.bf16.msra.mxu0 %v727
    %1247 = vmatmul.bf16.gmra.mxu0 %v234
    %v1248 = vpop.f32.mrf.mxu0
    %v1249 = vadd.f32 0.0, %v1248
    %v1250 = vpop.f32.mrf.mxu0
    %1251 = vdwg.mxu0
    %1252 = vmatpush.bf16.msra.mxu0 %v787
    %1253 = vmatpush.bf16.msra.mxu0 %v783
    %1254 = vmatpush.bf16.msra.mxu0 %v779
    %1255 = vmatpush.bf16.msra.mxu0 %v775
    %1256 = vmatpush.bf16.msra.mxu0 %v771
    %1257 = vmatpush.bf16.msra.mxu0 %v767
    %1258 = vmatpush.bf16.msra.mxu0 %v763
    %1259 = vmatpush.bf16.msra.mxu0 %v759
    %1260 = vmatmul.bf16.gmra.mxu0 %v235
    %v1261 = vpop.f32.mrf.mxu0
    %v1262 = vadd.f32 %v1249, %v1261
    %v1263 = vpop.f32.mrf.mxu0
    %1264 = vdwg.mxu0
    %1265 = vmatpush.bf16.msra.mxu0 %v819
    %1266 = vmatpush.bf16.msra.mxu0 %v815
    %1267 = vmatpush.bf16.msra.mxu0 %v811
    %1268 = vmatpush.bf16.msra.mxu0 %v807
    %1269 = vmatpush.bf16.msra.mxu0 %v803
    %1270 = vmatpush.bf16.msra.mxu0 %v799
    %1271 = vmatpush.bf16.msra.mxu0 %v795
    %1272 = vmatpush.bf16.msra.mxu0 %v791
    %1273 = vmatmul.bf16.gmra.mxu0 %v236
    %v1274 = vpop.f32.mrf.mxu0
    %v1275 = vadd.f32 %v1262, %v1274
    %v1276 = vpop.f32.mrf.mxu0
    %1277 = vdwg.mxu0
    %1278 = vmatpush.bf16.msra.mxu0 %v851
    %1279 = vmatpush.bf16.msra.mxu0 %v847
    %1280 = vmatpush.bf16.msra.mxu0 %v843
    %1281 = vmatpush.bf16.msra.mxu0 %v839
    %1282 = vmatpush.bf16.msra.mxu0 %v835
    %1283 = vmatpush.bf16.msra.mxu0 %v831
    %1284 = vmatpush.bf16.msra.mxu0 %v827
    %1285 = vmatpush.bf16.msra.mxu0 %v823
    %1286 = vmatmul.bf16.gmra.mxu0 %v237
    %v1287 = vpop.f32.mrf.mxu0
    %v1288 = vadd.f32 %v1275, %v1287
    %v1289 = vpop.f32.mrf.mxu0
    %1290 = vdwg.mxu0
    %1291 = vmatpush.bf16.msra.mxu0 %v883
    %1292 = vmatpush.bf16.msra.mxu0 %v879
    %1293 = vmatpush.bf16.msra.mxu0 %v875
    %1294 = vmatpush.bf16.msra.mxu0 %v871
    %1295 = vmatpush.bf16.msra.mxu0 %v867
    %1296 = vmatpush.bf16.msra.mxu0 %v863
    %1297 = vmatpush.bf16.msra.mxu0 %v859
    %1298 = vmatpush.bf16.msra.mxu0 %v855
    %1299 = vmatmul.bf16.gmra.mxu0 %v238
    %v1300 = vpop.f32.mrf.mxu0
    %v1301 = vadd.f32 %v1288, %v1300
    %v1302 = vpop.f32.mrf.mxu0
    %1303 = vdwg.mxu0
    %v1308 = vrot.slane %v1171, 6
    %v1309 = vrot.slane %v1236, 4
    %v1310 = vrot.slane %v1301, 2
    %vm1311 = vcmask 1041408
    %v1312 = vsel %vm1311, %v1106, %v1308
    %vm1313 = vcmask 1045508
    %v1314 = vsel %vm1313, %v1309, %v1310
    %vm1315 = vcmask 1043456
    %v1316 = vsel %vm1315, %v1312, %v1314
    %v1318 = vadd.f32 %v70, %v1316
    %1319 = vst [vmem:[#allocation2] sm:$0xff] %v1318
    // Predicated region
    $region38: #{_lambda_.7} parent=1 // pred_check
      %p1320 = pneg %p65
    $region39: #{_lambda_.7} parent=1 // pred_check_branch
      %1322 = sbr.rel (%p1320) target = $region41
    $region40: #{_lambda_.7} parent=1 // pred_region
      %v1323 = vld [vmem:[#allocation2] sm:$0xff]
      %v1324 = vld [vmem:[#allocation6] sm:$0xf]
      %v1326 = vperm.slane %v1324, 0
      %v1327 = vperm.slane %v1324, 1
      %v1328 = vperm.slane %v1324, 2
      %v1329 = vperm.slane %v1324, 3
      %v1330 = vrot.slane %v1327, 6
      %v1331 = vrot.slane %v1328, 4
      %v1332 = vrot.slane %v1329, 2
      %v1333 = vsel %vm1311, %v1326, %v1330
      %v1334 = vsel %vm1313, %v1331, %v1332
      %v1335 = vsel %vm1315, %v1333, %v1334
      %v1337 = vadd.f32 %v1323, %v1335
      %v1338 = vmax.f32 %v1337, 0.0
      %v1339 = vld [vmem:[#allocation8] sm:$0xf]
      %v1341 = vperm.slane %v1339, 0
      %v1342 = vperm.slane %v1339, 1
      %v1343 = vperm.slane %v1339, 2
      %v1344 = vperm.slane %v1339, 3
      %v1345 = vrot.slane %v1342, 6
      %v1346 = vrot.slane %v1343, 4
      %v1347 = vrot.slane %v1344, 2
      %v1348 = vsel %vm1311, %v1341, %v1345
      %v1349 = vsel %vm1313, %v1346, %v1347
      %v1350 = vsel %vm1315, %v1348, %v1349
      %v1352 = vmul.f32 %v1338, %v1350
      %1354 = vst [vmem:[#allocation1] ss:$4 sm:$0xff] %v1352
      %v1355 = vld.sshfl [vmem:[#allocation1] sm:$0xff pattern:$0x73625140]
      %v1356 = vld.sshfl [vmem:[#allocation1 + $0x8] sm:$0xff pattern:$0x73625140]
      %v1357 = vld.sshfl [vmem:[#allocation1 + $0x10] sm:$0xff pattern:$0x73625140]
      %v1358 = vld.sshfl [vmem:[#allocation1 + $0x18] sm:$0xff pattern:$0x73625140]
      %v1363 = vsel %vm1311, %v1355, 0.0
      %v1364 = vsel %vm1311, %v1356, 0.0
      %v1365 = vadd.f32 %v1363, %v1364
      %v1366 = vsel %vm1311, %v1357, 0.0
      %v1367 = vadd.f32 %v1365, %v1366
      %v1368 = vsel %vm1311, %v1358, 0.0
      %v1369 = vadd.f32 %v1367, %v1368
      %1370 = vadd.xlane.f32.xlu0 %v1369
      %v1371 = vpop.xlane.xlu0 %1370
      %v1372 = vld [vmem:[#allocation3] sm:$0x1]
      %v1374 = vperm.slane %v1372, 0
      %v1376 = vadd.f32 %v1371, %v1374
      %vm1377 = vcmask 1024
      %1378 = vst.msk [vmem:[%s5] sm:$0x3] %vm1377, %v1376
    $region41: #{_lambda_.7} parent=1 // pred_fallthru
      _
    // Predicated region
    $region42: #{_lambda_.7} parent=1 // pred_check
      _
    $region43: #{_lambda_.7} parent=1 // pred_check_branch
      %1380 = sbr.rel (0) target = $region45
    $region44: #{_lambda_.7} parent=1 // pred_region
      _
    $region45: #{_lambda_.7} parent=1 // pred_fallthru
      _
    // Predicated region
    $region46: #{_lambda_.7} parent=1 // pred_check
      _
    $region47: #{_lambda_.7} parent=1 // pred_check_branch
      %1382 = sbr.rel (0) target = $region49
    $region48: #{_lambda_.7} parent=1 // pred_region
      _
    $region49: #{_lambda_.7} parent=1 // pred_fallthru
      _
    %1383 = vsyncpa [#allocation5], 1
    %1384 = vsyncpa [#allocation7], 1

// kernel: _lambda_.5
$region0: #{_lambda_.5}
  #allocation0 [shape = 'u32[]', space=smem, size = 0x4, offset = 0x4, fixed_abs, tag = 'smem constant byte address 0x4 - core index']
  #allocation1 [shape = 'u32[72,128]{1,0:T(1,128)}', space=vmem, size = 0x9000, scoped, tag = 'internal scratch']
  %s0 = inlined_call_operand.vmem [shape: bf16[2,14,768], index: 0, kind: input, shape index: {}]
  %s1 = inlined_call_operand.hbm [shape: bf16[1920,512], index: 1, kind: input, shape index: {}]
  %s2 = inlined_call_operand.hbm [shape: f32[1,256], index: 2, kind: input, shape index: {}]
  %s3 = inlined_call_operand.vmem [shape: bf16[2,12,256], index: 3, kind: output, shape index: {}]
  %s4 = sld [smem:[#allocation0]]
  $region53: #{_lambda_.5} parent=0
    _
  %s6 = ssub.s32 1, %s4
  %s7 = scalar_select 0, %s6, %s4
  $region1: #{_lambda_.5} parent=0
    #allocation2 [shape = 'u8[1966080]{0}', space=vmem, size = 0x1e0000, scoped, tag = 'input window, operand 1, single buffered']
    #allocation3 [shape = 's32[2]{0}', space=sflag, size = 0x8, scoped, tag = 'scoped memory for _lambda_.5']
    #allocation4 [shape = 'u8[1024]{0}', space=vmem, size = 0x400, scoped, tag = 'input window, operand 2, single buffered']
    #allocation5 [shape = 's32[1]{0}', space=sflag, size = 0x4, scoped, tag = 'scoped memory for _lambda_.5']
    %8 = vsyncpa [#allocation3], 0
    %9 = vsyncpa [#allocation5], 0
    loop: start=0, step=1, limit=4
    $region2: #{_lambda_.5} parent=1 // loop_pre_header
      _
    $region3: #{_lambda_.5} parent=1 // loop_header
      %s11 = sphi 0, %s15
      %p12 = scmp.ge.s32.totalorder %s11, 4
      %s21 = sphi 0, %s23
      %s24 = sphi 0, %s21
      %s25 = sphi 0, %s24
      %s41 = sphi 0, %s25
      %s45 = sphi 0, %s45
      %s47 = sphi 0, %s45
      %s48 = sphi 0, %s47
      %s62 = sphi 0, %s48
      %s66 = sphi 0, %s66
      %s68 = sphi 0, %s66
      %s69 = sphi 0, %s68
      %s83 = sphi 0, %s69
      %s89 = sphi 0, %s91
      %s92 = sphi 0, %s89
      %s93 = sphi 0, %s92
      %s109 = sphi 0, %s93
    $region4: #{_lambda_.5} parent=1 // loop_header_branch
      %14 = sbr.rel (%p12) target = $region8
    $region5: #{_lambda_.5} parent=1 // loop_body
      %s16 = ssub.s32 %s11, 1
      %s17 = ssub.s32 %s11, 2
      %s18 = sadd.s32 %s11, 1
      %s19 = ssub.s32 %s11, %s18
      %p20 = scmp.eq.s32.totalorder %s19, 0
      %s22 = sadd.s32 %s21, 1
      %s23 = scalar_select %p20, %s21, %s22
      %p26 = pneg %p20
      %p27 = scmp.eq.s32.totalorder %s11, 1
      %p28 = por %p26, %p27
      %p29 = scmp.ne.s32.totalorder %s21, %s24
      %p30 = scmp.eq.s32.totalorder %s11, 0
      %p31 = por %p29, %p30
      %p32 = scmp.ne.s32.totalorder %s21, %s24
      %p33 = scmp.eq.s32.totalorder %s16, 1
      %p34 = por %p32, %p33
      %p35 = scmp.ne.s32.totalorder %s24, %s25
      %p36 = scmp.eq.s32.totalorder %s16, 0
      %p37 = por %p35, %p36
      %p38 = scmp.ne.s32.totalorder %s24, %s25
      %p39 = scmp.eq.s32.totalorder %s17, 1
      %p40 = por %p38, %p39
      %p42 = scmp.ne.s32.totalorder %s25, %s41
      %p43 = scmp.eq.s32.totalorder %s17, 0
      %p44 = por %p42, %p43
      %s46 = sadd.s32 %s45, 1
      %p49 = scmp.eq.s32.totalorder %s11, 1
      %p50 = scmp.ne.s32.totalorder %s45, %s47
      %p51 = scmp.eq.s32.totalorder %s11, 0
      %p52 = por %p50, %p51
      %p53 = scmp.ne.s32.totalorder %s45, %s47
      %p54 = scmp.eq.s32.totalorder %s16, 1
      %p55 = por %p53, %p54
      %p56 = scmp.ne.s32.totalorder %s47, %s48
      %p57 = scmp.eq.s32.totalorder %s16, 0
      %p58 = por %p56, %p57
      %p59 = scmp.ne.s32.totalorder %s47, %s48
      %p60 = scmp.eq.s32.totalorder %s17, 1
      %p61 = por %p59, %p60
      %p63 = scmp.ne.s32.totalorder %s48, %s62
      %p64 = scmp.eq.s32.totalorder %s17, 0
      %p65 = por %p63, %p64
      %s67 = sadd.s32 %s66, 1
      %p70 = scmp.eq.s32.totalorder %s11, 1
      %p71 = scmp.ne.s32.totalorder %s66, %s68
      %p72 = scmp.eq.s32.totalorder %s11, 0
      %p73 = por %p71, %p72
      %p74 = scmp.ne.s32.totalorder %s66, %s68
      %p75 = scmp.eq.s32.totalorder %s16, 1
      %p76 = por %p74, %p75
      %p77 = scmp.ne.s32.totalorder %s68, %s69
      %p78 = scmp.eq.s32.totalorder %s16, 0
      %p79 = por %p77, %p78
      %p80 = scmp.ne.s32.totalorder %s68, %s69
      %p81 = scmp.eq.s32.totalorder %s17, 1
      %p82 = por %p80, %p81
      %p84 = scmp.ne.s32.totalorder %s69, %s83
      %p85 = scmp.eq.s32.totalorder %s17, 0
      %p86 = por %p84, %p85
      %s87 = ssub.s32 %s11, %s18
      %p88 = scmp.eq.s32.totalorder %s87, 0
      %s90 = sadd.s32 %s89, 1
      %s91 = scalar_select %p88, %s89, %s90
      %p94 = pneg %p88
      %p95 = scmp.eq.s32.totalorder %s11, 1
      %p96 = por %p94, %p95
      %p97 = scmp.ne.s32.totalorder %s89, %s92
      %p98 = scmp.eq.s32.totalorder %s11, 0
      %p99 = por %p97, %p98
      %p100 = scmp.ne.s32.totalorder %s89, %s92
      %p101 = scmp.eq.s32.totalorder %s16, 1
      %p102 = por %p100, %p101
      %p103 = scmp.ne.s32.totalorder %s92, %s93
      %p104 = scmp.eq.s32.totalorder %s16, 0
      %p105 = por %p103, %p104
      %p106 = scmp.ne.s32.totalorder %s92, %s93
      %p107 = scmp.eq.s32.totalorder %s17, 1
      %p108 = por %p106, %p107
      %p110 = scmp.ne.s32.totalorder %s93, %s109
      %p111 = scmp.eq.s32.totalorder %s17, 0
      %p112 = por %p110, %p111
      %p113 = scmp.le.s32.totalorder 1, %s11
      %p114 = scmp.lt.s32.totalorder %s11, 3
      %p115 = pnand %p113, %p114
      %p116 = pneg %p115
      // Predicated region
      $region9: #{_lambda_.5} parent=5 // pred_check
        _
      $region10: #{_lambda_.5} parent=5 // pred_check_branch
        %118 = sbr.rel (%p115) target = $region12
      $region11: #{_lambda_.5} parent=5 // pred_region
        %s119 = ssub.s32 %s11, 1
        // Predicated region
        $region13: #{_lambda_.5} parent=11 // pred_check
          %p120 = pneg %p58
        $region14: #{_lambda_.5} parent=11 // pred_check_branch
          %122 = sbr.rel (%p120) target = $region16
        $region15: #{_lambda_.5} parent=11 // pred_region
          %124 = vsyncadd [#allocation3], 0
          %s125 = sshll.u32 %s1, 4
          %s126 = int_to_ptr.hbm [resolvable:$true] %s125
          %s127 = sshll.u32 [#allocation2], 4
          %s128 = int_to_ptr.vmem [resolvable:$true] %s127
          %133 = dma.hbm_to_vmem [thread:$0]  %s126, 61440, %s128, [#allocation3], 256, 256, 16
        $region16: #{_lambda_.5} parent=11 // pred_fallthru
          _
        // Predicated region
        $region17: #{_lambda_.5} parent=11 // pred_check
          %p134 = pneg %p79
        $region18: #{_lambda_.5} parent=11 // pred_check_branch
          %136 = sbr.rel (%p134) target = $region20
        $region19: #{_lambda_.5} parent=11 // pred_region
          %138 = vsyncadd [#allocation5], 0
          %s140 = sshll.u32 %s2, 4
          %s141 = int_to_ptr.hbm [resolvable:$true] %s140
          %s142 = sshll.u32 [#allocation4], 4
          %s143 = int_to_ptr.vmem [resolvable:$true] %s142
          %145 = dma.hbm_to_vmem [thread:$0]  %s141, 32, %s143, [#allocation5]
        $region20: #{_lambda_.5} parent=11 // pred_fallthru
          _
      $region12: #{_lambda_.5} parent=5 // pred_fallthru
        _
      %p146 = scmp.lt.s32.totalorder %s11, 2
      // Predicated region
      $region21: #{_lambda_.5} parent=5 // pred_check
        %p147 = pneg %p146
      $region22: #{_lambda_.5} parent=5 // pred_check_branch
        %149 = sbr.rel (%p147) target = $region24
      $region23: #{_lambda_.5} parent=5 // pred_region
        // Predicated region
        $region25: #{_lambda_.5} parent=23 // pred_check
          %p150 = pneg %p31
        $region26: #{_lambda_.5} parent=23 // pred_check_branch
          %152 = sbr.rel (%p150) target = $region28
        $region27: #{_lambda_.5} parent=23 // pred_region
          %p153 = scmp.lt.s32.totalorder %s11, 1
          %s154 = scalar_select %p153, %s11, 1
          %s155 = smul.addr %s154, 12
          %s156 = smul.addr %s155, 4
          %s157 = scalar_lea.vmem %s0, %s156
        $region28: #{_lambda_.5} parent=23 // pred_fallthru
          _
      $region24: #{_lambda_.5} parent=5 // pred_fallthru
        _
      %p158 = scmp.le.s32.totalorder 1, %s11
      %p159 = scmp.lt.s32.totalorder %s11, 3
      %p160 = pnand %p158, %p159
      %p161 = pneg %p160
      // Predicated region
      $region29: #{_lambda_.5} parent=5 // pred_check
        _
      $region30: #{_lambda_.5} parent=5 // pred_check_branch
        %163 = sbr.rel (%p160) target = $region32
      $region31: #{_lambda_.5} parent=5 // pred_region
        %s164 = ssub.s32 %s11, 1
        // Predicated region
        $region33: #{_lambda_.5} parent=31 // pred_check
          %p165 = pneg %p58
        $region34: #{_lambda_.5} parent=31 // pred_check_branch
          %167 = sbr.rel (%p165) target = $region36
        $region35: #{_lambda_.5} parent=31 // pred_region
          %169 = dma.done [#allocation3], 61440
        $region36: #{_lambda_.5} parent=31 // pred_fallthru
          _
        // Predicated region
        $region37: #{_lambda_.5} parent=31 // pred_check
          %p170 = pneg %p79
        $region38: #{_lambda_.5} parent=31 // pred_check_branch
          %172 = sbr.rel (%p170) target = $region40
        $region39: #{_lambda_.5} parent=31 // pred_region
          %174 = dma.done [#allocation5], 32
        $region40: #{_lambda_.5} parent=31 // pred_fallthru
          _
        %p175 = scmp.lt.s32.totalorder %s16, 1
        %s176 = scalar_select %p175, %s16, 1
        %s177 = smul.addr %s176, 12
        %s178 = smul.addr %s177, 4
        %s179 = scalar_lea.vmem %s0, %s178
        %p180 = pneg %p37
        %p181 = pneg %p34
        %p182 = pneg %p58
        %p183 = pneg %p55
        %p184 = pneg %p79
        %p185 = pneg %p76
        %p186 = pneg %p105
        %p187 = pneg %p102
        %p188 = scmp.lt.s32.totalorder %s16, 1
        %s189 = scalar_select %p188, %s16, 1
        %s190 = smul.addr %s189, 4
        %s191 = smul.addr %s190, 4
        %s192 = scalar_lea.vmem %s3, %s191
        %p193 = scmp.lt.s32.totalorder %s16, 1
        %s194 = scalar_select %p193, %s16, 1
        %s195 = smul.addr %s194, 12
        %s196 = smul.addr %s195, 4
        %s197 = scalar_lea.vmem %s0, %s196
        %p198 = scmp.lt.s32.totalorder %s16, 1
        %s199 = scalar_select %p198, %s16, 1
        %s200 = smul.addr %s199, 4
        %s201 = smul.addr %s200, 4
        %s202 = scalar_lea.vmem %s3, %s201
        %v203 = vld [vmem:[#allocation2] sm:$0xff]
        %v204 = vld [vmem:[#allocation2 + $0x8] sm:$0xff]
        %v205 = vld [vmem:[#allocation2 + $0x10] sm:$0xff]
        %v206 = vld [vmem:[#allocation2 + $0x18] sm:$0xff]
        %v207 = vld [vmem:[#allocation2 + $0x20] sm:$0xff]
        %v208 = vld [vmem:[#allocation2 + $0x28] sm:$0xff]
        %v209 = vld [vmem:[#allocation2 + $0x30] sm:$0xff]
        %v210 = vld [vmem:[#allocation2 + $0x38] sm:$0xff]
        %v211 = vld [vmem:[#allocation2 + $0x40] sm:$0xff]
        %v212 = vld [vmem:[#allocation2 + $0x48] sm:$0xff]
        %v213 = vld [vmem:[#allocation2 + $0x50] sm:$0xff]
        %v214 = vld [vmem:[#allocation2 + $0x58] sm:$0xff]
        %v215 = vld [vmem:[#allocation2 + $0x60] sm:$0xff]
        %v216 = vld [vmem:[#allocation2 + $0x68] sm:$0xff]
        %v217 = vld [vmem:[#allocation2 + $0x70] sm:$0xff]
        %v218 = vld [vmem:[#allocation2 + $0x78] sm:$0xff]
        %v219 = vld [vmem:[#allocation2 + $0x80] sm:$0xff]
        %v220 = vld [vmem:[#allocation2 + $0x88] sm:$0xff]
        %v221 = vld [vmem:[#allocation2 + $0x90] sm:$0xff]
        %v222 = vld [vmem:[#allocation2 + $0x98] sm:$0xff]
        %v223 = vld [vmem:[#allocation2 + $0xa0] sm:$0xff]
        %v224 = vld [vmem:[#allocation2 + $0xa8] sm:$0xff]
        %v225 = vld [vmem:[#allocation2 + $0xb0] sm:$0xff]
        %v226 = vld [vmem:[#allocation2 + $0xb8] sm:$0xff]
        %v227 = vld [vmem:[#allocation2 + $0xc0] sm:$0xff]
        %v228 = vld [vmem:[#allocation2 + $0xc8] sm:$0xff]
        %v229 = vld [vmem:[#allocation2 + $0xd0] sm:$0xff]
        %v230 = vld [vmem:[#allocation2 + $0xd8] sm:$0xff]
        %v231 = vld [vmem:[#allocation2 + $0xe0] sm:$0xff]
        %v232 = vld [vmem:[#allocation2 + $0xe8] sm:$0xff]
        %v233 = vld [vmem:[#allocation2 + $0xf0] sm:$0xff]
        %v234 = vld [vmem:[#allocation2 + $0xf8] sm:$0xff]
        %v235 = vld [vmem:[#allocation2 + $0x100] sm:$0xff]
        %v236 = vld [vmem:[#allocation2 + $0x108] sm:$0xff]
        %v237 = vld [vmem:[#allocation2 + $0x110] sm:$0xff]
        %v238 = vld [vmem:[#allocation2 + $0x118] sm:$0xff]
        %v239 = vld [vmem:[#allocation2 + $0x120] sm:$0xff]
        %v240 = vld [vmem:[#allocation2 + $0x128] sm:$0xff]
        %v241 = vld [vmem:[#allocation2 + $0x130] sm:$0xff]
        %v242 = vld [vmem:[#allocation2 + $0x138] sm:$0xff]
        %v243 = vld [vmem:[#allocation2 + $0x140] sm:$0xff]
        %v244 = vld [vmem:[#allocation2 + $0x148] sm:$0xff]
        %v245 = vld [vmem:[#allocation2 + $0x150] sm:$0xff]
        %v246 = vld [vmem:[#allocation2 + $0x158] sm:$0xff]
        %v247 = vld [vmem:[#allocation2 + $0x160] sm:$0xff]
        %v248 = vld [vmem:[#allocation2 + $0x168] sm:$0xff]
        %v249 = vld [vmem:[#allocation2 + $0x170] sm:$0xff]
        %v250 = vld [vmem:[#allocation2 + $0x178] sm:$0xff]
        %v251 = vld [vmem:[#allocation2 + $0x180] sm:$0xff]
        %v252 = vld [vmem:[#allocation2 + $0x188] sm:$0xff]
        %v253 = vld [vmem:[#allocation2 + $0x190] sm:$0xff]
        %v254 = vld [vmem:[#allocation2 + $0x198] sm:$0xff]
        %v255 = vld [vmem:[#allocation2 + $0x1a0] sm:$0xff]
        %v256 = vld [vmem:[#allocation2 + $0x1a8] sm:$0xff]
        %v257 = vld [vmem:[#allocation2 + $0x1b0] sm:$0xff]
        %v258 = vld [vmem:[#allocation2 + $0x1b8] sm:$0xff]
        %v259 = vld [vmem:[#allocation2 + $0x1c0] sm:$0xff]
        %v260 = vld [vmem:[#allocation2 + $0x1c8] sm:$0xff]
        %v261 = vld [vmem:[#allocation2 + $0x1d0] sm:$0xff]
        %v262 = vld [vmem:[#allocation2 + $0x1d8] sm:$0xff]
        %v263 = vld [vmem:[#allocation2 + $0x1e0] sm:$0xff]
        %v264 = vld [vmem:[#allocation2 + $0x1e8] sm:$0xff]
        %v265 = vld [vmem:[#allocation2 + $0x1f0] sm:$0xff]
        %v266 = vld [vmem:[#allocation2 + $0x1f8] sm:$0xff]
        %v267 = vld [vmem:[#allocation2 + $0x200] sm:$0xff]
        %v268 = vld [vmem:[#allocation2 + $0x208] sm:$0xff]
        %v269 = vld [vmem:[#allocation2 + $0x210] sm:$0xff]
        %v270 = vld [vmem:[#allocation2 + $0x218] sm:$0xff]
        %v271 = vld [vmem:[#allocation2 + $0x220] sm:$0xff]
        %v272 = vld [vmem:[#allocation2 + $0x228] sm:$0xff]
        %v273 = vld [vmem:[#allocation2 + $0x230] sm:$0xff]
        %v274 = vld [vmem:[#allocation2 + $0x238] sm:$0xff]
        %v275 = vld [vmem:[#allocation2 + $0x240] sm:$0xff]
        %v276 = vld [vmem:[#allocation2 + $0x248] sm:$0xff]
        %v277 = vld [vmem:[#allocation2 + $0x250] sm:$0xff]
        %v278 = vld [vmem:[#allocation2 + $0x258] sm:$0xff]
        %v279 = vld [vmem:[#allocation2 + $0x260] sm:$0xff]
        %v280 = vld [vmem:[#allocation2 + $0x268] sm:$0xff]
        %v281 = vld [vmem:[#allocation2 + $0x270] sm:$0xff]
        %v282 = vld [vmem:[#allocation2 + $0x278] sm:$0xff]
        %v283 = vld [vmem:[#allocation2 + $0x280] sm:$0xff]
        %v284 = vld [vmem:[#allocation2 + $0x288] sm:$0xff]
        %v285 = vld [vmem:[#allocation2 + $0x290] sm:$0xff]
        %v286 = vld [vmem:[#allocation2 + $0x298] sm:$0xff]
        %v287 = vld [vmem:[#allocation2 + $0x2a0] sm:$0xff]
        %v288 = vld [vmem:[#allocation2 + $0x2a8] sm:$0xff]
        %v289 = vld [vmem:[#allocation2 + $0x2b0] sm:$0xff]
        %v290 = vld [vmem:[#allocation2 + $0x2b8] sm:$0xff]
        %v291 = vld [vmem:[#allocation2 + $0x2c0] sm:$0xff]
        %v292 = vld [vmem:[#allocation2 + $0x2c8] sm:$0xff]
        %v293 = vld [vmem:[#allocation2 + $0x2d0] sm:$0xff]
        %v294 = vld [vmem:[#allocation2 + $0x2d8] sm:$0xff]
        %v295 = vld [vmem:[#allocation2 + $0x2e0] sm:$0xff]
        %v296 = vld [vmem:[#allocation2 + $0x2e8] sm:$0xff]
        %v297 = vld [vmem:[#allocation2 + $0x2f0] sm:$0xff]
        %v298 = vld [vmem:[#allocation2 + $0x2f8] sm:$0xff]
        %v299 = vld [vmem:[#allocation2 + $0x300] sm:$0xff]
        %v300 = vld [vmem:[#allocation2 + $0x308] sm:$0xff]
        %v301 = vld [vmem:[#allocation2 + $0x310] sm:$0xff]
        %v302 = vld [vmem:[#allocation2 + $0x318] sm:$0xff]
        %v303 = vld [vmem:[#allocation2 + $0x320] sm:$0xff]
        %v304 = vld [vmem:[#allocation2 + $0x328] sm:$0xff]
        %v305 = vld [vmem:[#allocation2 + $0x330] sm:$0xff]
        %v306 = vld [vmem:[#allocation2 + $0x338] sm:$0xff]
        %v307 = vld [vmem:[#allocation2 + $0x340] sm:$0xff]
        %v308 = vld [vmem:[#allocation2 + $0x348] sm:$0xff]
        %v309 = vld [vmem:[#allocation2 + $0x350] sm:$0xff]
        %v310 = vld [vmem:[#allocation2 + $0x358] sm:$0xff]
        %v311 = vld [vmem:[#allocation2 + $0x360] sm:$0xff]
        %v312 = vld [vmem:[#allocation2 + $0x368] sm:$0xff]
        %v313 = vld [vmem:[#allocation2 + $0x370] sm:$0xff]
        %v314 = vld [vmem:[#allocation2 + $0x378] sm:$0xff]
        %v315 = vld [vmem:[#allocation2 + $0x380] sm:$0xff]
        %v316 = vld [vmem:[#allocation2 + $0x388] sm:$0xff]
        %v317 = vld [vmem:[#allocation2 + $0x390] sm:$0xff]
        %v318 = vld [vmem:[#allocation2 + $0x398] sm:$0xff]
        %v319 = vld [vmem:[#allocation2 + $0x3a0] sm:$0xff]
        %v320 = vld [vmem:[#allocation2 + $0x3a8] sm:$0xff]
        %v321 = vld [vmem:[#allocation2 + $0x3b0] sm:$0xff]
        %v322 = vld [vmem:[#allocation2 + $0x3b8] sm:$0xff]
        %v323 = vld [vmem:[#allocation2 + $0x3c0] sm:$0xff]
        %v324 = vld [vmem:[#allocation2 + $0x3c8] sm:$0xff]
        %v325 = vld [vmem:[#allocation2 + $0x3d0] sm:$0xff]
        %v326 = vld [vmem:[#allocation2 + $0x3d8] sm:$0xff]
        %v327 = vld [vmem:[#allocation2 + $0x3e0] sm:$0xff]
        %v328 = vld [vmem:[#allocation2 + $0x3e8] sm:$0xff]
        %v329 = vld [vmem:[#allocation2 + $0x3f0] sm:$0xff]
        %v330 = vld [vmem:[#allocation2 + $0x3f8] sm:$0xff]
        %v331 = vld [vmem:[#allocation2 + $0x400] sm:$0xff]
        %v332 = vld [vmem:[#allocation2 + $0x408] sm:$0xff]
        %v333 = vld [vmem:[#allocation2 + $0x410] sm:$0xff]
        %v334 = vld [vmem:[#allocation2 + $0x418] sm:$0xff]
        %v335 = vld [vmem:[#allocation2 + $0x420] sm:$0xff]
        %v336 = vld [vmem:[#allocation2 + $0x428] sm:$0xff]
        %v337 = vld [vmem:[#allocation2 + $0x430] sm:$0xff]
        %v338 = vld [vmem:[#allocation2 + $0x438] sm:$0xff]
        %v339 = vld [vmem:[#allocation2 + $0x440] sm:$0xff]
        %v340 = vld [vmem:[#allocation2 + $0x448] sm:$0xff]
        %v341 = vld [vmem:[#allocation2 + $0x450] sm:$0xff]
        %v342 = vld [vmem:[#allocation2 + $0x458] sm:$0xff]
        %v343 = vld [vmem:[#allocation2 + $0x460] sm:$0xff]
        %v344 = vld [vmem:[#allocation2 + $0x468] sm:$0xff]
        %v345 = vld [vmem:[#allocation2 + $0x470] sm:$0xff]
        %v346 = vld [vmem:[#allocation2 + $0x478] sm:$0xff]
        %v347 = vld [vmem:[#allocation2 + $0x480] sm:$0xff]
        %v348 = vld [vmem:[#allocation2 + $0x488] sm:$0xff]
        %v349 = vld [vmem:[#allocation2 + $0x490] sm:$0xff]
        %v350 = vld [vmem:[#allocation2 + $0x498] sm:$0xff]
        %v351 = vld [vmem:[#allocation2 + $0x4a0] sm:$0xff]
        %v352 = vld [vmem:[#allocation2 + $0x4a8] sm:$0xff]
        %v353 = vld [vmem:[#allocation2 + $0x4b0] sm:$0xff]
        %v354 = vld [vmem:[#allocation2 + $0x4b8] sm:$0xff]
        %v355 = vld [vmem:[#allocation2 + $0x4c0] sm:$0xff]
        %v356 = vld [vmem:[#allocation2 + $0x4c8] sm:$0xff]
        %v357 = vld [vmem:[#allocation2 + $0x4d0] sm:$0xff]
        %v358 = vld [vmem:[#allocation2 + $0x4d8] sm:$0xff]
        %v359 = vld [vmem:[#allocation2 + $0x4e0] sm:$0xff]
        %v360 = vld [vmem:[#allocation2 + $0x4e8] sm:$0xff]
        %v361 = vld [vmem:[#allocation2 + $0x4f0] sm:$0xff]
        %v362 = vld [vmem:[#allocation2 + $0x4f8] sm:$0xff]
        %v363 = vld [vmem:[#allocation2 + $0x500] sm:$0xff]
        %v364 = vld [vmem:[#allocation2 + $0x508] sm:$0xff]
        %v365 = vld [vmem:[#allocation2 + $0x510] sm:$0xff]
        %v366 = vld [vmem:[#allocation2 + $0x518] sm:$0xff]
        %v367 = vld [vmem:[#allocation2 + $0x520] sm:$0xff]
        %v368 = vld [vmem:[#allocation2 + $0x528] sm:$0xff]
        %v369 = vld [vmem:[#allocation2 + $0x530] sm:$0xff]
        %v370 = vld [vmem:[#allocation2 + $0x538] sm:$0xff]
        %v371 = vld [vmem:[#allocation2 + $0x540] sm:$0xff]
        %v372 = vld [vmem:[#allocation2 + $0x548] sm:$0xff]
        %v373 = vld [vmem:[#allocation2 + $0x550] sm:$0xff]
        %v374 = vld [vmem:[#allocation2 + $0x558] sm:$0xff]
        %v375 = vld [vmem:[#allocation2 + $0x560] sm:$0xff]
        %v376 = vld [vmem:[#allocation2 + $0x568] sm:$0xff]
        %v377 = vld [vmem:[#allocation2 + $0x570] sm:$0xff]
        %v378 = vld [vmem:[#allocation2 + $0x578] sm:$0xff]
        %v379 = vld [vmem:[#allocation2 + $0x580] sm:$0xff]
        %v380 = vld [vmem:[#allocation2 + $0x588] sm:$0xff]
        %v381 = vld [vmem:[#allocation2 + $0x590] sm:$0xff]
        %v382 = vld [vmem:[#allocation2 + $0x598] sm:$0xff]
        %v383 = vld [vmem:[#allocation2 + $0x5a0] sm:$0xff]
        %v384 = vld [vmem:[#allocation2 + $0x5a8] sm:$0xff]
        %v385 = vld [vmem:[#allocation2 + $0x5b0] sm:$0xff]
        %v386 = vld [vmem:[#allocation2 + $0x5b8] sm:$0xff]
        %v387 = vld [vmem:[#allocation2 + $0x5c0] sm:$0xff]
        %v388 = vld [vmem:[#allocation2 + $0x5c8] sm:$0xff]
        %v389 = vld [vmem:[#allocation2 + $0x5d0] sm:$0xff]
        %v390 = vld [vmem:[#allocation2 + $0x5d8] sm:$0xff]
        %v391 = vld [vmem:[#allocation2 + $0x5e0] sm:$0xff]
        %v392 = vld [vmem:[#allocation2 + $0x5e8] sm:$0xff]
        %v393 = vld [vmem:[#allocation2 + $0x5f0] sm:$0xff]
        %v394 = vld [vmem:[#allocation2 + $0x5f8] sm:$0xff]
        %v395 = vld [vmem:[#allocation2 + $0x600] sm:$0xff]
        %v396 = vld [vmem:[#allocation2 + $0x608] sm:$0xff]
        %v397 = vld [vmem:[#allocation2 + $0x610] sm:$0xff]
        %v398 = vld [vmem:[#allocation2 + $0x618] sm:$0xff]
        %v399 = vld [vmem:[#allocation2 + $0x620] sm:$0xff]
        %v400 = vld [vmem:[#allocation2 + $0x628] sm:$0xff]
        %v401 = vld [vmem:[#allocation2 + $0x630] sm:$0xff]
        %v402 = vld [vmem:[#allocation2 + $0x638] sm:$0xff]
        %v403 = vld [vmem:[#allocation2 + $0x640] sm:$0xff]
        %v404 = vld [vmem:[#allocation2 + $0x648] sm:$0xff]
        %v405 = vld [vmem:[#allocation2 + $0x650] sm:$0xff]
        %v406 = vld [vmem:[#allocation2 + $0x658] sm:$0xff]
        %v407 = vld [vmem:[#allocation2 + $0x660] sm:$0xff]
        %v408 = vld [vmem:[#allocation2 + $0x668] sm:$0xff]
        %v409 = vld [vmem:[#allocation2 + $0x670] sm:$0xff]
        %v410 = vld [vmem:[#allocation2 + $0x678] sm:$0xff]
        %v411 = vld [vmem:[#allocation2 + $0x680] sm:$0xff]
        %v412 = vld [vmem:[#allocation2 + $0x688] sm:$0xff]
        %v413 = vld [vmem:[#allocation2 + $0x690] sm:$0xff]
        %v414 = vld [vmem:[#allocation2 + $0x698] sm:$0xff]
        %v415 = vld [vmem:[#allocation2 + $0x6a0] sm:$0xff]
        %v416 = vld [vmem:[#allocation2 + $0x6a8] sm:$0xff]
        %v417 = vld [vmem:[#allocation2 + $0x6b0] sm:$0xff]
        %v418 = vld [vmem:[#allocation2 + $0x6b8] sm:$0xff]
        %v419 = vld [vmem:[#allocation2 + $0x6c0] sm:$0xff]
        %v420 = vld [vmem:[#allocation2 + $0x6c8] sm:$0xff]
        %v421 = vld [vmem:[#allocation2 + $0x6d0] sm:$0xff]
        %v422 = vld [vmem:[#allocation2 + $0x6d8] sm:$0xff]
        %v423 = vld [vmem:[#allocation2 + $0x6e0] sm:$0xff]
        %v424 = vld [vmem:[#allocation2 + $0x6e8] sm:$0xff]
        %v425 = vld [vmem:[#allocation2 + $0x6f0] sm:$0xff]
        %v426 = vld [vmem:[#allocation2 + $0x6f8] sm:$0xff]
        %v427 = vld [vmem:[#allocation2 + $0x700] sm:$0xff]
        %v428 = vld [vmem:[#allocation2 + $0x708] sm:$0xff]
        %v429 = vld [vmem:[#allocation2 + $0x710] sm:$0xff]
        %v430 = vld [vmem:[#allocation2 + $0x718] sm:$0xff]
        %v431 = vld [vmem:[#allocation2 + $0x720] sm:$0xff]
        %v432 = vld [vmem:[#allocation2 + $0x728] sm:$0xff]
        %v433 = vld [vmem:[#allocation2 + $0x730] sm:$0xff]
        %v434 = vld [vmem:[#allocation2 + $0x738] sm:$0xff]
        %v435 = vld [vmem:[#allocation2 + $0x740] sm:$0xff]
        %v436 = vld [vmem:[#allocation2 + $0x748] sm:$0xff]
        %v437 = vld [vmem:[#allocation2 + $0x750] sm:$0xff]
        %v438 = vld [vmem:[#allocation2 + $0x758] sm:$0xff]
        %v439 = vld [vmem:[#allocation2 + $0x760] sm:$0xff]
        %v440 = vld [vmem:[#allocation2 + $0x768] sm:$0xff]
        %v441 = vld [vmem:[#allocation2 + $0x770] sm:$0xff]
        %v442 = vld [vmem:[#allocation2 + $0x778] sm:$0xff]
        %v443 = vld [vmem:[#allocation2 + $0x780] sm:$0xff]
        %v444 = vld [vmem:[#allocation2 + $0x788] sm:$0xff]
        %v445 = vld [vmem:[#allocation2 + $0x790] sm:$0xff]
        %v446 = vld [vmem:[#allocation2 + $0x798] sm:$0xff]
        %v447 = vld [vmem:[#allocation2 + $0x7a0] sm:$0xff]
        %v448 = vld [vmem:[#allocation2 + $0x7a8] sm:$0xff]
        %v449 = vld [vmem:[#allocation2 + $0x7b0] sm:$0xff]
        %v450 = vld [vmem:[#allocation2 + $0x7b8] sm:$0xff]
        %v451 = vld [vmem:[#allocation2 + $0x7c0] sm:$0xff]
        %v452 = vld [vmem:[#allocation2 + $0x7c8] sm:$0xff]
        %v453 = vld [vmem:[#allocation2 + $0x7d0] sm:$0xff]
        %v454 = vld [vmem:[#allocation2 + $0x7d8] sm:$0xff]
        %v455 = vld [vmem:[#allocation2 + $0x7e0] sm:$0xff]
        %v456 = vld [vmem:[#allocation2 + $0x7e8] sm:$0xff]
        %v457 = vld [vmem:[#allocation2 + $0x7f0] sm:$0xff]
        %v458 = vld [vmem:[#allocation2 + $0x7f8] sm:$0xff]
        %v459 = vld [vmem:[#allocation2 + $0x800] sm:$0xff]
        %v460 = vld [vmem:[#allocation2 + $0x808] sm:$0xff]
        %v461 = vld [vmem:[#allocation2 + $0x810] sm:$0xff]
        %v462 = vld [vmem:[#allocation2 + $0x818] sm:$0xff]
        %v463 = vld [vmem:[#allocation2 + $0x820] sm:$0xff]
        %v464 = vld [vmem:[#allocation2 + $0x828] sm:$0xff]
        %v465 = vld [vmem:[#allocation2 + $0x830] sm:$0xff]
        %v466 = vld [vmem:[#allocation2 + $0x838] sm:$0xff]
        %v467 = vld [vmem:[#allocation2 + $0x840] sm:$0xff]
        %v468 = vld [vmem:[#allocation2 + $0x848] sm:$0xff]
        %v469 = vld [vmem:[#allocation2 + $0x850] sm:$0xff]
        %v470 = vld [vmem:[#allocation2 + $0x858] sm:$0xff]
        %v471 = vld [vmem:[#allocation2 + $0x860] sm:$0xff]
        %v472 = vld [vmem:[#allocation2 + $0x868] sm:$0xff]
        %v473 = vld [vmem:[#allocation2 + $0x870] sm:$0xff]
        %v474 = vld [vmem:[#allocation2 + $0x878] sm:$0xff]
        %v475 = vld [vmem:[#allocation2 + $0x880] sm:$0xff]
        %v476 = vld [vmem:[#allocation2 + $0x888] sm:$0xff]
        %v477 = vld [vmem:[#allocation2 + $0x890] sm:$0xff]
        %v478 = vld [vmem:[#allocation2 + $0x898] sm:$0xff]
        %v479 = vld [vmem:[#allocation2 + $0x8a0] sm:$0xff]
        %v480 = vld [vmem:[#allocation2 + $0x8a8] sm:$0xff]
        %v481 = vld [vmem:[#allocation2 + $0x8b0] sm:$0xff]
        %v482 = vld [vmem:[#allocation2 + $0x8b8] sm:$0xff]
        %v483 = vld [vmem:[#allocation2 + $0x8c0] sm:$0xff]
        %v484 = vld [vmem:[#allocation2 + $0x8c8] sm:$0xff]
        %v485 = vld [vmem:[#allocation2 + $0x8d0] sm:$0xff]
        %v486 = vld [vmem:[#allocation2 + $0x8d8] sm:$0xff]
        %v487 = vld [vmem:[#allocation2 + $0x8e0] sm:$0xff]
        %v488 = vld [vmem:[#allocation2 + $0x8e8] sm:$0xff]
        %v489 = vld [vmem:[#allocation2 + $0x8f0] sm:$0xff]
        %v490 = vld [vmem:[#allocation2 + $0x8f8] sm:$0xff]
        %v491 = vld [vmem:[#allocation2 + $0x900] sm:$0xff]
        %v492 = vld [vmem:[#allocation2 + $0x908] sm:$0xff]
        %v493 = vld [vmem:[#allocation2 + $0x910] sm:$0xff]
        %v494 = vld [vmem:[#allocation2 + $0x918] sm:$0xff]
        %v495 = vld [vmem:[#allocation2 + $0x920] sm:$0xff]
        %v496 = vld [vmem:[#allocation2 + $0x928] sm:$0xff]
        %v497 = vld [vmem:[#allocation2 + $0x930] sm:$0xff]
        %v498 = vld [vmem:[#allocation2 + $0x938] sm:$0xff]
        %v499 = vld [vmem:[#allocation2 + $0x940] sm:$0xff]
        %v500 = vld [vmem:[#allocation2 + $0x948] sm:$0xff]
        %v501 = vld [vmem:[#allocation2 + $0x950] sm:$0xff]
        %v502 = vld [vmem:[#allocation2 + $0x958] sm:$0xff]
        %v503 = vld [vmem:[#allocation2 + $0x960] sm:$0xff]
        %v504 = vld [vmem:[#allocation2 + $0x968] sm:$0xff]
        %v505 = vld [vmem:[#allocation2 + $0x970] sm:$0xff]
        %v506 = vld [vmem:[#allocation2 + $0x978] sm:$0xff]
        %v507 = vld [vmem:[#allocation2 + $0x980] sm:$0xff]
        %v508 = vld [vmem:[#allocation2 + $0x988] sm:$0xff]
        %v509 = vld [vmem:[#allocation2 + $0x990] sm:$0xff]
        %v510 = vld [vmem:[#allocation2 + $0x998] sm:$0xff]
        %v511 = vld [vmem:[#allocation2 + $0x9a0] sm:$0xff]
        %v512 = vld [vmem:[#allocation2 + $0x9a8] sm:$0xff]
        %v513 = vld [vmem:[#allocation2 + $0x9b0] sm:$0xff]
        %v514 = vld [vmem:[#allocation2 + $0x9b8] sm:$0xff]
        %v515 = vld [vmem:[#allocation2 + $0x9c0] sm:$0xff]
        %v516 = vld [vmem:[#allocation2 + $0x9c8] sm:$0xff]
        %v517 = vld [vmem:[#allocation2 + $0x9d0] sm:$0xff]
        %v518 = vld [vmem:[#allocation2 + $0x9d8] sm:$0xff]
        %v519 = vld [vmem:[#allocation2 + $0x9e0] sm:$0xff]
        %v520 = vld [vmem:[#allocation2 + $0x9e8] sm:$0xff]
        %v521 = vld [vmem:[#allocation2 + $0x9f0] sm:$0xff]
        %v522 = vld [vmem:[#allocation2 + $0x9f8] sm:$0xff]
        %v523 = vld [vmem:[#allocation2 + $0xa00] sm:$0xff]
        %v524 = vld [vmem:[#allocation2 + $0xa08] sm:$0xff]
        %v525 = vld [vmem:[#allocation2 + $0xa10] sm:$0xff]
        %v526 = vld [vmem:[#allocation2 + $0xa18] sm:$0xff]
        %v527 = vld [vmem:[#allocation2 + $0xa20] sm:$0xff]
        %v528 = vld [vmem:[#allocation2 + $0xa28] sm:$0xff]
        %v529 = vld [vmem:[#allocation2 + $0xa30] sm:$0xff]
        %v530 = vld [vmem:[#allocation2 + $0xa38] sm:$0xff]
        %v531 = vld [vmem:[#allocation2 + $0xa40] sm:$0xff]
        %v532 = vld [vmem:[#allocation2 + $0xa48] sm:$0xff]
        %v533 = vld [vmem:[#allocation2 + $0xa50] sm:$0xff]
        %v534 = vld [vmem:[#allocation2 + $0xa58] sm:$0xff]
        %v535 = vld [vmem:[#allocation2 + $0xa60] sm:$0xff]
        %v536 = vld [vmem:[#allocation2 + $0xa68] sm:$0xff]
        %v537 = vld [vmem:[#allocation2 + $0xa70] sm:$0xff]
        %v538 = vld [vmem:[#allocation2 + $0xa78] sm:$0xff]
        %v539 = vld [vmem:[#allocation2 + $0xa80] sm:$0xff]
        %v540 = vld [vmem:[#allocation2 + $0xa88] sm:$0xff]
        %v541 = vld [vmem:[#allocation2 + $0xa90] sm:$0xff]
        %v542 = vld [vmem:[#allocation2 + $0xa98] sm:$0xff]
        %v543 = vld [vmem:[#allocation2 + $0xaa0] sm:$0xff]
        %v544 = vld [vmem:[#allocation2 + $0xaa8] sm:$0xff]
        %v545 = vld [vmem:[#allocation2 + $0xab0] sm:$0xff]
        %v546 = vld [vmem:[#allocation2 + $0xab8] sm:$0xff]
        %v547 = vld [vmem:[#allocation2 + $0xac0] sm:$0xff]
        %v548 = vld [vmem:[#allocation2 + $0xac8] sm:$0xff]
        %v549 = vld [vmem:[#allocation2 + $0xad0] sm:$0xff]
        %v550 = vld [vmem:[#allocation2 + $0xad8] sm:$0xff]
        %v551 = vld [vmem:[#allocation2 + $0xae0] sm:$0xff]
        %v552 = vld [vmem:[#allocation2 + $0xae8] sm:$0xff]
        %v553 = vld [vmem:[#allocation2 + $0xaf0] sm:$0xff]
        %v554 = vld [vmem:[#allocation2 + $0xaf8] sm:$0xff]
        %v555 = vld [vmem:[#allocation2 + $0xb00] sm:$0xff]
        %v556 = vld [vmem:[#allocation2 + $0xb08] sm:$0xff]
        %v557 = vld [vmem:[#allocation2 + $0xb10] sm:$0xff]
        %v558 = vld [vmem:[#allocation2 + $0xb18] sm:$0xff]
        %v559 = vld [vmem:[#allocation2 + $0xb20] sm:$0xff]
        %v560 = vld [vmem:[#allocation2 + $0xb28] sm:$0xff]
        %v561 = vld [vmem:[#allocation2 + $0xb30] sm:$0xff]
        %v562 = vld [vmem:[#allocation2 + $0xb38] sm:$0xff]
        %v563 = vld [vmem:[#allocation2 + $0xb40] sm:$0xff]
        %v564 = vld [vmem:[#allocation2 + $0xb48] sm:$0xff]
        %v565 = vld [vmem:[#allocation2 + $0xb50] sm:$0xff]
        %v566 = vld [vmem:[#allocation2 + $0xb58] sm:$0xff]
        %v567 = vld [vmem:[#allocation2 + $0xb60] sm:$0xff]
        %v568 = vld [vmem:[#allocation2 + $0xb68] sm:$0xff]
        %v569 = vld [vmem:[#allocation2 + $0xb70] sm:$0xff]
        %v570 = vld [vmem:[#allocation2 + $0xb78] sm:$0xff]
        %v571 = vld [vmem:[#allocation2 + $0xb80] sm:$0xff]
        %v572 = vld [vmem:[#allocation2 + $0xb88] sm:$0xff]
        %v573 = vld [vmem:[#allocation2 + $0xb90] sm:$0xff]
        %v574 = vld [vmem:[#allocation2 + $0xb98] sm:$0xff]
        %v575 = vld [vmem:[#allocation2 + $0xba0] sm:$0xff]
        %v576 = vld [vmem:[#allocation2 + $0xba8] sm:$0xff]
        %v577 = vld [vmem:[#allocation2 + $0xbb0] sm:$0xff]
        %v578 = vld [vmem:[#allocation2 + $0xbb8] sm:$0xff]
        %v579 = vld [vmem:[#allocation2 + $0xbc0] sm:$0xff]
        %v580 = vld [vmem:[#allocation2 + $0xbc8] sm:$0xff]
        %v581 = vld [vmem:[#allocation2 + $0xbd0] sm:$0xff]
        %v582 = vld [vmem:[#allocation2 + $0xbd8] sm:$0xff]
        %v583 = vld [vmem:[#allocation2 + $0xbe0] sm:$0xff]
        %v584 = vld [vmem:[#allocation2 + $0xbe8] sm:$0xff]
        %v585 = vld [vmem:[#allocation2 + $0xbf0] sm:$0xff]
        %v586 = vld [vmem:[#allocation2 + $0xbf8] sm:$0xff]
        %v587 = vld [vmem:[#allocation2 + $0xc00] sm:$0xff]
        %v588 = vld [vmem:[#allocation2 + $0xc08] sm:$0xff]
        %v589 = vld [vmem:[#allocation2 + $0xc10] sm:$0xff]
        %v590 = vld [vmem:[#allocation2 + $0xc18] sm:$0xff]
        %v591 = vld [vmem:[#allocation2 + $0xc20] sm:$0xff]
        %v592 = vld [vmem:[#allocation2 + $0xc28] sm:$0xff]
        %v593 = vld [vmem:[#allocation2 + $0xc30] sm:$0xff]
        %v594 = vld [vmem:[#allocation2 + $0xc38] sm:$0xff]
        %v595 = vld [vmem:[#allocation2 + $0xc40] sm:$0xff]
        %v596 = vld [vmem:[#allocation2 + $0xc48] sm:$0xff]
        %v597 = vld [vmem:[#allocation2 + $0xc50] sm:$0xff]
        %v598 = vld [vmem:[#allocation2 + $0xc58] sm:$0xff]
        %v599 = vld [vmem:[#allocation2 + $0xc60] sm:$0xff]
        %v600 = vld [vmem:[#allocation2 + $0xc68] sm:$0xff]
        %v601 = vld [vmem:[#allocation2 + $0xc70] sm:$0xff]
        %v602 = vld [vmem:[#allocation2 + $0xc78] sm:$0xff]
        %v603 = vld [vmem:[#allocation2 + $0xc80] sm:$0xff]
        %v604 = vld [vmem:[#allocation2 + $0xc88] sm:$0xff]
        %v605 = vld [vmem:[#allocation2 + $0xc90] sm:$0xff]
        %v606 = vld [vmem:[#allocation2 + $0xc98] sm:$0xff]
        %v607 = vld [vmem:[#allocation2 + $0xca0] sm:$0xff]
        %v608 = vld [vmem:[#allocation2 + $0xca8] sm:$0xff]
        %v609 = vld [vmem:[#allocation2 + $0xcb0] sm:$0xff]
        %v610 = vld [vmem:[#allocation2 + $0xcb8] sm:$0xff]
        %v611 = vld [vmem:[#allocation2 + $0xcc0] sm:$0xff]
        %v612 = vld [vmem:[#allocation2 + $0xcc8] sm:$0xff]
        %v613 = vld [vmem:[#allocation2 + $0xcd0] sm:$0xff]
        %v614 = vld [vmem:[#allocation2 + $0xcd8] sm:$0xff]
        %v615 = vld [vmem:[#allocation2 + $0xce0] sm:$0xff]
        %v616 = vld [vmem:[#allocation2 + $0xce8] sm:$0xff]
        %v617 = vld [vmem:[#allocation2 + $0xcf0] sm:$0xff]
        %v618 = vld [vmem:[#allocation2 + $0xcf8] sm:$0xff]
        %v619 = vld [vmem:[#allocation2 + $0xd00] sm:$0xff]
        %v620 = vld [vmem:[#allocation2 + $0xd08] sm:$0xff]
        %v621 = vld [vmem:[#allocation2 + $0xd10] sm:$0xff]
        %v622 = vld [vmem:[#allocation2 + $0xd18] sm:$0xff]
        %v623 = vld [vmem:[#allocation2 + $0xd20] sm:$0xff]
        %v624 = vld [vmem:[#allocation2 + $0xd28] sm:$0xff]
        %v625 = vld [vmem:[#allocation2 + $0xd30] sm:$0xff]
        %v626 = vld [vmem:[#allocation2 + $0xd38] sm:$0xff]
        %v627 = vld [vmem:[#allocation2 + $0xd40] sm:$0xff]
        %v628 = vld [vmem:[#allocation2 + $0xd48] sm:$0xff]
        %v629 = vld [vmem:[#allocation2 + $0xd50] sm:$0xff]
        %v630 = vld [vmem:[#allocation2 + $0xd58] sm:$0xff]
        %v631 = vld [vmem:[#allocation2 + $0xd60] sm:$0xff]
        %v632 = vld [vmem:[#allocation2 + $0xd68] sm:$0xff]
        %v633 = vld [vmem:[#allocation2 + $0xd70] sm:$0xff]
        %v634 = vld [vmem:[#allocation2 + $0xd78] sm:$0xff]
        %v635 = vld [vmem:[#allocation2 + $0xd80] sm:$0xff]
        %v636 = vld [vmem:[#allocation2 + $0xd88] sm:$0xff]
        %v637 = vld [vmem:[#allocation2 + $0xd90] sm:$0xff]
        %v638 = vld [vmem:[#allocation2 + $0xd98] sm:$0xff]
        %v639 = vld [vmem:[#allocation2 + $0xda0] sm:$0xff]
        %v640 = vld [vmem:[#allocation2 + $0xda8] sm:$0xff]
        %v641 = vld [vmem:[#allocation2 + $0xdb0] sm:$0xff]
        %v642 = vld [vmem:[#allocation2 + $0xdb8] sm:$0xff]
        %v643 = vld [vmem:[#allocation2 + $0xdc0] sm:$0xff]
        %v644 = vld [vmem:[#allocation2 + $0xdc8] sm:$0xff]
        %v645 = vld [vmem:[#allocation2 + $0xdd0] sm:$0xff]
        %v646 = vld [vmem:[#allocation2 + $0xdd8] sm:$0xff]
        %v647 = vld [vmem:[#allocation2 + $0xde0] sm:$0xff]
        %v648 = vld [vmem:[#allocation2 + $0xde8] sm:$0xff]
        %v649 = vld [vmem:[#allocation2 + $0xdf0] sm:$0xff]
        %v650 = vld [vmem:[#allocation2 + $0xdf8] sm:$0xff]
        %v651 = vld [vmem:[#allocation2 + $0xe00] sm:$0xff]
        %v652 = vld [vmem:[#allocation2 + $0xe08] sm:$0xff]
        %v653 = vld [vmem:[#allocation2 + $0xe10] sm:$0xff]
        %v654 = vld [vmem:[#allocation2 + $0xe18] sm:$0xff]
        %v655 = vld [vmem:[#allocation2 + $0xe20] sm:$0xff]
        %v656 = vld [vmem:[#allocation2 + $0xe28] sm:$0xff]
        %v657 = vld [vmem:[#allocation2 + $0xe30] sm:$0xff]
        %v658 = vld [vmem:[#allocation2 + $0xe38] sm:$0xff]
        %v659 = vld [vmem:[#allocation2 + $0xe40] sm:$0xff]
        %v660 = vld [vmem:[#allocation2 + $0xe48] sm:$0xff]
        %v661 = vld [vmem:[#allocation2 + $0xe50] sm:$0xff]
        %v662 = vld [vmem:[#allocation2 + $0xe58] sm:$0xff]
        %v663 = vld [vmem:[#allocation2 + $0xe60] sm:$0xff]
        %v664 = vld [vmem:[#allocation2 + $0xe68] sm:$0xff]
        %v665 = vld [vmem:[#allocation2 + $0xe70] sm:$0xff]
        %v666 = vld [vmem:[#allocation2 + $0xe78] sm:$0xff]
        %v667 = vld [vmem:[#allocation2 + $0xe80] sm:$0xff]
        %v668 = vld [vmem:[#allocation2 + $0xe88] sm:$0xff]
        %v669 = vld [vmem:[#allocation2 + $0xe90] sm:$0xff]
        %v670 = vld [vmem:[#allocation2 + $0xe98] sm:$0xff]
        %v671 = vld [vmem:[#allocation2 + $0xea0] sm:$0xff]
        %v672 = vld [vmem:[#allocation2 + $0xea8] sm:$0xff]
        %v673 = vld [vmem:[#allocation2 + $0xeb0] sm:$0xff]
        %v674 = vld [vmem:[#allocation2 + $0xeb8] sm:$0xff]
        %v675 = vld [vmem:[#allocation2 + $0xec0] sm:$0xff]
        %v676 = vld [vmem:[#allocation2 + $0xec8] sm:$0xff]
        %v677 = vld [vmem:[#allocation2 + $0xed0] sm:$0xff]
        %v678 = vld [vmem:[#allocation2 + $0xed8] sm:$0xff]
        %v679 = vld [vmem:[#allocation2 + $0xee0] sm:$0xff]
        %v680 = vld [vmem:[#allocation2 + $0xee8] sm:$0xff]
        %v681 = vld [vmem:[#allocation2 + $0xef0] sm:$0xff]
        %v682 = vld [vmem:[#allocation2 + $0xef8] sm:$0xff]
        %v683 = vld [vmem:[#allocation4] sm:$0x3]
        %v684 = vld [vmem:[%s197] sm:$0xff]
        %v685 = vld [vmem:[%s197 + $0x8] sm:$0xf]
        %v686 = vld [vmem:[%s197 + $0x18] sm:$0x33]
        %v687 = vld [vmem:[%s197 + $0x20] sm:$0x3]
        %v688 = vld [vmem:[%s197 + $0xc] sm:$0xff]
        %v689 = vld [vmem:[%s197 + $0x14] sm:$0xf]
        %v690 = vld [vmem:[%s197 + $0x24] sm:$0x33]
        %v691 = vld [vmem:[%s197 + $0x2c] sm:$0x3]
        %v692 = vld [vmem:[%s197 + $0x18] sm:$0x77]
        %v693 = vld [vmem:[%s197 + $0x20] sm:$0x7]
        %v694 = vld [vmem:[%s197 + $0x24] sm:$0x77]
        %v695 = vld [vmem:[%s197 + $0x2c] sm:$0x7]
        %v696 = vld [vmem:[%s197] sm:$0xee]
        %v697 = vld [vmem:[%s197 + $0x8] sm:$0xe]
        %v698 = vld [vmem:[%s197 + $0xc] sm:$0xee]
        %v699 = vld [vmem:[%s197 + $0x14] sm:$0xe]
        %v704 = vunpack.c.l.b16 %v684
        %v705 = vunpack.c.h.b16 %v684
        %v706 = vunpack.c.l.b16 %v685
        %v707 = vunpack.c.l.b16 %v686
        %v708 = vunpack.c.h.b16 %v686
        %v709 = vunpack.c.l.b16 %v687
        %v710 = vpack.c.b16 %v707, %v704
        %v711 = vpack.c.b16 %v708, %v705
        %v712 = vpack.c.b16 %v709, %v706
        %v720 = vunpack.c.l.b16 %v688
        %v721 = vunpack.c.h.b16 %v688
        %v722 = vunpack.c.l.b16 %v689
        %v723 = vunpack.c.l.b16 %v690
        %v724 = vunpack.c.h.b16 %v690
        %v725 = vunpack.c.l.b16 %v691
        %v726 = vpack.c.b16 %v723, %v720
        %v727 = vpack.c.b16 %v724, %v721
        %v728 = vpack.c.b16 %v725, %v722
        %v734 = vunpack.c.l.b16 %v692
        %v735 = vunpack.c.h.b16 %v692
        %v736 = vunpack.c.l.b16 %v693
        %v737 = vpack.c.b16 %v734, %v704
        %v738 = vpack.c.b16 %v735, %v705
        %v739 = vpack.c.b16 %v736, %v706
        %v741 = vshrl.u32 %v737, 16
        %v743 = vshll.u32 %v737, 16
        %v745 = vrot.slane %v743, 1
        %v746 = vor.u32 %v741, %v745
        %v748 = vshrl.u32 %v738, 16
        %v750 = vshll.u32 %v738, 16
        %v752 = vrot.slane %v750, 1
        %v753 = vor.u32 %v748, %v752
        %v755 = vshrl.u32 %v739, 16
        %v757 = vshll.u32 %v739, 16
        %v759 = vrot.slane %v757, 1
        %v760 = vor.u32 %v755, %v759
        %v766 = vunpack.c.l.b16 %v694
        %v767 = vunpack.c.h.b16 %v694
        %v768 = vunpack.c.l.b16 %v695
        %v769 = vpack.c.b16 %v766, %v720
        %v770 = vpack.c.b16 %v767, %v721
        %v771 = vpack.c.b16 %v768, %v722
        %v773 = vshrl.u32 %v769, 16
        %v775 = vshll.u32 %v769, 16
        %v777 = vrot.slane %v775, 1
        %v778 = vor.u32 %v773, %v777
        %v780 = vshrl.u32 %v770, 16
        %v782 = vshll.u32 %v770, 16
        %v784 = vrot.slane %v782, 1
        %v785 = vor.u32 %v780, %v784
        %v787 = vshrl.u32 %v771, 16
        %v789 = vshll.u32 %v771, 16
        %v791 = vrot.slane %v789, 1
        %v792 = vor.u32 %v787, %v791
        %v798 = vunpack.c.l.b16 %v696
        %v799 = vunpack.c.h.b16 %v696
        %v800 = vunpack.c.l.b16 %v697
        %v801 = vpack.c.b16 %v734, %v798
        %v802 = vpack.c.b16 %v735, %v799
        %v803 = vpack.c.b16 %v736, %v800
        %v804 = vrot.slane %v801, 1
        %v805 = vrot.slane %v802, 1
        %v806 = vrot.slane %v803, 1
        %v1290 = vunpack.c.l.b16 %v203
        %v1291 = vunpack.c.h.b16 %v203
        %v1292 = vunpack.c.l.b16 %v204
        %v1293 = vunpack.c.h.b16 %v204
        %v1294 = vunpack.c.l.b16 %v205
        %v1295 = vunpack.c.h.b16 %v205
        %v1296 = vunpack.c.l.b16 %v206
        %v1297 = vunpack.c.h.b16 %v206
        %v1298 = vunpack.c.l.b16 %v207
        %v1299 = vunpack.c.h.b16 %v207
        %v1300 = vunpack.c.l.b16 %v208
        %v1301 = vunpack.c.h.b16 %v208
        %v1302 = vunpack.c.l.b16 %v209
        %v1303 = vunpack.c.h.b16 %v209
        %v1304 = vunpack.c.l.b16 %v210
        %v1305 = vunpack.c.h.b16 %v210
        %v1306 = vunpack.c.l.b16 %v211
        %v1307 = vunpack.c.h.b16 %v211
        %v1308 = vunpack.c.l.b16 %v212
        %v1309 = vunpack.c.h.b16 %v212
        %v1310 = vunpack.c.l.b16 %v213
        %v1311 = vunpack.c.h.b16 %v213
        %v1312 = vunpack.c.l.b16 %v214
        %v1313 = vunpack.c.h.b16 %v214
        %v1314 = vunpack.c.l.b16 %v215
        %v1315 = vunpack.c.h.b16 %v215
        %v1316 = vunpack.c.l.b16 %v216
        %v1317 = vunpack.c.h.b16 %v216
        %v1318 = vunpack.c.l.b16 %v217
        %v1319 = vunpack.c.h.b16 %v217
        %v1320 = vunpack.c.l.b16 %v218
        %v1321 = vunpack.c.h.b16 %v218
        %v1322 = vunpack.c.l.b16 %v219
        %v1323 = vunpack.c.h.b16 %v219
        %v1324 = vunpack.c.l.b16 %v220
        %v1325 = vunpack.c.h.b16 %v220
        %v1326 = vunpack.c.l.b16 %v221
        %v1327 = vunpack.c.h.b16 %v221
        %v1328 = vunpack.c.l.b16 %v222
        %v1329 = vunpack.c.h.b16 %v222
        %v1330 = vunpack.c.l.b16 %v223
        %v1331 = vunpack.c.h.b16 %v223
        %v1332 = vunpack.c.l.b16 %v224
        %v1333 = vunpack.c.h.b16 %v224
        %v1334 = vunpack.c.l.b16 %v225
        %v1335 = vunpack.c.h.b16 %v225
        %v1336 = vunpack.c.l.b16 %v226
        %v1337 = vunpack.c.h.b16 %v226
        %v1338 = vunpack.c.l.b16 %v227
        %v1339 = vunpack.c.h.b16 %v227
        %v1340 = vunpack.c.l.b16 %v228
        %v1341 = vunpack.c.h.b16 %v228
        %v1342 = vunpack.c.l.b16 %v229
        %v1343 = vunpack.c.h.b16 %v229
        %v1344 = vunpack.c.l.b16 %v230
        %v1345 = vunpack.c.h.b16 %v230
        %v1346 = vunpack.c.l.b16 %v231
        %v1347 = vunpack.c.h.b16 %v231
        %v1348 = vunpack.c.l.b16 %v232
        %v1349 = vunpack.c.h.b16 %v232
        %v1350 = vunpack.c.l.b16 %v233
        %v1351 = vunpack.c.h.b16 %v233
        %v1352 = vunpack.c.l.b16 %v234
        %v1353 = vunpack.c.h.b16 %v234
        %v1354 = vunpack.c.l.b16 %v235
        %v1355 = vunpack.c.h.b16 %v235
        %v1356 = vunpack.c.l.b16 %v236
        %v1357 = vunpack.c.h.b16 %v236
        %v1358 = vunpack.c.l.b16 %v237
        %v1359 = vunpack.c.h.b16 %v237
        %v1360 = vunpack.c.l.b16 %v238
        %v1361 = vunpack.c.h.b16 %v238
        %v1362 = vunpack.c.l.b16 %v239
        %v1363 = vunpack.c.h.b16 %v239
        %v1364 = vunpack.c.l.b16 %v240
        %v1365 = vunpack.c.h.b16 %v240
        %v1366 = vunpack.c.l.b16 %v241
        %v1367 = vunpack.c.h.b16 %v241
        %v1368 = vunpack.c.l.b16 %v242
        %v1369 = vunpack.c.h.b16 %v242
        %v1370 = vunpack.c.l.b16 %v243
        %v1371 = vunpack.c.h.b16 %v243
        %v1372 = vunpack.c.l.b16 %v244
        %v1373 = vunpack.c.h.b16 %v244
        %v1374 = vunpack.c.l.b16 %v245
        %v1375 = vunpack.c.h.b16 %v245
        %v1376 = vunpack.c.l.b16 %v246
        %v1377 = vunpack.c.h.b16 %v246
        %v1378 = vunpack.c.l.b16 %v247
        %v1379 = vunpack.c.h.b16 %v247
        %v1380 = vunpack.c.l.b16 %v248
        %v1381 = vunpack.c.h.b16 %v248
        %v1382 = vunpack.c.l.b16 %v249
        %v1383 = vunpack.c.h.b16 %v249
        %v1384 = vunpack.c.l.b16 %v250
        %v1385 = vunpack.c.h.b16 %v250
        %v1386 = vunpack.c.l.b16 %v251
        %v1387 = vunpack.c.h.b16 %v251
        %v1388 = vunpack.c.l.b16 %v252
        %v1389 = vunpack.c.h.b16 %v252
        %v1390 = vunpack.c.l.b16 %v253
        %v1391 = vunpack.c.h.b16 %v253
        %v1392 = vunpack.c.l.b16 %v254
        %v1393 = vunpack.c.h.b16 %v254
        %v1394 = vunpack.c.l.b16 %v255
        %v1395 = vunpack.c.h.b16 %v255
        %v1396 = vunpack.c.l.b16 %v256
        %v1397 = vunpack.c.h.b16 %v256
        %v1398 = vunpack.c.l.b16 %v257
        %v1399 = vunpack.c.h.b16 %v257
        %v1400 = vunpack.c.l.b16 %v258
        %v1401 = vunpack.c.h.b16 %v258
        %v1402 = vunpack.c.l.b16 %v259
        %v1403 = vunpack.c.h.b16 %v259
        %v1404 = vunpack.c.l.b16 %v260
        %v1405 = vunpack.c.h.b16 %v260
        %v1406 = vunpack.c.l.b16 %v261
        %v1407 = vunpack.c.h.b16 %v261
        %v1408 = vunpack.c.l.b16 %v262
        %v1409 = vunpack.c.h.b16 %v262
        %v1410 = vunpack.c.l.b16 %v263
        %v1411 = vunpack.c.h.b16 %v263
        %v1412 = vunpack.c.l.b16 %v264
        %v1413 = vunpack.c.h.b16 %v264
        %v1414 = vunpack.c.l.b16 %v265
        %v1415 = vunpack.c.h.b16 %v265
        %v1416 = vunpack.c.l.b16 %v266
        %v1417 = vunpack.c.h.b16 %v266
        %v1418 = vunpack.c.l.b16 %v267
        %v1419 = vunpack.c.h.b16 %v267
        %v1420 = vunpack.c.l.b16 %v268
        %v1421 = vunpack.c.h.b16 %v268
        %v1422 = vunpack.c.l.b16 %v269
        %v1423 = vunpack.c.h.b16 %v269
        %v1424 = vunpack.c.l.b16 %v270
        %v1425 = vunpack.c.h.b16 %v270
        %v1426 = vunpack.c.l.b16 %v271
        %v1427 = vunpack.c.h.b16 %v271
        %v1428 = vunpack.c.l.b16 %v272
        %v1429 = vunpack.c.h.b16 %v272
        %v1430 = vunpack.c.l.b16 %v273
        %v1431 = vunpack.c.h.b16 %v273
        %v1432 = vunpack.c.l.b16 %v274
        %v1433 = vunpack.c.h.b16 %v274
        %v1434 = vunpack.c.l.b16 %v275
        %v1435 = vunpack.c.h.b16 %v275
        %v1436 = vunpack.c.l.b16 %v276
        %v1437 = vunpack.c.h.b16 %v276
        %v1438 = vunpack.c.l.b16 %v277
        %v1439 = vunpack.c.h.b16 %v277
        %v1440 = vunpack.c.l.b16 %v278
        %v1441 = vunpack.c.h.b16 %v278
        %v1442 = vunpack.c.l.b16 %v279
        %v1443 = vunpack.c.h.b16 %v279
        %v1444 = vunpack.c.l.b16 %v280
        %v1445 = vunpack.c.h.b16 %v280
        %v1446 = vunpack.c.l.b16 %v281
        %v1447 = vunpack.c.h.b16 %v281
        %v1448 = vunpack.c.l.b16 %v282
        %v1449 = vunpack.c.h.b16 %v282
        %v1450 = vunpack.c.l.b16 %v283
        %v1451 = vunpack.c.h.b16 %v283
        %v1452 = vunpack.c.l.b16 %v284
        %v1453 = vunpack.c.h.b16 %v284
        %v1454 = vunpack.c.l.b16 %v285
        %v1455 = vunpack.c.h.b16 %v285
        %v1456 = vunpack.c.l.b16 %v286
        %v1457 = vunpack.c.h.b16 %v286
        %v1458 = vunpack.c.l.b16 %v287
        %v1459 = vunpack.c.h.b16 %v287
        %v1460 = vunpack.c.l.b16 %v288
        %v1461 = vunpack.c.h.b16 %v288
        %v1462 = vunpack.c.l.b16 %v289
        %v1463 = vunpack.c.h.b16 %v289
        %v1464 = vunpack.c.l.b16 %v290
        %v1465 = vunpack.c.h.b16 %v290
        %v1466 = vunpack.c.l.b16 %v291
        %v1467 = vunpack.c.h.b16 %v291
        %v1468 = vunpack.c.l.b16 %v292
        %v1469 = vunpack.c.h.b16 %v292
        %v1470 = vunpack.c.l.b16 %v293
        %v1471 = vunpack.c.h.b16 %v293
        %v1472 = vunpack.c.l.b16 %v294
        %v1473 = vunpack.c.h.b16 %v294
        %v1474 = vunpack.c.l.b16 %v295
        %v1475 = vunpack.c.h.b16 %v295
        %v1476 = vunpack.c.l.b16 %v296
        %v1477 = vunpack.c.h.b16 %v296
        %v1478 = vunpack.c.l.b16 %v297
        %v1479 = vunpack.c.h.b16 %v297
        %v1480 = vunpack.c.l.b16 %v298
        %v1481 = vunpack.c.h.b16 %v298
        %v1482 = vunpack.c.l.b16 %v299
        %v1483 = vunpack.c.h.b16 %v299
        %v1484 = vunpack.c.l.b16 %v300
        %v1485 = vunpack.c.h.b16 %v300
        %v1486 = vunpack.c.l.b16 %v301
        %v1487 = vunpack.c.h.b16 %v301
        %v1488 = vunpack.c.l.b16 %v302
        %v1489 = vunpack.c.h.b16 %v302
        %v1490 = vunpack.c.l.b16 %v303
        %v1491 = vunpack.c.h.b16 %v303
        %v1492 = vunpack.c.l.b16 %v304
        %v1493 = vunpack.c.h.b16 %v304
        %v1494 = vunpack.c.l.b16 %v305
        %v1495 = vunpack.c.h.b16 %v305
        %v1496 = vunpack.c.l.b16 %v306
        %v1497 = vunpack.c.h.b16 %v306
        %v1498 = vunpack.c.l.b16 %v307
        %v1499 = vunpack.c.h.b16 %v307
        %v1500 = vunpack.c.l.b16 %v308
        %v1501 = vunpack.c.h.b16 %v308
        %v1502 = vunpack.c.l.b16 %v309
        %v1503 = vunpack.c.h.b16 %v309
        %v1504 = vunpack.c.l.b16 %v310
        %v1505 = vunpack.c.h.b16 %v310
        %v1506 = vunpack.c.l.b16 %v311
        %v1507 = vunpack.c.h.b16 %v311
        %v1508 = vunpack.c.l.b16 %v312
        %v1509 = vunpack.c.h.b16 %v312
        %v1510 = vunpack.c.l.b16 %v313
        %v1511 = vunpack.c.h.b16 %v313
        %v1512 = vunpack.c.l.b16 %v314
        %v1513 = vunpack.c.h.b16 %v314
        %v1514 = vunpack.c.l.b16 %v315
        %v1515 = vunpack.c.h.b16 %v315
        %v1516 = vunpack.c.l.b16 %v316
        %v1517 = vunpack.c.h.b16 %v316
        %v1518 = vunpack.c.l.b16 %v317
        %v1519 = vunpack.c.h.b16 %v317
        %v1520 = vunpack.c.l.b16 %v318
        %v1521 = vunpack.c.h.b16 %v318
        %v1522 = vunpack.c.l.b16 %v319
        %v1523 = vunpack.c.h.b16 %v319
        %v1524 = vunpack.c.l.b16 %v320
        %v1525 = vunpack.c.h.b16 %v320
        %v1526 = vunpack.c.l.b16 %v321
        %v1527 = vunpack.c.h.b16 %v321
        %v1528 = vunpack.c.l.b16 %v322
        %v1529 = vunpack.c.h.b16 %v322
        %v1530 = vunpack.c.l.b16 %v323
        %v1531 = vunpack.c.h.b16 %v323
        %v1532 = vunpack.c.l.b16 %v324
        %v1533 = vunpack.c.h.b16 %v324
        %v1534 = vunpack.c.l.b16 %v325
        %v1535 = vunpack.c.h.b16 %v325
        %v1536 = vunpack.c.l.b16 %v326
        %v1537 = vunpack.c.h.b16 %v326
        %v1538 = vunpack.c.l.b16 %v327
        %v1539 = vunpack.c.h.b16 %v327
        %v1540 = vunpack.c.l.b16 %v328
        %v1541 = vunpack.c.h.b16 %v328
        %v1542 = vunpack.c.l.b16 %v329
        %v1543 = vunpack.c.h.b16 %v329
        %v1544 = vunpack.c.l.b16 %v330
        %v1545 = vunpack.c.h.b16 %v330
        %v1546 = vunpack.c.l.b16 %v331
        %v1547 = vunpack.c.h.b16 %v331
        %v1548 = vunpack.c.l.b16 %v332
        %v1549 = vunpack.c.h.b16 %v332
        %v1550 = vunpack.c.l.b16 %v333
        %v1551 = vunpack.c.h.b16 %v333
        %v1552 = vunpack.c.l.b16 %v334
        %v1553 = vunpack.c.h.b16 %v334
        %v1554 = vunpack.c.l.b16 %v335
        %v1555 = vunpack.c.h.b16 %v335
        %v1556 = vunpack.c.l.b16 %v336
        %v1557 = vunpack.c.h.b16 %v336
        %v1558 = vunpack.c.l.b16 %v337
        %v1559 = vunpack.c.h.b16 %v337
        %v1560 = vunpack.c.l.b16 %v338
        %v1561 = vunpack.c.h.b16 %v338
        %v1562 = vunpack.c.l.b16 %v339
        %v1563 = vunpack.c.h.b16 %v339
        %v1564 = vunpack.c.l.b16 %v340
        %v1565 = vunpack.c.h.b16 %v340
        %v1566 = vunpack.c.l.b16 %v341
        %v1567 = vunpack.c.h.b16 %v341
        %v1568 = vunpack.c.l.b16 %v342
        %v1569 = vunpack.c.h.b16 %v342
        %v1570 = vunpack.c.l.b16 %v343
        %v1571 = vunpack.c.h.b16 %v343
        %v1572 = vunpack.c.l.b16 %v344
        %v1573 = vunpack.c.h.b16 %v344
        %v1574 = vunpack.c.l.b16 %v345
        %v1575 = vunpack.c.h.b16 %v345
        %v1576 = vunpack.c.l.b16 %v346
        %v1577 = vunpack.c.h.b16 %v346
        %v1578 = vunpack.c.l.b16 %v347
        %v1579 = vunpack.c.h.b16 %v347
        %v1580 = vunpack.c.l.b16 %v348
        %v1581 = vunpack.c.h.b16 %v348
        %v1582 = vunpack.c.l.b16 %v349
        %v1583 = vunpack.c.h.b16 %v349
        %v1584 = vunpack.c.l.b16 %v350
        %v1585 = vunpack.c.h.b16 %v350
        %v1586 = vunpack.c.l.b16 %v351
        %v1587 = vunpack.c.h.b16 %v351
        %v1588 = vunpack.c.l.b16 %v352
        %v1589 = vunpack.c.h.b16 %v352
        %v1590 = vunpack.c.l.b16 %v353
        %v1591 = vunpack.c.h.b16 %v353
        %v1592 = vunpack.c.l.b16 %v354
        %v1593 = vunpack.c.h.b16 %v354
        %v1594 = vunpack.c.l.b16 %v355
        %v1595 = vunpack.c.h.b16 %v355
        %v1596 = vunpack.c.l.b16 %v356
        %v1597 = vunpack.c.h.b16 %v356
        %v1598 = vunpack.c.l.b16 %v357
        %v1599 = vunpack.c.h.b16 %v357
        %v1600 = vunpack.c.l.b16 %v358
        %v1601 = vunpack.c.h.b16 %v358
        %v1602 = vunpack.c.l.b16 %v359
        %v1603 = vunpack.c.h.b16 %v359
        %v1604 = vunpack.c.l.b16 %v360
        %v1605 = vunpack.c.h.b16 %v360
        %v1606 = vunpack.c.l.b16 %v361
        %v1607 = vunpack.c.h.b16 %v361
        %v1608 = vunpack.c.l.b16 %v362
        %v1609 = vunpack.c.h.b16 %v362
        %v1610 = vunpack.c.l.b16 %v363
        %v1611 = vunpack.c.h.b16 %v363
        %v1612 = vunpack.c.l.b16 %v364
        %v1613 = vunpack.c.h.b16 %v364
        %v1614 = vunpack.c.l.b16 %v365
        %v1615 = vunpack.c.h.b16 %v365
        %v1616 = vunpack.c.l.b16 %v366
        %v1617 = vunpack.c.h.b16 %v366
        %v1618 = vunpack.c.l.b16 %v367
        %v1619 = vunpack.c.h.b16 %v367
        %v1620 = vunpack.c.l.b16 %v368
        %v1621 = vunpack.c.h.b16 %v368
        %v1622 = vunpack.c.l.b16 %v369
        %v1623 = vunpack.c.h.b16 %v369
        %v1624 = vunpack.c.l.b16 %v370
        %v1625 = vunpack.c.h.b16 %v370
        %v1626 = vunpack.c.l.b16 %v371
        %v1627 = vunpack.c.h.b16 %v371
        %v1628 = vunpack.c.l.b16 %v372
        %v1629 = vunpack.c.h.b16 %v372
        %v1630 = vunpack.c.l.b16 %v373
        %v1631 = vunpack.c.h.b16 %v373
        %v1632 = vunpack.c.l.b16 %v374
        %v1633 = vunpack.c.h.b16 %v374
        %v1634 = vunpack.c.l.b16 %v375
        %v1635 = vunpack.c.h.b16 %v375
        %v1636 = vunpack.c.l.b16 %v376
        %v1637 = vunpack.c.h.b16 %v376
        %v1638 = vunpack.c.l.b16 %v377
        %v1639 = vunpack.c.h.b16 %v377
        %v1640 = vunpack.c.l.b16 %v378
        %v1641 = vunpack.c.h.b16 %v378
        %v1642 = vunpack.c.l.b16 %v379
        %v1643 = vunpack.c.h.b16 %v379
        %v1644 = vunpack.c.l.b16 %v380
        %v1645 = vunpack.c.h.b16 %v380
        %v1646 = vunpack.c.l.b16 %v381
        %v1647 = vunpack.c.h.b16 %v381
        %v1648 = vunpack.c.l.b16 %v382
        %v1649 = vunpack.c.h.b16 %v382
        %v1650 = vunpack.c.l.b16 %v383
        %v1651 = vunpack.c.h.b16 %v383
        %v1652 = vunpack.c.l.b16 %v384
        %v1653 = vunpack.c.h.b16 %v384
        %v1654 = vunpack.c.l.b16 %v385
        %v1655 = vunpack.c.h.b16 %v385
        %v1656 = vunpack.c.l.b16 %v386
        %v1657 = vunpack.c.h.b16 %v386
        %v1658 = vunpack.c.l.b16 %v387
        %v1659 = vunpack.c.h.b16 %v387
        %v1660 = vunpack.c.l.b16 %v388
        %v1661 = vunpack.c.h.b16 %v388
        %v1662 = vunpack.c.l.b16 %v389
        %v1663 = vunpack.c.h.b16 %v389
        %v1664 = vunpack.c.l.b16 %v390
        %v1665 = vunpack.c.h.b16 %v390
        %v1666 = vunpack.c.l.b16 %v391
        %v1667 = vunpack.c.h.b16 %v391
        %v1668 = vunpack.c.l.b16 %v392
        %v1669 = vunpack.c.h.b16 %v392
        %v1670 = vunpack.c.l.b16 %v393
        %v1671 = vunpack.c.h.b16 %v393
        %v1672 = vunpack.c.l.b16 %v394
        %v1673 = vunpack.c.h.b16 %v394
        %v1674 = vunpack.c.l.b16 %v395
        %v1675 = vunpack.c.h.b16 %v395
        %v1676 = vunpack.c.l.b16 %v396
        %v1677 = vunpack.c.h.b16 %v396
        %v1678 = vunpack.c.l.b16 %v397
        %v1679 = vunpack.c.h.b16 %v397
        %v1680 = vunpack.c.l.b16 %v398
        %v1681 = vunpack.c.h.b16 %v398
        %v1682 = vunpack.c.l.b16 %v399
        %v1683 = vunpack.c.h.b16 %v399
        %v1684 = vunpack.c.l.b16 %v400
        %v1685 = vunpack.c.h.b16 %v400
        %v1686 = vunpack.c.l.b16 %v401
        %v1687 = vunpack.c.h.b16 %v401
        %v1688 = vunpack.c.l.b16 %v402
        %v1689 = vunpack.c.h.b16 %v402
        %v1690 = vunpack.c.l.b16 %v403
        %v1691 = vunpack.c.h.b16 %v403
        %v1692 = vunpack.c.l.b16 %v404
        %v1693 = vunpack.c.h.b16 %v404
        %v1694 = vunpack.c.l.b16 %v405
        %v1695 = vunpack.c.h.b16 %v405
        %v1696 = vunpack.c.l.b16 %v406
        %v1697 = vunpack.c.h.b16 %v406
        %v1698 = vunpack.c.l.b16 %v407
        %v1699 = vunpack.c.h.b16 %v407
        %v1700 = vunpack.c.l.b16 %v408
        %v1701 = vunpack.c.h.b16 %v408
        %v1702 = vunpack.c.l.b16 %v409
        %v1703 = vunpack.c.h.b16 %v409
        %v1704 = vunpack.c.l.b16 %v410
        %v1705 = vunpack.c.h.b16 %v410
        %v1706 = vunpack.c.l.b16 %v411
        %v1707 = vunpack.c.h.b16 %v411
        %v1708 = vunpack.c.l.b16 %v412
        %v1709 = vunpack.c.h.b16 %v412
        %v1710 = vunpack.c.l.b16 %v413
        %v1711 = vunpack.c.h.b16 %v413
        %v1712 = vunpack.c.l.b16 %v414
        %v1713 = vunpack.c.h.b16 %v414
        %v1714 = vunpack.c.l.b16 %v415
        %v1715 = vunpack.c.h.b16 %v415
        %v1716 = vunpack.c.l.b16 %v416
        %v1717 = vunpack.c.h.b16 %v416
        %v1718 = vunpack.c.l.b16 %v417
        %v1719 = vunpack.c.h.b16 %v417
        %v1720 = vunpack.c.l.b16 %v418
        %v1721 = vunpack.c.h.b16 %v418
        %v1722 = vunpack.c.l.b16 %v419
        %v1723 = vunpack.c.h.b16 %v419
        %v1724 = vunpack.c.l.b16 %v420
        %v1725 = vunpack.c.h.b16 %v420
        %v1726 = vunpack.c.l.b16 %v421
        %v1727 = vunpack.c.h.b16 %v421
        %v1728 = vunpack.c.l.b16 %v422
        %v1729 = vunpack.c.h.b16 %v422
        %v1730 = vunpack.c.l.b16 %v423
        %v1731 = vunpack.c.h.b16 %v423
        %v1732 = vunpack.c.l.b16 %v424
        %v1733 = vunpack.c.h.b16 %v424
        %v1734 = vunpack.c.l.b16 %v425
        %v1735 = vunpack.c.h.b16 %v425
        %v1736 = vunpack.c.l.b16 %v426
        %v1737 = vunpack.c.h.b16 %v426
        %v1738 = vunpack.c.l.b16 %v427
        %v1739 = vunpack.c.h.b16 %v427
        %v1740 = vunpack.c.l.b16 %v428
        %v1741 = vunpack.c.h.b16 %v428
        %v1742 = vunpack.c.l.b16 %v429
        %v1743 = vunpack.c.h.b16 %v429
        %v1744 = vunpack.c.l.b16 %v430
        %v1745 = vunpack.c.h.b16 %v430
        %v1746 = vunpack.c.l.b16 %v431
        %v1747 = vunpack.c.h.b16 %v431
        %v1748 = vunpack.c.l.b16 %v432
        %v1749 = vunpack.c.h.b16 %v432
        %v1750 = vunpack.c.l.b16 %v433
        %v1751 = vunpack.c.h.b16 %v433
        %v1752 = vunpack.c.l.b16 %v434
        %v1753 = vunpack.c.h.b16 %v434
        %v1754 = vunpack.c.l.b16 %v435
        %v1755 = vunpack.c.h.b16 %v435
        %v1756 = vunpack.c.l.b16 %v436
        %v1757 = vunpack.c.h.b16 %v436
        %v1758 = vunpack.c.l.b16 %v437
        %v1759 = vunpack.c.h.b16 %v437
        %v1760 = vunpack.c.l.b16 %v438
        %v1761 = vunpack.c.h.b16 %v438
        %v1762 = vunpack.c.l.b16 %v439
        %v1763 = vunpack.c.h.b16 %v439
        %v1764 = vunpack.c.l.b16 %v440
        %v1765 = vunpack.c.h.b16 %v440
        %v1766 = vunpack.c.l.b16 %v441
        %v1767 = vunpack.c.h.b16 %v441
        %v1768 = vunpack.c.l.b16 %v442
        %v1769 = vunpack.c.h.b16 %v442
        %v1770 = vunpack.c.l.b16 %v443
        %v1771 = vunpack.c.h.b16 %v443
        %v1772 = vunpack.c.l.b16 %v444
        %v1773 = vunpack.c.h.b16 %v444
        %v1774 = vunpack.c.l.b16 %v445
        %v1775 = vunpack.c.h.b16 %v445
        %v1776 = vunpack.c.l.b16 %v446
        %v1777 = vunpack.c.h.b16 %v446
        %v1778 = vunpack.c.l.b16 %v447
        %v1779 = vunpack.c.h.b16 %v447
        %v1780 = vunpack.c.l.b16 %v448
        %v1781 = vunpack.c.h.b16 %v448
        %v1782 = vunpack.c.l.b16 %v449
        %v1783 = vunpack.c.h.b16 %v449
        %v1784 = vunpack.c.l.b16 %v450
        %v1785 = vunpack.c.h.b16 %v450
        %v1786 = vunpack.c.l.b16 %v451
        %v1787 = vunpack.c.h.b16 %v451
        %v1788 = vunpack.c.l.b16 %v452
        %v1789 = vunpack.c.h.b16 %v452
        %v1790 = vunpack.c.l.b16 %v453
        %v1791 = vunpack.c.h.b16 %v453
        %v1792 = vunpack.c.l.b16 %v454
        %v1793 = vunpack.c.h.b16 %v454
        %v1794 = vunpack.c.l.b16 %v455
        %v1795 = vunpack.c.h.b16 %v455
        %v1796 = vunpack.c.l.b16 %v456
        %v1797 = vunpack.c.h.b16 %v456
        %v1798 = vunpack.c.l.b16 %v457
        %v1799 = vunpack.c.h.b16 %v457
        %v1800 = vunpack.c.l.b16 %v458
        %v1801 = vunpack.c.h.b16 %v458
        %v1802 = vunpack.c.l.b16 %v459
        %v1803 = vunpack.c.h.b16 %v459
        %v1804 = vunpack.c.l.b16 %v460
        %v1805 = vunpack.c.h.b16 %v460
        %v1806 = vunpack.c.l.b16 %v461
        %v1807 = vunpack.c.h.b16 %v461
        %v1808 = vunpack.c.l.b16 %v462
        %v1809 = vunpack.c.h.b16 %v462
        %v1810 = vunpack.c.l.b16 %v463
        %v1811 = vunpack.c.h.b16 %v463
        %v1812 = vunpack.c.l.b16 %v464
        %v1813 = vunpack.c.h.b16 %v464
        %v1814 = vunpack.c.l.b16 %v465
        %v1815 = vunpack.c.h.b16 %v465
        %v1816 = vunpack.c.l.b16 %v466
        %v1817 = vunpack.c.h.b16 %v466
        %v1818 = vunpack.c.l.b16 %v467
        %v1819 = vunpack.c.h.b16 %v467
        %v1820 = vunpack.c.l.b16 %v468
        %v1821 = vunpack.c.h.b16 %v468
        %v1822 = vunpack.c.l.b16 %v469
        %v1823 = vunpack.c.h.b16 %v469
        %v1824 = vunpack.c.l.b16 %v470
        %v1825 = vunpack.c.h.b16 %v470
        %v1826 = vunpack.c.l.b16 %v471
        %v1827 = vunpack.c.h.b16 %v471
        %v1828 = vunpack.c.l.b16 %v472
        %v1829 = vunpack.c.h.b16 %v472
        %v1830 = vunpack.c.l.b16 %v473
        %v1831 = vunpack.c.h.b16 %v473
        %v1832 = vunpack.c.l.b16 %v474
        %v1833 = vunpack.c.h.b16 %v474
        %v1834 = vunpack.c.l.b16 %v475
        %v1835 = vunpack.c.h.b16 %v475
        %v1836 = vunpack.c.l.b16 %v476
        %v1837 = vunpack.c.h.b16 %v476
        %v1838 = vunpack.c.l.b16 %v477
        %v1839 = vunpack.c.h.b16 %v477
        %v1840 = vunpack.c.l.b16 %v478
        %v1841 = vunpack.c.h.b16 %v478
        %v1842 = vunpack.c.l.b16 %v479
        %v1843 = vunpack.c.h.b16 %v479
        %v1844 = vunpack.c.l.b16 %v480
        %v1845 = vunpack.c.h.b16 %v480
        %v1846 = vunpack.c.l.b16 %v481
        %v1847 = vunpack.c.h.b16 %v481
        %v1848 = vunpack.c.l.b16 %v482
        %v1849 = vunpack.c.h.b16 %v482
        %v1850 = vunpack.c.l.b16 %v483
        %v1851 = vunpack.c.h.b16 %v483
        %v1852 = vunpack.c.l.b16 %v484
        %v1853 = vunpack.c.h.b16 %v484
        %v1854 = vunpack.c.l.b16 %v485
        %v1855 = vunpack.c.h.b16 %v485
        %v1856 = vunpack.c.l.b16 %v486
        %v1857 = vunpack.c.h.b16 %v486
        %v1858 = vunpack.c.l.b16 %v487
        %v1859 = vunpack.c.h.b16 %v487
        %v1860 = vunpack.c.l.b16 %v488
        %v1861 = vunpack.c.h.b16 %v488
        %v1862 = vunpack.c.l.b16 %v489
        %v1863 = vunpack.c.h.b16 %v489
        %v1864 = vunpack.c.l.b16 %v490
        %v1865 = vunpack.c.h.b16 %v490
        %v1866 = vunpack.c.l.b16 %v491
        %v1867 = vunpack.c.h.b16 %v491
        %v1868 = vunpack.c.l.b16 %v492
        %v1869 = vunpack.c.h.b16 %v492
        %v1870 = vunpack.c.l.b16 %v493
        %v1871 = vunpack.c.h.b16 %v493
        %v1872 = vunpack.c.l.b16 %v494
        %v1873 = vunpack.c.h.b16 %v494
        %v1874 = vunpack.c.l.b16 %v495
        %v1875 = vunpack.c.h.b16 %v495
        %v1876 = vunpack.c.l.b16 %v496
        %v1877 = vunpack.c.h.b16 %v496
        %v1878 = vunpack.c.l.b16 %v497
        %v1879 = vunpack.c.h.b16 %v497
        %v1880 = vunpack.c.l.b16 %v498
        %v1881 = vunpack.c.h.b16 %v498
        %v1882 = vunpack.c.l.b16 %v499
        %v1883 = vunpack.c.h.b16 %v499
        %v1884 = vunpack.c.l.b16 %v500
        %v1885 = vunpack.c.h.b16 %v500
        %v1886 = vunpack.c.l.b16 %v501
        %v1887 = vunpack.c.h.b16 %v501
        %v1888 = vunpack.c.l.b16 %v502
        %v1889 = vunpack.c.h.b16 %v502
        %v1890 = vunpack.c.l.b16 %v503
        %v1891 = vunpack.c.h.b16 %v503
        %v1892 = vunpack.c.l.b16 %v504
        %v1893 = vunpack.c.h.b16 %v504
        %v1894 = vunpack.c.l.b16 %v505
        %v1895 = vunpack.c.h.b16 %v505
        %v1896 = vunpack.c.l.b16 %v506
        %v1897 = vunpack.c.h.b16 %v506
        %v1898 = vunpack.c.l.b16 %v507
        %v1899 = vunpack.c.h.b16 %v507
        %v1900 = vunpack.c.l.b16 %v508
        %v1901 = vunpack.c.h.b16 %v508
        %v1902 = vunpack.c.l.b16 %v509
        %v1903 = vunpack.c.h.b16 %v509
        %v1904 = vunpack.c.l.b16 %v510
        %v1905 = vunpack.c.h.b16 %v510
        %v1906 = vunpack.c.l.b16 %v511
        %v1907 = vunpack.c.h.b16 %v511
        %v1908 = vunpack.c.l.b16 %v512
        %v1909 = vunpack.c.h.b16 %v512
        %v1910 = vunpack.c.l.b16 %v513
        %v1911 = vunpack.c.h.b16 %v513
        %v1912 = vunpack.c.l.b16 %v514
        %v1913 = vunpack.c.h.b16 %v514
        %v1914 = vunpack.c.l.b16 %v515
        %v1915 = vunpack.c.h.b16 %v515
        %v1916 = vunpack.c.l.b16 %v516
        %v1917 = vunpack.c.h.b16 %v516
        %v1918 = vunpack.c.l.b16 %v517
        %v1919 = vunpack.c.h.b16 %v517
        %v1920 = vunpack.c.l.b16 %v518
        %v1921 = vunpack.c.h.b16 %v518
        %v1922 = vunpack.c.l.b16 %v519
        %v1923 = vunpack.c.h.b16 %v519
        %v1924 = vunpack.c.l.b16 %v520
        %v1925 = vunpack.c.h.b16 %v520
        %v1926 = vunpack.c.l.b16 %v521
        %v1927 = vunpack.c.h.b16 %v521
        %v1928 = vunpack.c.l.b16 %v522
        %v1929 = vunpack.c.h.b16 %v522
        %v1930 = vunpack.c.l.b16 %v523
        %v1931 = vunpack.c.h.b16 %v523
        %v1932 = vunpack.c.l.b16 %v524
        %v1933 = vunpack.c.h.b16 %v524
        %v1934 = vunpack.c.l.b16 %v525
        %v1935 = vunpack.c.h.b16 %v525
        %v1936 = vunpack.c.l.b16 %v526
        %v1937 = vunpack.c.h.b16 %v526
        %v1938 = vunpack.c.l.b16 %v527
        %v1939 = vunpack.c.h.b16 %v527
        %v1940 = vunpack.c.l.b16 %v528
        %v1941 = vunpack.c.h.b16 %v528
        %v1942 = vunpack.c.l.b16 %v529
        %v1943 = vunpack.c.h.b16 %v529
        %v1944 = vunpack.c.l.b16 %v530
        %v1945 = vunpack.c.h.b16 %v530
        %v1946 = vunpack.c.l.b16 %v531
        %v1947 = vunpack.c.h.b16 %v531
        %v1948 = vunpack.c.l.b16 %v532
        %v1949 = vunpack.c.h.b16 %v532
        %v1950 = vunpack.c.l.b16 %v533
        %v1951 = vunpack.c.h.b16 %v533
        %v1952 = vunpack.c.l.b16 %v534
        %v1953 = vunpack.c.h.b16 %v534
        %v1954 = vunpack.c.l.b16 %v535
        %v1955 = vunpack.c.h.b16 %v535
        %v1956 = vunpack.c.l.b16 %v536
        %v1957 = vunpack.c.h.b16 %v536
        %v1958 = vunpack.c.l.b16 %v537
        %v1959 = vunpack.c.h.b16 %v537
        %v1960 = vunpack.c.l.b16 %v538
        %v1961 = vunpack.c.h.b16 %v538
        %v1962 = vunpack.c.l.b16 %v539
        %v1963 = vunpack.c.h.b16 %v539
        %v1964 = vunpack.c.l.b16 %v540
        %v1965 = vunpack.c.h.b16 %v540
        %v1966 = vunpack.c.l.b16 %v541
        %v1967 = vunpack.c.h.b16 %v541
        %v1968 = vunpack.c.l.b16 %v542
        %v1969 = vunpack.c.h.b16 %v542
        %v1970 = vunpack.c.l.b16 %v543
        %v1971 = vunpack.c.h.b16 %v543
        %v1972 = vunpack.c.l.b16 %v544
        %v1973 = vunpack.c.h.b16 %v544
        %v1974 = vunpack.c.l.b16 %v545
        %v1975 = vunpack.c.h.b16 %v545
        %v1976 = vunpack.c.l.b16 %v546
        %v1977 = vunpack.c.h.b16 %v546
        %v1978 = vunpack.c.l.b16 %v547
        %v1979 = vunpack.c.h.b16 %v547
        %v1980 = vunpack.c.l.b16 %v548
        %v1981 = vunpack.c.h.b16 %v548
        %v1982 = vunpack.c.l.b16 %v549
        %v1983 = vunpack.c.h.b16 %v549
        %v1984 = vunpack.c.l.b16 %v550
        %v1985 = vunpack.c.h.b16 %v550
        %v1986 = vunpack.c.l.b16 %v551
        %v1987 = vunpack.c.h.b16 %v551
        %v1988 = vunpack.c.l.b16 %v552
        %v1989 = vunpack.c.h.b16 %v552
        %v1990 = vunpack.c.l.b16 %v553
        %v1991 = vunpack.c.h.b16 %v553
        %v1992 = vunpack.c.l.b16 %v554
        %v1993 = vunpack.c.h.b16 %v554
        %v1994 = vunpack.c.l.b16 %v555
        %v1995 = vunpack.c.h.b16 %v555
        %v1996 = vunpack.c.l.b16 %v556
        %v1997 = vunpack.c.h.b16 %v556
        %v1998 = vunpack.c.l.b16 %v557
        %v1999 = vunpack.c.h.b16 %v557
        %v2000 = vunpack.c.l.b16 %v558
        %v2001 = vunpack.c.h.b16 %v558
        %v2002 = vunpack.c.l.b16 %v559
        %v2003 = vunpack.c.h.b16 %v559
        %v2004 = vunpack.c.l.b16 %v560
        %v2005 = vunpack.c.h.b16 %v560
        %v2006 = vunpack.c.l.b16 %v561
        %v2007 = vunpack.c.h.b16 %v561
        %v2008 = vunpack.c.l.b16 %v562
        %v2009 = vunpack.c.h.b16 %v562
        %v2010 = vunpack.c.l.b16 %v563
        %v2011 = vunpack.c.h.b16 %v563
        %v2012 = vunpack.c.l.b16 %v564
        %v2013 = vunpack.c.h.b16 %v564
        %v2014 = vunpack.c.l.b16 %v565
        %v2015 = vunpack.c.h.b16 %v565
        %v2016 = vunpack.c.l.b16 %v566
        %v2017 = vunpack.c.h.b16 %v566
        %v2018 = vunpack.c.l.b16 %v567
        %v2019 = vunpack.c.h.b16 %v567
        %v2020 = vunpack.c.l.b16 %v568
        %v2021 = vunpack.c.h.b16 %v568
        %v2022 = vunpack.c.l.b16 %v569
        %v2023 = vunpack.c.h.b16 %v569
        %v2024 = vunpack.c.l.b16 %v570
        %v2025 = vunpack.c.h.b16 %v570
        %v2026 = vunpack.c.l.b16 %v571
        %v2027 = vunpack.c.h.b16 %v571
        %v2028 = vunpack.c.l.b16 %v572
        %v2029 = vunpack.c.h.b16 %v572
        %v2030 = vunpack.c.l.b16 %v573
        %v2031 = vunpack.c.h.b16 %v573
        %v2032 = vunpack.c.l.b16 %v574
        %v2033 = vunpack.c.h.b16 %v574
        %v2034 = vunpack.c.l.b16 %v575
        %v2035 = vunpack.c.h.b16 %v575
        %v2036 = vunpack.c.l.b16 %v576
        %v2037 = vunpack.c.h.b16 %v576
        %v2038 = vunpack.c.l.b16 %v577
        %v2039 = vunpack.c.h.b16 %v577
        %v2040 = vunpack.c.l.b16 %v578
        %v2041 = vunpack.c.h.b16 %v578
        %v2042 = vunpack.c.l.b16 %v579
        %v2043 = vunpack.c.h.b16 %v579
        %v2044 = vunpack.c.l.b16 %v580
        %v2045 = vunpack.c.h.b16 %v580
        %v2046 = vunpack.c.l.b16 %v581
        %v2047 = vunpack.c.h.b16 %v581
        %v2048 = vunpack.c.l.b16 %v582
        %v2049 = vunpack.c.h.b16 %v582
        %v2050 = vunpack.c.l.b16 %v583
        %v2051 = vunpack.c.h.b16 %v583
        %v2052 = vunpack.c.l.b16 %v584
        %v2053 = vunpack.c.h.b16 %v584
        %v2054 = vunpack.c.l.b16 %v585
        %v2055 = vunpack.c.h.b16 %v585
        %v2056 = vunpack.c.l.b16 %v586
        %v2057 = vunpack.c.h.b16 %v586
        %v2058 = vunpack.c.l.b16 %v587
        %v2059 = vunpack.c.h.b16 %v587
        %v2060 = vunpack.c.l.b16 %v588
        %v2061 = vunpack.c.h.b16 %v588
        %v2062 = vunpack.c.l.b16 %v589
        %v2063 = vunpack.c.h.b16 %v589
        %v2064 = vunpack.c.l.b16 %v590
        %v2065 = vunpack.c.h.b16 %v590
        %v2066 = vunpack.c.l.b16 %v591
        %v2067 = vunpack.c.h.b16 %v591
        %v2068 = vunpack.c.l.b16 %v592
        %v2069 = vunpack.c.h.b16 %v592
        %v2070 = vunpack.c.l.b16 %v593
        %v2071 = vunpack.c.h.b16 %v593
        %v2072 = vunpack.c.l.b16 %v594
        %v2073 = vunpack.c.h.b16 %v594
        %v2074 = vunpack.c.l.b16 %v595
        %v2075 = vunpack.c.h.b16 %v595
        %v2076 = vunpack.c.l.b16 %v596
        %v2077 = vunpack.c.h.b16 %v596
        %v2078 = vunpack.c.l.b16 %v597
        %v2079 = vunpack.c.h.b16 %v597
        %v2080 = vunpack.c.l.b16 %v598
        %v2081 = vunpack.c.h.b16 %v598
        %v2082 = vunpack.c.l.b16 %v599
        %v2083 = vunpack.c.h.b16 %v599
        %v2084 = vunpack.c.l.b16 %v600
        %v2085 = vunpack.c.h.b16 %v600
        %v2086 = vunpack.c.l.b16 %v601
        %v2087 = vunpack.c.h.b16 %v601
        %v2088 = vunpack.c.l.b16 %v602
        %v2089 = vunpack.c.h.b16 %v602
        %v2090 = vunpack.c.l.b16 %v603
        %v2091 = vunpack.c.h.b16 %v603
        %v2092 = vunpack.c.l.b16 %v604
        %v2093 = vunpack.c.h.b16 %v604
        %v2094 = vunpack.c.l.b16 %v605
        %v2095 = vunpack.c.h.b16 %v605
        %v2096 = vunpack.c.l.b16 %v606
        %v2097 = vunpack.c.h.b16 %v606
        %v2098 = vunpack.c.l.b16 %v607
        %v2099 = vunpack.c.h.b16 %v607
        %v2100 = vunpack.c.l.b16 %v608
        %v2101 = vunpack.c.h.b16 %v608
        %v2102 = vunpack.c.l.b16 %v609
        %v2103 = vunpack.c.h.b16 %v609
        %v2104 = vunpack.c.l.b16 %v610
        %v2105 = vunpack.c.h.b16 %v610
        %v2106 = vunpack.c.l.b16 %v611
        %v2107 = vunpack.c.h.b16 %v611
        %v2108 = vunpack.c.l.b16 %v612
        %v2109 = vunpack.c.h.b16 %v612
        %v2110 = vunpack.c.l.b16 %v613
        %v2111 = vunpack.c.h.b16 %v613
        %v2112 = vunpack.c.l.b16 %v614
        %v2113 = vunpack.c.h.b16 %v614
        %v2114 = vunpack.c.l.b16 %v615
        %v2115 = vunpack.c.h.b16 %v615
        %v2116 = vunpack.c.l.b16 %v616
        %v2117 = vunpack.c.h.b16 %v616
        %v2118 = vunpack.c.l.b16 %v617
        %v2119 = vunpack.c.h.b16 %v617
        %v2120 = vunpack.c.l.b16 %v618
        %v2121 = vunpack.c.h.b16 %v618
        %v2122 = vunpack.c.l.b16 %v619
        %v2123 = vunpack.c.h.b16 %v619
        %v2124 = vunpack.c.l.b16 %v620
        %v2125 = vunpack.c.h.b16 %v620
        %v2126 = vunpack.c.l.b16 %v621
        %v2127 = vunpack.c.h.b16 %v621
        %v2128 = vunpack.c.l.b16 %v622
        %v2129 = vunpack.c.h.b16 %v622
        %v2130 = vunpack.c.l.b16 %v623
        %v2131 = vunpack.c.h.b16 %v623
        %v2132 = vunpack.c.l.b16 %v624
        %v2133 = vunpack.c.h.b16 %v624
        %v2134 = vunpack.c.l.b16 %v625
        %v2135 = vunpack.c.h.b16 %v625
        %v2136 = vunpack.c.l.b16 %v626
        %v2137 = vunpack.c.h.b16 %v626
        %v2138 = vunpack.c.l.b16 %v627
        %v2139 = vunpack.c.h.b16 %v627
        %v2140 = vunpack.c.l.b16 %v628
        %v2141 = vunpack.c.h.b16 %v628
        %v2142 = vunpack.c.l.b16 %v629
        %v2143 = vunpack.c.h.b16 %v629
        %v2144 = vunpack.c.l.b16 %v630
        %v2145 = vunpack.c.h.b16 %v630
        %v2146 = vunpack.c.l.b16 %v631
        %v2147 = vunpack.c.h.b16 %v631
        %v2148 = vunpack.c.l.b16 %v632
        %v2149 = vunpack.c.h.b16 %v632
        %v2150 = vunpack.c.l.b16 %v633
        %v2151 = vunpack.c.h.b16 %v633
        %v2152 = vunpack.c.l.b16 %v634
        %v2153 = vunpack.c.h.b16 %v634
        %v2154 = vunpack.c.l.b16 %v635
        %v2155 = vunpack.c.h.b16 %v635
        %v2156 = vunpack.c.l.b16 %v636
        %v2157 = vunpack.c.h.b16 %v636
        %v2158 = vunpack.c.l.b16 %v637
        %v2159 = vunpack.c.h.b16 %v637
        %v2160 = vunpack.c.l.b16 %v638
        %v2161 = vunpack.c.h.b16 %v638
        %v2162 = vunpack.c.l.b16 %v639
        %v2163 = vunpack.c.h.b16 %v639
        %v2164 = vunpack.c.l.b16 %v640
        %v2165 = vunpack.c.h.b16 %v640
        %v2166 = vunpack.c.l.b16 %v641
        %v2167 = vunpack.c.h.b16 %v641
        %v2168 = vunpack.c.l.b16 %v642
        %v2169 = vunpack.c.h.b16 %v642
        %v2170 = vunpack.c.l.b16 %v643
        %v2171 = vunpack.c.h.b16 %v643
        %v2172 = vunpack.c.l.b16 %v644
        %v2173 = vunpack.c.h.b16 %v644
        %v2174 = vunpack.c.l.b16 %v645
        %v2175 = vunpack.c.h.b16 %v645
        %v2176 = vunpack.c.l.b16 %v646
        %v2177 = vunpack.c.h.b16 %v646
        %v2178 = vunpack.c.l.b16 %v647
        %v2179 = vunpack.c.h.b16 %v647
        %v2180 = vunpack.c.l.b16 %v648
        %v2181 = vunpack.c.h.b16 %v648
        %v2182 = vunpack.c.l.b16 %v649
        %v2183 = vunpack.c.h.b16 %v649
        %v2184 = vunpack.c.l.b16 %v650
        %v2185 = vunpack.c.h.b16 %v650
        %v2186 = vunpack.c.l.b16 %v651
        %v2187 = vunpack.c.h.b16 %v651
        %v2188 = vunpack.c.l.b16 %v652
        %v2189 = vunpack.c.h.b16 %v652
        %v2190 = vunpack.c.l.b16 %v653
        %v2191 = vunpack.c.h.b16 %v653
        %v2192 = vunpack.c.l.b16 %v654
        %v2193 = vunpack.c.h.b16 %v654
        %v2194 = vunpack.c.l.b16 %v655
        %v2195 = vunpack.c.h.b16 %v655
        %v2196 = vunpack.c.l.b16 %v656
        %v2197 = vunpack.c.h.b16 %v656
        %v2198 = vunpack.c.l.b16 %v657
        %v2199 = vunpack.c.h.b16 %v657
        %v2200 = vunpack.c.l.b16 %v658
        %v2201 = vunpack.c.h.b16 %v658
        %v2202 = vunpack.c.l.b16 %v659
        %v2203 = vunpack.c.h.b16 %v659
        %v2204 = vunpack.c.l.b16 %v660
        %v2205 = vunpack.c.h.b16 %v660
        %v2206 = vunpack.c.l.b16 %v661
        %v2207 = vunpack.c.h.b16 %v661
        %v2208 = vunpack.c.l.b16 %v662
        %v2209 = vunpack.c.h.b16 %v662
        %v2210 = vunpack.c.l.b16 %v663
        %v2211 = vunpack.c.h.b16 %v663
        %v2212 = vunpack.c.l.b16 %v664
        %v2213 = vunpack.c.h.b16 %v664
        %v2214 = vunpack.c.l.b16 %v665
        %v2215 = vunpack.c.h.b16 %v665
        %v2216 = vunpack.c.l.b16 %v666
        %v2217 = vunpack.c.h.b16 %v666
        %v2218 = vunpack.c.l.b16 %v667
        %v2219 = vunpack.c.h.b16 %v667
        %v2220 = vunpack.c.l.b16 %v668
        %v2221 = vunpack.c.h.b16 %v668
        %v2222 = vunpack.c.l.b16 %v669
        %v2223 = vunpack.c.h.b16 %v669
        %v2224 = vunpack.c.l.b16 %v670
        %v2225 = vunpack.c.h.b16 %v670
        %v2226 = vunpack.c.l.b16 %v671
        %v2227 = vunpack.c.h.b16 %v671
        %v2228 = vunpack.c.l.b16 %v672
        %v2229 = vunpack.c.h.b16 %v672
        %v2230 = vunpack.c.l.b16 %v673
        %v2231 = vunpack.c.h.b16 %v673
        %v2232 = vunpack.c.l.b16 %v674
        %v2233 = vunpack.c.h.b16 %v674
        %v2234 = vunpack.c.l.b16 %v675
        %v2235 = vunpack.c.h.b16 %v675
        %v2236 = vunpack.c.l.b16 %v676
        %v2237 = vunpack.c.h.b16 %v676
        %v2238 = vunpack.c.l.b16 %v677
        %v2239 = vunpack.c.h.b16 %v677
        %v2240 = vunpack.c.l.b16 %v678
        %v2241 = vunpack.c.h.b16 %v678
        %v2242 = vunpack.c.l.b16 %v679
        %v2243 = vunpack.c.h.b16 %v679
        %v2244 = vunpack.c.l.b16 %v680
        %v2245 = vunpack.c.h.b16 %v680
        %v2246 = vunpack.c.l.b16 %v681
        %v2247 = vunpack.c.h.b16 %v681
        %v2248 = vunpack.c.l.b16 %v682
        %v2249 = vunpack.c.h.b16 %v682
        %v2250 = vpack.c.b16 %v1294, %v1290
        %v2251 = vpack.c.b16 %v1295, %v1291
        %v2252 = vpack.c.b16 %v1296, %v1292
        %v2253 = vpack.c.b16 %v1297, %v1293
        %v2254 = vpack.c.b16 %v1302, %v1298
        %v2255 = vpack.c.b16 %v1303, %v1299
        %v2256 = vpack.c.b16 %v1304, %v1300
        %v2257 = vpack.c.b16 %v1305, %v1301
        %v2258 = vpack.c.b16 %v1310, %v1306
        %v2259 = vpack.c.b16 %v1311, %v1307
        %v2260 = vpack.c.b16 %v1312, %v1308
        %v2261 = vpack.c.b16 %v1313, %v1309
        %v2262 = vpack.c.b16 %v1318, %v1314
        %v2263 = vpack.c.b16 %v1319, %v1315
        %v2264 = vpack.c.b16 %v1320, %v1316
        %v2265 = vpack.c.b16 %v1321, %v1317
        %v2266 = vpack.c.b16 %v1326, %v1322
        %v2267 = vpack.c.b16 %v1327, %v1323
        %v2268 = vpack.c.b16 %v1328, %v1324
        %v2269 = vpack.c.b16 %v1329, %v1325
        %v2270 = vpack.c.b16 %v1334, %v1330
        %v2271 = vpack.c.b16 %v1335, %v1331
        %v2272 = vpack.c.b16 %v1336, %v1332
        %v2273 = vpack.c.b16 %v1337, %v1333
        %v2274 = vpack.c.b16 %v1342, %v1338
        %v2275 = vpack.c.b16 %v1343, %v1339
        %v2276 = vpack.c.b16 %v1344, %v1340
        %v2277 = vpack.c.b16 %v1345, %v1341
        %v2278 = vpack.c.b16 %v1350, %v1346
        %v2279 = vpack.c.b16 %v1351, %v1347
        %v2280 = vpack.c.b16 %v1352, %v1348
        %v2281 = vpack.c.b16 %v1353, %v1349
        %v2282 = vpack.c.b16 %v1358, %v1354
        %v2283 = vpack.c.b16 %v1359, %v1355
        %v2284 = vpack.c.b16 %v1360, %v1356
        %v2285 = vpack.c.b16 %v1361, %v1357
        %v2286 = vpack.c.b16 %v1366, %v1362
        %v2287 = vpack.c.b16 %v1367, %v1363
        %v2288 = vpack.c.b16 %v1368, %v1364
        %v2289 = vpack.c.b16 %v1369, %v1365
        %v2290 = vpack.c.b16 %v1374, %v1370
        %v2291 = vpack.c.b16 %v1375, %v1371
        %v2292 = vpack.c.b16 %v1376, %v1372
        %v2293 = vpack.c.b16 %v1377, %v1373
        %v2294 = vpack.c.b16 %v1382, %v1378
        %v2295 = vpack.c.b16 %v1383, %v1379
        %v2296 = vpack.c.b16 %v1384, %v1380
        %v2297 = vpack.c.b16 %v1385, %v1381
        %v2298 = vpack.c.b16 %v1390, %v1386
        %v2299 = vpack.c.b16 %v1391, %v1387
        %v2300 = vpack.c.b16 %v1392, %v1388
        %v2301 = vpack.c.b16 %v1393, %v1389
        %v2302 = vpack.c.b16 %v1398, %v1394
        %v2303 = vpack.c.b16 %v1399, %v1395
        %v2304 = vpack.c.b16 %v1400, %v1396
        %v2305 = vpack.c.b16 %v1401, %v1397
        %v2306 = vpack.c.b16 %v1406, %v1402
        %v2307 = vpack.c.b16 %v1407, %v1403
        %v2308 = vpack.c.b16 %v1408, %v1404
        %v2309 = vpack.c.b16 %v1409, %v1405
        %v2310 = vpack.c.b16 %v1414, %v1410
        %v2311 = vpack.c.b16 %v1415, %v1411
        %v2312 = vpack.c.b16 %v1416, %v1412
        %v2313 = vpack.c.b16 %v1417, %v1413
        %v2314 = vpack.c.b16 %v1422, %v1418
        %v2315 = vpack.c.b16 %v1423, %v1419
        %v2316 = vpack.c.b16 %v1424, %v1420
        %v2317 = vpack.c.b16 %v1425, %v1421
        %v2318 = vpack.c.b16 %v1430, %v1426
        %v2319 = vpack.c.b16 %v1431, %v1427
        %v2320 = vpack.c.b16 %v1432, %v1428
        %v2321 = vpack.c.b16 %v1433, %v1429
        %v2322 = vpack.c.b16 %v1438, %v1434
        %v2323 = vpack.c.b16 %v1439, %v1435
        %v2324 = vpack.c.b16 %v1440, %v1436
        %v2325 = vpack.c.b16 %v1441, %v1437
        %v2326 = vpack.c.b16 %v1446, %v1442
        %v2327 = vpack.c.b16 %v1447, %v1443
        %v2328 = vpack.c.b16 %v1448, %v1444
        %v2329 = vpack.c.b16 %v1449, %v1445
        %v2330 = vpack.c.b16 %v1454, %v1450
        %v2331 = vpack.c.b16 %v1455, %v1451
        %v2332 = vpack.c.b16 %v1456, %v1452
        %v2333 = vpack.c.b16 %v1457, %v1453
        %v2334 = vpack.c.b16 %v1462, %v1458
        %v2335 = vpack.c.b16 %v1463, %v1459
        %v2336 = vpack.c.b16 %v1464, %v1460
        %v2337 = vpack.c.b16 %v1465, %v1461
        %v2338 = vpack.c.b16 %v1470, %v1466
        %v2339 = vpack.c.b16 %v1471, %v1467
        %v2340 = vpack.c.b16 %v1472, %v1468
        %v2341 = vpack.c.b16 %v1473, %v1469
        %v2342 = vpack.c.b16 %v1478, %v1474
        %v2343 = vpack.c.b16 %v1479, %v1475
        %v2344 = vpack.c.b16 %v1480, %v1476
        %v2345 = vpack.c.b16 %v1481, %v1477
        %v2346 = vpack.c.b16 %v1486, %v1482
        %v2347 = vpack.c.b16 %v1487, %v1483
        %v2348 = vpack.c.b16 %v1488, %v1484
        %v2349 = vpack.c.b16 %v1489, %v1485
        %v2350 = vpack.c.b16 %v1494, %v1490
        %v2351 = vpack.c.b16 %v1495, %v1491
        %v2352 = vpack.c.b16 %v1496, %v1492
        %v2353 = vpack.c.b16 %v1497, %v1493
        %v2354 = vpack.c.b16 %v1502, %v1498
        %v2355 = vpack.c.b16 %v1503, %v1499
        %v2356 = vpack.c.b16 %v1504, %v1500
        %v2357 = vpack.c.b16 %v1505, %v1501
        %v2358 = vpack.c.b16 %v1510, %v1506
        %v2359 = vpack.c.b16 %v1511, %v1507
        %v2360 = vpack.c.b16 %v1512, %v1508
        %v2361 = vpack.c.b16 %v1513, %v1509
        %v2362 = vpack.c.b16 %v1518, %v1514
        %v2363 = vpack.c.b16 %v1519, %v1515
        %v2364 = vpack.c.b16 %v1520, %v1516
        %v2365 = vpack.c.b16 %v1521, %v1517
        %v2366 = vpack.c.b16 %v1526, %v1522
        %v2367 = vpack.c.b16 %v1527, %v1523
        %v2368 = vpack.c.b16 %v1528, %v1524
        %v2369 = vpack.c.b16 %v1529, %v1525
        %v2370 = vpack.c.b16 %v1534, %v1530
        %v2371 = vpack.c.b16 %v1535, %v1531
        %v2372 = vpack.c.b16 %v1536, %v1532
        %v2373 = vpack.c.b16 %v1537, %v1533
        %v2374 = vpack.c.b16 %v1542, %v1538
        %v2375 = vpack.c.b16 %v1543, %v1539
        %v2376 = vpack.c.b16 %v1544, %v1540
        %v2377 = vpack.c.b16 %v1545, %v1541
        %v2378 = vpack.c.b16 %v1550, %v1546
        %v2379 = vpack.c.b16 %v1551, %v1547
        %v2380 = vpack.c.b16 %v1552, %v1548
        %v2381 = vpack.c.b16 %v1553, %v1549
        %v2382 = vpack.c.b16 %v1558, %v1554
        %v2383 = vpack.c.b16 %v1559, %v1555
        %v2384 = vpack.c.b16 %v1560, %v1556
        %v2385 = vpack.c.b16 %v1561, %v1557
        %v2386 = vpack.c.b16 %v1566, %v1562
        %v2387 = vpack.c.b16 %v1567, %v1563
        %v2388 = vpack.c.b16 %v1568, %v1564
        %v2389 = vpack.c.b16 %v1569, %v1565
        %v2390 = vpack.c.b16 %v1574, %v1570
        %v2391 = vpack.c.b16 %v1575, %v1571
        %v2392 = vpack.c.b16 %v1576, %v1572
        %v2393 = vpack.c.b16 %v1577, %v1573
        %v2394 = vpack.c.b16 %v1582, %v1578
        %v2395 = vpack.c.b16 %v1583, %v1579
        %v2396 = vpack.c.b16 %v1584, %v1580
        %v2397 = vpack.c.b16 %v1585, %v1581
        %v2398 = vpack.c.b16 %v1590, %v1586
        %v2399 = vpack.c.b16 %v1591, %v1587
        %v2400 = vpack.c.b16 %v1592, %v1588
        %v2401 = vpack.c.b16 %v1593, %v1589
        %v2402 = vpack.c.b16 %v1598, %v1594
        %v2403 = vpack.c.b16 %v1599, %v1595
        %v2404 = vpack.c.b16 %v1600, %v1596
        %v2405 = vpack.c.b16 %v1601, %v1597
        %v2406 = vpack.c.b16 %v1606, %v1602
        %v2407 = vpack.c.b16 %v1607, %v1603
        %v2408 = vpack.c.b16 %v1608, %v1604
        %v2409 = vpack.c.b16 %v1609, %v1605
        %v2410 = vpack.c.b16 %v1614, %v1610
        %v2411 = vpack.c.b16 %v1615, %v1611
        %v2412 = vpack.c.b16 %v1616, %v1612
        %v2413 = vpack.c.b16 %v1617, %v1613
        %v2414 = vpack.c.b16 %v1622, %v1618
        %v2415 = vpack.c.b16 %v1623, %v1619
        %v2416 = vpack.c.b16 %v1624, %v1620
        %v2417 = vpack.c.b16 %v1625, %v1621
        %v2418 = vpack.c.b16 %v1630, %v1626
        %v2419 = vpack.c.b16 %v1631, %v1627
        %v2420 = vpack.c.b16 %v1632, %v1628
        %v2421 = vpack.c.b16 %v1633, %v1629
        %v2422 = vpack.c.b16 %v1638, %v1634
        %v2423 = vpack.c.b16 %v1639, %v1635
        %v2424 = vpack.c.b16 %v1640, %v1636
        %v2425 = vpack.c.b16 %v1641, %v1637
        %v2426 = vpack.c.b16 %v1646, %v1642
        %v2427 = vpack.c.b16 %v1647, %v1643
        %v2428 = vpack.c.b16 %v1648, %v1644
        %v2429 = vpack.c.b16 %v1649, %v1645
        %v2430 = vpack.c.b16 %v1654, %v1650
        %v2431 = vpack.c.b16 %v1655, %v1651
        %v2432 = vpack.c.b16 %v1656, %v1652
        %v2433 = vpack.c.b16 %v1657, %v1653
        %v2434 = vpack.c.b16 %v1662, %v1658
        %v2435 = vpack.c.b16 %v1663, %v1659
        %v2436 = vpack.c.b16 %v1664, %v1660
        %v2437 = vpack.c.b16 %v1665, %v1661
        %v2438 = vpack.c.b16 %v1670, %v1666
        %v2439 = vpack.c.b16 %v1671, %v1667
        %v2440 = vpack.c.b16 %v1672, %v1668
        %v2441 = vpack.c.b16 %v1673, %v1669
        %v2442 = vpack.c.b16 %v1678, %v1674
        %v2443 = vpack.c.b16 %v1679, %v1675
        %v2444 = vpack.c.b16 %v1680, %v1676
        %v2445 = vpack.c.b16 %v1681, %v1677
        %v2446 = vpack.c.b16 %v1686, %v1682
        %v2447 = vpack.c.b16 %v1687, %v1683
        %v2448 = vpack.c.b16 %v1688, %v1684
        %v2449 = vpack.c.b16 %v1689, %v1685
        %v2450 = vpack.c.b16 %v1694, %v1690
        %v2451 = vpack.c.b16 %v1695, %v1691
        %v2452 = vpack.c.b16 %v1696, %v1692
        %v2453 = vpack.c.b16 %v1697, %v1693
        %v2454 = vpack.c.b16 %v1702, %v1698
        %v2455 = vpack.c.b16 %v1703, %v1699
        %v2456 = vpack.c.b16 %v1704, %v1700
        %v2457 = vpack.c.b16 %v1705, %v1701
        %v2458 = vpack.c.b16 %v1710, %v1706
        %v2459 = vpack.c.b16 %v1711, %v1707
        %v2460 = vpack.c.b16 %v1712, %v1708
        %v2461 = vpack.c.b16 %v1713, %v1709
        %v2462 = vpack.c.b16 %v1718, %v1714
        %v2463 = vpack.c.b16 %v1719, %v1715
        %v2464 = vpack.c.b16 %v1720, %v1716
        %v2465 = vpack.c.b16 %v1721, %v1717
        %v2466 = vpack.c.b16 %v1726, %v1722
        %v2467 = vpack.c.b16 %v1727, %v1723
        %v2468 = vpack.c.b16 %v1728, %v1724
        %v2469 = vpack.c.b16 %v1729, %v1725
        %v2470 = vpack.c.b16 %v1734, %v1730
        %v2471 = vpack.c.b16 %v1735, %v1731
        %v2472 = vpack.c.b16 %v1736, %v1732
        %v2473 = vpack.c.b16 %v1737, %v1733
        %v2474 = vpack.c.b16 %v1742, %v1738
        %v2475 = vpack.c.b16 %v1743, %v1739
        %v2476 = vpack.c.b16 %v1744, %v1740
        %v2477 = vpack.c.b16 %v1745, %v1741
        %v2478 = vpack.c.b16 %v1750, %v1746
        %v2479 = vpack.c.b16 %v1751, %v1747
        %v2480 = vpack.c.b16 %v1752, %v1748
        %v2481 = vpack.c.b16 %v1753, %v1749
        %v2482 = vpack.c.b16 %v1758, %v1754
        %v2483 = vpack.c.b16 %v1759, %v1755
        %v2484 = vpack.c.b16 %v1760, %v1756
        %v2485 = vpack.c.b16 %v1761, %v1757
        %v2486 = vpack.c.b16 %v1766, %v1762
        %v2487 = vpack.c.b16 %v1767, %v1763
        %v2488 = vpack.c.b16 %v1768, %v1764
        %v2489 = vpack.c.b16 %v1769, %v1765
        %v2490 = vpack.c.b16 %v1774, %v1770
        %v2491 = vpack.c.b16 %v1775, %v1771
        %v2492 = vpack.c.b16 %v1776, %v1772
        %v2493 = vpack.c.b16 %v1777, %v1773
        %v2494 = vpack.c.b16 %v1782, %v1778
        %v2495 = vpack.c.b16 %v1783, %v1779
        %v2496 = vpack.c.b16 %v1784, %v1780
        %v2497 = vpack.c.b16 %v1785, %v1781
        %v2498 = vpack.c.b16 %v1790, %v1786
        %v2499 = vpack.c.b16 %v1791, %v1787
        %v2500 = vpack.c.b16 %v1792, %v1788
        %v2501 = vpack.c.b16 %v1793, %v1789
        %v2502 = vpack.c.b16 %v1798, %v1794
        %v2503 = vpack.c.b16 %v1799, %v1795
        %v2504 = vpack.c.b16 %v1800, %v1796
        %v2505 = vpack.c.b16 %v1801, %v1797
        %v2506 = vpack.c.b16 %v1806, %v1802
        %v2507 = vpack.c.b16 %v1807, %v1803
        %v2508 = vpack.c.b16 %v1808, %v1804
        %v2509 = vpack.c.b16 %v1809, %v1805
        %v2510 = vpack.c.b16 %v1814, %v1810
        %v2511 = vpack.c.b16 %v1815, %v1811
        %v2512 = vpack.c.b16 %v1816, %v1812
        %v2513 = vpack.c.b16 %v1817, %v1813
        %v2514 = vpack.c.b16 %v1822, %v1818
        %v2515 = vpack.c.b16 %v1823, %v1819
        %v2516 = vpack.c.b16 %v1824, %v1820
        %v2517 = vpack.c.b16 %v1825, %v1821
        %v2518 = vpack.c.b16 %v1830, %v1826
        %v2519 = vpack.c.b16 %v1831, %v1827
        %v2520 = vpack.c.b16 %v1832, %v1828
        %v2521 = vpack.c.b16 %v1833, %v1829
        %v2522 = vpack.c.b16 %v1838, %v1834
        %v2523 = vpack.c.b16 %v1839, %v1835
        %v2524 = vpack.c.b16 %v1840, %v1836
        %v2525 = vpack.c.b16 %v1841, %v1837
        %v2526 = vpack.c.b16 %v1846, %v1842
        %v2527 = vpack.c.b16 %v1847, %v1843
        %v2528 = vpack.c.b16 %v1848, %v1844
        %v2529 = vpack.c.b16 %v1849, %v1845
        %v2530 = vpack.c.b16 %v1854, %v1850
        %v2531 = vpack.c.b16 %v1855, %v1851
        %v2532 = vpack.c.b16 %v1856, %v1852
        %v2533 = vpack.c.b16 %v1857, %v1853
        %v2534 = vpack.c.b16 %v1862, %v1858
        %v2535 = vpack.c.b16 %v1863, %v1859
        %v2536 = vpack.c.b16 %v1864, %v1860
        %v2537 = vpack.c.b16 %v1865, %v1861
        %v2538 = vpack.c.b16 %v1870, %v1866
        %v2539 = vpack.c.b16 %v1871, %v1867
        %v2540 = vpack.c.b16 %v1872, %v1868
        %v2541 = vpack.c.b16 %v1873, %v1869
        %v2542 = vpack.c.b16 %v1878, %v1874
        %v2543 = vpack.c.b16 %v1879, %v1875
        %v2544 = vpack.c.b16 %v1880, %v1876
        %v2545 = vpack.c.b16 %v1881, %v1877
        %v2546 = vpack.c.b16 %v1886, %v1882
        %v2547 = vpack.c.b16 %v1887, %v1883
        %v2548 = vpack.c.b16 %v1888, %v1884
        %v2549 = vpack.c.b16 %v1889, %v1885
        %v2550 = vpack.c.b16 %v1894, %v1890
        %v2551 = vpack.c.b16 %v1895, %v1891
        %v2552 = vpack.c.b16 %v1896, %v1892
        %v2553 = vpack.c.b16 %v1897, %v1893
        %v2554 = vpack.c.b16 %v1902, %v1898
        %v2555 = vpack.c.b16 %v1903, %v1899
        %v2556 = vpack.c.b16 %v1904, %v1900
        %v2557 = vpack.c.b16 %v1905, %v1901
        %v2558 = vpack.c.b16 %v1910, %v1906
        %v2559 = vpack.c.b16 %v1911, %v1907
        %v2560 = vpack.c.b16 %v1912, %v1908
        %v2561 = vpack.c.b16 %v1913, %v1909
        %v2562 = vpack.c.b16 %v1918, %v1914
        %v2563 = vpack.c.b16 %v1919, %v1915
        %v2564 = vpack.c.b16 %v1920, %v1916
        %v2565 = vpack.c.b16 %v1921, %v1917
        %v2566 = vpack.c.b16 %v1926, %v1922
        %v2567 = vpack.c.b16 %v1927, %v1923
        %v2568 = vpack.c.b16 %v1928, %v1924
        %v2569 = vpack.c.b16 %v1929, %v1925
        %v2570 = vpack.c.b16 %v1934, %v1930
        %v2571 = vpack.c.b16 %v1935, %v1931
        %v2572 = vpack.c.b16 %v1936, %v1932
        %v2573 = vpack.c.b16 %v1937, %v1933
        %v2574 = vpack.c.b16 %v1942, %v1938
        %v2575 = vpack.c.b16 %v1943, %v1939
        %v2576 = vpack.c.b16 %v1944, %v1940
        %v2577 = vpack.c.b16 %v1945, %v1941
        %v2578 = vpack.c.b16 %v1950, %v1946
        %v2579 = vpack.c.b16 %v1951, %v1947
        %v2580 = vpack.c.b16 %v1952, %v1948
        %v2581 = vpack.c.b16 %v1953, %v1949
        %v2582 = vpack.c.b16 %v1958, %v1954
        %v2583 = vpack.c.b16 %v1959, %v1955
        %v2584 = vpack.c.b16 %v1960, %v1956
        %v2585 = vpack.c.b16 %v1961, %v1957
        %v2586 = vpack.c.b16 %v1966, %v1962
        %v2587 = vpack.c.b16 %v1967, %v1963
        %v2588 = vpack.c.b16 %v1968, %v1964
        %v2589 = vpack.c.b16 %v1969, %v1965
        %v2590 = vpack.c.b16 %v1974, %v1970
        %v2591 = vpack.c.b16 %v1975, %v1971
        %v2592 = vpack.c.b16 %v1976, %v1972
        %v2593 = vpack.c.b16 %v1977, %v1973
        %v2594 = vpack.c.b16 %v1982, %v1978
        %v2595 = vpack.c.b16 %v1983, %v1979
        %v2596 = vpack.c.b16 %v1984, %v1980
        %v2597 = vpack.c.b16 %v1985, %v1981
        %v2598 = vpack.c.b16 %v1990, %v1986
        %v2599 = vpack.c.b16 %v1991, %v1987
        %v2600 = vpack.c.b16 %v1992, %v1988
        %v2601 = vpack.c.b16 %v1993, %v1989
        %v2602 = vpack.c.b16 %v1998, %v1994
        %v2603 = vpack.c.b16 %v1999, %v1995
        %v2604 = vpack.c.b16 %v2000, %v1996
        %v2605 = vpack.c.b16 %v2001, %v1997
        %v2606 = vpack.c.b16 %v2006, %v2002
        %v2607 = vpack.c.b16 %v2007, %v2003
        %v2608 = vpack.c.b16 %v2008, %v2004
        %v2609 = vpack.c.b16 %v2009, %v2005
        %v2610 = vpack.c.b16 %v2014, %v2010
        %v2611 = vpack.c.b16 %v2015, %v2011
        %v2612 = vpack.c.b16 %v2016, %v2012
        %v2613 = vpack.c.b16 %v2017, %v2013
        %v2614 = vpack.c.b16 %v2022, %v2018
        %v2615 = vpack.c.b16 %v2023, %v2019
        %v2616 = vpack.c.b16 %v2024, %v2020
        %v2617 = vpack.c.b16 %v2025, %v2021
        %v2618 = vpack.c.b16 %v2030, %v2026
        %v2619 = vpack.c.b16 %v2031, %v2027
        %v2620 = vpack.c.b16 %v2032, %v2028
        %v2621 = vpack.c.b16 %v2033, %v2029
        %v2622 = vpack.c.b16 %v2038, %v2034
        %v2623 = vpack.c.b16 %v2039, %v2035
        %v2624 = vpack.c.b16 %v2040, %v2036
        %v2625 = vpack.c.b16 %v2041, %v2037
        %v2626 = vpack.c.b16 %v2046, %v2042
        %v2627 = vpack.c.b16 %v2047, %v2043
        %v2628 = vpack.c.b16 %v2048, %v2044
        %v2629 = vpack.c.b16 %v2049, %v2045
        %v2630 = vpack.c.b16 %v2054, %v2050
        %v2631 = vpack.c.b16 %v2055, %v2051
        %v2632 = vpack.c.b16 %v2056, %v2052
        %v2633 = vpack.c.b16 %v2057, %v2053
        %v2634 = vpack.c.b16 %v2062, %v2058
        %v2635 = vpack.c.b16 %v2063, %v2059
        %v2636 = vpack.c.b16 %v2064, %v2060
        %v2637 = vpack.c.b16 %v2065, %v2061
        %v2638 = vpack.c.b16 %v2070, %v2066
        %v2639 = vpack.c.b16 %v2071, %v2067
        %v2640 = vpack.c.b16 %v2072, %v2068
        %v2641 = vpack.c.b16 %v2073, %v2069
        %v2642 = vpack.c.b16 %v2078, %v2074
        %v2643 = vpack.c.b16 %v2079, %v2075
        %v2644 = vpack.c.b16 %v2080, %v2076
        %v2645 = vpack.c.b16 %v2081, %v2077
        %v2646 = vpack.c.b16 %v2086, %v2082
        %v2647 = vpack.c.b16 %v2087, %v2083
        %v2648 = vpack.c.b16 %v2088, %v2084
        %v2649 = vpack.c.b16 %v2089, %v2085
        %v2650 = vpack.c.b16 %v2094, %v2090
        %v2651 = vpack.c.b16 %v2095, %v2091
        %v2652 = vpack.c.b16 %v2096, %v2092
        %v2653 = vpack.c.b16 %v2097, %v2093
        %v2654 = vpack.c.b16 %v2102, %v2098
        %v2655 = vpack.c.b16 %v2103, %v2099
        %v2656 = vpack.c.b16 %v2104, %v2100
        %v2657 = vpack.c.b16 %v2105, %v2101
        %v2658 = vpack.c.b16 %v2110, %v2106
        %v2659 = vpack.c.b16 %v2111, %v2107
        %v2660 = vpack.c.b16 %v2112, %v2108
        %v2661 = vpack.c.b16 %v2113, %v2109
        %v2662 = vpack.c.b16 %v2118, %v2114
        %v2663 = vpack.c.b16 %v2119, %v2115
        %v2664 = vpack.c.b16 %v2120, %v2116
        %v2665 = vpack.c.b16 %v2121, %v2117
        %v2666 = vpack.c.b16 %v2126, %v2122
        %v2667 = vpack.c.b16 %v2127, %v2123
        %v2668 = vpack.c.b16 %v2128, %v2124
        %v2669 = vpack.c.b16 %v2129, %v2125
        %v2670 = vpack.c.b16 %v2134, %v2130
        %v2671 = vpack.c.b16 %v2135, %v2131
        %v2672 = vpack.c.b16 %v2136, %v2132
        %v2673 = vpack.c.b16 %v2137, %v2133
        %v2674 = vpack.c.b16 %v2142, %v2138
        %v2675 = vpack.c.b16 %v2143, %v2139
        %v2676 = vpack.c.b16 %v2144, %v2140
        %v2677 = vpack.c.b16 %v2145, %v2141
        %v2678 = vpack.c.b16 %v2150, %v2146
        %v2679 = vpack.c.b16 %v2151, %v2147
        %v2680 = vpack.c.b16 %v2152, %v2148
        %v2681 = vpack.c.b16 %v2153, %v2149
        %v2682 = vpack.c.b16 %v2158, %v2154
        %v2683 = vpack.c.b16 %v2159, %v2155
        %v2684 = vpack.c.b16 %v2160, %v2156
        %v2685 = vpack.c.b16 %v2161, %v2157
        %v2686 = vpack.c.b16 %v2166, %v2162
        %v2687 = vpack.c.b16 %v2167, %v2163
        %v2688 = vpack.c.b16 %v2168, %v2164
        %v2689 = vpack.c.b16 %v2169, %v2165
        %v2690 = vpack.c.b16 %v2174, %v2170
        %v2691 = vpack.c.b16 %v2175, %v2171
        %v2692 = vpack.c.b16 %v2176, %v2172
        %v2693 = vpack.c.b16 %v2177, %v2173
        %v2694 = vpack.c.b16 %v2182, %v2178
        %v2695 = vpack.c.b16 %v2183, %v2179
        %v2696 = vpack.c.b16 %v2184, %v2180
        %v2697 = vpack.c.b16 %v2185, %v2181
        %v2698 = vpack.c.b16 %v2190, %v2186
        %v2699 = vpack.c.b16 %v2191, %v2187
        %v2700 = vpack.c.b16 %v2192, %v2188
        %v2701 = vpack.c.b16 %v2193, %v2189
        %v2702 = vpack.c.b16 %v2198, %v2194
        %v2703 = vpack.c.b16 %v2199, %v2195
        %v2704 = vpack.c.b16 %v2200, %v2196
        %v2705 = vpack.c.b16 %v2201, %v2197
        %v2706 = vpack.c.b16 %v2206, %v2202
        %v2707 = vpack.c.b16 %v2207, %v2203
        %v2708 = vpack.c.b16 %v2208, %v2204
        %v2709 = vpack.c.b16 %v2209, %v2205
        %v2710 = vpack.c.b16 %v2214, %v2210
        %v2711 = vpack.c.b16 %v2215, %v2211
        %v2712 = vpack.c.b16 %v2216, %v2212
        %v2713 = vpack.c.b16 %v2217, %v2213
        %v2714 = vpack.c.b16 %v2222, %v2218
        %v2715 = vpack.c.b16 %v2223, %v2219
        %v2716 = vpack.c.b16 %v2224, %v2220
        %v2717 = vpack.c.b16 %v2225, %v2221
        %v2718 = vpack.c.b16 %v2230, %v2226
        %v2719 = vpack.c.b16 %v2231, %v2227
        %v2720 = vpack.c.b16 %v2232, %v2228
        %v2721 = vpack.c.b16 %v2233, %v2229
        %v2722 = vpack.c.b16 %v2238, %v2234
        %v2723 = vpack.c.b16 %v2239, %v2235
        %v2724 = vpack.c.b16 %v2240, %v2236
        %v2725 = vpack.c.b16 %v2241, %v2237
        %v2726 = vpack.c.b16 %v2246, %v2242
        %v2727 = vpack.c.b16 %v2247, %v2243
        %v2728 = vpack.c.b16 %v2248, %v2244
        %v2729 = vpack.c.b16 %v2249, %v2245
        %3210 = vmatpush.bf16.msra.mxu0 %v2278
        %3211 = vmatpush.bf16.msra.mxu0 %v2274
        %3212 = vmatpush.bf16.msra.mxu0 %v2270
        %3213 = vmatpush.bf16.msra.mxu0 %v2266
        %3214 = vmatpush.bf16.msra.mxu0 %v2262
        %3215 = vmatpush.bf16.msra.mxu0 %v2258
        %3216 = vmatpush.bf16.msra.mxu0 %v2254
        %3217 = vmatpush.bf16.msra.mxu0 %v2250
        %3218 = vmatmul.bf16.gmra.mxu0 %v710
        %v3219 = vpop.f32.mrf.mxu0
        %v3220 = vadd.f32 0.0, %v3219
        %v3221 = vpop.f32.mrf.mxu0
        %v3222 = vadd.f32 0.0, %v3221
        %3223 = vdwg.mxu0
        %3224 = vmatpush.bf16.msra.mxu0 %v2310
        %3225 = vmatpush.bf16.msra.mxu0 %v2306
        %3226 = vmatpush.bf16.msra.mxu0 %v2302
        %3227 = vmatpush.bf16.msra.mxu0 %v2298
        %3228 = vmatpush.bf16.msra.mxu0 %v2294
        %3229 = vmatpush.bf16.msra.mxu0 %v2290
        %3230 = vmatpush.bf16.msra.mxu0 %v2286
        %3231 = vmatpush.bf16.msra.mxu0 %v2282
        %3232 = vmatmul.bf16.gmra.mxu0 %v711
        %v3233 = vpop.f32.mrf.mxu0
        %v3234 = vadd.f32 %v3220, %v3233
        %v3235 = vpop.f32.mrf.mxu0
        %v3236 = vadd.f32 %v3222, %v3235
        %3237 = vdwg.mxu0
        %3238 = vmatpush.bf16.msra.mxu0 %v2342
        %3239 = vmatpush.bf16.msra.mxu0 %v2338
        %3240 = vmatpush.bf16.msra.mxu0 %v2334
        %3241 = vmatpush.bf16.msra.mxu0 %v2330
        %3242 = vmatpush.bf16.msra.mxu0 %v2326
        %3243 = vmatpush.bf16.msra.mxu0 %v2322
        %3244 = vmatpush.bf16.msra.mxu0 %v2318
        %3245 = vmatpush.bf16.msra.mxu0 %v2314
        %3246 = vmatmul.bf16.gmra.mxu0 %v712
        %v3247 = vpop.f32.mrf.mxu0
        %v3248 = vadd.f32 %v3234, %v3247
        %v3249 = vpop.f32.mrf.mxu0
        %v3250 = vadd.f32 %v3236, %v3249
        %3251 = vdwg.mxu0
        %3252 = vmatpush.bf16.msra.mxu0 %v2374
        %3253 = vmatpush.bf16.msra.mxu0 %v2370
        %3254 = vmatpush.bf16.msra.mxu0 %v2366
        %3255 = vmatpush.bf16.msra.mxu0 %v2362
        %3256 = vmatpush.bf16.msra.mxu0 %v2358
        %3257 = vmatpush.bf16.msra.mxu0 %v2354
        %3258 = vmatpush.bf16.msra.mxu0 %v2350
        %3259 = vmatpush.bf16.msra.mxu0 %v2346
        %3260 = vmatmul.bf16.gmra.mxu0 %v726
        %v3261 = vpop.f32.mrf.mxu0
        %v3262 = vadd.f32 %v3248, %v3261
        %v3263 = vpop.f32.mrf.mxu0
        %v3264 = vadd.f32 %v3250, %v3263
        %3265 = vdwg.mxu0
        %3266 = vmatpush.bf16.msra.mxu0 %v2406
        %3267 = vmatpush.bf16.msra.mxu0 %v2402
        %3268 = vmatpush.bf16.msra.mxu0 %v2398
        %3269 = vmatpush.bf16.msra.mxu0 %v2394
        %3270 = vmatpush.bf16.msra.mxu0 %v2390
        %3271 = vmatpush.bf16.msra.mxu0 %v2386
        %3272 = vmatpush.bf16.msra.mxu0 %v2382
        %3273 = vmatpush.bf16.msra.mxu0 %v2378
        %3274 = vmatmul.bf16.gmra.mxu0 %v727
        %v3275 = vpop.f32.mrf.mxu0
        %v3276 = vadd.f32 %v3262, %v3275
        %v3277 = vpop.f32.mrf.mxu0
        %v3278 = vadd.f32 %v3264, %v3277
        %3279 = vdwg.mxu0
        %3280 = vmatpush.bf16.msra.mxu0 %v2438
        %3281 = vmatpush.bf16.msra.mxu0 %v2434
        %3282 = vmatpush.bf16.msra.mxu0 %v2430
        %3283 = vmatpush.bf16.msra.mxu0 %v2426
        %3284 = vmatpush.bf16.msra.mxu0 %v2422
        %3285 = vmatpush.bf16.msra.mxu0 %v2418
        %3286 = vmatpush.bf16.msra.mxu0 %v2414
        %3287 = vmatpush.bf16.msra.mxu0 %v2410
        %3288 = vmatmul.bf16.gmra.mxu0 %v728
        %v3289 = vpop.f32.mrf.mxu0
        %v3290 = vadd.f32 %v3276, %v3289
        %v3291 = vpop.f32.mrf.mxu0
        %v3292 = vadd.f32 %v3278, %v3291
        %3293 = vdwg.mxu0
        %3294 = vmatpush.bf16.msra.mxu0 %v2470
        %3295 = vmatpush.bf16.msra.mxu0 %v2466
        %3296 = vmatpush.bf16.msra.mxu0 %v2462
        %3297 = vmatpush.bf16.msra.mxu0 %v2458
        %3298 = vmatpush.bf16.msra.mxu0 %v2454
        %3299 = vmatpush.bf16.msra.mxu0 %v2450
        %3300 = vmatpush.bf16.msra.mxu0 %v2446
        %3301 = vmatpush.bf16.msra.mxu0 %v2442
        %3302 = vmatmul.bf16.gmra.mxu0 %v746
        %v3303 = vpop.f32.mrf.mxu0
        %v3304 = vadd.f32 %v3290, %v3303
        %v3305 = vpop.f32.mrf.mxu0
        %v3306 = vadd.f32 %v3292, %v3305
        %3307 = vdwg.mxu0
        %3308 = vmatpush.bf16.msra.mxu0 %v2502
        %3309 = vmatpush.bf16.msra.mxu0 %v2498
        %3310 = vmatpush.bf16.msra.mxu0 %v2494
        %3311 = vmatpush.bf16.msra.mxu0 %v2490
        %3312 = vmatpush.bf16.msra.mxu0 %v2486
        %3313 = vmatpush.bf16.msra.mxu0 %v2482
        %3314 = vmatpush.bf16.msra.mxu0 %v2478
        %3315 = vmatpush.bf16.msra.mxu0 %v2474
        %3316 = vmatmul.bf16.gmra.mxu0 %v753
        %v3317 = vpop.f32.mrf.mxu0
        %v3318 = vadd.f32 %v3304, %v3317
        %v3319 = vpop.f32.mrf.mxu0
        %v3320 = vadd.f32 %v3306, %v3319
        %3321 = vdwg.mxu0
        %3322 = vmatpush.bf16.msra.mxu0 %v2534
        %3323 = vmatpush.bf16.msra.mxu0 %v2530
        %3324 = vmatpush.bf16.msra.mxu0 %v2526
        %3325 = vmatpush.bf16.msra.mxu0 %v2522
        %3326 = vmatpush.bf16.msra.mxu0 %v2518
        %3327 = vmatpush.bf16.msra.mxu0 %v2514
        %3328 = vmatpush.bf16.msra.mxu0 %v2510
        %3329 = vmatpush.bf16.msra.mxu0 %v2506
        %3330 = vmatmul.bf16.gmra.mxu0 %v760
        %v3331 = vpop.f32.mrf.mxu0
        %v3332 = vadd.f32 %v3318, %v3331
        %v3333 = vpop.f32.mrf.mxu0
        %v3334 = vadd.f32 %v3320, %v3333
        %3335 = vdwg.mxu0
        %3336 = vmatpush.bf16.msra.mxu0 %v2566
        %3337 = vmatpush.bf16.msra.mxu0 %v2562
        %3338 = vmatpush.bf16.msra.mxu0 %v2558
        %3339 = vmatpush.bf16.msra.mxu0 %v2554
        %3340 = vmatpush.bf16.msra.mxu0 %v2550
        %3341 = vmatpush.bf16.msra.mxu0 %v2546
        %3342 = vmatpush.bf16.msra.mxu0 %v2542
        %3343 = vmatpush.bf16.msra.mxu0 %v2538
        %3344 = vmatmul.bf16.gmra.mxu0 %v778
        %v3345 = vpop.f32.mrf.mxu0
        %v3346 = vadd.f32 %v3332, %v3345
        %v3347 = vpop.f32.mrf.mxu0
        %v3348 = vadd.f32 %v3334, %v3347
        %3349 = vdwg.mxu0
        %3350 = vmatpush.bf16.msra.mxu0 %v2598
        %3351 = vmatpush.bf16.msra.mxu0 %v2594
        %3352 = vmatpush.bf16.msra.mxu0 %v2590
        %3353 = vmatpush.bf16.msra.mxu0 %v2586
        %3354 = vmatpush.bf16.msra.mxu0 %v2582
        %3355 = vmatpush.bf16.msra.mxu0 %v2578
        %3356 = vmatpush.bf16.msra.mxu0 %v2574
        %3357 = vmatpush.bf16.msra.mxu0 %v2570
        %3358 = vmatmul.bf16.gmra.mxu0 %v785
        %v3359 = vpop.f32.mrf.mxu0
        %v3360 = vadd.f32 %v3346, %v3359
        %v3361 = vpop.f32.mrf.mxu0
        %v3362 = vadd.f32 %v3348, %v3361
        %3363 = vdwg.mxu0
        %3364 = vmatpush.bf16.msra.mxu0 %v2630
        %3365 = vmatpush.bf16.msra.mxu0 %v2626
        %3366 = vmatpush.bf16.msra.mxu0 %v2622
        %3367 = vmatpush.bf16.msra.mxu0 %v2618
        %3368 = vmatpush.bf16.msra.mxu0 %v2614
        %3369 = vmatpush.bf16.msra.mxu0 %v2610
        %3370 = vmatpush.bf16.msra.mxu0 %v2606
        %3371 = vmatpush.bf16.msra.mxu0 %v2602
        %3372 = vmatmul.bf16.gmra.mxu0 %v792
        %v3373 = vpop.f32.mrf.mxu0
        %v3374 = vadd.f32 %v3360, %v3373
        %v3375 = vpop.f32.mrf.mxu0
        %v3376 = vadd.f32 %v3362, %v3375
        %3377 = vdwg.mxu0
        %3378 = vmatpush.bf16.msra.mxu0 %v2662
        %3379 = vmatpush.bf16.msra.mxu0 %v2658
        %3380 = vmatpush.bf16.msra.mxu0 %v2654
        %3381 = vmatpush.bf16.msra.mxu0 %v2650
        %3382 = vmatpush.bf16.msra.mxu0 %v2646
        %3383 = vmatpush.bf16.msra.mxu0 %v2642
        %3384 = vmatpush.bf16.msra.mxu0 %v2638
        %3385 = vmatpush.bf16.msra.mxu0 %v2634
        %3386 = vmatmul.bf16.gmra.mxu0 %v804
        %v3387 = vpop.f32.mrf.mxu0
        %v3388 = vadd.f32 %v3374, %v3387
        %v3389 = vpop.f32.mrf.mxu0
        %v3390 = vadd.f32 %v3376, %v3389
        %3391 = vdwg.mxu0
        %3392 = vmatpush.bf16.msra.mxu0 %v2694
        %3393 = vmatpush.bf16.msra.mxu0 %v2690
        %3394 = vmatpush.bf16.msra.mxu0 %v2686
        %3395 = vmatpush.bf16.msra.mxu0 %v2682
        %3396 = vmatpush.bf16.msra.mxu0 %v2678
        %3397 = vmatpush.bf16.msra.mxu0 %v2674
        %3398 = vmatpush.bf16.msra.mxu0 %v2670
        %3399 = vmatpush.bf16.msra.mxu0 %v2666
        %3400 = vmatmul.bf16.gmra.mxu0 %v805
        %v3401 = vpop.f32.mrf.mxu0
        %v3402 = vadd.f32 %v3388, %v3401
        %v3403 = vpop.f32.mrf.mxu0
        %v3404 = vadd.f32 %v3390, %v3403
        %3405 = vdwg.mxu0
        %3406 = vmatpush.bf16.msra.mxu0 %v2726
        %3407 = vmatpush.bf16.msra.mxu0 %v2722
        %3408 = vmatpush.bf16.msra.mxu0 %v2718
        %3409 = vmatpush.bf16.msra.mxu0 %v2714
        %3410 = vmatpush.bf16.msra.mxu0 %v2710
        %3411 = vmatpush.bf16.msra.mxu0 %v2706
        %3412 = vmatpush.bf16.msra.mxu0 %v2702
        %3413 = vmatpush.bf16.msra.mxu0 %v2698
        %3414 = vmatmul.bf16.gmra.mxu0 %v806
        %v3415 = vpop.f32.mrf.mxu0
        %v3416 = vadd.f32 %v3402, %v3415
        %v3417 = vpop.f32.mrf.mxu0
        %v3418 = vadd.f32 %v3404, %v3417
        %3419 = vdwg.mxu0
        %3420 = vmatpush.bf16.msra.mxu0 %v2279
        %3421 = vmatpush.bf16.msra.mxu0 %v2275
        %3422 = vmatpush.bf16.msra.mxu0 %v2271
        %3423 = vmatpush.bf16.msra.mxu0 %v2267
        %3424 = vmatpush.bf16.msra.mxu0 %v2263
        %3425 = vmatpush.bf16.msra.mxu0 %v2259
        %3426 = vmatpush.bf16.msra.mxu0 %v2255
        %3427 = vmatpush.bf16.msra.mxu0 %v2251
        %3428 = vmatmul.bf16.gmra.mxu0 %v710
        %v3429 = vpop.f32.mrf.mxu0
        %v3430 = vadd.f32 0.0, %v3429
        %v3431 = vpop.f32.mrf.mxu0
        %v3432 = vadd.f32 0.0, %v3431
        %3433 = vdwg.mxu0
        %3434 = vmatpush.bf16.msra.mxu0 %v2311
        %3435 = vmatpush.bf16.msra.mxu0 %v2307
        %3436 = vmatpush.bf16.msra.mxu0 %v2303
        %3437 = vmatpush.bf16.msra.mxu0 %v2299
        %3438 = vmatpush.bf16.msra.mxu0 %v2295
        %3439 = vmatpush.bf16.msra.mxu0 %v2291
        %3440 = vmatpush.bf16.msra.mxu0 %v2287
        %3441 = vmatpush.bf16.msra.mxu0 %v2283
        %3442 = vmatmul.bf16.gmra.mxu0 %v711
        %v3443 = vpop.f32.mrf.mxu0
        %v3444 = vadd.f32 %v3430, %v3443
        %v3445 = vpop.f32.mrf.mxu0
        %v3446 = vadd.f32 %v3432, %v3445
        %3447 = vdwg.mxu0
        %3448 = vmatpush.bf16.msra.mxu0 %v2343
        %3449 = vmatpush.bf16.msra.mxu0 %v2339
        %3450 = vmatpush.bf16.msra.mxu0 %v2335
        %3451 = vmatpush.bf16.msra.mxu0 %v2331
        %3452 = vmatpush.bf16.msra.mxu0 %v2327
        %3453 = vmatpush.bf16.msra.mxu0 %v2323
        %3454 = vmatpush.bf16.msra.mxu0 %v2319
        %3455 = vmatpush.bf16.msra.mxu0 %v2315
        %3456 = vmatmul.bf16.gmra.mxu0 %v712
        %v3457 = vpop.f32.mrf.mxu0
        %v3458 = vadd.f32 %v3444, %v3457
        %v3459 = vpop.f32.mrf.mxu0
        %v3460 = vadd.f32 %v3446, %v3459
        %3461 = vdwg.mxu0
        %3462 = vmatpush.bf16.msra.mxu0 %v2375
        %3463 = vmatpush.bf16.msra.mxu0 %v2371
        %3464 = vmatpush.bf16.msra.mxu0 %v2367
        %3465 = vmatpush.bf16.msra.mxu0 %v2363
        %3466 = vmatpush.bf16.msra.mxu0 %v2359
        %3467 = vmatpush.bf16.msra.mxu0 %v2355
        %3468 = vmatpush.bf16.msra.mxu0 %v2351
        %3469 = vmatpush.bf16.msra.mxu0 %v2347
        %3470 = vmatmul.bf16.gmra.mxu0 %v726
        %v3471 = vpop.f32.mrf.mxu0
        %v3472 = vadd.f32 %v3458, %v3471
        %v3473 = vpop.f32.mrf.mxu0
        %v3474 = vadd.f32 %v3460, %v3473
        %3475 = vdwg.mxu0
        %3476 = vmatpush.bf16.msra.mxu0 %v2407
        %3477 = vmatpush.bf16.msra.mxu0 %v2403
        %3478 = vmatpush.bf16.msra.mxu0 %v2399
        %3479 = vmatpush.bf16.msra.mxu0 %v2395
        %3480 = vmatpush.bf16.msra.mxu0 %v2391
        %3481 = vmatpush.bf16.msra.mxu0 %v2387
        %3482 = vmatpush.bf16.msra.mxu0 %v2383
        %3483 = vmatpush.bf16.msra.mxu0 %v2379
        %3484 = vmatmul.bf16.gmra.mxu0 %v727
        %v3485 = vpop.f32.mrf.mxu0
        %v3486 = vadd.f32 %v3472, %v3485
        %v3487 = vpop.f32.mrf.mxu0
        %v3488 = vadd.f32 %v3474, %v3487
        %3489 = vdwg.mxu0
        %3490 = vmatpush.bf16.msra.mxu0 %v2439
        %3491 = vmatpush.bf16.msra.mxu0 %v2435
        %3492 = vmatpush.bf16.msra.mxu0 %v2431
        %3493 = vmatpush.bf16.msra.mxu0 %v2427
        %3494 = vmatpush.bf16.msra.mxu0 %v2423
        %3495 = vmatpush.bf16.msra.mxu0 %v2419
        %3496 = vmatpush.bf16.msra.mxu0 %v2415
        %3497 = vmatpush.bf16.msra.mxu0 %v2411
        %3498 = vmatmul.bf16.gmra.mxu0 %v728
        %v3499 = vpop.f32.mrf.mxu0
        %v3500 = vadd.f32 %v3486, %v3499
        %v3501 = vpop.f32.mrf.mxu0
        %v3502 = vadd.f32 %v3488, %v3501
        %3503 = vdwg.mxu0
        %3504 = vmatpush.bf16.msra.mxu0 %v2471
        %3505 = vmatpush.bf16.msra.mxu0 %v2467
        %3506 = vmatpush.bf16.msra.mxu0 %v2463
        %3507 = vmatpush.bf16.msra.mxu0 %v2459
        %3508 = vmatpush.bf16.msra.mxu0 %v2455
        %3509 = vmatpush.bf16.msra.mxu0 %v2451
        %3510 = vmatpush.bf16.msra.mxu0 %v2447
        %3511 = vmatpush.bf16.msra.mxu0 %v2443
        %3512 = vmatmul.bf16.gmra.mxu0 %v746
        %v3513 = vpop.f32.mrf.mxu0
        %v3514 = vadd.f32 %v3500, %v3513
        %v3515 = vpop.f32.mrf.mxu0
        %v3516 = vadd.f32 %v3502, %v3515
        %3517 = vdwg.mxu0
        %3518 = vmatpush.bf16.msra.mxu0 %v2503
        %3519 = vmatpush.bf16.msra.mxu0 %v2499
        %3520 = vmatpush.bf16.msra.mxu0 %v2495
        %3521 = vmatpush.bf16.msra.mxu0 %v2491
        %3522 = vmatpush.bf16.msra.mxu0 %v2487
        %3523 = vmatpush.bf16.msra.mxu0 %v2483
        %3524 = vmatpush.bf16.msra.mxu0 %v2479
        %3525 = vmatpush.bf16.msra.mxu0 %v2475
        %3526 = vmatmul.bf16.gmra.mxu0 %v753
        %v3527 = vpop.f32.mrf.mxu0
        %v3528 = vadd.f32 %v3514, %v3527
        %v3529 = vpop.f32.mrf.mxu0
        %v3530 = vadd.f32 %v3516, %v3529
        %3531 = vdwg.mxu0
        %3532 = vmatpush.bf16.msra.mxu0 %v2535
        %3533 = vmatpush.bf16.msra.mxu0 %v2531
        %3534 = vmatpush.bf16.msra.mxu0 %v2527
        %3535 = vmatpush.bf16.msra.mxu0 %v2523
        %3536 = vmatpush.bf16.msra.mxu0 %v2519
        %3537 = vmatpush.bf16.msra.mxu0 %v2515
        %3538 = vmatpush.bf16.msra.mxu0 %v2511
        %3539 = vmatpush.bf16.msra.mxu0 %v2507
        %3540 = vmatmul.bf16.gmra.mxu0 %v760
        %v3541 = vpop.f32.mrf.mxu0
        %v3542 = vadd.f32 %v3528, %v3541
        %v3543 = vpop.f32.mrf.mxu0
        %v3544 = vadd.f32 %v3530, %v3543
        %3545 = vdwg.mxu0
        %3546 = vmatpush.bf16.msra.mxu0 %v2567
        %3547 = vmatpush.bf16.msra.mxu0 %v2563
        %3548 = vmatpush.bf16.msra.mxu0 %v2559
        %3549 = vmatpush.bf16.msra.mxu0 %v2555
        %3550 = vmatpush.bf16.msra.mxu0 %v2551
        %3551 = vmatpush.bf16.msra.mxu0 %v2547
        %3552 = vmatpush.bf16.msra.mxu0 %v2543
        %3553 = vmatpush.bf16.msra.mxu0 %v2539
        %3554 = vmatmul.bf16.gmra.mxu0 %v778
        %v3555 = vpop.f32.mrf.mxu0
        %v3556 = vadd.f32 %v3542, %v3555
        %v3557 = vpop.f32.mrf.mxu0
        %v3558 = vadd.f32 %v3544, %v3557
        %3559 = vdwg.mxu0
        %3560 = vmatpush.bf16.msra.mxu0 %v2599
        %3561 = vmatpush.bf16.msra.mxu0 %v2595
        %3562 = vmatpush.bf16.msra.mxu0 %v2591
        %3563 = vmatpush.bf16.msra.mxu0 %v2587
        %3564 = vmatpush.bf16.msra.mxu0 %v2583
        %3565 = vmatpush.bf16.msra.mxu0 %v2579
        %3566 = vmatpush.bf16.msra.mxu0 %v2575
        %3567 = vmatpush.bf16.msra.mxu0 %v2571
        %3568 = vmatmul.bf16.gmra.mxu0 %v785
        %v3569 = vpop.f32.mrf.mxu0
        %v3570 = vadd.f32 %v3556, %v3569
        %v3571 = vpop.f32.mrf.mxu0
        %v3572 = vadd.f32 %v3558, %v3571
        %3573 = vdwg.mxu0
        %3574 = vmatpush.bf16.msra.mxu0 %v2631
        %3575 = vmatpush.bf16.msra.mxu0 %v2627
        %3576 = vmatpush.bf16.msra.mxu0 %v2623
        %3577 = vmatpush.bf16.msra.mxu0 %v2619
        %3578 = vmatpush.bf16.msra.mxu0 %v2615
        %3579 = vmatpush.bf16.msra.mxu0 %v2611
        %3580 = vmatpush.bf16.msra.mxu0 %v2607
        %3581 = vmatpush.bf16.msra.mxu0 %v2603
        %3582 = vmatmul.bf16.gmra.mxu0 %v792
        %v3583 = vpop.f32.mrf.mxu0
        %v3584 = vadd.f32 %v3570, %v3583
        %v3585 = vpop.f32.mrf.mxu0
        %v3586 = vadd.f32 %v3572, %v3585
        %3587 = vdwg.mxu0
        %3588 = vmatpush.bf16.msra.mxu0 %v2663
        %3589 = vmatpush.bf16.msra.mxu0 %v2659
        %3590 = vmatpush.bf16.msra.mxu0 %v2655
        %3591 = vmatpush.bf16.msra.mxu0 %v2651
        %3592 = vmatpush.bf16.msra.mxu0 %v2647
        %3593 = vmatpush.bf16.msra.mxu0 %v2643
        %3594 = vmatpush.bf16.msra.mxu0 %v2639
        %3595 = vmatpush.bf16.msra.mxu0 %v2635
        %3596 = vmatmul.bf16.gmra.mxu0 %v804
        %v3597 = vpop.f32.mrf.mxu0
        %v3598 = vadd.f32 %v3584, %v3597
        %v3599 = vpop.f32.mrf.mxu0
        %v3600 = vadd.f32 %v3586, %v3599
        %3601 = vdwg.mxu0
        %3602 = vmatpush.bf16.msra.mxu0 %v2695
        %3603 = vmatpush.bf16.msra.mxu0 %v2691
        %3604 = vmatpush.bf16.msra.mxu0 %v2687
        %3605 = vmatpush.bf16.msra.mxu0 %v2683
        %3606 = vmatpush.bf16.msra.mxu0 %v2679
        %3607 = vmatpush.bf16.msra.mxu0 %v2675
        %3608 = vmatpush.bf16.msra.mxu0 %v2671
        %3609 = vmatpush.bf16.msra.mxu0 %v2667
        %3610 = vmatmul.bf16.gmra.mxu0 %v805
        %v3611 = vpop.f32.mrf.mxu0
        %v3612 = vadd.f32 %v3598, %v3611
        %v3613 = vpop.f32.mrf.mxu0
        %v3614 = vadd.f32 %v3600, %v3613
        %3615 = vdwg.mxu0
        %3616 = vmatpush.bf16.msra.mxu0 %v2727
        %3617 = vmatpush.bf16.msra.mxu0 %v2723
        %3618 = vmatpush.bf16.msra.mxu0 %v2719
        %3619 = vmatpush.bf16.msra.mxu0 %v2715
        %3620 = vmatpush.bf16.msra.mxu0 %v2711
        %3621 = vmatpush.bf16.msra.mxu0 %v2707
        %3622 = vmatpush.bf16.msra.mxu0 %v2703
        %3623 = vmatpush.bf16.msra.mxu0 %v2699
        %3624 = vmatmul.bf16.gmra.mxu0 %v806
        %v3625 = vpop.f32.mrf.mxu0
        %v3626 = vadd.f32 %v3612, %v3625
        %v3627 = vpop.f32.mrf.mxu0
        %v3628 = vadd.f32 %v3614, %v3627
        %3629 = vdwg.mxu0
        %3630 = vmatpush.bf16.msra.mxu0 %v2280
        %3631 = vmatpush.bf16.msra.mxu0 %v2276
        %3632 = vmatpush.bf16.msra.mxu0 %v2272
        %3633 = vmatpush.bf16.msra.mxu0 %v2268
        %3634 = vmatpush.bf16.msra.mxu0 %v2264
        %3635 = vmatpush.bf16.msra.mxu0 %v2260
        %3636 = vmatpush.bf16.msra.mxu0 %v2256
        %3637 = vmatpush.bf16.msra.mxu0 %v2252
        %3638 = vmatmul.bf16.gmra.mxu0 %v710
        %v3639 = vpop.f32.mrf.mxu0
        %v3640 = vadd.f32 0.0, %v3639
        %v3641 = vpop.f32.mrf.mxu0
        %v3642 = vadd.f32 0.0, %v3641
        %3643 = vdwg.mxu0
        %3644 = vmatpush.bf16.msra.mxu0 %v2312
        %3645 = vmatpush.bf16.msra.mxu0 %v2308
        %3646 = vmatpush.bf16.msra.mxu0 %v2304
        %3647 = vmatpush.bf16.msra.mxu0 %v2300
        %3648 = vmatpush.bf16.msra.mxu0 %v2296
        %3649 = vmatpush.bf16.msra.mxu0 %v2292
        %3650 = vmatpush.bf16.msra.mxu0 %v2288
        %3651 = vmatpush.bf16.msra.mxu0 %v2284
        %3652 = vmatmul.bf16.gmra.mxu0 %v711
        %v3653 = vpop.f32.mrf.mxu0
        %v3654 = vadd.f32 %v3640, %v3653
        %v3655 = vpop.f32.mrf.mxu0
        %v3656 = vadd.f32 %v3642, %v3655
        %3657 = vdwg.mxu0
        %3658 = vmatpush.bf16.msra.mxu0 %v2344
        %3659 = vmatpush.bf16.msra.mxu0 %v2340
        %3660 = vmatpush.bf16.msra.mxu0 %v2336
        %3661 = vmatpush.bf16.msra.mxu0 %v2332
        %3662 = vmatpush.bf16.msra.mxu0 %v2328
        %3663 = vmatpush.bf16.msra.mxu0 %v2324
        %3664 = vmatpush.bf16.msra.mxu0 %v2320
        %3665 = vmatpush.bf16.msra.mxu0 %v2316
        %3666 = vmatmul.bf16.gmra.mxu0 %v712
        %v3667 = vpop.f32.mrf.mxu0
        %v3668 = vadd.f32 %v3654, %v3667
        %v3669 = vpop.f32.mrf.mxu0
        %v3670 = vadd.f32 %v3656, %v3669
        %3671 = vdwg.mxu0
        %3672 = vmatpush.bf16.msra.mxu0 %v2376
        %3673 = vmatpush.bf16.msra.mxu0 %v2372
        %3674 = vmatpush.bf16.msra.mxu0 %v2368
        %3675 = vmatpush.bf16.msra.mxu0 %v2364
        %3676 = vmatpush.bf16.msra.mxu0 %v2360
        %3677 = vmatpush.bf16.msra.mxu0 %v2356
        %3678 = vmatpush.bf16.msra.mxu0 %v2352
        %3679 = vmatpush.bf16.msra.mxu0 %v2348
        %3680 = vmatmul.bf16.gmra.mxu0 %v726
        %v3681 = vpop.f32.mrf.mxu0
        %v3682 = vadd.f32 %v3668, %v3681
        %v3683 = vpop.f32.mrf.mxu0
        %v3684 = vadd.f32 %v3670, %v3683
        %3685 = vdwg.mxu0
        %3686 = vmatpush.bf16.msra.mxu0 %v2408
        %3687 = vmatpush.bf16.msra.mxu0 %v2404
        %3688 = vmatpush.bf16.msra.mxu0 %v2400
        %3689 = vmatpush.bf16.msra.mxu0 %v2396
        %3690 = vmatpush.bf16.msra.mxu0 %v2392
        %3691 = vmatpush.bf16.msra.mxu0 %v2388
        %3692 = vmatpush.bf16.msra.mxu0 %v2384
        %3693 = vmatpush.bf16.msra.mxu0 %v2380
        %3694 = vmatmul.bf16.gmra.mxu0 %v727
        %v3695 = vpop.f32.mrf.mxu0
        %v3696 = vadd.f32 %v3682, %v3695
        %v3697 = vpop.f32.mrf.mxu0
        %v3698 = vadd.f32 %v3684, %v3697
        %3699 = vdwg.mxu0
        %3700 = vmatpush.bf16.msra.mxu0 %v2440
        %3701 = vmatpush.bf16.msra.mxu0 %v2436
        %3702 = vmatpush.bf16.msra.mxu0 %v2432
        %3703 = vmatpush.bf16.msra.mxu0 %v2428
        %3704 = vmatpush.bf16.msra.mxu0 %v2424
        %3705 = vmatpush.bf16.msra.mxu0 %v2420
        %3706 = vmatpush.bf16.msra.mxu0 %v2416
        %3707 = vmatpush.bf16.msra.mxu0 %v2412
        %3708 = vmatmul.bf16.gmra.mxu0 %v728
        %v3709 = vpop.f32.mrf.mxu0
        %v3710 = vadd.f32 %v3696, %v3709
        %v3711 = vpop.f32.mrf.mxu0
        %v3712 = vadd.f32 %v3698, %v3711
        %3713 = vdwg.mxu0
        %3714 = vmatpush.bf16.msra.mxu0 %v2472
        %3715 = vmatpush.bf16.msra.mxu0 %v2468
        %3716 = vmatpush.bf16.msra.mxu0 %v2464
        %3717 = vmatpush.bf16.msra.mxu0 %v2460
        %3718 = vmatpush.bf16.msra.mxu0 %v2456
        %3719 = vmatpush.bf16.msra.mxu0 %v2452
        %3720 = vmatpush.bf16.msra.mxu0 %v2448
        %3721 = vmatpush.bf16.msra.mxu0 %v2444
        %3722 = vmatmul.bf16.gmra.mxu0 %v746
        %v3723 = vpop.f32.mrf.mxu0
        %v3724 = vadd.f32 %v3710, %v3723
        %v3725 = vpop.f32.mrf.mxu0
        %v3726 = vadd.f32 %v3712, %v3725
        %3727 = vdwg.mxu0
        %3728 = vmatpush.bf16.msra.mxu0 %v2504
        %3729 = vmatpush.bf16.msra.mxu0 %v2500
        %3730 = vmatpush.bf16.msra.mxu0 %v2496
        %3731 = vmatpush.bf16.msra.mxu0 %v2492
        %3732 = vmatpush.bf16.msra.mxu0 %v2488
        %3733 = vmatpush.bf16.msra.mxu0 %v2484
        %3734 = vmatpush.bf16.msra.mxu0 %v2480
        %3735 = vmatpush.bf16.msra.mxu0 %v2476
        %3736 = vmatmul.bf16.gmra.mxu0 %v753
        %v3737 = vpop.f32.mrf.mxu0
        %v3738 = vadd.f32 %v3724, %v3737
        %v3739 = vpop.f32.mrf.mxu0
        %v3740 = vadd.f32 %v3726, %v3739
        %3741 = vdwg.mxu0
        %3742 = vmatpush.bf16.msra.mxu0 %v2536
        %3743 = vmatpush.bf16.msra.mxu0 %v2532
        %3744 = vmatpush.bf16.msra.mxu0 %v2528
        %3745 = vmatpush.bf16.msra.mxu0 %v2524
        %3746 = vmatpush.bf16.msra.mxu0 %v2520
        %3747 = vmatpush.bf16.msra.mxu0 %v2516
        %3748 = vmatpush.bf16.msra.mxu0 %v2512
        %3749 = vmatpush.bf16.msra.mxu0 %v2508
        %3750 = vmatmul.bf16.gmra.mxu0 %v760
        %v3751 = vpop.f32.mrf.mxu0
        %v3752 = vadd.f32 %v3738, %v3751
        %v3753 = vpop.f32.mrf.mxu0
        %v3754 = vadd.f32 %v3740, %v3753
        %3755 = vdwg.mxu0
        %3756 = vmatpush.bf16.msra.mxu0 %v2568
        %3757 = vmatpush.bf16.msra.mxu0 %v2564
        %3758 = vmatpush.bf16.msra.mxu0 %v2560
        %3759 = vmatpush.bf16.msra.mxu0 %v2556
        %3760 = vmatpush.bf16.msra.mxu0 %v2552
        %3761 = vmatpush.bf16.msra.mxu0 %v2548
        %3762 = vmatpush.bf16.msra.mxu0 %v2544
        %3763 = vmatpush.bf16.msra.mxu0 %v2540
        %3764 = vmatmul.bf16.gmra.mxu0 %v778
        %v3765 = vpop.f32.mrf.mxu0
        %v3766 = vadd.f32 %v3752, %v3765
        %v3767 = vpop.f32.mrf.mxu0
        %v3768 = vadd.f32 %v3754, %v3767
        %3769 = vdwg.mxu0
        %3770 = vmatpush.bf16.msra.mxu0 %v2600
        %3771 = vmatpush.bf16.msra.mxu0 %v2596
        %3772 = vmatpush.bf16.msra.mxu0 %v2592
        %3773 = vmatpush.bf16.msra.mxu0 %v2588
        %3774 = vmatpush.bf16.msra.mxu0 %v2584
        %3775 = vmatpush.bf16.msra.mxu0 %v2580
        %3776 = vmatpush.bf16.msra.mxu0 %v2576
        %3777 = vmatpush.bf16.msra.mxu0 %v2572
        %3778 = vmatmul.bf16.gmra.mxu0 %v785
        %v3779 = vpop.f32.mrf.mxu0
        %v3780 = vadd.f32 %v3766, %v3779
        %v3781 = vpop.f32.mrf.mxu0
        %v3782 = vadd.f32 %v3768, %v3781
        %3783 = vdwg.mxu0
        %3784 = vmatpush.bf16.msra.mxu0 %v2632
        %3785 = vmatpush.bf16.msra.mxu0 %v2628
        %3786 = vmatpush.bf16.msra.mxu0 %v2624
        %3787 = vmatpush.bf16.msra.mxu0 %v2620
        %3788 = vmatpush.bf16.msra.mxu0 %v2616
        %3789 = vmatpush.bf16.msra.mxu0 %v2612
        %3790 = vmatpush.bf16.msra.mxu0 %v2608
        %3791 = vmatpush.bf16.msra.mxu0 %v2604
        %3792 = vmatmul.bf16.gmra.mxu0 %v792
        %v3793 = vpop.f32.mrf.mxu0
        %v3794 = vadd.f32 %v3780, %v3793
        %v3795 = vpop.f32.mrf.mxu0
        %v3796 = vadd.f32 %v3782, %v3795
        %3797 = vdwg.mxu0
        %3798 = vmatpush.bf16.msra.mxu0 %v2664
        %3799 = vmatpush.bf16.msra.mxu0 %v2660
        %3800 = vmatpush.bf16.msra.mxu0 %v2656
        %3801 = vmatpush.bf16.msra.mxu0 %v2652
        %3802 = vmatpush.bf16.msra.mxu0 %v2648
        %3803 = vmatpush.bf16.msra.mxu0 %v2644
        %3804 = vmatpush.bf16.msra.mxu0 %v2640
        %3805 = vmatpush.bf16.msra.mxu0 %v2636
        %3806 = vmatmul.bf16.gmra.mxu0 %v804
        %v3807 = vpop.f32.mrf.mxu0
        %v3808 = vadd.f32 %v3794, %v3807
        %v3809 = vpop.f32.mrf.mxu0
        %v3810 = vadd.f32 %v3796, %v3809
        %3811 = vdwg.mxu0
        %3812 = vmatpush.bf16.msra.mxu0 %v2696
        %3813 = vmatpush.bf16.msra.mxu0 %v2692
        %3814 = vmatpush.bf16.msra.mxu0 %v2688
        %3815 = vmatpush.bf16.msra.mxu0 %v2684
        %3816 = vmatpush.bf16.msra.mxu0 %v2680
        %3817 = vmatpush.bf16.msra.mxu0 %v2676
        %3818 = vmatpush.bf16.msra.mxu0 %v2672
        %3819 = vmatpush.bf16.msra.mxu0 %v2668
        %3820 = vmatmul.bf16.gmra.mxu0 %v805
        %v3821 = vpop.f32.mrf.mxu0
        %v3822 = vadd.f32 %v3808, %v3821
        %v3823 = vpop.f32.mrf.mxu0
        %v3824 = vadd.f32 %v3810, %v3823
        %3825 = vdwg.mxu0
        %3826 = vmatpush.bf16.msra.mxu0 %v2728
        %3827 = vmatpush.bf16.msra.mxu0 %v2724
        %3828 = vmatpush.bf16.msra.mxu0 %v2720
        %3829 = vmatpush.bf16.msra.mxu0 %v2716
        %3830 = vmatpush.bf16.msra.mxu0 %v2712
        %3831 = vmatpush.bf16.msra.mxu0 %v2708
        %3832 = vmatpush.bf16.msra.mxu0 %v2704
        %3833 = vmatpush.bf16.msra.mxu0 %v2700
        %3834 = vmatmul.bf16.gmra.mxu0 %v806
        %v3835 = vpop.f32.mrf.mxu0
        %v3836 = vadd.f32 %v3822, %v3835
        %v3837 = vpop.f32.mrf.mxu0
        %v3838 = vadd.f32 %v3824, %v3837
        %3839 = vdwg.mxu0
        %3840 = vmatpush.bf16.msra.mxu0 %v2281
        %3841 = vmatpush.bf16.msra.mxu0 %v2277
        %3842 = vmatpush.bf16.msra.mxu0 %v2273
        %3843 = vmatpush.bf16.msra.mxu0 %v2269
        %3844 = vmatpush.bf16.msra.mxu0 %v2265
        %3845 = vmatpush.bf16.msra.mxu0 %v2261
        %3846 = vmatpush.bf16.msra.mxu0 %v2257
        %3847 = vmatpush.bf16.msra.mxu0 %v2253
        %3848 = vmatmul.bf16.gmra.mxu0 %v710
        %v3849 = vpop.f32.mrf.mxu0
        %v3850 = vadd.f32 0.0, %v3849
        %v3851 = vpop.f32.mrf.mxu0
        %v3852 = vadd.f32 0.0, %v3851
        %3853 = vdwg.mxu0
        %3854 = vmatpush.bf16.msra.mxu0 %v2313
        %3855 = vmatpush.bf16.msra.mxu0 %v2309
        %3856 = vmatpush.bf16.msra.mxu0 %v2305
        %3857 = vmatpush.bf16.msra.mxu0 %v2301
        %3858 = vmatpush.bf16.msra.mxu0 %v2297
        %3859 = vmatpush.bf16.msra.mxu0 %v2293
        %3860 = vmatpush.bf16.msra.mxu0 %v2289
        %3861 = vmatpush.bf16.msra.mxu0 %v2285
        %3862 = vmatmul.bf16.gmra.mxu0 %v711
        %v3863 = vpop.f32.mrf.mxu0
        %v3864 = vadd.f32 %v3850, %v3863
        %v3865 = vpop.f32.mrf.mxu0
        %v3866 = vadd.f32 %v3852, %v3865
        %3867 = vdwg.mxu0
        %3868 = vmatpush.bf16.msra.mxu0 %v2345
        %3869 = vmatpush.bf16.msra.mxu0 %v2341
        %3870 = vmatpush.bf16.msra.mxu0 %v2337
        %3871 = vmatpush.bf16.msra.mxu0 %v2333
        %3872 = vmatpush.bf16.msra.mxu0 %v2329
        %3873 = vmatpush.bf16.msra.mxu0 %v2325
        %3874 = vmatpush.bf16.msra.mxu0 %v2321
        %3875 = vmatpush.bf16.msra.mxu0 %v2317
        %3876 = vmatmul.bf16.gmra.mxu0 %v712
        %v3877 = vpop.f32.mrf.mxu0
        %v3878 = vadd.f32 %v3864, %v3877
        %v3879 = vpop.f32.mrf.mxu0
        %v3880 = vadd.f32 %v3866, %v3879
        %3881 = vdwg.mxu0
        %3882 = vmatpush.bf16.msra.mxu0 %v2377
        %3883 = vmatpush.bf16.msra.mxu0 %v2373
        %3884 = vmatpush.bf16.msra.mxu0 %v2369
        %3885 = vmatpush.bf16.msra.mxu0 %v2365
        %3886 = vmatpush.bf16.msra.mxu0 %v2361
        %3887 = vmatpush.bf16.msra.mxu0 %v2357
        %3888 = vmatpush.bf16.msra.mxu0 %v2353
        %3889 = vmatpush.bf16.msra.mxu0 %v2349
        %3890 = vmatmul.bf16.gmra.mxu0 %v726
        %v3891 = vpop.f32.mrf.mxu0
        %v3892 = vadd.f32 %v3878, %v3891
        %v3893 = vpop.f32.mrf.mxu0
        %v3894 = vadd.f32 %v3880, %v3893
        %3895 = vdwg.mxu0
        %3896 = vmatpush.bf16.msra.mxu0 %v2409
        %3897 = vmatpush.bf16.msra.mxu0 %v2405
        %3898 = vmatpush.bf16.msra.mxu0 %v2401
        %3899 = vmatpush.bf16.msra.mxu0 %v2397
        %3900 = vmatpush.bf16.msra.mxu0 %v2393
        %3901 = vmatpush.bf16.msra.mxu0 %v2389
        %3902 = vmatpush.bf16.msra.mxu0 %v2385
        %3903 = vmatpush.bf16.msra.mxu0 %v2381
        %3904 = vmatmul.bf16.gmra.mxu0 %v727
        %v3905 = vpop.f32.mrf.mxu0
        %v3906 = vadd.f32 %v3892, %v3905
        %v3907 = vpop.f32.mrf.mxu0
        %v3908 = vadd.f32 %v3894, %v3907
        %3909 = vdwg.mxu0
        %3910 = vmatpush.bf16.msra.mxu0 %v2441
        %3911 = vmatpush.bf16.msra.mxu0 %v2437
        %3912 = vmatpush.bf16.msra.mxu0 %v2433
        %3913 = vmatpush.bf16.msra.mxu0 %v2429
        %3914 = vmatpush.bf16.msra.mxu0 %v2425
        %3915 = vmatpush.bf16.msra.mxu0 %v2421
        %3916 = vmatpush.bf16.msra.mxu0 %v2417
        %3917 = vmatpush.bf16.msra.mxu0 %v2413
        %3918 = vmatmul.bf16.gmra.mxu0 %v728
        %v3919 = vpop.f32.mrf.mxu0
        %v3920 = vadd.f32 %v3906, %v3919
        %v3921 = vpop.f32.mrf.mxu0
        %v3922 = vadd.f32 %v3908, %v3921
        %3923 = vdwg.mxu0
        %3924 = vmatpush.bf16.msra.mxu0 %v2473
        %3925 = vmatpush.bf16.msra.mxu0 %v2469
        %3926 = vmatpush.bf16.msra.mxu0 %v2465
        %3927 = vmatpush.bf16.msra.mxu0 %v2461
        %3928 = vmatpush.bf16.msra.mxu0 %v2457
        %3929 = vmatpush.bf16.msra.mxu0 %v2453
        %3930 = vmatpush.bf16.msra.mxu0 %v2449
        %3931 = vmatpush.bf16.msra.mxu0 %v2445
        %3932 = vmatmul.bf16.gmra.mxu0 %v746
        %v3933 = vpop.f32.mrf.mxu0
        %v3934 = vadd.f32 %v3920, %v3933
        %v3935 = vpop.f32.mrf.mxu0
        %v3936 = vadd.f32 %v3922, %v3935
        %3937 = vdwg.mxu0
        %3938 = vmatpush.bf16.msra.mxu0 %v2505
        %3939 = vmatpush.bf16.msra.mxu0 %v2501
        %3940 = vmatpush.bf16.msra.mxu0 %v2497
        %3941 = vmatpush.bf16.msra.mxu0 %v2493
        %3942 = vmatpush.bf16.msra.mxu0 %v2489
        %3943 = vmatpush.bf16.msra.mxu0 %v2485
        %3944 = vmatpush.bf16.msra.mxu0 %v2481
        %3945 = vmatpush.bf16.msra.mxu0 %v2477
        %3946 = vmatmul.bf16.gmra.mxu0 %v753
        %v3947 = vpop.f32.mrf.mxu0
        %v3948 = vadd.f32 %v3934, %v3947
        %v3949 = vpop.f32.mrf.mxu0
        %v3950 = vadd.f32 %v3936, %v3949
        %3951 = vdwg.mxu0
        %3952 = vmatpush.bf16.msra.mxu0 %v2537
        %3953 = vmatpush.bf16.msra.mxu0 %v2533
        %3954 = vmatpush.bf16.msra.mxu0 %v2529
        %3955 = vmatpush.bf16.msra.mxu0 %v2525
        %3956 = vmatpush.bf16.msra.mxu0 %v2521
        %3957 = vmatpush.bf16.msra.mxu0 %v2517
        %3958 = vmatpush.bf16.msra.mxu0 %v2513
        %3959 = vmatpush.bf16.msra.mxu0 %v2509
        %3960 = vmatmul.bf16.gmra.mxu0 %v760
        %v3961 = vpop.f32.mrf.mxu0
        %v3962 = vadd.f32 %v3948, %v3961
        %v3963 = vpop.f32.mrf.mxu0
        %v3964 = vadd.f32 %v3950, %v3963
        %3965 = vdwg.mxu0
        %3966 = vmatpush.bf16.msra.mxu0 %v2569
        %3967 = vmatpush.bf16.msra.mxu0 %v2565
        %3968 = vmatpush.bf16.msra.mxu0 %v2561
        %3969 = vmatpush.bf16.msra.mxu0 %v2557
        %3970 = vmatpush.bf16.msra.mxu0 %v2553
        %3971 = vmatpush.bf16.msra.mxu0 %v2549
        %3972 = vmatpush.bf16.msra.mxu0 %v2545
        %3973 = vmatpush.bf16.msra.mxu0 %v2541
        %3974 = vmatmul.bf16.gmra.mxu0 %v778
        %v3975 = vpop.f32.mrf.mxu0
        %v3976 = vadd.f32 %v3962, %v3975
        %v3977 = vpop.f32.mrf.mxu0
        %v3978 = vadd.f32 %v3964, %v3977
        %3979 = vdwg.mxu0
        %3980 = vmatpush.bf16.msra.mxu0 %v2601
        %3981 = vmatpush.bf16.msra.mxu0 %v2597
        %3982 = vmatpush.bf16.msra.mxu0 %v2593
        %3983 = vmatpush.bf16.msra.mxu0 %v2589
        %3984 = vmatpush.bf16.msra.mxu0 %v2585
        %3985 = vmatpush.bf16.msra.mxu0 %v2581
        %3986 = vmatpush.bf16.msra.mxu0 %v2577
        %3987 = vmatpush.bf16.msra.mxu0 %v2573
        %3988 = vmatmul.bf16.gmra.mxu0 %v785
        %v3989 = vpop.f32.mrf.mxu0
        %v3990 = vadd.f32 %v3976, %v3989
        %v3991 = vpop.f32.mrf.mxu0
        %v3992 = vadd.f32 %v3978, %v3991
        %3993 = vdwg.mxu0
        %3994 = vmatpush.bf16.msra.mxu0 %v2633
        %3995 = vmatpush.bf16.msra.mxu0 %v2629
        %3996 = vmatpush.bf16.msra.mxu0 %v2625
        %3997 = vmatpush.bf16.msra.mxu0 %v2621
        %3998 = vmatpush.bf16.msra.mxu0 %v2617
        %3999 = vmatpush.bf16.msra.mxu0 %v2613
        %4000 = vmatpush.bf16.msra.mxu0 %v2609
        %4001 = vmatpush.bf16.msra.mxu0 %v2605
        %4002 = vmatmul.bf16.gmra.mxu0 %v792
        %v4003 = vpop.f32.mrf.mxu0
        %v4004 = vadd.f32 %v3990, %v4003
        %v4005 = vpop.f32.mrf.mxu0
        %v4006 = vadd.f32 %v3992, %v4005
        %4007 = vdwg.mxu0
        %4008 = vmatpush.bf16.msra.mxu0 %v2665
        %4009 = vmatpush.bf16.msra.mxu0 %v2661
        %4010 = vmatpush.bf16.msra.mxu0 %v2657
        %4011 = vmatpush.bf16.msra.mxu0 %v2653
        %4012 = vmatpush.bf16.msra.mxu0 %v2649
        %4013 = vmatpush.bf16.msra.mxu0 %v2645
        %4014 = vmatpush.bf16.msra.mxu0 %v2641
        %4015 = vmatpush.bf16.msra.mxu0 %v2637
        %4016 = vmatmul.bf16.gmra.mxu0 %v804
        %v4017 = vpop.f32.mrf.mxu0
        %v4018 = vadd.f32 %v4004, %v4017
        %v4019 = vpop.f32.mrf.mxu0
        %v4020 = vadd.f32 %v4006, %v4019
        %4021 = vdwg.mxu0
        %4022 = vmatpush.bf16.msra.mxu0 %v2697
        %4023 = vmatpush.bf16.msra.mxu0 %v2693
        %4024 = vmatpush.bf16.msra.mxu0 %v2689
        %4025 = vmatpush.bf16.msra.mxu0 %v2685
        %4026 = vmatpush.bf16.msra.mxu0 %v2681
        %4027 = vmatpush.bf16.msra.mxu0 %v2677
        %4028 = vmatpush.bf16.msra.mxu0 %v2673
        %4029 = vmatpush.bf16.msra.mxu0 %v2669
        %4030 = vmatmul.bf16.gmra.mxu0 %v805
        %v4031 = vpop.f32.mrf.mxu0
        %v4032 = vadd.f32 %v4018, %v4031
        %v4033 = vpop.f32.mrf.mxu0
        %v4034 = vadd.f32 %v4020, %v4033
        %4035 = vdwg.mxu0
        %4036 = vmatpush.bf16.msra.mxu0 %v2729
        %4037 = vmatpush.bf16.msra.mxu0 %v2725
        %4038 = vmatpush.bf16.msra.mxu0 %v2721
        %4039 = vmatpush.bf16.msra.mxu0 %v2717
        %4040 = vmatpush.bf16.msra.mxu0 %v2713
        %4041 = vmatpush.bf16.msra.mxu0 %v2709
        %4042 = vmatpush.bf16.msra.mxu0 %v2705
        %4043 = vmatpush.bf16.msra.mxu0 %v2701
        %4044 = vmatmul.bf16.gmra.mxu0 %v806
        %v4045 = vpop.f32.mrf.mxu0
        %v4046 = vadd.f32 %v4032, %v4045
        %v4047 = vpop.f32.mrf.mxu0
        %v4048 = vadd.f32 %v4034, %v4047
        %4049 = vdwg.mxu0
        %v4052 = vunpack.c.l.b16 %v698
        %v4053 = vunpack.c.h.b16 %v698
        %v4054 = vunpack.c.l.b16 %v699
        %v4055 = vpack.c.b16 %v766, %v4052
        %v4056 = vpack.c.b16 %v767, %v4053
        %v4057 = vpack.c.b16 %v768, %v4054
        %v4058 = vrot.slane %v4055, 1
        %v4059 = vrot.slane %v4056, 1
        %v4060 = vrot.slane %v4057, 1
        %4064 = vmatpush.bf16.msra.mxu0 %v2278
        %4065 = vmatpush.bf16.msra.mxu0 %v2274
        %4066 = vmatpush.bf16.msra.mxu0 %v2270
        %4067 = vmatpush.bf16.msra.mxu0 %v2266
        %4068 = vmatpush.bf16.msra.mxu0 %v2262
        %4069 = vmatpush.bf16.msra.mxu0 %v2258
        %4070 = vmatpush.bf16.msra.mxu0 %v2254
        %4071 = vmatpush.bf16.msra.mxu0 %v2250
        %4072 = vmatmul.bf16.gmra.mxu0 %v726
        %v4073 = vpop.f32.mrf.mxu0
        %v4074 = vadd.f32 0.0, %v4073
        %v4075 = vpop.f32.mrf.mxu0
        %v4076 = vadd.f32 0.0, %v4075
        %4077 = vdwg.mxu0
        %4078 = vmatpush.bf16.msra.mxu0 %v2310
        %4079 = vmatpush.bf16.msra.mxu0 %v2306
        %4080 = vmatpush.bf16.msra.mxu0 %v2302
        %4081 = vmatpush.bf16.msra.mxu0 %v2298
        %4082 = vmatpush.bf16.msra.mxu0 %v2294
        %4083 = vmatpush.bf16.msra.mxu0 %v2290
        %4084 = vmatpush.bf16.msra.mxu0 %v2286
        %4085 = vmatpush.bf16.msra.mxu0 %v2282
        %4086 = vmatmul.bf16.gmra.mxu0 %v727
        %v4087 = vpop.f32.mrf.mxu0
        %v4088 = vadd.f32 %v4074, %v4087
        %v4089 = vpop.f32.mrf.mxu0
        %v4090 = vadd.f32 %v4076, %v4089
        %4091 = vdwg.mxu0
        %4092 = vmatpush.bf16.msra.mxu0 %v2342
        %4093 = vmatpush.bf16.msra.mxu0 %v2338
        %4094 = vmatpush.bf16.msra.mxu0 %v2334
        %4095 = vmatpush.bf16.msra.mxu0 %v2330
        %4096 = vmatpush.bf16.msra.mxu0 %v2326
        %4097 = vmatpush.bf16.msra.mxu0 %v2322
        %4098 = vmatpush.bf16.msra.mxu0 %v2318
        %4099 = vmatpush.bf16.msra.mxu0 %v2314
        %4100 = vmatmul.bf16.gmra.mxu0 %v728
        %v4101 = vpop.f32.mrf.mxu0
        %v4102 = vadd.f32 %v4088, %v4101
        %v4103 = vpop.f32.mrf.mxu0
        %v4104 = vadd.f32 %v4090, %v4103
        %4105 = vdwg.mxu0
        %4106 = vmatpush.bf16.msra.mxu0 %v2374
        %4107 = vmatpush.bf16.msra.mxu0 %v2370
        %4108 = vmatpush.bf16.msra.mxu0 %v2366
        %4109 = vmatpush.bf16.msra.mxu0 %v2362
        %4110 = vmatpush.bf16.msra.mxu0 %v2358
        %4111 = vmatpush.bf16.msra.mxu0 %v2354
        %4112 = vmatpush.bf16.msra.mxu0 %v2350
        %4113 = vmatpush.bf16.msra.mxu0 %v2346
        %4114 = vmatmul.bf16.gmra.mxu0 %v746
        %v4115 = vpop.f32.mrf.mxu0
        %v4116 = vadd.f32 %v4102, %v4115
        %v4117 = vpop.f32.mrf.mxu0
        %v4118 = vadd.f32 %v4104, %v4117
        %4119 = vdwg.mxu0
        %4120 = vmatpush.bf16.msra.mxu0 %v2406
        %4121 = vmatpush.bf16.msra.mxu0 %v2402
        %4122 = vmatpush.bf16.msra.mxu0 %v2398
        %4123 = vmatpush.bf16.msra.mxu0 %v2394
        %4124 = vmatpush.bf16.msra.mxu0 %v2390
        %4125 = vmatpush.bf16.msra.mxu0 %v2386
        %4126 = vmatpush.bf16.msra.mxu0 %v2382
        %4127 = vmatpush.bf16.msra.mxu0 %v2378
        %4128 = vmatmul.bf16.gmra.mxu0 %v753
        %v4129 = vpop.f32.mrf.mxu0
        %v4130 = vadd.f32 %v4116, %v4129
        %v4131 = vpop.f32.mrf.mxu0
        %v4132 = vadd.f32 %v4118, %v4131
        %4133 = vdwg.mxu0
        %4134 = vmatpush.bf16.msra.mxu0 %v2438
        %4135 = vmatpush.bf16.msra.mxu0 %v2434
        %4136 = vmatpush.bf16.msra.mxu0 %v2430
        %4137 = vmatpush.bf16.msra.mxu0 %v2426
        %4138 = vmatpush.bf16.msra.mxu0 %v2422
        %4139 = vmatpush.bf16.msra.mxu0 %v2418
        %4140 = vmatpush.bf16.msra.mxu0 %v2414
        %4141 = vmatpush.bf16.msra.mxu0 %v2410
        %4142 = vmatmul.bf16.gmra.mxu0 %v760
        %v4143 = vpop.f32.mrf.mxu0
        %v4144 = vadd.f32 %v4130, %v4143
        %v4145 = vpop.f32.mrf.mxu0
        %v4146 = vadd.f32 %v4132, %v4145
        %4147 = vdwg.mxu0
        %4148 = vmatpush.bf16.msra.mxu0 %v2470
        %4149 = vmatpush.bf16.msra.mxu0 %v2466
        %4150 = vmatpush.bf16.msra.mxu0 %v2462
        %4151 = vmatpush.bf16.msra.mxu0 %v2458
        %4152 = vmatpush.bf16.msra.mxu0 %v2454
        %4153 = vmatpush.bf16.msra.mxu0 %v2450
        %4154 = vmatpush.bf16.msra.mxu0 %v2446
        %4155 = vmatpush.bf16.msra.mxu0 %v2442
        %4156 = vmatmul.bf16.gmra.mxu0 %v778
        %v4157 = vpop.f32.mrf.mxu0
        %v4158 = vadd.f32 %v4144, %v4157
        %v4159 = vpop.f32.mrf.mxu0
        %v4160 = vadd.f32 %v4146, %v4159
        %4161 = vdwg.mxu0
        %4162 = vmatpush.bf16.msra.mxu0 %v2502
        %4163 = vmatpush.bf16.msra.mxu0 %v2498
        %4164 = vmatpush.bf16.msra.mxu0 %v2494
        %4165 = vmatpush.bf16.msra.mxu0 %v2490
        %4166 = vmatpush.bf16.msra.mxu0 %v2486
        %4167 = vmatpush.bf16.msra.mxu0 %v2482
        %4168 = vmatpush.bf16.msra.mxu0 %v2478
        %4169 = vmatpush.bf16.msra.mxu0 %v2474
        %4170 = vmatmul.bf16.gmra.mxu0 %v785
        %v4171 = vpop.f32.mrf.mxu0
        %v4172 = vadd.f32 %v4158, %v4171
        %v4173 = vpop.f32.mrf.mxu0
        %v4174 = vadd.f32 %v4160, %v4173
        %4175 = vdwg.mxu0
        %4176 = vmatpush.bf16.msra.mxu0 %v2534
        %4177 = vmatpush.bf16.msra.mxu0 %v2530
        %4178 = vmatpush.bf16.msra.mxu0 %v2526
        %4179 = vmatpush.bf16.msra.mxu0 %v2522
        %4180 = vmatpush.bf16.msra.mxu0 %v2518
        %4181 = vmatpush.bf16.msra.mxu0 %v2514
        %4182 = vmatpush.bf16.msra.mxu0 %v2510
        %4183 = vmatpush.bf16.msra.mxu0 %v2506
        %4184 = vmatmul.bf16.gmra.mxu0 %v792
        %v4185 = vpop.f32.mrf.mxu0
        %v4186 = vadd.f32 %v4172, %v4185
        %v4187 = vpop.f32.mrf.mxu0
        %v4188 = vadd.f32 %v4174, %v4187
        %4189 = vdwg.mxu0
        %4190 = vmatpush.bf16.msra.mxu0 %v2566
        %4191 = vmatpush.bf16.msra.mxu0 %v2562
        %4192 = vmatpush.bf16.msra.mxu0 %v2558
        %4193 = vmatpush.bf16.msra.mxu0 %v2554
        %4194 = vmatpush.bf16.msra.mxu0 %v2550
        %4195 = vmatpush.bf16.msra.mxu0 %v2546
        %4196 = vmatpush.bf16.msra.mxu0 %v2542
        %4197 = vmatpush.bf16.msra.mxu0 %v2538
        %4198 = vmatmul.bf16.gmra.mxu0 %v804
        %v4199 = vpop.f32.mrf.mxu0
        %v4200 = vadd.f32 %v4186, %v4199
        %v4201 = vpop.f32.mrf.mxu0
        %v4202 = vadd.f32 %v4188, %v4201
        %4203 = vdwg.mxu0
        %4204 = vmatpush.bf16.msra.mxu0 %v2598
        %4205 = vmatpush.bf16.msra.mxu0 %v2594
        %4206 = vmatpush.bf16.msra.mxu0 %v2590
        %4207 = vmatpush.bf16.msra.mxu0 %v2586
        %4208 = vmatpush.bf16.msra.mxu0 %v2582
        %4209 = vmatpush.bf16.msra.mxu0 %v2578
        %4210 = vmatpush.bf16.msra.mxu0 %v2574
        %4211 = vmatpush.bf16.msra.mxu0 %v2570
        %4212 = vmatmul.bf16.gmra.mxu0 %v805
        %v4213 = vpop.f32.mrf.mxu0
        %v4214 = vadd.f32 %v4200, %v4213
        %v4215 = vpop.f32.mrf.mxu0
        %v4216 = vadd.f32 %v4202, %v4215
        %4217 = vdwg.mxu0
        %4218 = vmatpush.bf16.msra.mxu0 %v2630
        %4219 = vmatpush.bf16.msra.mxu0 %v2626
        %4220 = vmatpush.bf16.msra.mxu0 %v2622
        %4221 = vmatpush.bf16.msra.mxu0 %v2618
        %4222 = vmatpush.bf16.msra.mxu0 %v2614
        %4223 = vmatpush.bf16.msra.mxu0 %v2610
        %4224 = vmatpush.bf16.msra.mxu0 %v2606
        %4225 = vmatpush.bf16.msra.mxu0 %v2602
        %4226 = vmatmul.bf16.gmra.mxu0 %v806
        %v4227 = vpop.f32.mrf.mxu0
        %v4228 = vadd.f32 %v4214, %v4227
        %v4229 = vpop.f32.mrf.mxu0
        %v4230 = vadd.f32 %v4216, %v4229
        %4231 = vdwg.mxu0
        %4232 = vmatpush.bf16.msra.mxu0 %v2662
        %4233 = vmatpush.bf16.msra.mxu0 %v2658
        %4234 = vmatpush.bf16.msra.mxu0 %v2654
        %4235 = vmatpush.bf16.msra.mxu0 %v2650
        %4236 = vmatpush.bf16.msra.mxu0 %v2646
        %4237 = vmatpush.bf16.msra.mxu0 %v2642
        %4238 = vmatpush.bf16.msra.mxu0 %v2638
        %4239 = vmatpush.bf16.msra.mxu0 %v2634
        %4240 = vmatmul.bf16.gmra.mxu0 %v4058
        %v4241 = vpop.f32.mrf.mxu0
        %v4242 = vadd.f32 %v4228, %v4241
        %v4243 = vpop.f32.mrf.mxu0
        %v4244 = vadd.f32 %v4230, %v4243
        %4245 = vdwg.mxu0
        %4246 = vmatpush.bf16.msra.mxu0 %v2694
        %4247 = vmatpush.bf16.msra.mxu0 %v2690
        %4248 = vmatpush.bf16.msra.mxu0 %v2686
        %4249 = vmatpush.bf16.msra.mxu0 %v2682
        %4250 = vmatpush.bf16.msra.mxu0 %v2678
        %4251 = vmatpush.bf16.msra.mxu0 %v2674
        %4252 = vmatpush.bf16.msra.mxu0 %v2670
        %4253 = vmatpush.bf16.msra.mxu0 %v2666
        %4254 = vmatmul.bf16.gmra.mxu0 %v4059
        %v4255 = vpop.f32.mrf.mxu0
        %v4256 = vadd.f32 %v4242, %v4255
        %v4257 = vpop.f32.mrf.mxu0
        %v4258 = vadd.f32 %v4244, %v4257
        %4259 = vdwg.mxu0
        %4260 = vmatpush.bf16.msra.mxu0 %v2726
        %4261 = vmatpush.bf16.msra.mxu0 %v2722
        %4262 = vmatpush.bf16.msra.mxu0 %v2718
        %4263 = vmatpush.bf16.msra.mxu0 %v2714
        %4264 = vmatpush.bf16.msra.mxu0 %v2710
        %4265 = vmatpush.bf16.msra.mxu0 %v2706
        %4266 = vmatpush.bf16.msra.mxu0 %v2702
        %4267 = vmatpush.bf16.msra.mxu0 %v2698
        %4268 = vmatmul.bf16.gmra.mxu0 %v4060
        %v4269 = vpop.f32.mrf.mxu0
        %v4270 = vadd.f32 %v4256, %v4269
        %v4271 = vpop.f32.mrf.mxu0
        %v4272 = vadd.f32 %v4258, %v4271
        %4273 = vdwg.mxu0
        %4274 = vmatpush.bf16.msra.mxu0 %v2279
        %4275 = vmatpush.bf16.msra.mxu0 %v2275
        %4276 = vmatpush.bf16.msra.mxu0 %v2271
        %4277 = vmatpush.bf16.msra.mxu0 %v2267
        %4278 = vmatpush.bf16.msra.mxu0 %v2263
        %4279 = vmatpush.bf16.msra.mxu0 %v2259
        %4280 = vmatpush.bf16.msra.mxu0 %v2255
        %4281 = vmatpush.bf16.msra.mxu0 %v2251
        %4282 = vmatmul.bf16.gmra.mxu0 %v726
        %v4283 = vpop.f32.mrf.mxu0
        %v4284 = vadd.f32 0.0, %v4283
        %v4285 = vpop.f32.mrf.mxu0
        %v4286 = vadd.f32 0.0, %v4285
        %4287 = vdwg.mxu0
        %4288 = vmatpush.bf16.msra.mxu0 %v2311
        %4289 = vmatpush.bf16.msra.mxu0 %v2307
        %4290 = vmatpush.bf16.msra.mxu0 %v2303
        %4291 = vmatpush.bf16.msra.mxu0 %v2299
        %4292 = vmatpush.bf16.msra.mxu0 %v2295
        %4293 = vmatpush.bf16.msra.mxu0 %v2291
        %4294 = vmatpush.bf16.msra.mxu0 %v2287
        %4295 = vmatpush.bf16.msra.mxu0 %v2283
        %4296 = vmatmul.bf16.gmra.mxu0 %v727
        %v4297 = vpop.f32.mrf.mxu0
        %v4298 = vadd.f32 %v4284, %v4297
        %v4299 = vpop.f32.mrf.mxu0
        %v4300 = vadd.f32 %v4286, %v4299
        %4301 = vdwg.mxu0
        %4302 = vmatpush.bf16.msra.mxu0 %v2343
        %4303 = vmatpush.bf16.msra.mxu0 %v2339
        %4304 = vmatpush.bf16.msra.mxu0 %v2335
        %4305 = vmatpush.bf16.msra.mxu0 %v2331
        %4306 = vmatpush.bf16.msra.mxu0 %v2327
        %4307 = vmatpush.bf16.msra.mxu0 %v2323
        %4308 = vmatpush.bf16.msra.mxu0 %v2319
        %4309 = vmatpush.bf16.msra.mxu0 %v2315
        %4310 = vmatmul.bf16.gmra.mxu0 %v728
        %v4311 = vpop.f32.mrf.mxu0
        %v4312 = vadd.f32 %v4298, %v4311
        %v4313 = vpop.f32.mrf.mxu0
        %v4314 = vadd.f32 %v4300, %v4313
        %4315 = vdwg.mxu0
        %4316 = vmatpush.bf16.msra.mxu0 %v2375
        %4317 = vmatpush.bf16.msra.mxu0 %v2371
        %4318 = vmatpush.bf16.msra.mxu0 %v2367
        %4319 = vmatpush.bf16.msra.mxu0 %v2363
        %4320 = vmatpush.bf16.msra.mxu0 %v2359
        %4321 = vmatpush.bf16.msra.mxu0 %v2355
        %4322 = vmatpush.bf16.msra.mxu0 %v2351
        %4323 = vmatpush.bf16.msra.mxu0 %v2347
        %4324 = vmatmul.bf16.gmra.mxu0 %v746
        %v4325 = vpop.f32.mrf.mxu0
        %v4326 = vadd.f32 %v4312, %v4325
        %v4327 = vpop.f32.mrf.mxu0
        %v4328 = vadd.f32 %v4314, %v4327
        %4329 = vdwg.mxu0
        %4330 = vmatpush.bf16.msra.mxu0 %v2407
        %4331 = vmatpush.bf16.msra.mxu0 %v2403
        %4332 = vmatpush.bf16.msra.mxu0 %v2399
        %4333 = vmatpush.bf16.msra.mxu0 %v2395
        %4334 = vmatpush.bf16.msra.mxu0 %v2391
        %4335 = vmatpush.bf16.msra.mxu0 %v2387
        %4336 = vmatpush.bf16.msra.mxu0 %v2383
        %4337 = vmatpush.bf16.msra.mxu0 %v2379
        %4338 = vmatmul.bf16.gmra.mxu0 %v753
        %v4339 = vpop.f32.mrf.mxu0
        %v4340 = vadd.f32 %v4326, %v4339
        %v4341 = vpop.f32.mrf.mxu0
        %v4342 = vadd.f32 %v4328, %v4341
        %4343 = vdwg.mxu0
        %4344 = vmatpush.bf16.msra.mxu0 %v2439
        %4345 = vmatpush.bf16.msra.mxu0 %v2435
        %4346 = vmatpush.bf16.msra.mxu0 %v2431
        %4347 = vmatpush.bf16.msra.mxu0 %v2427
        %4348 = vmatpush.bf16.msra.mxu0 %v2423
        %4349 = vmatpush.bf16.msra.mxu0 %v2419
        %4350 = vmatpush.bf16.msra.mxu0 %v2415
        %4351 = vmatpush.bf16.msra.mxu0 %v2411
        %4352 = vmatmul.bf16.gmra.mxu0 %v760
        %v4353 = vpop.f32.mrf.mxu0
        %v4354 = vadd.f32 %v4340, %v4353
        %v4355 = vpop.f32.mrf.mxu0
        %v4356 = vadd.f32 %v4342, %v4355
        %4357 = vdwg.mxu0
        %4358 = vmatpush.bf16.msra.mxu0 %v2471
        %4359 = vmatpush.bf16.msra.mxu0 %v2467
        %4360 = vmatpush.bf16.msra.mxu0 %v2463
        %4361 = vmatpush.bf16.msra.mxu0 %v2459
        %4362 = vmatpush.bf16.msra.mxu0 %v2455
        %4363 = vmatpush.bf16.msra.mxu0 %v2451
        %4364 = vmatpush.bf16.msra.mxu0 %v2447
        %4365 = vmatpush.bf16.msra.mxu0 %v2443
        %4366 = vmatmul.bf16.gmra.mxu0 %v778
        %v4367 = vpop.f32.mrf.mxu0
        %v4368 = vadd.f32 %v4354, %v4367
        %v4369 = vpop.f32.mrf.mxu0
        %v4370 = vadd.f32 %v4356, %v4369
        %4371 = vdwg.mxu0
        %4372 = vmatpush.bf16.msra.mxu0 %v2503
        %4373 = vmatpush.bf16.msra.mxu0 %v2499
        %4374 = vmatpush.bf16.msra.mxu0 %v2495
        %4375 = vmatpush.bf16.msra.mxu0 %v2491
        %4376 = vmatpush.bf16.msra.mxu0 %v2487
        %4377 = vmatpush.bf16.msra.mxu0 %v2483
        %4378 = vmatpush.bf16.msra.mxu0 %v2479
        %4379 = vmatpush.bf16.msra.mxu0 %v2475
        %4380 = vmatmul.bf16.gmra.mxu0 %v785
        %v4381 = vpop.f32.mrf.mxu0
        %v4382 = vadd.f32 %v4368, %v4381
        %v4383 = vpop.f32.mrf.mxu0
        %v4384 = vadd.f32 %v4370, %v4383
        %4385 = vdwg.mxu0
        %4386 = vmatpush.bf16.msra.mxu0 %v2535
        %4387 = vmatpush.bf16.msra.mxu0 %v2531
        %4388 = vmatpush.bf16.msra.mxu0 %v2527
        %4389 = vmatpush.bf16.msra.mxu0 %v2523
        %4390 = vmatpush.bf16.msra.mxu0 %v2519
        %4391 = vmatpush.bf16.msra.mxu0 %v2515
        %4392 = vmatpush.bf16.msra.mxu0 %v2511
        %4393 = vmatpush.bf16.msra.mxu0 %v2507
        %4394 = vmatmul.bf16.gmra.mxu0 %v792
        %v4395 = vpop.f32.mrf.mxu0
        %v4396 = vadd.f32 %v4382, %v4395
        %v4397 = vpop.f32.mrf.mxu0
        %v4398 = vadd.f32 %v4384, %v4397
        %4399 = vdwg.mxu0
        %4400 = vmatpush.bf16.msra.mxu0 %v2567
        %4401 = vmatpush.bf16.msra.mxu0 %v2563
        %4402 = vmatpush.bf16.msra.mxu0 %v2559
        %4403 = vmatpush.bf16.msra.mxu0 %v2555
        %4404 = vmatpush.bf16.msra.mxu0 %v2551
        %4405 = vmatpush.bf16.msra.mxu0 %v2547
        %4406 = vmatpush.bf16.msra.mxu0 %v2543
        %4407 = vmatpush.bf16.msra.mxu0 %v2539
        %4408 = vmatmul.bf16.gmra.mxu0 %v804
        %v4409 = vpop.f32.mrf.mxu0
        %v4410 = vadd.f32 %v4396, %v4409
        %v4411 = vpop.f32.mrf.mxu0
        %v4412 = vadd.f32 %v4398, %v4411
        %4413 = vdwg.mxu0
        %4414 = vmatpush.bf16.msra.mxu0 %v2599
        %4415 = vmatpush.bf16.msra.mxu0 %v2595
        %4416 = vmatpush.bf16.msra.mxu0 %v2591
        %4417 = vmatpush.bf16.msra.mxu0 %v2587
        %4418 = vmatpush.bf16.msra.mxu0 %v2583
        %4419 = vmatpush.bf16.msra.mxu0 %v2579
        %4420 = vmatpush.bf16.msra.mxu0 %v2575
        %4421 = vmatpush.bf16.msra.mxu0 %v2571
        %4422 = vmatmul.bf16.gmra.mxu0 %v805
        %v4423 = vpop.f32.mrf.mxu0
        %v4424 = vadd.f32 %v4410, %v4423
        %v4425 = vpop.f32.mrf.mxu0
        %v4426 = vadd.f32 %v4412, %v4425
        %4427 = vdwg.mxu0
        %4428 = vmatpush.bf16.msra.mxu0 %v2631
        %4429 = vmatpush.bf16.msra.mxu0 %v2627
        %4430 = vmatpush.bf16.msra.mxu0 %v2623
        %4431 = vmatpush.bf16.msra.mxu0 %v2619
        %4432 = vmatpush.bf16.msra.mxu0 %v2615
        %4433 = vmatpush.bf16.msra.mxu0 %v2611
        %4434 = vmatpush.bf16.msra.mxu0 %v2607
        %4435 = vmatpush.bf16.msra.mxu0 %v2603
        %4436 = vmatmul.bf16.gmra.mxu0 %v806
        %v4437 = vpop.f32.mrf.mxu0
        %v4438 = vadd.f32 %v4424, %v4437
        %v4439 = vpop.f32.mrf.mxu0
        %v4440 = vadd.f32 %v4426, %v4439
        %4441 = vdwg.mxu0
        %4442 = vmatpush.bf16.msra.mxu0 %v2663
        %4443 = vmatpush.bf16.msra.mxu0 %v2659
        %4444 = vmatpush.bf16.msra.mxu0 %v2655
        %4445 = vmatpush.bf16.msra.mxu0 %v2651
        %4446 = vmatpush.bf16.msra.mxu0 %v2647
        %4447 = vmatpush.bf16.msra.mxu0 %v2643
        %4448 = vmatpush.bf16.msra.mxu0 %v2639
        %4449 = vmatpush.bf16.msra.mxu0 %v2635
        %4450 = vmatmul.bf16.gmra.mxu0 %v4058
        %v4451 = vpop.f32.mrf.mxu0
        %v4452 = vadd.f32 %v4438, %v4451
        %v4453 = vpop.f32.mrf.mxu0
        %v4454 = vadd.f32 %v4440, %v4453
        %4455 = vdwg.mxu0
        %4456 = vmatpush.bf16.msra.mxu0 %v2695
        %4457 = vmatpush.bf16.msra.mxu0 %v2691
        %4458 = vmatpush.bf16.msra.mxu0 %v2687
        %4459 = vmatpush.bf16.msra.mxu0 %v2683
        %4460 = vmatpush.bf16.msra.mxu0 %v2679
        %4461 = vmatpush.bf16.msra.mxu0 %v2675
        %4462 = vmatpush.bf16.msra.mxu0 %v2671
        %4463 = vmatpush.bf16.msra.mxu0 %v2667
        %4464 = vmatmul.bf16.gmra.mxu0 %v4059
        %v4465 = vpop.f32.mrf.mxu0
        %v4466 = vadd.f32 %v4452, %v4465
        %v4467 = vpop.f32.mrf.mxu0
        %v4468 = vadd.f32 %v4454, %v4467
        %4469 = vdwg.mxu0
        %4470 = vmatpush.bf16.msra.mxu0 %v2727
        %4471 = vmatpush.bf16.msra.mxu0 %v2723
        %4472 = vmatpush.bf16.msra.mxu0 %v2719
        %4473 = vmatpush.bf16.msra.mxu0 %v2715
        %4474 = vmatpush.bf16.msra.mxu0 %v2711
        %4475 = vmatpush.bf16.msra.mxu0 %v2707
        %4476 = vmatpush.bf16.msra.mxu0 %v2703
        %4477 = vmatpush.bf16.msra.mxu0 %v2699
        %4478 = vmatmul.bf16.gmra.mxu0 %v4060
        %v4479 = vpop.f32.mrf.mxu0
        %v4480 = vadd.f32 %v4466, %v4479
        %v4481 = vpop.f32.mrf.mxu0
        %v4482 = vadd.f32 %v4468, %v4481
        %4483 = vdwg.mxu0
        %4484 = vmatpush.bf16.msra.mxu0 %v2280
        %4485 = vmatpush.bf16.msra.mxu0 %v2276
        %4486 = vmatpush.bf16.msra.mxu0 %v2272
        %4487 = vmatpush.bf16.msra.mxu0 %v2268
        %4488 = vmatpush.bf16.msra.mxu0 %v2264
        %4489 = vmatpush.bf16.msra.mxu0 %v2260
        %4490 = vmatpush.bf16.msra.mxu0 %v2256
        %4491 = vmatpush.bf16.msra.mxu0 %v2252
        %4492 = vmatmul.bf16.gmra.mxu0 %v726
        %v4493 = vpop.f32.mrf.mxu0
        %v4494 = vadd.f32 0.0, %v4493
        %v4495 = vpop.f32.mrf.mxu0
        %v4496 = vadd.f32 0.0, %v4495
        %4497 = vdwg.mxu0
        %4498 = vmatpush.bf16.msra.mxu0 %v2312
        %4499 = vmatpush.bf16.msra.mxu0 %v2308
        %4500 = vmatpush.bf16.msra.mxu0 %v2304
        %4501 = vmatpush.bf16.msra.mxu0 %v2300
        %4502 = vmatpush.bf16.msra.mxu0 %v2296
        %4503 = vmatpush.bf16.msra.mxu0 %v2292
        %4504 = vmatpush.bf16.msra.mxu0 %v2288
        %4505 = vmatpush.bf16.msra.mxu0 %v2284
        %4506 = vmatmul.bf16.gmra.mxu0 %v727
        %v4507 = vpop.f32.mrf.mxu0
        %v4508 = vadd.f32 %v4494, %v4507
        %v4509 = vpop.f32.mrf.mxu0
        %v4510 = vadd.f32 %v4496, %v4509
        %4511 = vdwg.mxu0
        %4512 = vmatpush.bf16.msra.mxu0 %v2344
        %4513 = vmatpush.bf16.msra.mxu0 %v2340
        %4514 = vmatpush.bf16.msra.mxu0 %v2336
        %4515 = vmatpush.bf16.msra.mxu0 %v2332
        %4516 = vmatpush.bf16.msra.mxu0 %v2328
        %4517 = vmatpush.bf16.msra.mxu0 %v2324
        %4518 = vmatpush.bf16.msra.mxu0 %v2320
        %4519 = vmatpush.bf16.msra.mxu0 %v2316
        %4520 = vmatmul.bf16.gmra.mxu0 %v728
        %v4521 = vpop.f32.mrf.mxu0
        %v4522 = vadd.f32 %v4508, %v4521
        %v4523 = vpop.f32.mrf.mxu0
        %v4524 = vadd.f32 %v4510, %v4523
        %4525 = vdwg.mxu0
        %4526 = vmatpush.bf16.msra.mxu0 %v2376
        %4527 = vmatpush.bf16.msra.mxu0 %v2372
        %4528 = vmatpush.bf16.msra.mxu0 %v2368
        %4529 = vmatpush.bf16.msra.mxu0 %v2364
        %4530 = vmatpush.bf16.msra.mxu0 %v2360
        %4531 = vmatpush.bf16.msra.mxu0 %v2356
        %4532 = vmatpush.bf16.msra.mxu0 %v2352
        %4533 = vmatpush.bf16.msra.mxu0 %v2348
        %4534 = vmatmul.bf16.gmra.mxu0 %v746
        %v4535 = vpop.f32.mrf.mxu0
        %v4536 = vadd.f32 %v4522, %v4535
        %v4537 = vpop.f32.mrf.mxu0
        %v4538 = vadd.f32 %v4524, %v4537
        %4539 = vdwg.mxu0
        %4540 = vmatpush.bf16.msra.mxu0 %v2408
        %4541 = vmatpush.bf16.msra.mxu0 %v2404
        %4542 = vmatpush.bf16.msra.mxu0 %v2400
        %4543 = vmatpush.bf16.msra.mxu0 %v2396
        %4544 = vmatpush.bf16.msra.mxu0 %v2392
        %4545 = vmatpush.bf16.msra.mxu0 %v2388
        %4546 = vmatpush.bf16.msra.mxu0 %v2384
        %4547 = vmatpush.bf16.msra.mxu0 %v2380
        %4548 = vmatmul.bf16.gmra.mxu0 %v753
        %v4549 = vpop.f32.mrf.mxu0
        %v4550 = vadd.f32 %v4536, %v4549
        %v4551 = vpop.f32.mrf.mxu0
        %v4552 = vadd.f32 %v4538, %v4551
        %4553 = vdwg.mxu0
        %4554 = vmatpush.bf16.msra.mxu0 %v2440
        %4555 = vmatpush.bf16.msra.mxu0 %v2436
        %4556 = vmatpush.bf16.msra.mxu0 %v2432
        %4557 = vmatpush.bf16.msra.mxu0 %v2428
        %4558 = vmatpush.bf16.msra.mxu0 %v2424
        %4559 = vmatpush.bf16.msra.mxu0 %v2420
        %4560 = vmatpush.bf16.msra.mxu0 %v2416
        %4561 = vmatpush.bf16.msra.mxu0 %v2412
        %4562 = vmatmul.bf16.gmra.mxu0 %v760
        %v4563 = vpop.f32.mrf.mxu0
        %v4564 = vadd.f32 %v4550, %v4563
        %v4565 = vpop.f32.mrf.mxu0
        %v4566 = vadd.f32 %v4552, %v4565
        %4567 = vdwg.mxu0
        %4568 = vmatpush.bf16.msra.mxu0 %v2472
        %4569 = vmatpush.bf16.msra.mxu0 %v2468
        %4570 = vmatpush.bf16.msra.mxu0 %v2464
        %4571 = vmatpush.bf16.msra.mxu0 %v2460
        %4572 = vmatpush.bf16.msra.mxu0 %v2456
        %4573 = vmatpush.bf16.msra.mxu0 %v2452
        %4574 = vmatpush.bf16.msra.mxu0 %v2448
        %4575 = vmatpush.bf16.msra.mxu0 %v2444
        %4576 = vmatmul.bf16.gmra.mxu0 %v778
        %v4577 = vpop.f32.mrf.mxu0
        %v4578 = vadd.f32 %v4564, %v4577
        %v4579 = vpop.f32.mrf.mxu0
        %v4580 = vadd.f32 %v4566, %v4579
        %4581 = vdwg.mxu0
        %4582 = vmatpush.bf16.msra.mxu0 %v2504
        %4583 = vmatpush.bf16.msra.mxu0 %v2500
        %4584 = vmatpush.bf16.msra.mxu0 %v2496
        %4585 = vmatpush.bf16.msra.mxu0 %v2492
        %4586 = vmatpush.bf16.msra.mxu0 %v2488
        %4587 = vmatpush.bf16.msra.mxu0 %v2484
        %4588 = vmatpush.bf16.msra.mxu0 %v2480
        %4589 = vmatpush.bf16.msra.mxu0 %v2476
        %4590 = vmatmul.bf16.gmra.mxu0 %v785
        %v4591 = vpop.f32.mrf.mxu0
        %v4592 = vadd.f32 %v4578, %v4591
        %v4593 = vpop.f32.mrf.mxu0
        %v4594 = vadd.f32 %v4580, %v4593
        %4595 = vdwg.mxu0
        %4596 = vmatpush.bf16.msra.mxu0 %v2536
        %4597 = vmatpush.bf16.msra.mxu0 %v2532
        %4598 = vmatpush.bf16.msra.mxu0 %v2528
        %4599 = vmatpush.bf16.msra.mxu0 %v2524
        %4600 = vmatpush.bf16.msra.mxu0 %v2520
        %4601 = vmatpush.bf16.msra.mxu0 %v2516
        %4602 = vmatpush.bf16.msra.mxu0 %v2512
        %4603 = vmatpush.bf16.msra.mxu0 %v2508
        %4604 = vmatmul.bf16.gmra.mxu0 %v792
        %v4605 = vpop.f32.mrf.mxu0
        %v4606 = vadd.f32 %v4592, %v4605
        %v4607 = vpop.f32.mrf.mxu0
        %v4608 = vadd.f32 %v4594, %v4607
        %4609 = vdwg.mxu0
        %4610 = vmatpush.bf16.msra.mxu0 %v2568
        %4611 = vmatpush.bf16.msra.mxu0 %v2564
        %4612 = vmatpush.bf16.msra.mxu0 %v2560
        %4613 = vmatpush.bf16.msra.mxu0 %v2556
        %4614 = vmatpush.bf16.msra.mxu0 %v2552
        %4615 = vmatpush.bf16.msra.mxu0 %v2548
        %4616 = vmatpush.bf16.msra.mxu0 %v2544
        %4617 = vmatpush.bf16.msra.mxu0 %v2540
        %4618 = vmatmul.bf16.gmra.mxu0 %v804
        %v4619 = vpop.f32.mrf.mxu0
        %v4620 = vadd.f32 %v4606, %v4619
        %v4621 = vpop.f32.mrf.mxu0
        %v4622 = vadd.f32 %v4608, %v4621
        %4623 = vdwg.mxu0
        %4624 = vmatpush.bf16.msra.mxu0 %v2600
        %4625 = vmatpush.bf16.msra.mxu0 %v2596
        %4626 = vmatpush.bf16.msra.mxu0 %v2592
        %4627 = vmatpush.bf16.msra.mxu0 %v2588
        %4628 = vmatpush.bf16.msra.mxu0 %v2584
        %4629 = vmatpush.bf16.msra.mxu0 %v2580
        %4630 = vmatpush.bf16.msra.mxu0 %v2576
        %4631 = vmatpush.bf16.msra.mxu0 %v2572
        %4632 = vmatmul.bf16.gmra.mxu0 %v805
        %v4633 = vpop.f32.mrf.mxu0
        %v4634 = vadd.f32 %v4620, %v4633
        %v4635 = vpop.f32.mrf.mxu0
        %v4636 = vadd.f32 %v4622, %v4635
        %4637 = vdwg.mxu0
        %4638 = vmatpush.bf16.msra.mxu0 %v2632
        %4639 = vmatpush.bf16.msra.mxu0 %v2628
        %4640 = vmatpush.bf16.msra.mxu0 %v2624
        %4641 = vmatpush.bf16.msra.mxu0 %v2620
        %4642 = vmatpush.bf16.msra.mxu0 %v2616
        %4643 = vmatpush.bf16.msra.mxu0 %v2612
        %4644 = vmatpush.bf16.msra.mxu0 %v2608
        %4645 = vmatpush.bf16.msra.mxu0 %v2604
        %4646 = vmatmul.bf16.gmra.mxu0 %v806
        %v4647 = vpop.f32.mrf.mxu0
        %v4648 = vadd.f32 %v4634, %v4647
        %v4649 = vpop.f32.mrf.mxu0
        %v4650 = vadd.f32 %v4636, %v4649
        %4651 = vdwg.mxu0
        %4652 = vmatpush.bf16.msra.mxu0 %v2664
        %4653 = vmatpush.bf16.msra.mxu0 %v2660
        %4654 = vmatpush.bf16.msra.mxu0 %v2656
        %4655 = vmatpush.bf16.msra.mxu0 %v2652
        %4656 = vmatpush.bf16.msra.mxu0 %v2648
        %4657 = vmatpush.bf16.msra.mxu0 %v2644
        %4658 = vmatpush.bf16.msra.mxu0 %v2640
        %4659 = vmatpush.bf16.msra.mxu0 %v2636
        %4660 = vmatmul.bf16.gmra.mxu0 %v4058
        %v4661 = vpop.f32.mrf.mxu0
        %v4662 = vadd.f32 %v4648, %v4661
        %v4663 = vpop.f32.mrf.mxu0
        %v4664 = vadd.f32 %v4650, %v4663
        %4665 = vdwg.mxu0
        %4666 = vmatpush.bf16.msra.mxu0 %v2696
        %4667 = vmatpush.bf16.msra.mxu0 %v2692
        %4668 = vmatpush.bf16.msra.mxu0 %v2688
        %4669 = vmatpush.bf16.msra.mxu0 %v2684
        %4670 = vmatpush.bf16.msra.mxu0 %v2680
        %4671 = vmatpush.bf16.msra.mxu0 %v2676
        %4672 = vmatpush.bf16.msra.mxu0 %v2672
        %4673 = vmatpush.bf16.msra.mxu0 %v2668
        %4674 = vmatmul.bf16.gmra.mxu0 %v4059
        %v4675 = vpop.f32.mrf.mxu0
        %v4676 = vadd.f32 %v4662, %v4675
        %v4677 = vpop.f32.mrf.mxu0
        %v4678 = vadd.f32 %v4664, %v4677
        %4679 = vdwg.mxu0
        %4680 = vmatpush.bf16.msra.mxu0 %v2728
        %4681 = vmatpush.bf16.msra.mxu0 %v2724
        %4682 = vmatpush.bf16.msra.mxu0 %v2720
        %4683 = vmatpush.bf16.msra.mxu0 %v2716
        %4684 = vmatpush.bf16.msra.mxu0 %v2712
        %4685 = vmatpush.bf16.msra.mxu0 %v2708
        %4686 = vmatpush.bf16.msra.mxu0 %v2704
        %4687 = vmatpush.bf16.msra.mxu0 %v2700
        %4688 = vmatmul.bf16.gmra.mxu0 %v4060
        %v4689 = vpop.f32.mrf.mxu0
        %v4690 = vadd.f32 %v4676, %v4689
        %v4691 = vpop.f32.mrf.mxu0
        %v4692 = vadd.f32 %v4678, %v4691
        %4693 = vdwg.mxu0
        %4694 = vmatpush.bf16.msra.mxu0 %v2281
        %4695 = vmatpush.bf16.msra.mxu0 %v2277
        %4696 = vmatpush.bf16.msra.mxu0 %v2273
        %4697 = vmatpush.bf16.msra.mxu0 %v2269
        %4698 = vmatpush.bf16.msra.mxu0 %v2265
        %4699 = vmatpush.bf16.msra.mxu0 %v2261
        %4700 = vmatpush.bf16.msra.mxu0 %v2257
        %4701 = vmatpush.bf16.msra.mxu0 %v2253
        %4702 = vmatmul.bf16.gmra.mxu0 %v726
        %v4703 = vpop.f32.mrf.mxu0
        %v4704 = vadd.f32 0.0, %v4703
        %v4705 = vpop.f32.mrf.mxu0
        %v4706 = vadd.f32 0.0, %v4705
        %4707 = vdwg.mxu0
        %4708 = vmatpush.bf16.msra.mxu0 %v2313
        %4709 = vmatpush.bf16.msra.mxu0 %v2309
        %4710 = vmatpush.bf16.msra.mxu0 %v2305
        %4711 = vmatpush.bf16.msra.mxu0 %v2301
        %4712 = vmatpush.bf16.msra.mxu0 %v2297
        %4713 = vmatpush.bf16.msra.mxu0 %v2293
        %4714 = vmatpush.bf16.msra.mxu0 %v2289
        %4715 = vmatpush.bf16.msra.mxu0 %v2285
        %4716 = vmatmul.bf16.gmra.mxu0 %v727
        %v4717 = vpop.f32.mrf.mxu0
        %v4718 = vadd.f32 %v4704, %v4717
        %v4719 = vpop.f32.mrf.mxu0
        %v4720 = vadd.f32 %v4706, %v4719
        %4721 = vdwg.mxu0
        %4722 = vmatpush.bf16.msra.mxu0 %v2345
        %4723 = vmatpush.bf16.msra.mxu0 %v2341
        %4724 = vmatpush.bf16.msra.mxu0 %v2337
        %4725 = vmatpush.bf16.msra.mxu0 %v2333
        %4726 = vmatpush.bf16.msra.mxu0 %v2329
        %4727 = vmatpush.bf16.msra.mxu0 %v2325
        %4728 = vmatpush.bf16.msra.mxu0 %v2321
        %4729 = vmatpush.bf16.msra.mxu0 %v2317
        %4730 = vmatmul.bf16.gmra.mxu0 %v728
        %v4731 = vpop.f32.mrf.mxu0
        %v4732 = vadd.f32 %v4718, %v4731
        %v4733 = vpop.f32.mrf.mxu0
        %v4734 = vadd.f32 %v4720, %v4733
        %4735 = vdwg.mxu0
        %4736 = vmatpush.bf16.msra.mxu0 %v2377
        %4737 = vmatpush.bf16.msra.mxu0 %v2373
        %4738 = vmatpush.bf16.msra.mxu0 %v2369
        %4739 = vmatpush.bf16.msra.mxu0 %v2365
        %4740 = vmatpush.bf16.msra.mxu0 %v2361
        %4741 = vmatpush.bf16.msra.mxu0 %v2357
        %4742 = vmatpush.bf16.msra.mxu0 %v2353
        %4743 = vmatpush.bf16.msra.mxu0 %v2349
        %4744 = vmatmul.bf16.gmra.mxu0 %v746
        %v4745 = vpop.f32.mrf.mxu0
        %v4746 = vadd.f32 %v4732, %v4745
        %v4747 = vpop.f32.mrf.mxu0
        %v4748 = vadd.f32 %v4734, %v4747
        %4749 = vdwg.mxu0
        %4750 = vmatpush.bf16.msra.mxu0 %v2409
        %4751 = vmatpush.bf16.msra.mxu0 %v2405
        %4752 = vmatpush.bf16.msra.mxu0 %v2401
        %4753 = vmatpush.bf16.msra.mxu0 %v2397
        %4754 = vmatpush.bf16.msra.mxu0 %v2393
        %4755 = vmatpush.bf16.msra.mxu0 %v2389
        %4756 = vmatpush.bf16.msra.mxu0 %v2385
        %4757 = vmatpush.bf16.msra.mxu0 %v2381
        %4758 = vmatmul.bf16.gmra.mxu0 %v753
        %v4759 = vpop.f32.mrf.mxu0
        %v4760 = vadd.f32 %v4746, %v4759
        %v4761 = vpop.f32.mrf.mxu0
        %v4762 = vadd.f32 %v4748, %v4761
        %4763 = vdwg.mxu0
        %4764 = vmatpush.bf16.msra.mxu0 %v2441
        %4765 = vmatpush.bf16.msra.mxu0 %v2437
        %4766 = vmatpush.bf16.msra.mxu0 %v2433
        %4767 = vmatpush.bf16.msra.mxu0 %v2429
        %4768 = vmatpush.bf16.msra.mxu0 %v2425
        %4769 = vmatpush.bf16.msra.mxu0 %v2421
        %4770 = vmatpush.bf16.msra.mxu0 %v2417
        %4771 = vmatpush.bf16.msra.mxu0 %v2413
        %4772 = vmatmul.bf16.gmra.mxu0 %v760
        %v4773 = vpop.f32.mrf.mxu0
        %v4774 = vadd.f32 %v4760, %v4773
        %v4775 = vpop.f32.mrf.mxu0
        %v4776 = vadd.f32 %v4762, %v4775
        %4777 = vdwg.mxu0
        %4778 = vmatpush.bf16.msra.mxu0 %v2473
        %4779 = vmatpush.bf16.msra.mxu0 %v2469
        %4780 = vmatpush.bf16.msra.mxu0 %v2465
        %4781 = vmatpush.bf16.msra.mxu0 %v2461
        %4782 = vmatpush.bf16.msra.mxu0 %v2457
        %4783 = vmatpush.bf16.msra.mxu0 %v2453
        %4784 = vmatpush.bf16.msra.mxu0 %v2449
        %4785 = vmatpush.bf16.msra.mxu0 %v2445
        %4786 = vmatmul.bf16.gmra.mxu0 %v778
        %v4787 = vpop.f32.mrf.mxu0
        %v4788 = vadd.f32 %v4774, %v4787
        %v4789 = vpop.f32.mrf.mxu0
        %v4790 = vadd.f32 %v4776, %v4789
        %4791 = vdwg.mxu0
        %4792 = vmatpush.bf16.msra.mxu0 %v2505
        %4793 = vmatpush.bf16.msra.mxu0 %v2501
        %4794 = vmatpush.bf16.msra.mxu0 %v2497
        %4795 = vmatpush.bf16.msra.mxu0 %v2493
        %4796 = vmatpush.bf16.msra.mxu0 %v2489
        %4797 = vmatpush.bf16.msra.mxu0 %v2485
        %4798 = vmatpush.bf16.msra.mxu0 %v2481
        %4799 = vmatpush.bf16.msra.mxu0 %v2477
        %4800 = vmatmul.bf16.gmra.mxu0 %v785
        %v4801 = vpop.f32.mrf.mxu0
        %v4802 = vadd.f32 %v4788, %v4801
        %v4803 = vpop.f32.mrf.mxu0
        %v4804 = vadd.f32 %v4790, %v4803
        %4805 = vdwg.mxu0
        %4806 = vmatpush.bf16.msra.mxu0 %v2537
        %4807 = vmatpush.bf16.msra.mxu0 %v2533
        %4808 = vmatpush.bf16.msra.mxu0 %v2529
        %4809 = vmatpush.bf16.msra.mxu0 %v2525
        %4810 = vmatpush.bf16.msra.mxu0 %v2521
        %4811 = vmatpush.bf16.msra.mxu0 %v2517
        %4812 = vmatpush.bf16.msra.mxu0 %v2513
        %4813 = vmatpush.bf16.msra.mxu0 %v2509
        %4814 = vmatmul.bf16.gmra.mxu0 %v792
        %v4815 = vpop.f32.mrf.mxu0
        %v4816 = vadd.f32 %v4802, %v4815
        %v4817 = vpop.f32.mrf.mxu0
        %v4818 = vadd.f32 %v4804, %v4817
        %4819 = vdwg.mxu0
        %4820 = vmatpush.bf16.msra.mxu0 %v2569
        %4821 = vmatpush.bf16.msra.mxu0 %v2565
        %4822 = vmatpush.bf16.msra.mxu0 %v2561
        %4823 = vmatpush.bf16.msra.mxu0 %v2557
        %4824 = vmatpush.bf16.msra.mxu0 %v2553
        %4825 = vmatpush.bf16.msra.mxu0 %v2549
        %4826 = vmatpush.bf16.msra.mxu0 %v2545
        %4827 = vmatpush.bf16.msra.mxu0 %v2541
        %4828 = vmatmul.bf16.gmra.mxu0 %v804
        %v4829 = vpop.f32.mrf.mxu0
        %v4830 = vadd.f32 %v4816, %v4829
        %v4831 = vpop.f32.mrf.mxu0
        %v4832 = vadd.f32 %v4818, %v4831
        %4833 = vdwg.mxu0
        %4834 = vmatpush.bf16.msra.mxu0 %v2601
        %4835 = vmatpush.bf16.msra.mxu0 %v2597
        %4836 = vmatpush.bf16.msra.mxu0 %v2593
        %4837 = vmatpush.bf16.msra.mxu0 %v2589
        %4838 = vmatpush.bf16.msra.mxu0 %v2585
        %4839 = vmatpush.bf16.msra.mxu0 %v2581
        %4840 = vmatpush.bf16.msra.mxu0 %v2577
        %4841 = vmatpush.bf16.msra.mxu0 %v2573
        %4842 = vmatmul.bf16.gmra.mxu0 %v805
        %v4843 = vpop.f32.mrf.mxu0
        %v4844 = vadd.f32 %v4830, %v4843
        %v4845 = vpop.f32.mrf.mxu0
        %v4846 = vadd.f32 %v4832, %v4845
        %4847 = vdwg.mxu0
        %4848 = vmatpush.bf16.msra.mxu0 %v2633
        %4849 = vmatpush.bf16.msra.mxu0 %v2629
        %4850 = vmatpush.bf16.msra.mxu0 %v2625
        %4851 = vmatpush.bf16.msra.mxu0 %v2621
        %4852 = vmatpush.bf16.msra.mxu0 %v2617
        %4853 = vmatpush.bf16.msra.mxu0 %v2613
        %4854 = vmatpush.bf16.msra.mxu0 %v2609
        %4855 = vmatpush.bf16.msra.mxu0 %v2605
        %4856 = vmatmul.bf16.gmra.mxu0 %v806
        %v4857 = vpop.f32.mrf.mxu0
        %v4858 = vadd.f32 %v4844, %v4857
        %v4859 = vpop.f32.mrf.mxu0
        %v4860 = vadd.f32 %v4846, %v4859
        %4861 = vdwg.mxu0
        %4862 = vmatpush.bf16.msra.mxu0 %v2665
        %4863 = vmatpush.bf16.msra.mxu0 %v2661
        %4864 = vmatpush.bf16.msra.mxu0 %v2657
        %4865 = vmatpush.bf16.msra.mxu0 %v2653
        %4866 = vmatpush.bf16.msra.mxu0 %v2649
        %4867 = vmatpush.bf16.msra.mxu0 %v2645
        %4868 = vmatpush.bf16.msra.mxu0 %v2641
        %4869 = vmatpush.bf16.msra.mxu0 %v2637
        %4870 = vmatmul.bf16.gmra.mxu0 %v4058
        %v4871 = vpop.f32.mrf.mxu0
        %v4872 = vadd.f32 %v4858, %v4871
        %v4873 = vpop.f32.mrf.mxu0
        %v4874 = vadd.f32 %v4860, %v4873
        %4875 = vdwg.mxu0
        %4876 = vmatpush.bf16.msra.mxu0 %v2697
        %4877 = vmatpush.bf16.msra.mxu0 %v2693
        %4878 = vmatpush.bf16.msra.mxu0 %v2689
        %4879 = vmatpush.bf16.msra.mxu0 %v2685
        %4880 = vmatpush.bf16.msra.mxu0 %v2681
        %4881 = vmatpush.bf16.msra.mxu0 %v2677
        %4882 = vmatpush.bf16.msra.mxu0 %v2673
        %4883 = vmatpush.bf16.msra.mxu0 %v2669
        %4884 = vmatmul.bf16.gmra.mxu0 %v4059
        %v4885 = vpop.f32.mrf.mxu0
        %v4886 = vadd.f32 %v4872, %v4885
        %v4887 = vpop.f32.mrf.mxu0
        %v4888 = vadd.f32 %v4874, %v4887
        %4889 = vdwg.mxu0
        %4890 = vmatpush.bf16.msra.mxu0 %v2729
        %4891 = vmatpush.bf16.msra.mxu0 %v2725
        %4892 = vmatpush.bf16.msra.mxu0 %v2721
        %4893 = vmatpush.bf16.msra.mxu0 %v2717
        %4894 = vmatpush.bf16.msra.mxu0 %v2713
        %4895 = vmatpush.bf16.msra.mxu0 %v2709
        %4896 = vmatpush.bf16.msra.mxu0 %v2705
        %4897 = vmatpush.bf16.msra.mxu0 %v2701
        %4898 = vmatmul.bf16.gmra.mxu0 %v4060
        %v4899 = vpop.f32.mrf.mxu0
        %v4900 = vadd.f32 %v4886, %v4899
        %v4901 = vpop.f32.mrf.mxu0
        %v4902 = vadd.f32 %v4888, %v4901
        %4903 = vdwg.mxu0
        %v4904 = vmax.f32 %v3416, %v4270
        %v4905 = vmax.f32 %v3626, %v4480
        %v4906 = vmax.f32 %v3836, %v4690
        %v4907 = vmax.f32 %v4046, %v4900
        %v4908 = vmax.f32 %v3418, %v4272
        %v4909 = vmax.f32 %v3628, %v4482
        %v4910 = vmax.f32 %v3838, %v4692
        %v4911 = vmax.f32 %v4048, %v4902
        %v4912 = vmax.f32 %v4904, %v4906
        %v4913 = vmax.f32 %v4905, %v4907
        %v4914 = vmax.f32 %v4908, %v4910
        %v4915 = vmax.f32 %v4909, %v4911
        %v4917 = vperm.slane %v683, 0
        %v4918 = vperm.slane %v683, 1
        %v4921 = vadd.f32 %v4912, %v4917
        %v4922 = vadd.f32 %v4913, %v4918
        %v4923 = vadd.f32 %v4914, %v4917
        %v4924 = vadd.f32 %v4915, %v4918
        %v4925 = vmax.f32 %v4921, 0.0
        %v4926 = vmax.f32 %v4922, 0.0
        %v4927 = vmax.f32 %v4923, 0.0
        %v4928 = vmax.f32 %v4924, 0.0
        %v4929 = vpack.c.bf16 %v4926, %v4925
        %v4930 = vpack.c.bf16 %v4928, %v4927
        %4931 = vst [vmem:[%s202] sm:$0xff] %v4929
        %4932 = vst [vmem:[%s202 + $0x8] sm:$0x33] %v4930
        %p4933 = scmp.lt.s32.totalorder %s16, 1
        %s4934 = scalar_select %p4933, %s16, 1
        %s4935 = smul.addr %s4934, 4
        %s4936 = smul.addr %s4935, 4
        %s4937 = scalar_lea.vmem %s3, %s4936
        // Predicated region
        $region41: #{_lambda_.5} parent=31 // pred_check
          %p4938 = pneg %p102
        $region42: #{_lambda_.5} parent=31 // pred_check_branch
          %4940 = sbr.rel (%p4938) target = $region44
        $region43: #{_lambda_.5} parent=31 // pred_region
          _
        $region44: #{_lambda_.5} parent=31 // pred_fallthru
          _
      $region32: #{_lambda_.5} parent=5 // pred_fallthru
        _
      %p4941 = scmp.le.s32.totalorder 2, %s11
      // Predicated region
      $region45: #{_lambda_.5} parent=5 // pred_check
        %p4942 = pneg %p4941
      $region46: #{_lambda_.5} parent=5 // pred_check_branch
        %4944 = sbr.rel (%p4942) target = $region48
      $region47: #{_lambda_.5} parent=5 // pred_region
        %s4945 = ssub.s32 %s11, 2
        // Predicated region
        $region49: #{_lambda_.5} parent=47 // pred_check
          %p4946 = pneg %p108
        $region50: #{_lambda_.5} parent=47 // pred_check_branch
          %4948 = sbr.rel (%p4946) target = $region52
        $region51: #{_lambda_.5} parent=47 // pred_region
          %p4949 = scmp.lt.s32.totalorder %s17, 1
          %s4950 = scalar_select %p4949, %s17, 1
          %s4951 = smul.addr %s4950, 4
          %s4952 = smul.addr %s4951, 4
          %s4953 = scalar_lea.vmem %s3, %s4952
        $region52: #{_lambda_.5} parent=47 // pred_fallthru
          _
      $region48: #{_lambda_.5} parent=5 // pred_fallthru
        _
    $region6: #{_lambda_.5} parent=1 // loop_footer
      %s15 = sadd.s32 1, %s11
    $region7: #{_lambda_.5} parent=1 // loop_footer_branch
      %10 = sbr.rel target = $region3
    $region8: #{_lambda_.5} parent=1 // loop_exit
      _
    %4954 = vsyncpa [#allocation3], 1
    %s4955 = scalar_lea.sflag [#allocation3], 1
    %4956 = vsyncpa %s4955, 1
    %4957 = vsyncpa [#allocation5], 1

// kernel: _lambda_.4
$region0: #{_lambda_.4}
  #allocation0 [shape = 'u32[]', space=smem, size = 0x4, offset = 0x4, fixed_abs, tag = 'smem constant byte address 0x4 - core index']
  #allocation1 [shape = 'u32[72,128]{1,0:T(1,128)}', space=vmem, size = 0x9000, scoped, tag = 'internal scratch']
  %s0 = inlined_call_operand.vmem [shape: bf16[2,32,256], index: 0, kind: input, shape index: {}]
  %s1 = inlined_call_operand.hbm [shape: bf16[1024,768], index: 1, kind: input, shape index: {}]
  %s2 = inlined_call_operand.hbm [shape: f32[1,384], index: 2, kind: input, shape index: {}]
  %s3 = inlined_call_operand.vmem [shape: bf16[2,28,384], index: 3, kind: output, shape index: {}]
  %s4 = sld [smem:[#allocation0]]
  $region53: #{_lambda_.4} parent=0
    _
  %s6 = ssub.s32 1, %s4
  %s7 = scalar_select 0, %s6, %s4
  $region1: #{_lambda_.4} parent=0
    #allocation2 [shape = 'u8[1572864]{0}', space=vmem, size = 0x180000, scoped, tag = 'input window, operand 1, single buffered']
    #allocation3 [shape = 's32[2]{0}', space=sflag, size = 0x8, scoped, tag = 'scoped memory for _lambda_.4']
    #allocation4 [shape = 'u8[1536]{0}', space=vmem, size = 0x800, scoped, tag = 'input window, operand 2, single buffered']
    #allocation5 [shape = 's32[1]{0}', space=sflag, size = 0x4, scoped, tag = 'scoped memory for _lambda_.4']
    %8 = vsyncpa [#allocation3], 0
    %9 = vsyncpa [#allocation5], 0
    loop: start=0, step=1, limit=4
    $region2: #{_lambda_.4} parent=1 // loop_pre_header
      _
    $region3: #{_lambda_.4} parent=1 // loop_header
      %s11 = sphi 0, %s15
      %p12 = scmp.ge.s32.totalorder %s11, 4
      %s21 = sphi 0, %s23
      %s24 = sphi 0, %s21
      %s25 = sphi 0, %s24
      %s41 = sphi 0, %s25
      %s45 = sphi 0, %s45
      %s47 = sphi 0, %s45
      %s48 = sphi 0, %s47
      %s62 = sphi 0, %s48
      %s66 = sphi 0, %s66
      %s68 = sphi 0, %s66
      %s69 = sphi 0, %s68
      %s83 = sphi 0, %s69
      %s89 = sphi 0, %s91
      %s92 = sphi 0, %s89
      %s93 = sphi 0, %s92
      %s109 = sphi 0, %s93
    $region4: #{_lambda_.4} parent=1 // loop_header_branch
      %14 = sbr.rel (%p12) target = $region8
    $region5: #{_lambda_.4} parent=1 // loop_body
      %s16 = ssub.s32 %s11, 1
      %s17 = ssub.s32 %s11, 2
      %s18 = sadd.s32 %s11, 1
      %s19 = ssub.s32 %s11, %s18
      %p20 = scmp.eq.s32.totalorder %s19, 0
      %s22 = sadd.s32 %s21, 1
      %s23 = scalar_select %p20, %s21, %s22
      %p26 = pneg %p20
      %p27 = scmp.eq.s32.totalorder %s11, 1
      %p28 = por %p26, %p27
      %p29 = scmp.ne.s32.totalorder %s21, %s24
      %p30 = scmp.eq.s32.totalorder %s11, 0
      %p31 = por %p29, %p30
      %p32 = scmp.ne.s32.totalorder %s21, %s24
      %p33 = scmp.eq.s32.totalorder %s16, 1
      %p34 = por %p32, %p33
      %p35 = scmp.ne.s32.totalorder %s24, %s25
      %p36 = scmp.eq.s32.totalorder %s16, 0
      %p37 = por %p35, %p36
      %p38 = scmp.ne.s32.totalorder %s24, %s25
      %p39 = scmp.eq.s32.totalorder %s17, 1
      %p40 = por %p38, %p39
      %p42 = scmp.ne.s32.totalorder %s25, %s41
      %p43 = scmp.eq.s32.totalorder %s17, 0
      %p44 = por %p42, %p43
      %s46 = sadd.s32 %s45, 1
      %p49 = scmp.eq.s32.totalorder %s11, 1
      %p50 = scmp.ne.s32.totalorder %s45, %s47
      %p51 = scmp.eq.s32.totalorder %s11, 0
      %p52 = por %p50, %p51
      %p53 = scmp.ne.s32.totalorder %s45, %s47
      %p54 = scmp.eq.s32.totalorder %s16, 1
      %p55 = por %p53, %p54
      %p56 = scmp.ne.s32.totalorder %s47, %s48
      %p57 = scmp.eq.s32.totalorder %s16, 0
      %p58 = por %p56, %p57
      %p59 = scmp.ne.s32.totalorder %s47, %s48
      %p60 = scmp.eq.s32.totalorder %s17, 1
      %p61 = por %p59, %p60
      %p63 = scmp.ne.s32.totalorder %s48, %s62
      %p64 = scmp.eq.s32.totalorder %s17, 0
      %p65 = por %p63, %p64
      %s67 = sadd.s32 %s66, 1
      %p70 = scmp.eq.s32.totalorder %s11, 1
      %p71 = scmp.ne.s32.totalorder %s66, %s68
      %p72 = scmp.eq.s32.totalorder %s11, 0
      %p73 = por %p71, %p72
      %p74 = scmp.ne.s32.totalorder %s66, %s68
      %p75 = scmp.eq.s32.totalorder %s16, 1
      %p76 = por %p74, %p75
      %p77 = scmp.ne.s32.totalorder %s68, %s69
      %p78 = scmp.eq.s32.totalorder %s16, 0
      %p79 = por %p77, %p78
      %p80 = scmp.ne.s32.totalorder %s68, %s69
      %p81 = scmp.eq.s32.totalorder %s17, 1
      %p82 = por %p80, %p81
      %p84 = scmp.ne.s32.totalorder %s69, %s83
      %p85 = scmp.eq.s32.totalorder %s17, 0
      %p86 = por %p84, %p85
      %s87 = ssub.s32 %s11, %s18
      %p88 = scmp.eq.s32.totalorder %s87, 0
      %s90 = sadd.s32 %s89, 1
      %s91 = scalar_select %p88, %s89, %s90
      %p94 = pneg %p88
      %p95 = scmp.eq.s32.totalorder %s11, 1
      %p96 = por %p94, %p95
      %p97 = scmp.ne.s32.totalorder %s89, %s92
      %p98 = scmp.eq.s32.totalorder %s11, 0
      %p99 = por %p97, %p98
      %p100 = scmp.ne.s32.totalorder %s89, %s92
      %p101 = scmp.eq.s32.totalorder %s16, 1
      %p102 = por %p100, %p101
      %p103 = scmp.ne.s32.totalorder %s92, %s93
      %p104 = scmp.eq.s32.totalorder %s16, 0
      %p105 = por %p103, %p104
      %p106 = scmp.ne.s32.totalorder %s92, %s93
      %p107 = scmp.eq.s32.totalorder %s17, 1
      %p108 = por %p106, %p107
      %p110 = scmp.ne.s32.totalorder %s93, %s109
      %p111 = scmp.eq.s32.totalorder %s17, 0
      %p112 = por %p110, %p111
      %p113 = scmp.le.s32.totalorder 1, %s11
      %p114 = scmp.lt.s32.totalorder %s11, 3
      %p115 = pnand %p113, %p114
      %p116 = pneg %p115
      // Predicated region
      $region9: #{_lambda_.4} parent=5 // pred_check
        _
      $region10: #{_lambda_.4} parent=5 // pred_check_branch
        %118 = sbr.rel (%p115) target = $region12
      $region11: #{_lambda_.4} parent=5 // pred_region
        %s119 = ssub.s32 %s11, 1
        // Predicated region
        $region13: #{_lambda_.4} parent=11 // pred_check
          %p120 = pneg %p58
        $region14: #{_lambda_.4} parent=11 // pred_check_branch
          %122 = sbr.rel (%p120) target = $region16
        $region15: #{_lambda_.4} parent=11 // pred_region
          %124 = vsyncadd [#allocation3], 0
          %s125 = sshll.u32 %s1, 4
          %s126 = int_to_ptr.hbm [resolvable:$true] %s125
          %s127 = sshll.u32 [#allocation2], 4
          %s128 = int_to_ptr.vmem [resolvable:$true] %s127
          %133 = dma.hbm_to_vmem [thread:$0]  %s126, 49152, %s128, [#allocation3], 384, 384, 24
        $region16: #{_lambda_.4} parent=11 // pred_fallthru
          _
        // Predicated region
        $region17: #{_lambda_.4} parent=11 // pred_check
          %p134 = pneg %p79
        $region18: #{_lambda_.4} parent=11 // pred_check_branch
          %136 = sbr.rel (%p134) target = $region20
        $region19: #{_lambda_.4} parent=11 // pred_region
          %138 = vsyncadd [#allocation5], 0
          %s140 = sshll.u32 %s2, 4
          %s141 = int_to_ptr.hbm [resolvable:$true] %s140
          %s142 = sshll.u32 [#allocation4], 4
          %s143 = int_to_ptr.vmem [resolvable:$true] %s142
          %145 = dma.hbm_to_vmem [thread:$0]  %s141, 48, %s143, [#allocation5]
        $region20: #{_lambda_.4} parent=11 // pred_fallthru
          _
      $region12: #{_lambda_.4} parent=5 // pred_fallthru
        _
      %p146 = scmp.lt.s32.totalorder %s11, 2
      // Predicated region
      $region21: #{_lambda_.4} parent=5 // pred_check
        %p147 = pneg %p146
      $region22: #{_lambda_.4} parent=5 // pred_check_branch
        %149 = sbr.rel (%p147) target = $region24
      $region23: #{_lambda_.4} parent=5 // pred_region
        // Predicated region
        $region25: #{_lambda_.4} parent=23 // pred_check
          %p150 = pneg %p31
        $region26: #{_lambda_.4} parent=23 // pred_check_branch
          %152 = sbr.rel (%p150) target = $region28
        $region27: #{_lambda_.4} parent=23 // pred_region
          %p153 = scmp.lt.s32.totalorder %s11, 1
          %s154 = scalar_select %p153, %s11, 1
          %s155 = smul.addr %s154, 8
          %s156 = smul.addr %s155, 4
          %s157 = scalar_lea.vmem %s0, %s156
        $region28: #{_lambda_.4} parent=23 // pred_fallthru
          _
      $region24: #{_lambda_.4} parent=5 // pred_fallthru
        _
      %p158 = scmp.le.s32.totalorder 1, %s11
      %p159 = scmp.lt.s32.totalorder %s11, 3
      %p160 = pnand %p158, %p159
      %p161 = pneg %p160
      // Predicated region
      $region29: #{_lambda_.4} parent=5 // pred_check
        _
      $region30: #{_lambda_.4} parent=5 // pred_check_branch
        %163 = sbr.rel (%p160) target = $region32
      $region31: #{_lambda_.4} parent=5 // pred_region
        %s164 = ssub.s32 %s11, 1
        // Predicated region
        $region33: #{_lambda_.4} parent=31 // pred_check
          %p165 = pneg %p58
        $region34: #{_lambda_.4} parent=31 // pred_check_branch
          %167 = sbr.rel (%p165) target = $region36
        $region35: #{_lambda_.4} parent=31 // pred_region
          %169 = dma.done [#allocation3], 49152
        $region36: #{_lambda_.4} parent=31 // pred_fallthru
          _
        // Predicated region
        $region37: #{_lambda_.4} parent=31 // pred_check
          %p170 = pneg %p79
        $region38: #{_lambda_.4} parent=31 // pred_check_branch
          %172 = sbr.rel (%p170) target = $region40
        $region39: #{_lambda_.4} parent=31 // pred_region
          %174 = dma.done [#allocation5], 48
        $region40: #{_lambda_.4} parent=31 // pred_fallthru
          _
        %p175 = scmp.lt.s32.totalorder %s16, 1
        %s176 = scalar_select %p175, %s16, 1
        %s177 = smul.addr %s176, 8
        %s178 = smul.addr %s177, 4
        %s179 = scalar_lea.vmem %s0, %s178
        %p180 = pneg %p37
        %p181 = pneg %p34
        %p182 = pneg %p58
        %p183 = pneg %p55
        %p184 = pneg %p79
        %p185 = pneg %p76
        %p186 = pneg %p105
        %p187 = pneg %p102
        %p188 = scmp.lt.s32.totalorder %s16, 1
        %s189 = scalar_select %p188, %s16, 1
        %s190 = smul.addr %s189, 12
        %s191 = smul.addr %s190, 4
        %s192 = scalar_lea.vmem %s3, %s191
        %p193 = scmp.lt.s32.totalorder %s16, 1
        %s194 = scalar_select %p193, %s16, 1
        %s195 = smul.addr %s194, 8
        %s196 = smul.addr %s195, 4
        %s197 = scalar_lea.vmem %s0, %s196
        %p198 = scmp.lt.s32.totalorder %s16, 1
        %s199 = scalar_select %p198, %s16, 1
        %s200 = smul.addr %s199, 12
        %s201 = smul.addr %s200, 4
        %s202 = scalar_lea.vmem %s3, %s201
        %v203 = vld [vmem:[#allocation2] sm:$0xff]
        %v204 = vld [vmem:[#allocation2 + $0x8] sm:$0xff]
        %v205 = vld [vmem:[#allocation2 + $0x10] sm:$0xff]
        %v206 = vld [vmem:[#allocation2 + $0x18] sm:$0xff]
        %v207 = vld [vmem:[#allocation2 + $0x20] sm:$0xff]
        %v208 = vld [vmem:[#allocation2 + $0x28] sm:$0xff]
        %v209 = vld [vmem:[#allocation2 + $0x30] sm:$0xff]
        %v210 = vld [vmem:[#allocation2 + $0x38] sm:$0xff]
        %v211 = vld [vmem:[#allocation2 + $0x40] sm:$0xff]
        %v212 = vld [vmem:[#allocation2 + $0x48] sm:$0xff]
        %v213 = vld [vmem:[#allocation2 + $0x50] sm:$0xff]
        %v214 = vld [vmem:[#allocation2 + $0x58] sm:$0xff]
        %v215 = vld [vmem:[#allocation2 + $0x60] sm:$0xff]
        %v216 = vld [vmem:[#allocation2 + $0x68] sm:$0xff]
        %v217 = vld [vmem:[#allocation2 + $0x70] sm:$0xff]
        %v218 = vld [vmem:[#allocation2 + $0x78] sm:$0xff]
        %v219 = vld [vmem:[#allocation2 + $0x80] sm:$0xff]
        %v220 = vld [vmem:[#allocation2 + $0x88] sm:$0xff]
        %v221 = vld [vmem:[#allocation2 + $0x90] sm:$0xff]
        %v222 = vld [vmem:[#allocation2 + $0x98] sm:$0xff]
        %v223 = vld [vmem:[#allocation2 + $0xa0] sm:$0xff]
        %v224 = vld [vmem:[#allocation2 + $0xa8] sm:$0xff]
        %v225 = vld [vmem:[#allocation2 + $0xb0] sm:$0xff]
        %v226 = vld [vmem:[#allocation2 + $0xb8] sm:$0xff]
        %v227 = vld [vmem:[#allocation2 + $0xc0] sm:$0xff]
        %v228 = vld [vmem:[#allocation2 + $0xc8] sm:$0xff]
        %v229 = vld [vmem:[#allocation2 + $0xd0] sm:$0xff]
        %v230 = vld [vmem:[#allocation2 + $0xd8] sm:$0xff]
        %v231 = vld [vmem:[#allocation2 + $0xe0] sm:$0xff]
        %v232 = vld [vmem:[#allocation2 + $0xe8] sm:$0xff]
        %v233 = vld [vmem:[#allocation2 + $0xf0] sm:$0xff]
        %v234 = vld [vmem:[#allocation2 + $0xf8] sm:$0xff]
        %v235 = vld [vmem:[#allocation2 + $0x100] sm:$0xff]
        %v236 = vld [vmem:[#allocation2 + $0x108] sm:$0xff]
        %v237 = vld [vmem:[#allocation2 + $0x110] sm:$0xff]
        %v238 = vld [vmem:[#allocation2 + $0x118] sm:$0xff]
        %v239 = vld [vmem:[#allocation2 + $0x120] sm:$0xff]
        %v240 = vld [vmem:[#allocation2 + $0x128] sm:$0xff]
        %v241 = vld [vmem:[#allocation2 + $0x130] sm:$0xff]
        %v242 = vld [vmem:[#allocation2 + $0x138] sm:$0xff]
        %v243 = vld [vmem:[#allocation2 + $0x140] sm:$0xff]
        %v244 = vld [vmem:[#allocation2 + $0x148] sm:$0xff]
        %v245 = vld [vmem:[#allocation2 + $0x150] sm:$0xff]
        %v246 = vld [vmem:[#allocation2 + $0x158] sm:$0xff]
        %v247 = vld [vmem:[#allocation2 + $0x160] sm:$0xff]
        %v248 = vld [vmem:[#allocation2 + $0x168] sm:$0xff]
        %v249 = vld [vmem:[#allocation2 + $0x170] sm:$0xff]
        %v250 = vld [vmem:[#allocation2 + $0x178] sm:$0xff]
        %v251 = vld [vmem:[#allocation2 + $0x180] sm:$0xff]
        %v252 = vld [vmem:[#allocation2 + $0x188] sm:$0xff]
        %v253 = vld [vmem:[#allocation2 + $0x190] sm:$0xff]
        %v254 = vld [vmem:[#allocation2 + $0x198] sm:$0xff]
        %v255 = vld [vmem:[#allocation2 + $0x1a0] sm:$0xff]
        %v256 = vld [vmem:[#allocation2 + $0x1a8] sm:$0xff]
        %v257 = vld [vmem:[#allocation2 + $0x1b0] sm:$0xff]
        %v258 = vld [vmem:[#allocation2 + $0x1b8] sm:$0xff]
        %v259 = vld [vmem:[#allocation2 + $0x1c0] sm:$0xff]
        %v260 = vld [vmem:[#allocation2 + $0x1c8] sm:$0xff]
        %v261 = vld [vmem:[#allocation2 + $0x1d0] sm:$0xff]
        %v262 = vld [vmem:[#allocation2 + $0x1d8] sm:$0xff]
        %v263 = vld [vmem:[#allocation2 + $0x1e0] sm:$0xff]
        %v264 = vld [vmem:[#allocation2 + $0x1e8] sm:$0xff]
        %v265 = vld [vmem:[#allocation2 + $0x1f0] sm:$0xff]
        %v266 = vld [vmem:[#allocation2 + $0x1f8] sm:$0xff]
        %v267 = vld [vmem:[#allocation2 + $0x200] sm:$0xff]
        %v268 = vld [vmem:[#allocation2 + $0x208] sm:$0xff]
        %v269 = vld [vmem:[#allocation2 + $0x210] sm:$0xff]
        %v270 = vld [vmem:[#allocation2 + $0x218] sm:$0xff]
        %v271 = vld [vmem:[#allocation2 + $0x220] sm:$0xff]
        %v272 = vld [vmem:[#allocation2 + $0x228] sm:$0xff]
        %v273 = vld [vmem:[#allocation2 + $0x230] sm:$0xff]
        %v274 = vld [vmem:[#allocation2 + $0x238] sm:$0xff]
        %v275 = vld [vmem:[#allocation2 + $0x240] sm:$0xff]
        %v276 = vld [vmem:[#allocation2 + $0x248] sm:$0xff]
        %v277 = vld [vmem:[#allocation2 + $0x250] sm:$0xff]
        %v278 = vld [vmem:[#allocation2 + $0x258] sm:$0xff]
        %v279 = vld [vmem:[#allocation2 + $0x260] sm:$0xff]
        %v280 = vld [vmem:[#allocation2 + $0x268] sm:$0xff]
        %v281 = vld [vmem:[#allocation2 + $0x270] sm:$0xff]
        %v282 = vld [vmem:[#allocation2 + $0x278] sm:$0xff]
        %v283 = vld [vmem:[#allocation2 + $0x280] sm:$0xff]
        %v284 = vld [vmem:[#allocation2 + $0x288] sm:$0xff]
        %v285 = vld [vmem:[#allocation2 + $0x290] sm:$0xff]
        %v286 = vld [vmem:[#allocation2 + $0x298] sm:$0xff]
        %v287 = vld [vmem:[#allocation2 + $0x2a0] sm:$0xff]
        %v288 = vld [vmem:[#allocation2 + $0x2a8] sm:$0xff]
        %v289 = vld [vmem:[#allocation2 + $0x2b0] sm:$0xff]
        %v290 = vld [vmem:[#allocation2 + $0x2b8] sm:$0xff]
        %v291 = vld [vmem:[#allocation2 + $0x2c0] sm:$0xff]
        %v292 = vld [vmem:[#allocation2 + $0x2c8] sm:$0xff]
        %v293 = vld [vmem:[#allocation2 + $0x2d0] sm:$0xff]
        %v294 = vld [vmem:[#allocation2 + $0x2d8] sm:$0xff]
        %v295 = vld [vmem:[#allocation2 + $0x2e0] sm:$0xff]
        %v296 = vld [vmem:[#allocation2 + $0x2e8] sm:$0xff]
        %v297 = vld [vmem:[#allocation2 + $0x2f0] sm:$0xff]
        %v298 = vld [vmem:[#allocation2 + $0x2f8] sm:$0xff]
        %v299 = vld [vmem:[#allocation2 + $0x300] sm:$0xff]
        %v300 = vld [vmem:[#allocation2 + $0x308] sm:$0xff]
        %v301 = vld [vmem:[#allocation2 + $0x310] sm:$0xff]
        %v302 = vld [vmem:[#allocation2 + $0x318] sm:$0xff]
        %v303 = vld [vmem:[#allocation2 + $0x320] sm:$0xff]
        %v304 = vld [vmem:[#allocation2 + $0x328] sm:$0xff]
        %v305 = vld [vmem:[#allocation2 + $0x330] sm:$0xff]
        %v306 = vld [vmem:[#allocation2 + $0x338] sm:$0xff]
        %v307 = vld [vmem:[#allocation2 + $0x340] sm:$0xff]
        %v308 = vld [vmem:[#allocation2 + $0x348] sm:$0xff]
        %v309 = vld [vmem:[#allocation2 + $0x350] sm:$0xff]
        %v310 = vld [vmem:[#allocation2 + $0x358] sm:$0xff]
        %v311 = vld [vmem:[#allocation2 + $0x360] sm:$0xff]
        %v312 = vld [vmem:[#allocation2 + $0x368] sm:$0xff]
        %v313 = vld [vmem:[#allocation2 + $0x370] sm:$0xff]
        %v314 = vld [vmem:[#allocation2 + $0x378] sm:$0xff]
        %v315 = vld [vmem:[#allocation2 + $0x380] sm:$0xff]
        %v316 = vld [vmem:[#allocation2 + $0x388] sm:$0xff]
        %v317 = vld [vmem:[#allocation2 + $0x390] sm:$0xff]
        %v318 = vld [vmem:[#allocation2 + $0x398] sm:$0xff]
        %v319 = vld [vmem:[#allocation2 + $0x3a0] sm:$0xff]
        %v320 = vld [vmem:[#allocation2 + $0x3a8] sm:$0xff]
        %v321 = vld [vmem:[#allocation2 + $0x3b0] sm:$0xff]
        %v322 = vld [vmem:[#allocation2 + $0x3b8] sm:$0xff]
        %v323 = vld [vmem:[#allocation2 + $0x3c0] sm:$0xff]
        %v324 = vld [vmem:[#allocation2 + $0x3c8] sm:$0xff]
        %v325 = vld [vmem:[#allocation2 + $0x3d0] sm:$0xff]
        %v326 = vld [vmem:[#allocation2 + $0x3d8] sm:$0xff]
        %v327 = vld [vmem:[#allocation2 + $0x3e0] sm:$0xff]
        %v328 = vld [vmem:[#allocation2 + $0x3e8] sm:$0xff]
        %v329 = vld [vmem:[#allocation2 + $0x3f0] sm:$0xff]
        %v330 = vld [vmem:[#allocation2 + $0x3f8] sm:$0xff]
        %v331 = vld [vmem:[#allocation2 + $0x400] sm:$0xff]
        %v332 = vld [vmem:[#allocation2 + $0x408] sm:$0xff]
        %v333 = vld [vmem:[#allocation2 + $0x410] sm:$0xff]
        %v334 = vld [vmem:[#allocation2 + $0x418] sm:$0xff]
        %v335 = vld [vmem:[#allocation2 + $0x420] sm:$0xff]
        %v336 = vld [vmem:[#allocation2 + $0x428] sm:$0xff]
        %v337 = vld [vmem:[#allocation2 + $0x430] sm:$0xff]
        %v338 = vld [vmem:[#allocation2 + $0x438] sm:$0xff]
        %v339 = vld [vmem:[#allocation2 + $0x440] sm:$0xff]
        %v340 = vld [vmem:[#allocation2 + $0x448] sm:$0xff]
        %v341 = vld [vmem:[#allocation2 + $0x450] sm:$0xff]
        %v342 = vld [vmem:[#allocation2 + $0x458] sm:$0xff]
        %v343 = vld [vmem:[#allocation2 + $0x460] sm:$0xff]
        %v344 = vld [vmem:[#allocation2 + $0x468] sm:$0xff]
        %v345 = vld [vmem:[#allocation2 + $0x470] sm:$0xff]
        %v346 = vld [vmem:[#allocation2 + $0x478] sm:$0xff]
        %v347 = vld [vmem:[#allocation2 + $0x480] sm:$0xff]
        %v348 = vld [vmem:[#allocation2 + $0x488] sm:$0xff]
        %v349 = vld [vmem:[#allocation2 + $0x490] sm:$0xff]
        %v350 = vld [vmem:[#allocation2 + $0x498] sm:$0xff]
        %v351 = vld [vmem:[#allocation2 + $0x4a0] sm:$0xff]
        %v352 = vld [vmem:[#allocation2 + $0x4a8] sm:$0xff]
        %v353 = vld [vmem:[#allocation2 + $0x4b0] sm:$0xff]
        %v354 = vld [vmem:[#allocation2 + $0x4b8] sm:$0xff]
        %v355 = vld [vmem:[#allocation2 + $0x4c0] sm:$0xff]
        %v356 = vld [vmem:[#allocation2 + $0x4c8] sm:$0xff]
        %v357 = vld [vmem:[#allocation2 + $0x4d0] sm:$0xff]
        %v358 = vld [vmem:[#allocation2 + $0x4d8] sm:$0xff]
        %v359 = vld [vmem:[#allocation2 + $0x4e0] sm:$0xff]
        %v360 = vld [vmem:[#allocation2 + $0x4e8] sm:$0xff]
        %v361 = vld [vmem:[#allocation2 + $0x4f0] sm:$0xff]
        %v362 = vld [vmem:[#allocation2 + $0x4f8] sm:$0xff]
        %v363 = vld [vmem:[#allocation2 + $0x500] sm:$0xff]
        %v364 = vld [vmem:[#allocation2 + $0x508] sm:$0xff]
        %v365 = vld [vmem:[#allocation2 + $0x510] sm:$0xff]
        %v366 = vld [vmem:[#allocation2 + $0x518] sm:$0xff]
        %v367 = vld [vmem:[#allocation2 + $0x520] sm:$0xff]
        %v368 = vld [vmem:[#allocation2 + $0x528] sm:$0xff]
        %v369 = vld [vmem:[#allocation2 + $0x530] sm:$0xff]
        %v370 = vld [vmem:[#allocation2 + $0x538] sm:$0xff]
        %v371 = vld [vmem:[#allocation2 + $0x540] sm:$0xff]
        %v372 = vld [vmem:[#allocation2 + $0x548] sm:$0xff]
        %v373 = vld [vmem:[#allocation2 + $0x550] sm:$0xff]
        %v374 = vld [vmem:[#allocation2 + $0x558] sm:$0xff]
        %v375 = vld [vmem:[#allocation2 + $0x560] sm:$0xff]
        %v376 = vld [vmem:[#allocation2 + $0x568] sm:$0xff]
        %v377 = vld [vmem:[#allocation2 + $0x570] sm:$0xff]
        %v378 = vld [vmem:[#allocation2 + $0x578] sm:$0xff]
        %v379 = vld [vmem:[#allocation2 + $0x580] sm:$0xff]
        %v380 = vld [vmem:[#allocation2 + $0x588] sm:$0xff]
        %v381 = vld [vmem:[#allocation2 + $0x590] sm:$0xff]
        %v382 = vld [vmem:[#allocation2 + $0x598] sm:$0xff]
        %v383 = vld [vmem:[#allocation2 + $0x5a0] sm:$0xff]
        %v384 = vld [vmem:[#allocation2 + $0x5a8] sm:$0xff]
        %v385 = vld [vmem:[#allocation2 + $0x5b0] sm:$0xff]
        %v386 = vld [vmem:[#allocation2 + $0x5b8] sm:$0xff]
        %v387 = vld [vmem:[#allocation2 + $0x5c0] sm:$0xff]
        %v388 = vld [vmem:[#allocation2 + $0x5c8] sm:$0xff]
        %v389 = vld [vmem:[#allocation2 + $0x5d0] sm:$0xff]
        %v390 = vld [vmem:[#allocation2 + $0x5d8] sm:$0xff]
        %v391 = vld [vmem:[#allocation2 + $0x5e0] sm:$0xff]
        %v392 = vld [vmem:[#allocation2 + $0x5e8] sm:$0xff]
        %v393 = vld [vmem:[#allocation2 + $0x5f0] sm:$0xff]
        %v394 = vld [vmem:[#allocation2 + $0x5f8] sm:$0xff]
        %v395 = vld [vmem:[#allocation2 + $0x600] sm:$0xff]
        %v396 = vld [vmem:[#allocation2 + $0x608] sm:$0xff]
        %v397 = vld [vmem:[#allocation2 + $0x610] sm:$0xff]
        %v398 = vld [vmem:[#allocation2 + $0x618] sm:$0xff]
        %v399 = vld [vmem:[#allocation2 + $0x620] sm:$0xff]
        %v400 = vld [vmem:[#allocation2 + $0x628] sm:$0xff]
        %v401 = vld [vmem:[#allocation2 + $0x630] sm:$0xff]
        %v402 = vld [vmem:[#allocation2 + $0x638] sm:$0xff]
        %v403 = vld [vmem:[#allocation2 + $0x640] sm:$0xff]
        %v404 = vld [vmem:[#allocation2 + $0x648] sm:$0xff]
        %v405 = vld [vmem:[#allocation2 + $0x650] sm:$0xff]
        %v406 = vld [vmem:[#allocation2 + $0x658] sm:$0xff]
        %v407 = vld [vmem:[#allocation2 + $0x660] sm:$0xff]
        %v408 = vld [vmem:[#allocation2 + $0x668] sm:$0xff]
        %v409 = vld [vmem:[#allocation2 + $0x670] sm:$0xff]
        %v410 = vld [vmem:[#allocation2 + $0x678] sm:$0xff]
        %v411 = vld [vmem:[#allocation2 + $0x680] sm:$0xff]
        %v412 = vld [vmem:[#allocation2 + $0x688] sm:$0xff]
        %v413 = vld [vmem:[#allocation2 + $0x690] sm:$0xff]
        %v414 = vld [vmem:[#allocation2 + $0x698] sm:$0xff]
        %v415 = vld [vmem:[#allocation2 + $0x6a0] sm:$0xff]
        %v416 = vld [vmem:[#allocation2 + $0x6a8] sm:$0xff]
        %v417 = vld [vmem:[#allocation2 + $0x6b0] sm:$0xff]
        %v418 = vld [vmem:[#allocation2 + $0x6b8] sm:$0xff]
        %v419 = vld [vmem:[#allocation2 + $0x6c0] sm:$0xff]
        %v420 = vld [vmem:[#allocation2 + $0x6c8] sm:$0xff]
        %v421 = vld [vmem:[#allocation2 + $0x6d0] sm:$0xff]
        %v422 = vld [vmem:[#allocation2 + $0x6d8] sm:$0xff]
        %v423 = vld [vmem:[#allocation2 + $0x6e0] sm:$0xff]
        %v424 = vld [vmem:[#allocation2 + $0x6e8] sm:$0xff]
        %v425 = vld [vmem:[#allocation2 + $0x6f0] sm:$0xff]
        %v426 = vld [vmem:[#allocation2 + $0x6f8] sm:$0xff]
        %v427 = vld [vmem:[#allocation2 + $0x700] sm:$0xff]
        %v428 = vld [vmem:[#allocation2 + $0x708] sm:$0xff]
        %v429 = vld [vmem:[#allocation2 + $0x710] sm:$0xff]
        %v430 = vld [vmem:[#allocation2 + $0x718] sm:$0xff]
        %v431 = vld [vmem:[#allocation2 + $0x720] sm:$0xff]
        %v432 = vld [vmem:[#allocation2 + $0x728] sm:$0xff]
        %v433 = vld [vmem:[#allocation2 + $0x730] sm:$0xff]
        %v434 = vld [vmem:[#allocation2 + $0x738] sm:$0xff]
        %v435 = vld [vmem:[#allocation2 + $0x740] sm:$0xff]
        %v436 = vld [vmem:[#allocation2 + $0x748] sm:$0xff]
        %v437 = vld [vmem:[#allocation2 + $0x750] sm:$0xff]
        %v438 = vld [vmem:[#allocation2 + $0x758] sm:$0xff]
        %v439 = vld [vmem:[#allocation2 + $0x760] sm:$0xff]
        %v440 = vld [vmem:[#allocation2 + $0x768] sm:$0xff]
        %v441 = vld [vmem:[#allocation2 + $0x770] sm:$0xff]
        %v442 = vld [vmem:[#allocation2 + $0x778] sm:$0xff]
        %v443 = vld [vmem:[#allocation2 + $0x780] sm:$0xff]
        %v444 = vld [vmem:[#allocation2 + $0x788] sm:$0xff]
        %v445 = vld [vmem:[#allocation2 + $0x790] sm:$0xff]
        %v446 = vld [vmem:[#allocation2 + $0x798] sm:$0xff]
        %v447 = vld [vmem:[#allocation2 + $0x7a0] sm:$0xff]
        %v448 = vld [vmem:[#allocation2 + $0x7a8] sm:$0xff]
        %v449 = vld [vmem:[#allocation2 + $0x7b0] sm:$0xff]
        %v450 = vld [vmem:[#allocation2 + $0x7b8] sm:$0xff]
        %v451 = vld [vmem:[#allocation2 + $0x7c0] sm:$0xff]
        %v452 = vld [vmem:[#allocation2 + $0x7c8] sm:$0xff]
        %v453 = vld [vmem:[#allocation2 + $0x7d0] sm:$0xff]
        %v454 = vld [vmem:[#allocation2 + $0x7d8] sm:$0xff]
        %v455 = vld [vmem:[#allocation2 + $0x7e0] sm:$0xff]
        %v456 = vld [vmem:[#allocation2 + $0x7e8] sm:$0xff]
        %v457 = vld [vmem:[#allocation2 + $0x7f0] sm:$0xff]
        %v458 = vld [vmem:[#allocation2 + $0x7f8] sm:$0xff]
        %v459 = vld [vmem:[#allocation2 + $0x800] sm:$0xff]
        %v460 = vld [vmem:[#allocation2 + $0x808] sm:$0xff]
        %v461 = vld [vmem:[#allocation2 + $0x810] sm:$0xff]
        %v462 = vld [vmem:[#allocation2 + $0x818] sm:$0xff]
        %v463 = vld [vmem:[#allocation2 + $0x820] sm:$0xff]
        %v464 = vld [vmem:[#allocation2 + $0x828] sm:$0xff]
        %v465 = vld [vmem:[#allocation2 + $0x830] sm:$0xff]
        %v466 = vld [vmem:[#allocation2 + $0x838] sm:$0xff]
        %v467 = vld [vmem:[#allocation2 + $0x840] sm:$0xff]
        %v468 = vld [vmem:[#allocation2 + $0x848] sm:$0xff]
        %v469 = vld [vmem:[#allocation2 + $0x850] sm:$0xff]
        %v470 = vld [vmem:[#allocation2 + $0x858] sm:$0xff]
        %v471 = vld [vmem:[#allocation2 + $0x860] sm:$0xff]
        %v472 = vld [vmem:[#allocation2 + $0x868] sm:$0xff]
        %v473 = vld [vmem:[#allocation2 + $0x870] sm:$0xff]
        %v474 = vld [vmem:[#allocation2 + $0x878] sm:$0xff]
        %v475 = vld [vmem:[#allocation2 + $0x880] sm:$0xff]
        %v476 = vld [vmem:[#allocation2 + $0x888] sm:$0xff]
        %v477 = vld [vmem:[#allocation2 + $0x890] sm:$0xff]
        %v478 = vld [vmem:[#allocation2 + $0x898] sm:$0xff]
        %v479 = vld [vmem:[#allocation2 + $0x8a0] sm:$0xff]
        %v480 = vld [vmem:[#allocation2 + $0x8a8] sm:$0xff]
        %v481 = vld [vmem:[#allocation2 + $0x8b0] sm:$0xff]
        %v482 = vld [vmem:[#allocation2 + $0x8b8] sm:$0xff]
        %v483 = vld [vmem:[#allocation2 + $0x8c0] sm:$0xff]
        %v484 = vld [vmem:[#allocation2 + $0x8c8] sm:$0xff]
        %v485 = vld [vmem:[#allocation2 + $0x8d0] sm:$0xff]
        %v486 = vld [vmem:[#allocation2 + $0x8d8] sm:$0xff]
        %v487 = vld [vmem:[#allocation2 + $0x8e0] sm:$0xff]
        %v488 = vld [vmem:[#allocation2 + $0x8e8] sm:$0xff]
        %v489 = vld [vmem:[#allocation2 + $0x8f0] sm:$0xff]
        %v490 = vld [vmem:[#allocation2 + $0x8f8] sm:$0xff]
        %v491 = vld [vmem:[#allocation2 + $0x900] sm:$0xff]
        %v492 = vld [vmem:[#allocation2 + $0x908] sm:$0xff]
        %v493 = vld [vmem:[#allocation2 + $0x910] sm:$0xff]
        %v494 = vld [vmem:[#allocation2 + $0x918] sm:$0xff]
        %v495 = vld [vmem:[#allocation2 + $0x920] sm:$0xff]
        %v496 = vld [vmem:[#allocation2 + $0x928] sm:$0xff]
        %v497 = vld [vmem:[#allocation2 + $0x930] sm:$0xff]
        %v498 = vld [vmem:[#allocation2 + $0x938] sm:$0xff]
        %v499 = vld [vmem:[#allocation2 + $0x940] sm:$0xff]
        %v500 = vld [vmem:[#allocation2 + $0x948] sm:$0xff]
        %v501 = vld [vmem:[#allocation2 + $0x950] sm:$0xff]
        %v502 = vld [vmem:[#allocation2 + $0x958] sm:$0xff]
        %v503 = vld [vmem:[#allocation2 + $0x960] sm:$0xff]
        %v504 = vld [vmem:[#allocation2 + $0x968] sm:$0xff]
        %v505 = vld [vmem:[#allocation2 + $0x970] sm:$0xff]
        %v506 = vld [vmem:[#allocation2 + $0x978] sm:$0xff]
        %v507 = vld [vmem:[#allocation2 + $0x980] sm:$0xff]
        %v508 = vld [vmem:[#allocation2 + $0x988] sm:$0xff]
        %v509 = vld [vmem:[#allocation2 + $0x990] sm:$0xff]
        %v510 = vld [vmem:[#allocation2 + $0x998] sm:$0xff]
        %v511 = vld [vmem:[#allocation2 + $0x9a0] sm:$0xff]
        %v512 = vld [vmem:[#allocation2 + $0x9a8] sm:$0xff]
        %v513 = vld [vmem:[#allocation2 + $0x9b0] sm:$0xff]
        %v514 = vld [vmem:[#allocation2 + $0x9b8] sm:$0xff]
        %v515 = vld [vmem:[#allocation2 + $0x9c0] sm:$0xff]
        %v516 = vld [vmem:[#allocation2 + $0x9c8] sm:$0xff]
        %v517 = vld [vmem:[#allocation2 + $0x9d0] sm:$0xff]
        %v518 = vld [vmem:[#allocation2 + $0x9d8] sm:$0xff]
        %v519 = vld [vmem:[#allocation2 + $0x9e0] sm:$0xff]
        %v520 = vld [vmem:[#allocation2 + $0x9e8] sm:$0xff]
        %v521 = vld [vmem:[#allocation2 + $0x9f0] sm:$0xff]
        %v522 = vld [vmem:[#allocation2 + $0x9f8] sm:$0xff]
        %v523 = vld [vmem:[#allocation2 + $0xa00] sm:$0xff]
        %v524 = vld [vmem:[#allocation2 + $0xa08] sm:$0xff]
        %v525 = vld [vmem:[#allocation2 + $0xa10] sm:$0xff]
        %v526 = vld [vmem:[#allocation2 + $0xa18] sm:$0xff]
        %v527 = vld [vmem:[#allocation2 + $0xa20] sm:$0xff]
        %v528 = vld [vmem:[#allocation2 + $0xa28] sm:$0xff]
        %v529 = vld [vmem:[#allocation2 + $0xa30] sm:$0xff]
        %v530 = vld [vmem:[#allocation2 + $0xa38] sm:$0xff]
        %v531 = vld [vmem:[#allocation2 + $0xa40] sm:$0xff]
        %v532 = vld [vmem:[#allocation2 + $0xa48] sm:$0xff]
        %v533 = vld [vmem:[#allocation2 + $0xa50] sm:$0xff]
        %v534 = vld [vmem:[#allocation2 + $0xa58] sm:$0xff]
        %v535 = vld [vmem:[#allocation2 + $0xa60] sm:$0xff]
        %v536 = vld [vmem:[#allocation2 + $0xa68] sm:$0xff]
        %v537 = vld [vmem:[#allocation2 + $0xa70] sm:$0xff]
        %v538 = vld [vmem:[#allocation2 + $0xa78] sm:$0xff]
        %v539 = vld [vmem:[#allocation2 + $0xa80] sm:$0xff]
        %v540 = vld [vmem:[#allocation2 + $0xa88] sm:$0xff]
        %v541 = vld [vmem:[#allocation2 + $0xa90] sm:$0xff]
        %v542 = vld [vmem:[#allocation2 + $0xa98] sm:$0xff]
        %v543 = vld [vmem:[#allocation2 + $0xaa0] sm:$0xff]
        %v544 = vld [vmem:[#allocation2 + $0xaa8] sm:$0xff]
        %v545 = vld [vmem:[#allocation2 + $0xab0] sm:$0xff]
        %v546 = vld [vmem:[#allocation2 + $0xab8] sm:$0xff]
        %v547 = vld [vmem:[#allocation2 + $0xac0] sm:$0xff]
        %v548 = vld [vmem:[#allocation2 + $0xac8] sm:$0xff]
        %v549 = vld [vmem:[#allocation2 + $0xad0] sm:$0xff]
        %v550 = vld [vmem:[#allocation2 + $0xad8] sm:$0xff]
        %v551 = vld [vmem:[#allocation2 + $0xae0] sm:$0xff]
        %v552 = vld [vmem:[#allocation2 + $0xae8] sm:$0xff]
        %v553 = vld [vmem:[#allocation2 + $0xaf0] sm:$0xff]
        %v554 = vld [vmem:[#allocation2 + $0xaf8] sm:$0xff]
        %v555 = vld [vmem:[#allocation2 + $0xb00] sm:$0xff]
        %v556 = vld [vmem:[#allocation2 + $0xb08] sm:$0xff]
        %v557 = vld [vmem:[#allocation2 + $0xb10] sm:$0xff]
        %v558 = vld [vmem:[#allocation2 + $0xb18] sm:$0xff]
        %v559 = vld [vmem:[#allocation2 + $0xb20] sm:$0xff]
        %v560 = vld [vmem:[#allocation2 + $0xb28] sm:$0xff]
        %v561 = vld [vmem:[#allocation2 + $0xb30] sm:$0xff]
        %v562 = vld [vmem:[#allocation2 + $0xb38] sm:$0xff]
        %v563 = vld [vmem:[#allocation2 + $0xb40] sm:$0xff]
        %v564 = vld [vmem:[#allocation2 + $0xb48] sm:$0xff]
        %v565 = vld [vmem:[#allocation2 + $0xb50] sm:$0xff]
        %v566 = vld [vmem:[#allocation2 + $0xb58] sm:$0xff]
        %v567 = vld [vmem:[#allocation2 + $0xb60] sm:$0xff]
        %v568 = vld [vmem:[#allocation2 + $0xb68] sm:$0xff]
        %v569 = vld [vmem:[#allocation2 + $0xb70] sm:$0xff]
        %v570 = vld [vmem:[#allocation2 + $0xb78] sm:$0xff]
        %v571 = vld [vmem:[#allocation2 + $0xb80] sm:$0xff]
        %v572 = vld [vmem:[#allocation2 + $0xb88] sm:$0xff]
        %v573 = vld [vmem:[#allocation2 + $0xb90] sm:$0xff]
        %v574 = vld [vmem:[#allocation2 + $0xb98] sm:$0xff]
        %v575 = vld [vmem:[#allocation2 + $0xba0] sm:$0xff]
        %v576 = vld [vmem:[#allocation2 + $0xba8] sm:$0xff]
        %v577 = vld [vmem:[#allocation2 + $0xbb0] sm:$0xff]
        %v578 = vld [vmem:[#allocation2 + $0xbb8] sm:$0xff]
        %v579 = vld [vmem:[#allocation2 + $0xbc0] sm:$0xff]
        %v580 = vld [vmem:[#allocation2 + $0xbc8] sm:$0xff]
        %v581 = vld [vmem:[#allocation2 + $0xbd0] sm:$0xff]
        %v582 = vld [vmem:[#allocation2 + $0xbd8] sm:$0xff]
        %v583 = vld [vmem:[#allocation2 + $0xbe0] sm:$0xff]
        %v584 = vld [vmem:[#allocation2 + $0xbe8] sm:$0xff]
        %v585 = vld [vmem:[#allocation2 + $0xbf0] sm:$0xff]
        %v586 = vld [vmem:[#allocation2 + $0xbf8] sm:$0xff]
        %v587 = vld [vmem:[#allocation4] sm:$0x7]
        %v588 = vld [vmem:[%s197] sm:$0xf]
        %v589 = vld [vmem:[%s197 + $0x8] sm:$0xf]
        %v590 = vld [vmem:[%s197 + $0x10] sm:$0xf]
        %v591 = vld [vmem:[%s197 + $0x18] sm:$0x3]
        %v592 = vld [vmem:[%s197 + $0x4] sm:$0xf]
        %v593 = vld [vmem:[%s197 + $0xc] sm:$0xf]
        %v594 = vld [vmem:[%s197 + $0x14] sm:$0xf]
        %v595 = vld [vmem:[%s197 + $0x1c] sm:$0x3]
        %v596 = vld [vmem:[%s197 + $0x18] sm:$0x7]
        %v597 = vld [vmem:[%s197 + $0x1c] sm:$0x7]
        %v598 = vld [vmem:[%s197] sm:$0xe]
        %v599 = vld [vmem:[%s197 + $0x4] sm:$0xe]
        %v600 = vld [vmem:[%s197 + $0x18] sm:$0xf]
        %v601 = vld [vmem:[%s197 + $0x1c] sm:$0xf]
        %v602 = vld [vmem:[%s197] sm:$0xc]
        %v607 = vunpack.c.l.b16 %v588
        %v608 = vunpack.c.l.b16 %v589
        %v609 = vunpack.c.l.b16 %v590
        %v610 = vunpack.c.l.b16 %v591
        %v611 = vpack.c.b16 %v608, %v607
        %v612 = vpack.c.b16 %v610, %v609
        %v619 = vunpack.c.l.b16 %v592
        %v620 = vunpack.c.l.b16 %v593
        %v621 = vunpack.c.l.b16 %v594
        %v622 = vunpack.c.l.b16 %v595
        %v623 = vpack.c.b16 %v620, %v619
        %v624 = vpack.c.b16 %v622, %v621
        %v628 = vunpack.c.l.b16 %v596
        %v629 = vpack.c.b16 %v628, %v609
        %vm630 = vsmask.f32 7424
        %v632 = vshrl.u32 %v611, 16
        %v634 = vshll.u32 %v611, 16
        %v636 = vrot.slane %v634, 1
        %v637 = vor.u32 %v632, %v636
        %v639 = vshll.u32 %v629, 16
        %v641 = vrot.slane %v639, 1
        %v642 = vsel %vm630, %v637, %v641
        %v643 = vshrl.u32 %v629, 16
        %v645 = vor.u32 %v643, %v641
        %v649 = vunpack.c.l.b16 %v597
        %v650 = vpack.c.b16 %v649, %v621
        %v652 = vshrl.u32 %v623, 16
        %v654 = vshll.u32 %v623, 16
        %v656 = vrot.slane %v654, 1
        %v657 = vor.u32 %v652, %v656
        %v659 = vshll.u32 %v650, 16
        %v661 = vrot.slane %v659, 1
        %v662 = vsel %vm630, %v657, %v661
        %v663 = vshrl.u32 %v650, 16
        %v665 = vor.u32 %v663, %v661
        %v669 = vunpack.c.l.b16 %v598
        %v670 = vpack.c.b16 %v608, %v669
        %vm671 = vcmask 1046528
        %v672 = vrot.slane %v670, 1
        %v673 = vrot.slane %v629, 1
        %v674 = vsel %vm671, %v672, %v673
        %v678 = vunpack.c.l.b16 %v599
        %v679 = vpack.c.b16 %v620, %v678
        %v680 = vrot.slane %v679, 1
        %v681 = vrot.slane %v650, 1
        %v682 = vsel %vm671, %v680, %v681
        %v686 = vunpack.c.l.b16 %v600
        %v687 = vpack.c.b16 %v686, %v609
        %vm688 = vsmask.f32 6400
        %v690 = vshrl.u32 %v670, 16
        %v692 = vrot.slane %v690, 1
        %v693 = vshll.u32 %v670, 16
        %v695 = vrot.slane %v693, 2
        %v696 = vor.u32 %v692, %v695
        %v698 = vshrl.u32 %v687, 16
        %v700 = vrot.slane %v698, 1
        %v701 = vshll.u32 %v687, 16
        %v703 = vrot.slane %v701, 2
        %v704 = vor.u32 %v700, %v703
        %v705 = vsel %vm688, %v696, %v704
        %v709 = vunpack.c.l.b16 %v601
        %v710 = vpack.c.b16 %v709, %v621
        %v712 = vshrl.u32 %v679, 16
        %v714 = vrot.slane %v712, 1
        %v715 = vshll.u32 %v679, 16
        %v717 = vrot.slane %v715, 2
        %v718 = vor.u32 %v714, %v717
        %v720 = vshrl.u32 %v710, 16
        %v722 = vrot.slane %v720, 1
        %v723 = vshll.u32 %v710, 16
        %v725 = vrot.slane %v723, 2
        %v726 = vor.u32 %v722, %v725
        %v727 = vsel %vm688, %v718, %v726
        %v1114 = vunpack.c.l.b16 %v203
        %v1115 = vunpack.c.h.b16 %v203
        %v1116 = vunpack.c.l.b16 %v204
        %v1117 = vunpack.c.h.b16 %v204
        %v1118 = vunpack.c.l.b16 %v205
        %v1119 = vunpack.c.h.b16 %v205
        %v1120 = vunpack.c.l.b16 %v206
        %v1121 = vunpack.c.h.b16 %v206
        %v1122 = vunpack.c.l.b16 %v207
        %v1123 = vunpack.c.h.b16 %v207
        %v1124 = vunpack.c.l.b16 %v208
        %v1125 = vunpack.c.h.b16 %v208
        %v1126 = vunpack.c.l.b16 %v209
        %v1127 = vunpack.c.h.b16 %v209
        %v1128 = vunpack.c.l.b16 %v210
        %v1129 = vunpack.c.h.b16 %v210
        %v1130 = vunpack.c.l.b16 %v211
        %v1131 = vunpack.c.h.b16 %v211
        %v1132 = vunpack.c.l.b16 %v212
        %v1133 = vunpack.c.h.b16 %v212
        %v1134 = vunpack.c.l.b16 %v213
        %v1135 = vunpack.c.h.b16 %v213
        %v1136 = vunpack.c.l.b16 %v214
        %v1137 = vunpack.c.h.b16 %v214
        %v1138 = vunpack.c.l.b16 %v215
        %v1139 = vunpack.c.h.b16 %v215
        %v1140 = vunpack.c.l.b16 %v216
        %v1141 = vunpack.c.h.b16 %v216
        %v1142 = vunpack.c.l.b16 %v217
        %v1143 = vunpack.c.h.b16 %v217
        %v1144 = vunpack.c.l.b16 %v218
        %v1145 = vunpack.c.h.b16 %v218
        %v1146 = vunpack.c.l.b16 %v219
        %v1147 = vunpack.c.h.b16 %v219
        %v1148 = vunpack.c.l.b16 %v220
        %v1149 = vunpack.c.h.b16 %v220
        %v1150 = vunpack.c.l.b16 %v221
        %v1151 = vunpack.c.h.b16 %v221
        %v1152 = vunpack.c.l.b16 %v222
        %v1153 = vunpack.c.h.b16 %v222
        %v1154 = vunpack.c.l.b16 %v223
        %v1155 = vunpack.c.h.b16 %v223
        %v1156 = vunpack.c.l.b16 %v224
        %v1157 = vunpack.c.h.b16 %v224
        %v1158 = vunpack.c.l.b16 %v225
        %v1159 = vunpack.c.h.b16 %v225
        %v1160 = vunpack.c.l.b16 %v226
        %v1161 = vunpack.c.h.b16 %v226
        %v1162 = vunpack.c.l.b16 %v227
        %v1163 = vunpack.c.h.b16 %v227
        %v1164 = vunpack.c.l.b16 %v228
        %v1165 = vunpack.c.h.b16 %v228
        %v1166 = vunpack.c.l.b16 %v229
        %v1167 = vunpack.c.h.b16 %v229
        %v1168 = vunpack.c.l.b16 %v230
        %v1169 = vunpack.c.h.b16 %v230
        %v1170 = vunpack.c.l.b16 %v231
        %v1171 = vunpack.c.h.b16 %v231
        %v1172 = vunpack.c.l.b16 %v232
        %v1173 = vunpack.c.h.b16 %v232
        %v1174 = vunpack.c.l.b16 %v233
        %v1175 = vunpack.c.h.b16 %v233
        %v1176 = vunpack.c.l.b16 %v234
        %v1177 = vunpack.c.h.b16 %v234
        %v1178 = vunpack.c.l.b16 %v235
        %v1179 = vunpack.c.h.b16 %v235
        %v1180 = vunpack.c.l.b16 %v236
        %v1181 = vunpack.c.h.b16 %v236
        %v1182 = vunpack.c.l.b16 %v237
        %v1183 = vunpack.c.h.b16 %v237
        %v1184 = vunpack.c.l.b16 %v238
        %v1185 = vunpack.c.h.b16 %v238
        %v1186 = vunpack.c.l.b16 %v239
        %v1187 = vunpack.c.h.b16 %v239
        %v1188 = vunpack.c.l.b16 %v240
        %v1189 = vunpack.c.h.b16 %v240
        %v1190 = vunpack.c.l.b16 %v241
        %v1191 = vunpack.c.h.b16 %v241
        %v1192 = vunpack.c.l.b16 %v242
        %v1193 = vunpack.c.h.b16 %v242
        %v1194 = vunpack.c.l.b16 %v243
        %v1195 = vunpack.c.h.b16 %v243
        %v1196 = vunpack.c.l.b16 %v244
        %v1197 = vunpack.c.h.b16 %v244
        %v1198 = vunpack.c.l.b16 %v245
        %v1199 = vunpack.c.h.b16 %v245
        %v1200 = vunpack.c.l.b16 %v246
        %v1201 = vunpack.c.h.b16 %v246
        %v1202 = vunpack.c.l.b16 %v247
        %v1203 = vunpack.c.h.b16 %v247
        %v1204 = vunpack.c.l.b16 %v248
        %v1205 = vunpack.c.h.b16 %v248
        %v1206 = vunpack.c.l.b16 %v249
        %v1207 = vunpack.c.h.b16 %v249
        %v1208 = vunpack.c.l.b16 %v250
        %v1209 = vunpack.c.h.b16 %v250
        %v1210 = vunpack.c.l.b16 %v251
        %v1211 = vunpack.c.h.b16 %v251
        %v1212 = vunpack.c.l.b16 %v252
        %v1213 = vunpack.c.h.b16 %v252
        %v1214 = vunpack.c.l.b16 %v253
        %v1215 = vunpack.c.h.b16 %v253
        %v1216 = vunpack.c.l.b16 %v254
        %v1217 = vunpack.c.h.b16 %v254
        %v1218 = vunpack.c.l.b16 %v255
        %v1219 = vunpack.c.h.b16 %v255
        %v1220 = vunpack.c.l.b16 %v256
        %v1221 = vunpack.c.h.b16 %v256
        %v1222 = vunpack.c.l.b16 %v257
        %v1223 = vunpack.c.h.b16 %v257
        %v1224 = vunpack.c.l.b16 %v258
        %v1225 = vunpack.c.h.b16 %v258
        %v1226 = vunpack.c.l.b16 %v259
        %v1227 = vunpack.c.h.b16 %v259
        %v1228 = vunpack.c.l.b16 %v260
        %v1229 = vunpack.c.h.b16 %v260
        %v1230 = vunpack.c.l.b16 %v261
        %v1231 = vunpack.c.h.b16 %v261
        %v1232 = vunpack.c.l.b16 %v262
        %v1233 = vunpack.c.h.b16 %v262
        %v1234 = vunpack.c.l.b16 %v263
        %v1235 = vunpack.c.h.b16 %v263
        %v1236 = vunpack.c.l.b16 %v264
        %v1237 = vunpack.c.h.b16 %v264
        %v1238 = vunpack.c.l.b16 %v265
        %v1239 = vunpack.c.h.b16 %v265
        %v1240 = vunpack.c.l.b16 %v266
        %v1241 = vunpack.c.h.b16 %v266
        %v1242 = vunpack.c.l.b16 %v267
        %v1243 = vunpack.c.h.b16 %v267
        %v1244 = vunpack.c.l.b16 %v268
        %v1245 = vunpack.c.h.b16 %v268
        %v1246 = vunpack.c.l.b16 %v269
        %v1247 = vunpack.c.h.b16 %v269
        %v1248 = vunpack.c.l.b16 %v270
        %v1249 = vunpack.c.h.b16 %v270
        %v1250 = vunpack.c.l.b16 %v271
        %v1251 = vunpack.c.h.b16 %v271
        %v1252 = vunpack.c.l.b16 %v272
        %v1253 = vunpack.c.h.b16 %v272
        %v1254 = vunpack.c.l.b16 %v273
        %v1255 = vunpack.c.h.b16 %v273
        %v1256 = vunpack.c.l.b16 %v274
        %v1257 = vunpack.c.h.b16 %v274
        %v1258 = vunpack.c.l.b16 %v275
        %v1259 = vunpack.c.h.b16 %v275
        %v1260 = vunpack.c.l.b16 %v276
        %v1261 = vunpack.c.h.b16 %v276
        %v1262 = vunpack.c.l.b16 %v277
        %v1263 = vunpack.c.h.b16 %v277
        %v1264 = vunpack.c.l.b16 %v278
        %v1265 = vunpack.c.h.b16 %v278
        %v1266 = vunpack.c.l.b16 %v279
        %v1267 = vunpack.c.h.b16 %v279
        %v1268 = vunpack.c.l.b16 %v280
        %v1269 = vunpack.c.h.b16 %v280
        %v1270 = vunpack.c.l.b16 %v281
        %v1271 = vunpack.c.h.b16 %v281
        %v1272 = vunpack.c.l.b16 %v282
        %v1273 = vunpack.c.h.b16 %v282
        %v1274 = vunpack.c.l.b16 %v283
        %v1275 = vunpack.c.h.b16 %v283
        %v1276 = vunpack.c.l.b16 %v284
        %v1277 = vunpack.c.h.b16 %v284
        %v1278 = vunpack.c.l.b16 %v285
        %v1279 = vunpack.c.h.b16 %v285
        %v1280 = vunpack.c.l.b16 %v286
        %v1281 = vunpack.c.h.b16 %v286
        %v1282 = vunpack.c.l.b16 %v287
        %v1283 = vunpack.c.h.b16 %v287
        %v1284 = vunpack.c.l.b16 %v288
        %v1285 = vunpack.c.h.b16 %v288
        %v1286 = vunpack.c.l.b16 %v289
        %v1287 = vunpack.c.h.b16 %v289
        %v1288 = vunpack.c.l.b16 %v290
        %v1289 = vunpack.c.h.b16 %v290
        %v1290 = vunpack.c.l.b16 %v291
        %v1291 = vunpack.c.h.b16 %v291
        %v1292 = vunpack.c.l.b16 %v292
        %v1293 = vunpack.c.h.b16 %v292
        %v1294 = vunpack.c.l.b16 %v293
        %v1295 = vunpack.c.h.b16 %v293
        %v1296 = vunpack.c.l.b16 %v294
        %v1297 = vunpack.c.h.b16 %v294
        %v1298 = vunpack.c.l.b16 %v295
        %v1299 = vunpack.c.h.b16 %v295
        %v1300 = vunpack.c.l.b16 %v296
        %v1301 = vunpack.c.h.b16 %v296
        %v1302 = vunpack.c.l.b16 %v297
        %v1303 = vunpack.c.h.b16 %v297
        %v1304 = vunpack.c.l.b16 %v298
        %v1305 = vunpack.c.h.b16 %v298
        %v1306 = vunpack.c.l.b16 %v299
        %v1307 = vunpack.c.h.b16 %v299
        %v1308 = vunpack.c.l.b16 %v300
        %v1309 = vunpack.c.h.b16 %v300
        %v1310 = vunpack.c.l.b16 %v301
        %v1311 = vunpack.c.h.b16 %v301
        %v1312 = vunpack.c.l.b16 %v302
        %v1313 = vunpack.c.h.b16 %v302
        %v1314 = vunpack.c.l.b16 %v303
        %v1315 = vunpack.c.h.b16 %v303
        %v1316 = vunpack.c.l.b16 %v304
        %v1317 = vunpack.c.h.b16 %v304
        %v1318 = vunpack.c.l.b16 %v305
        %v1319 = vunpack.c.h.b16 %v305
        %v1320 = vunpack.c.l.b16 %v306
        %v1321 = vunpack.c.h.b16 %v306
        %v1322 = vunpack.c.l.b16 %v307
        %v1323 = vunpack.c.h.b16 %v307
        %v1324 = vunpack.c.l.b16 %v308
        %v1325 = vunpack.c.h.b16 %v308
        %v1326 = vunpack.c.l.b16 %v309
        %v1327 = vunpack.c.h.b16 %v309
        %v1328 = vunpack.c.l.b16 %v310
        %v1329 = vunpack.c.h.b16 %v310
        %v1330 = vunpack.c.l.b16 %v311
        %v1331 = vunpack.c.h.b16 %v311
        %v1332 = vunpack.c.l.b16 %v312
        %v1333 = vunpack.c.h.b16 %v312
        %v1334 = vunpack.c.l.b16 %v313
        %v1335 = vunpack.c.h.b16 %v313
        %v1336 = vunpack.c.l.b16 %v314
        %v1337 = vunpack.c.h.b16 %v314
        %v1338 = vunpack.c.l.b16 %v315
        %v1339 = vunpack.c.h.b16 %v315
        %v1340 = vunpack.c.l.b16 %v316
        %v1341 = vunpack.c.h.b16 %v316
        %v1342 = vunpack.c.l.b16 %v317
        %v1343 = vunpack.c.h.b16 %v317
        %v1344 = vunpack.c.l.b16 %v318
        %v1345 = vunpack.c.h.b16 %v318
        %v1346 = vunpack.c.l.b16 %v319
        %v1347 = vunpack.c.h.b16 %v319
        %v1348 = vunpack.c.l.b16 %v320
        %v1349 = vunpack.c.h.b16 %v320
        %v1350 = vunpack.c.l.b16 %v321
        %v1351 = vunpack.c.h.b16 %v321
        %v1352 = vunpack.c.l.b16 %v322
        %v1353 = vunpack.c.h.b16 %v322
        %v1354 = vunpack.c.l.b16 %v323
        %v1355 = vunpack.c.h.b16 %v323
        %v1356 = vunpack.c.l.b16 %v324
        %v1357 = vunpack.c.h.b16 %v324
        %v1358 = vunpack.c.l.b16 %v325
        %v1359 = vunpack.c.h.b16 %v325
        %v1360 = vunpack.c.l.b16 %v326
        %v1361 = vunpack.c.h.b16 %v326
        %v1362 = vunpack.c.l.b16 %v327
        %v1363 = vunpack.c.h.b16 %v327
        %v1364 = vunpack.c.l.b16 %v328
        %v1365 = vunpack.c.h.b16 %v328
        %v1366 = vunpack.c.l.b16 %v329
        %v1367 = vunpack.c.h.b16 %v329
        %v1368 = vunpack.c.l.b16 %v330
        %v1369 = vunpack.c.h.b16 %v330
        %v1370 = vunpack.c.l.b16 %v331
        %v1371 = vunpack.c.h.b16 %v331
        %v1372 = vunpack.c.l.b16 %v332
        %v1373 = vunpack.c.h.b16 %v332
        %v1374 = vunpack.c.l.b16 %v333
        %v1375 = vunpack.c.h.b16 %v333
        %v1376 = vunpack.c.l.b16 %v334
        %v1377 = vunpack.c.h.b16 %v334
        %v1378 = vunpack.c.l.b16 %v335
        %v1379 = vunpack.c.h.b16 %v335
        %v1380 = vunpack.c.l.b16 %v336
        %v1381 = vunpack.c.h.b16 %v336
        %v1382 = vunpack.c.l.b16 %v337
        %v1383 = vunpack.c.h.b16 %v337
        %v1384 = vunpack.c.l.b16 %v338
        %v1385 = vunpack.c.h.b16 %v338
        %v1386 = vunpack.c.l.b16 %v339
        %v1387 = vunpack.c.h.b16 %v339
        %v1388 = vunpack.c.l.b16 %v340
        %v1389 = vunpack.c.h.b16 %v340
        %v1390 = vunpack.c.l.b16 %v341
        %v1391 = vunpack.c.h.b16 %v341
        %v1392 = vunpack.c.l.b16 %v342
        %v1393 = vunpack.c.h.b16 %v342
        %v1394 = vunpack.c.l.b16 %v343
        %v1395 = vunpack.c.h.b16 %v343
        %v1396 = vunpack.c.l.b16 %v344
        %v1397 = vunpack.c.h.b16 %v344
        %v1398 = vunpack.c.l.b16 %v345
        %v1399 = vunpack.c.h.b16 %v345
        %v1400 = vunpack.c.l.b16 %v346
        %v1401 = vunpack.c.h.b16 %v346
        %v1402 = vunpack.c.l.b16 %v347
        %v1403 = vunpack.c.h.b16 %v347
        %v1404 = vunpack.c.l.b16 %v348
        %v1405 = vunpack.c.h.b16 %v348
        %v1406 = vunpack.c.l.b16 %v349
        %v1407 = vunpack.c.h.b16 %v349
        %v1408 = vunpack.c.l.b16 %v350
        %v1409 = vunpack.c.h.b16 %v350
        %v1410 = vunpack.c.l.b16 %v351
        %v1411 = vunpack.c.h.b16 %v351
        %v1412 = vunpack.c.l.b16 %v352
        %v1413 = vunpack.c.h.b16 %v352
        %v1414 = vunpack.c.l.b16 %v353
        %v1415 = vunpack.c.h.b16 %v353
        %v1416 = vunpack.c.l.b16 %v354
        %v1417 = vunpack.c.h.b16 %v354
        %v1418 = vunpack.c.l.b16 %v355
        %v1419 = vunpack.c.h.b16 %v355
        %v1420 = vunpack.c.l.b16 %v356
        %v1421 = vunpack.c.h.b16 %v356
        %v1422 = vunpack.c.l.b16 %v357
        %v1423 = vunpack.c.h.b16 %v357
        %v1424 = vunpack.c.l.b16 %v358
        %v1425 = vunpack.c.h.b16 %v358
        %v1426 = vunpack.c.l.b16 %v359
        %v1427 = vunpack.c.h.b16 %v359
        %v1428 = vunpack.c.l.b16 %v360
        %v1429 = vunpack.c.h.b16 %v360
        %v1430 = vunpack.c.l.b16 %v361
        %v1431 = vunpack.c.h.b16 %v361
        %v1432 = vunpack.c.l.b16 %v362
        %v1433 = vunpack.c.h.b16 %v362
        %v1434 = vunpack.c.l.b16 %v363
        %v1435 = vunpack.c.h.b16 %v363
        %v1436 = vunpack.c.l.b16 %v364
        %v1437 = vunpack.c.h.b16 %v364
        %v1438 = vunpack.c.l.b16 %v365
        %v1439 = vunpack.c.h.b16 %v365
        %v1440 = vunpack.c.l.b16 %v366
        %v1441 = vunpack.c.h.b16 %v366
        %v1442 = vunpack.c.l.b16 %v367
        %v1443 = vunpack.c.h.b16 %v367
        %v1444 = vunpack.c.l.b16 %v368
        %v1445 = vunpack.c.h.b16 %v368
        %v1446 = vunpack.c.l.b16 %v369
        %v1447 = vunpack.c.h.b16 %v369
        %v1448 = vunpack.c.l.b16 %v370
        %v1449 = vunpack.c.h.b16 %v370
        %v1450 = vunpack.c.l.b16 %v371
        %v1451 = vunpack.c.h.b16 %v371
        %v1452 = vunpack.c.l.b16 %v372
        %v1453 = vunpack.c.h.b16 %v372
        %v1454 = vunpack.c.l.b16 %v373
        %v1455 = vunpack.c.h.b16 %v373
        %v1456 = vunpack.c.l.b16 %v374
        %v1457 = vunpack.c.h.b16 %v374
        %v1458 = vunpack.c.l.b16 %v375
        %v1459 = vunpack.c.h.b16 %v375
        %v1460 = vunpack.c.l.b16 %v376
        %v1461 = vunpack.c.h.b16 %v376
        %v1462 = vunpack.c.l.b16 %v377
        %v1463 = vunpack.c.h.b16 %v377
        %v1464 = vunpack.c.l.b16 %v378
        %v1465 = vunpack.c.h.b16 %v378
        %v1466 = vunpack.c.l.b16 %v379
        %v1467 = vunpack.c.h.b16 %v379
        %v1468 = vunpack.c.l.b16 %v380
        %v1469 = vunpack.c.h.b16 %v380
        %v1470 = vunpack.c.l.b16 %v381
        %v1471 = vunpack.c.h.b16 %v381
        %v1472 = vunpack.c.l.b16 %v382
        %v1473 = vunpack.c.h.b16 %v382
        %v1474 = vunpack.c.l.b16 %v383
        %v1475 = vunpack.c.h.b16 %v383
        %v1476 = vunpack.c.l.b16 %v384
        %v1477 = vunpack.c.h.b16 %v384
        %v1478 = vunpack.c.l.b16 %v385
        %v1479 = vunpack.c.h.b16 %v385
        %v1480 = vunpack.c.l.b16 %v386
        %v1481 = vunpack.c.h.b16 %v386
        %v1482 = vunpack.c.l.b16 %v387
        %v1483 = vunpack.c.h.b16 %v387
        %v1484 = vunpack.c.l.b16 %v388
        %v1485 = vunpack.c.h.b16 %v388
        %v1486 = vunpack.c.l.b16 %v389
        %v1487 = vunpack.c.h.b16 %v389
        %v1488 = vunpack.c.l.b16 %v390
        %v1489 = vunpack.c.h.b16 %v390
        %v1490 = vunpack.c.l.b16 %v391
        %v1491 = vunpack.c.h.b16 %v391
        %v1492 = vunpack.c.l.b16 %v392
        %v1493 = vunpack.c.h.b16 %v392
        %v1494 = vunpack.c.l.b16 %v393
        %v1495 = vunpack.c.h.b16 %v393
        %v1496 = vunpack.c.l.b16 %v394
        %v1497 = vunpack.c.h.b16 %v394
        %v1498 = vunpack.c.l.b16 %v395
        %v1499 = vunpack.c.h.b16 %v395
        %v1500 = vunpack.c.l.b16 %v396
        %v1501 = vunpack.c.h.b16 %v396
        %v1502 = vunpack.c.l.b16 %v397
        %v1503 = vunpack.c.h.b16 %v397
        %v1504 = vunpack.c.l.b16 %v398
        %v1505 = vunpack.c.h.b16 %v398
        %v1506 = vunpack.c.l.b16 %v399
        %v1507 = vunpack.c.h.b16 %v399
        %v1508 = vunpack.c.l.b16 %v400
        %v1509 = vunpack.c.h.b16 %v400
        %v1510 = vunpack.c.l.b16 %v401
        %v1511 = vunpack.c.h.b16 %v401
        %v1512 = vunpack.c.l.b16 %v402
        %v1513 = vunpack.c.h.b16 %v402
        %v1514 = vunpack.c.l.b16 %v403
        %v1515 = vunpack.c.h.b16 %v403
        %v1516 = vunpack.c.l.b16 %v404
        %v1517 = vunpack.c.h.b16 %v404
        %v1518 = vunpack.c.l.b16 %v405
        %v1519 = vunpack.c.h.b16 %v405
        %v1520 = vunpack.c.l.b16 %v406
        %v1521 = vunpack.c.h.b16 %v406
        %v1522 = vunpack.c.l.b16 %v407
        %v1523 = vunpack.c.h.b16 %v407
        %v1524 = vunpack.c.l.b16 %v408
        %v1525 = vunpack.c.h.b16 %v408
        %v1526 = vunpack.c.l.b16 %v409
        %v1527 = vunpack.c.h.b16 %v409
        %v1528 = vunpack.c.l.b16 %v410
        %v1529 = vunpack.c.h.b16 %v410
        %v1530 = vunpack.c.l.b16 %v411
        %v1531 = vunpack.c.h.b16 %v411
        %v1532 = vunpack.c.l.b16 %v412
        %v1533 = vunpack.c.h.b16 %v412
        %v1534 = vunpack.c.l.b16 %v413
        %v1535 = vunpack.c.h.b16 %v413
        %v1536 = vunpack.c.l.b16 %v414
        %v1537 = vunpack.c.h.b16 %v414
        %v1538 = vunpack.c.l.b16 %v415
        %v1539 = vunpack.c.h.b16 %v415
        %v1540 = vunpack.c.l.b16 %v416
        %v1541 = vunpack.c.h.b16 %v416
        %v1542 = vunpack.c.l.b16 %v417
        %v1543 = vunpack.c.h.b16 %v417
        %v1544 = vunpack.c.l.b16 %v418
        %v1545 = vunpack.c.h.b16 %v418
        %v1546 = vunpack.c.l.b16 %v419
        %v1547 = vunpack.c.h.b16 %v419
        %v1548 = vunpack.c.l.b16 %v420
        %v1549 = vunpack.c.h.b16 %v420
        %v1550 = vunpack.c.l.b16 %v421
        %v1551 = vunpack.c.h.b16 %v421
        %v1552 = vunpack.c.l.b16 %v422
        %v1553 = vunpack.c.h.b16 %v422
        %v1554 = vunpack.c.l.b16 %v423
        %v1555 = vunpack.c.h.b16 %v423
        %v1556 = vunpack.c.l.b16 %v424
        %v1557 = vunpack.c.h.b16 %v424
        %v1558 = vunpack.c.l.b16 %v425
        %v1559 = vunpack.c.h.b16 %v425
        %v1560 = vunpack.c.l.b16 %v426
        %v1561 = vunpack.c.h.b16 %v426
        %v1562 = vunpack.c.l.b16 %v427
        %v1563 = vunpack.c.h.b16 %v427
        %v1564 = vunpack.c.l.b16 %v428
        %v1565 = vunpack.c.h.b16 %v428
        %v1566 = vunpack.c.l.b16 %v429
        %v1567 = vunpack.c.h.b16 %v429
        %v1568 = vunpack.c.l.b16 %v430
        %v1569 = vunpack.c.h.b16 %v430
        %v1570 = vunpack.c.l.b16 %v431
        %v1571 = vunpack.c.h.b16 %v431
        %v1572 = vunpack.c.l.b16 %v432
        %v1573 = vunpack.c.h.b16 %v432
        %v1574 = vunpack.c.l.b16 %v433
        %v1575 = vunpack.c.h.b16 %v433
        %v1576 = vunpack.c.l.b16 %v434
        %v1577 = vunpack.c.h.b16 %v434
        %v1578 = vunpack.c.l.b16 %v435
        %v1579 = vunpack.c.h.b16 %v435
        %v1580 = vunpack.c.l.b16 %v436
        %v1581 = vunpack.c.h.b16 %v436
        %v1582 = vunpack.c.l.b16 %v437
        %v1583 = vunpack.c.h.b16 %v437
        %v1584 = vunpack.c.l.b16 %v438
        %v1585 = vunpack.c.h.b16 %v438
        %v1586 = vunpack.c.l.b16 %v439
        %v1587 = vunpack.c.h.b16 %v439
        %v1588 = vunpack.c.l.b16 %v440
        %v1589 = vunpack.c.h.b16 %v440
        %v1590 = vunpack.c.l.b16 %v441
        %v1591 = vunpack.c.h.b16 %v441
        %v1592 = vunpack.c.l.b16 %v442
        %v1593 = vunpack.c.h.b16 %v442
        %v1594 = vunpack.c.l.b16 %v443
        %v1595 = vunpack.c.h.b16 %v443
        %v1596 = vunpack.c.l.b16 %v444
        %v1597 = vunpack.c.h.b16 %v444
        %v1598 = vunpack.c.l.b16 %v445
        %v1599 = vunpack.c.h.b16 %v445
        %v1600 = vunpack.c.l.b16 %v446
        %v1601 = vunpack.c.h.b16 %v446
        %v1602 = vunpack.c.l.b16 %v447
        %v1603 = vunpack.c.h.b16 %v447
        %v1604 = vunpack.c.l.b16 %v448
        %v1605 = vunpack.c.h.b16 %v448
        %v1606 = vunpack.c.l.b16 %v449
        %v1607 = vunpack.c.h.b16 %v449
        %v1608 = vunpack.c.l.b16 %v450
        %v1609 = vunpack.c.h.b16 %v450
        %v1610 = vunpack.c.l.b16 %v451
        %v1611 = vunpack.c.h.b16 %v451
        %v1612 = vunpack.c.l.b16 %v452
        %v1613 = vunpack.c.h.b16 %v452
        %v1614 = vunpack.c.l.b16 %v453
        %v1615 = vunpack.c.h.b16 %v453
        %v1616 = vunpack.c.l.b16 %v454
        %v1617 = vunpack.c.h.b16 %v454
        %v1618 = vunpack.c.l.b16 %v455
        %v1619 = vunpack.c.h.b16 %v455
        %v1620 = vunpack.c.l.b16 %v456
        %v1621 = vunpack.c.h.b16 %v456
        %v1622 = vunpack.c.l.b16 %v457
        %v1623 = vunpack.c.h.b16 %v457
        %v1624 = vunpack.c.l.b16 %v458
        %v1625 = vunpack.c.h.b16 %v458
        %v1626 = vunpack.c.l.b16 %v459
        %v1627 = vunpack.c.h.b16 %v459
        %v1628 = vunpack.c.l.b16 %v460
        %v1629 = vunpack.c.h.b16 %v460
        %v1630 = vunpack.c.l.b16 %v461
        %v1631 = vunpack.c.h.b16 %v461
        %v1632 = vunpack.c.l.b16 %v462
        %v1633 = vunpack.c.h.b16 %v462
        %v1634 = vunpack.c.l.b16 %v463
        %v1635 = vunpack.c.h.b16 %v463
        %v1636 = vunpack.c.l.b16 %v464
        %v1637 = vunpack.c.h.b16 %v464
        %v1638 = vunpack.c.l.b16 %v465
        %v1639 = vunpack.c.h.b16 %v465
        %v1640 = vunpack.c.l.b16 %v466
        %v1641 = vunpack.c.h.b16 %v466
        %v1642 = vunpack.c.l.b16 %v467
        %v1643 = vunpack.c.h.b16 %v467
        %v1644 = vunpack.c.l.b16 %v468
        %v1645 = vunpack.c.h.b16 %v468
        %v1646 = vunpack.c.l.b16 %v469
        %v1647 = vunpack.c.h.b16 %v469
        %v1648 = vunpack.c.l.b16 %v470
        %v1649 = vunpack.c.h.b16 %v470
        %v1650 = vunpack.c.l.b16 %v471
        %v1651 = vunpack.c.h.b16 %v471
        %v1652 = vunpack.c.l.b16 %v472
        %v1653 = vunpack.c.h.b16 %v472
        %v1654 = vunpack.c.l.b16 %v473
        %v1655 = vunpack.c.h.b16 %v473
        %v1656 = vunpack.c.l.b16 %v474
        %v1657 = vunpack.c.h.b16 %v474
        %v1658 = vunpack.c.l.b16 %v475
        %v1659 = vunpack.c.h.b16 %v475
        %v1660 = vunpack.c.l.b16 %v476
        %v1661 = vunpack.c.h.b16 %v476
        %v1662 = vunpack.c.l.b16 %v477
        %v1663 = vunpack.c.h.b16 %v477
        %v1664 = vunpack.c.l.b16 %v478
        %v1665 = vunpack.c.h.b16 %v478
        %v1666 = vunpack.c.l.b16 %v479
        %v1667 = vunpack.c.h.b16 %v479
        %v1668 = vunpack.c.l.b16 %v480
        %v1669 = vunpack.c.h.b16 %v480
        %v1670 = vunpack.c.l.b16 %v481
        %v1671 = vunpack.c.h.b16 %v481
        %v1672 = vunpack.c.l.b16 %v482
        %v1673 = vunpack.c.h.b16 %v482
        %v1674 = vunpack.c.l.b16 %v483
        %v1675 = vunpack.c.h.b16 %v483
        %v1676 = vunpack.c.l.b16 %v484
        %v1677 = vunpack.c.h.b16 %v484
        %v1678 = vunpack.c.l.b16 %v485
        %v1679 = vunpack.c.h.b16 %v485
        %v1680 = vunpack.c.l.b16 %v486
        %v1681 = vunpack.c.h.b16 %v486
        %v1682 = vunpack.c.l.b16 %v487
        %v1683 = vunpack.c.h.b16 %v487
        %v1684 = vunpack.c.l.b16 %v488
        %v1685 = vunpack.c.h.b16 %v488
        %v1686 = vunpack.c.l.b16 %v489
        %v1687 = vunpack.c.h.b16 %v489
        %v1688 = vunpack.c.l.b16 %v490
        %v1689 = vunpack.c.h.b16 %v490
        %v1690 = vunpack.c.l.b16 %v491
        %v1691 = vunpack.c.h.b16 %v491
        %v1692 = vunpack.c.l.b16 %v492
        %v1693 = vunpack.c.h.b16 %v492
        %v1694 = vunpack.c.l.b16 %v493
        %v1695 = vunpack.c.h.b16 %v493
        %v1696 = vunpack.c.l.b16 %v494
        %v1697 = vunpack.c.h.b16 %v494
        %v1698 = vunpack.c.l.b16 %v495
        %v1699 = vunpack.c.h.b16 %v495
        %v1700 = vunpack.c.l.b16 %v496
        %v1701 = vunpack.c.h.b16 %v496
        %v1702 = vunpack.c.l.b16 %v497
        %v1703 = vunpack.c.h.b16 %v497
        %v1704 = vunpack.c.l.b16 %v498
        %v1705 = vunpack.c.h.b16 %v498
        %v1706 = vunpack.c.l.b16 %v499
        %v1707 = vunpack.c.h.b16 %v499
        %v1708 = vunpack.c.l.b16 %v500
        %v1709 = vunpack.c.h.b16 %v500
        %v1710 = vunpack.c.l.b16 %v501
        %v1711 = vunpack.c.h.b16 %v501
        %v1712 = vunpack.c.l.b16 %v502
        %v1713 = vunpack.c.h.b16 %v502
        %v1714 = vunpack.c.l.b16 %v503
        %v1715 = vunpack.c.h.b16 %v503
        %v1716 = vunpack.c.l.b16 %v504
        %v1717 = vunpack.c.h.b16 %v504
        %v1718 = vunpack.c.l.b16 %v505
        %v1719 = vunpack.c.h.b16 %v505
        %v1720 = vunpack.c.l.b16 %v506
        %v1721 = vunpack.c.h.b16 %v506
        %v1722 = vunpack.c.l.b16 %v507
        %v1723 = vunpack.c.h.b16 %v507
        %v1724 = vunpack.c.l.b16 %v508
        %v1725 = vunpack.c.h.b16 %v508
        %v1726 = vunpack.c.l.b16 %v509
        %v1727 = vunpack.c.h.b16 %v509
        %v1728 = vunpack.c.l.b16 %v510
        %v1729 = vunpack.c.h.b16 %v510
        %v1730 = vunpack.c.l.b16 %v511
        %v1731 = vunpack.c.h.b16 %v511
        %v1732 = vunpack.c.l.b16 %v512
        %v1733 = vunpack.c.h.b16 %v512
        %v1734 = vunpack.c.l.b16 %v513
        %v1735 = vunpack.c.h.b16 %v513
        %v1736 = vunpack.c.l.b16 %v514
        %v1737 = vunpack.c.h.b16 %v514
        %v1738 = vunpack.c.l.b16 %v515
        %v1739 = vunpack.c.h.b16 %v515
        %v1740 = vunpack.c.l.b16 %v516
        %v1741 = vunpack.c.h.b16 %v516
        %v1742 = vunpack.c.l.b16 %v517
        %v1743 = vunpack.c.h.b16 %v517
        %v1744 = vunpack.c.l.b16 %v518
        %v1745 = vunpack.c.h.b16 %v518
        %v1746 = vunpack.c.l.b16 %v519
        %v1747 = vunpack.c.h.b16 %v519
        %v1748 = vunpack.c.l.b16 %v520
        %v1749 = vunpack.c.h.b16 %v520
        %v1750 = vunpack.c.l.b16 %v521
        %v1751 = vunpack.c.h.b16 %v521
        %v1752 = vunpack.c.l.b16 %v522
        %v1753 = vunpack.c.h.b16 %v522
        %v1754 = vunpack.c.l.b16 %v523
        %v1755 = vunpack.c.h.b16 %v523
        %v1756 = vunpack.c.l.b16 %v524
        %v1757 = vunpack.c.h.b16 %v524
        %v1758 = vunpack.c.l.b16 %v525
        %v1759 = vunpack.c.h.b16 %v525
        %v1760 = vunpack.c.l.b16 %v526
        %v1761 = vunpack.c.h.b16 %v526
        %v1762 = vunpack.c.l.b16 %v527
        %v1763 = vunpack.c.h.b16 %v527
        %v1764 = vunpack.c.l.b16 %v528
        %v1765 = vunpack.c.h.b16 %v528
        %v1766 = vunpack.c.l.b16 %v529
        %v1767 = vunpack.c.h.b16 %v529
        %v1768 = vunpack.c.l.b16 %v530
        %v1769 = vunpack.c.h.b16 %v530
        %v1770 = vunpack.c.l.b16 %v531
        %v1771 = vunpack.c.h.b16 %v531
        %v1772 = vunpack.c.l.b16 %v532
        %v1773 = vunpack.c.h.b16 %v532
        %v1774 = vunpack.c.l.b16 %v533
        %v1775 = vunpack.c.h.b16 %v533
        %v1776 = vunpack.c.l.b16 %v534
        %v1777 = vunpack.c.h.b16 %v534
        %v1778 = vunpack.c.l.b16 %v535
        %v1779 = vunpack.c.h.b16 %v535
        %v1780 = vunpack.c.l.b16 %v536
        %v1781 = vunpack.c.h.b16 %v536
        %v1782 = vunpack.c.l.b16 %v537
        %v1783 = vunpack.c.h.b16 %v537
        %v1784 = vunpack.c.l.b16 %v538
        %v1785 = vunpack.c.h.b16 %v538
        %v1786 = vunpack.c.l.b16 %v539
        %v1787 = vunpack.c.h.b16 %v539
        %v1788 = vunpack.c.l.b16 %v540
        %v1789 = vunpack.c.h.b16 %v540
        %v1790 = vunpack.c.l.b16 %v541
        %v1791 = vunpack.c.h.b16 %v541
        %v1792 = vunpack.c.l.b16 %v542
        %v1793 = vunpack.c.h.b16 %v542
        %v1794 = vunpack.c.l.b16 %v543
        %v1795 = vunpack.c.h.b16 %v543
        %v1796 = vunpack.c.l.b16 %v544
        %v1797 = vunpack.c.h.b16 %v544
        %v1798 = vunpack.c.l.b16 %v545
        %v1799 = vunpack.c.h.b16 %v545
        %v1800 = vunpack.c.l.b16 %v546
        %v1801 = vunpack.c.h.b16 %v546
        %v1802 = vunpack.c.l.b16 %v547
        %v1803 = vunpack.c.h.b16 %v547
        %v1804 = vunpack.c.l.b16 %v548
        %v1805 = vunpack.c.h.b16 %v548
        %v1806 = vunpack.c.l.b16 %v549
        %v1807 = vunpack.c.h.b16 %v549
        %v1808 = vunpack.c.l.b16 %v550
        %v1809 = vunpack.c.h.b16 %v550
        %v1810 = vunpack.c.l.b16 %v551
        %v1811 = vunpack.c.h.b16 %v551
        %v1812 = vunpack.c.l.b16 %v552
        %v1813 = vunpack.c.h.b16 %v552
        %v1814 = vunpack.c.l.b16 %v553
        %v1815 = vunpack.c.h.b16 %v553
        %v1816 = vunpack.c.l.b16 %v554
        %v1817 = vunpack.c.h.b16 %v554
        %v1818 = vunpack.c.l.b16 %v555
        %v1819 = vunpack.c.h.b16 %v555
        %v1820 = vunpack.c.l.b16 %v556
        %v1821 = vunpack.c.h.b16 %v556
        %v1822 = vunpack.c.l.b16 %v557
        %v1823 = vunpack.c.h.b16 %v557
        %v1824 = vunpack.c.l.b16 %v558
        %v1825 = vunpack.c.h.b16 %v558
        %v1826 = vunpack.c.l.b16 %v559
        %v1827 = vunpack.c.h.b16 %v559
        %v1828 = vunpack.c.l.b16 %v560
        %v1829 = vunpack.c.h.b16 %v560
        %v1830 = vunpack.c.l.b16 %v561
        %v1831 = vunpack.c.h.b16 %v561
        %v1832 = vunpack.c.l.b16 %v562
        %v1833 = vunpack.c.h.b16 %v562
        %v1834 = vunpack.c.l.b16 %v563
        %v1835 = vunpack.c.h.b16 %v563
        %v1836 = vunpack.c.l.b16 %v564
        %v1837 = vunpack.c.h.b16 %v564
        %v1838 = vunpack.c.l.b16 %v565
        %v1839 = vunpack.c.h.b16 %v565
        %v1840 = vunpack.c.l.b16 %v566
        %v1841 = vunpack.c.h.b16 %v566
        %v1842 = vunpack.c.l.b16 %v567
        %v1843 = vunpack.c.h.b16 %v567
        %v1844 = vunpack.c.l.b16 %v568
        %v1845 = vunpack.c.h.b16 %v568
        %v1846 = vunpack.c.l.b16 %v569
        %v1847 = vunpack.c.h.b16 %v569
        %v1848 = vunpack.c.l.b16 %v570
        %v1849 = vunpack.c.h.b16 %v570
        %v1850 = vunpack.c.l.b16 %v571
        %v1851 = vunpack.c.h.b16 %v571
        %v1852 = vunpack.c.l.b16 %v572
        %v1853 = vunpack.c.h.b16 %v572
        %v1854 = vunpack.c.l.b16 %v573
        %v1855 = vunpack.c.h.b16 %v573
        %v1856 = vunpack.c.l.b16 %v574
        %v1857 = vunpack.c.h.b16 %v574
        %v1858 = vunpack.c.l.b16 %v575
        %v1859 = vunpack.c.h.b16 %v575
        %v1860 = vunpack.c.l.b16 %v576
        %v1861 = vunpack.c.h.b16 %v576
        %v1862 = vunpack.c.l.b16 %v577
        %v1863 = vunpack.c.h.b16 %v577
        %v1864 = vunpack.c.l.b16 %v578
        %v1865 = vunpack.c.h.b16 %v578
        %v1866 = vunpack.c.l.b16 %v579
        %v1867 = vunpack.c.h.b16 %v579
        %v1868 = vunpack.c.l.b16 %v580
        %v1869 = vunpack.c.h.b16 %v580
        %v1870 = vunpack.c.l.b16 %v581
        %v1871 = vunpack.c.h.b16 %v581
        %v1872 = vunpack.c.l.b16 %v582
        %v1873 = vunpack.c.h.b16 %v582
        %v1874 = vunpack.c.l.b16 %v583
        %v1875 = vunpack.c.h.b16 %v583
        %v1876 = vunpack.c.l.b16 %v584
        %v1877 = vunpack.c.h.b16 %v584
        %v1878 = vunpack.c.l.b16 %v585
        %v1879 = vunpack.c.h.b16 %v585
        %v1880 = vunpack.c.l.b16 %v586
        %v1881 = vunpack.c.h.b16 %v586
        %v1882 = vpack.c.b16 %v1120, %v1114
        %v1883 = vpack.c.b16 %v1121, %v1115
        %v1884 = vpack.c.b16 %v1122, %v1116
        %v1885 = vpack.c.b16 %v1123, %v1117
        %v1886 = vpack.c.b16 %v1124, %v1118
        %v1887 = vpack.c.b16 %v1125, %v1119
        %v1888 = vpack.c.b16 %v1132, %v1126
        %v1889 = vpack.c.b16 %v1133, %v1127
        %v1890 = vpack.c.b16 %v1134, %v1128
        %v1891 = vpack.c.b16 %v1135, %v1129
        %v1892 = vpack.c.b16 %v1136, %v1130
        %v1893 = vpack.c.b16 %v1137, %v1131
        %v1894 = vpack.c.b16 %v1144, %v1138
        %v1895 = vpack.c.b16 %v1145, %v1139
        %v1896 = vpack.c.b16 %v1146, %v1140
        %v1897 = vpack.c.b16 %v1147, %v1141
        %v1898 = vpack.c.b16 %v1148, %v1142
        %v1899 = vpack.c.b16 %v1149, %v1143
        %v1900 = vpack.c.b16 %v1156, %v1150
        %v1901 = vpack.c.b16 %v1157, %v1151
        %v1902 = vpack.c.b16 %v1158, %v1152
        %v1903 = vpack.c.b16 %v1159, %v1153
        %v1904 = vpack.c.b16 %v1160, %v1154
        %v1905 = vpack.c.b16 %v1161, %v1155
        %v1906 = vpack.c.b16 %v1168, %v1162
        %v1907 = vpack.c.b16 %v1169, %v1163
        %v1908 = vpack.c.b16 %v1170, %v1164
        %v1909 = vpack.c.b16 %v1171, %v1165
        %v1910 = vpack.c.b16 %v1172, %v1166
        %v1911 = vpack.c.b16 %v1173, %v1167
        %v1912 = vpack.c.b16 %v1180, %v1174
        %v1913 = vpack.c.b16 %v1181, %v1175
        %v1914 = vpack.c.b16 %v1182, %v1176
        %v1915 = vpack.c.b16 %v1183, %v1177
        %v1916 = vpack.c.b16 %v1184, %v1178
        %v1917 = vpack.c.b16 %v1185, %v1179
        %v1918 = vpack.c.b16 %v1192, %v1186
        %v1919 = vpack.c.b16 %v1193, %v1187
        %v1920 = vpack.c.b16 %v1194, %v1188
        %v1921 = vpack.c.b16 %v1195, %v1189
        %v1922 = vpack.c.b16 %v1196, %v1190
        %v1923 = vpack.c.b16 %v1197, %v1191
        %v1924 = vpack.c.b16 %v1204, %v1198
        %v1925 = vpack.c.b16 %v1205, %v1199
        %v1926 = vpack.c.b16 %v1206, %v1200
        %v1927 = vpack.c.b16 %v1207, %v1201
        %v1928 = vpack.c.b16 %v1208, %v1202
        %v1929 = vpack.c.b16 %v1209, %v1203
        %v1930 = vpack.c.b16 %v1216, %v1210
        %v1931 = vpack.c.b16 %v1217, %v1211
        %v1932 = vpack.c.b16 %v1218, %v1212
        %v1933 = vpack.c.b16 %v1219, %v1213
        %v1934 = vpack.c.b16 %v1220, %v1214
        %v1935 = vpack.c.b16 %v1221, %v1215
        %v1936 = vpack.c.b16 %v1228, %v1222
        %v1937 = vpack.c.b16 %v1229, %v1223
        %v1938 = vpack.c.b16 %v1230, %v1224
        %v1939 = vpack.c.b16 %v1231, %v1225
        %v1940 = vpack.c.b16 %v1232, %v1226
        %v1941 = vpack.c.b16 %v1233, %v1227
        %v1942 = vpack.c.b16 %v1240, %v1234
        %v1943 = vpack.c.b16 %v1241, %v1235
        %v1944 = vpack.c.b16 %v1242, %v1236
        %v1945 = vpack.c.b16 %v1243, %v1237
        %v1946 = vpack.c.b16 %v1244, %v1238
        %v1947 = vpack.c.b16 %v1245, %v1239
        %v1948 = vpack.c.b16 %v1252, %v1246
        %v1949 = vpack.c.b16 %v1253, %v1247
        %v1950 = vpack.c.b16 %v1254, %v1248
        %v1951 = vpack.c.b16 %v1255, %v1249
        %v1952 = vpack.c.b16 %v1256, %v1250
        %v1953 = vpack.c.b16 %v1257, %v1251
        %v1954 = vpack.c.b16 %v1264, %v1258
        %v1955 = vpack.c.b16 %v1265, %v1259
        %v1956 = vpack.c.b16 %v1266, %v1260
        %v1957 = vpack.c.b16 %v1267, %v1261
        %v1958 = vpack.c.b16 %v1268, %v1262
        %v1959 = vpack.c.b16 %v1269, %v1263
        %v1960 = vpack.c.b16 %v1276, %v1270
        %v1961 = vpack.c.b16 %v1277, %v1271
        %v1962 = vpack.c.b16 %v1278, %v1272
        %v1963 = vpack.c.b16 %v1279, %v1273
        %v1964 = vpack.c.b16 %v1280, %v1274
        %v1965 = vpack.c.b16 %v1281, %v1275
        %v1966 = vpack.c.b16 %v1288, %v1282
        %v1967 = vpack.c.b16 %v1289, %v1283
        %v1968 = vpack.c.b16 %v1290, %v1284
        %v1969 = vpack.c.b16 %v1291, %v1285
        %v1970 = vpack.c.b16 %v1292, %v1286
        %v1971 = vpack.c.b16 %v1293, %v1287
        %v1972 = vpack.c.b16 %v1300, %v1294
        %v1973 = vpack.c.b16 %v1301, %v1295
        %v1974 = vpack.c.b16 %v1302, %v1296
        %v1975 = vpack.c.b16 %v1303, %v1297
        %v1976 = vpack.c.b16 %v1304, %v1298
        %v1977 = vpack.c.b16 %v1305, %v1299
        %v1978 = vpack.c.b16 %v1312, %v1306
        %v1979 = vpack.c.b16 %v1313, %v1307
        %v1980 = vpack.c.b16 %v1314, %v1308
        %v1981 = vpack.c.b16 %v1315, %v1309
        %v1982 = vpack.c.b16 %v1316, %v1310
        %v1983 = vpack.c.b16 %v1317, %v1311
        %v1984 = vpack.c.b16 %v1324, %v1318
        %v1985 = vpack.c.b16 %v1325, %v1319
        %v1986 = vpack.c.b16 %v1326, %v1320
        %v1987 = vpack.c.b16 %v1327, %v1321
        %v1988 = vpack.c.b16 %v1328, %v1322
        %v1989 = vpack.c.b16 %v1329, %v1323
        %v1990 = vpack.c.b16 %v1336, %v1330
        %v1991 = vpack.c.b16 %v1337, %v1331
        %v1992 = vpack.c.b16 %v1338, %v1332
        %v1993 = vpack.c.b16 %v1339, %v1333
        %v1994 = vpack.c.b16 %v1340, %v1334
        %v1995 = vpack.c.b16 %v1341, %v1335
        %v1996 = vpack.c.b16 %v1348, %v1342
        %v1997 = vpack.c.b16 %v1349, %v1343
        %v1998 = vpack.c.b16 %v1350, %v1344
        %v1999 = vpack.c.b16 %v1351, %v1345
        %v2000 = vpack.c.b16 %v1352, %v1346
        %v2001 = vpack.c.b16 %v1353, %v1347
        %v2002 = vpack.c.b16 %v1360, %v1354
        %v2003 = vpack.c.b16 %v1361, %v1355
        %v2004 = vpack.c.b16 %v1362, %v1356
        %v2005 = vpack.c.b16 %v1363, %v1357
        %v2006 = vpack.c.b16 %v1364, %v1358
        %v2007 = vpack.c.b16 %v1365, %v1359
        %v2008 = vpack.c.b16 %v1372, %v1366
        %v2009 = vpack.c.b16 %v1373, %v1367
        %v2010 = vpack.c.b16 %v1374, %v1368
        %v2011 = vpack.c.b16 %v1375, %v1369
        %v2012 = vpack.c.b16 %v1376, %v1370
        %v2013 = vpack.c.b16 %v1377, %v1371
        %v2014 = vpack.c.b16 %v1384, %v1378
        %v2015 = vpack.c.b16 %v1385, %v1379
        %v2016 = vpack.c.b16 %v1386, %v1380
        %v2017 = vpack.c.b16 %v1387, %v1381
        %v2018 = vpack.c.b16 %v1388, %v1382
        %v2019 = vpack.c.b16 %v1389, %v1383
        %v2020 = vpack.c.b16 %v1396, %v1390
        %v2021 = vpack.c.b16 %v1397, %v1391
        %v2022 = vpack.c.b16 %v1398, %v1392
        %v2023 = vpack.c.b16 %v1399, %v1393
        %v2024 = vpack.c.b16 %v1400, %v1394
        %v2025 = vpack.c.b16 %v1401, %v1395
        %v2026 = vpack.c.b16 %v1408, %v1402
        %v2027 = vpack.c.b16 %v1409, %v1403
        %v2028 = vpack.c.b16 %v1410, %v1404
        %v2029 = vpack.c.b16 %v1411, %v1405
        %v2030 = vpack.c.b16 %v1412, %v1406
        %v2031 = vpack.c.b16 %v1413, %v1407
        %v2032 = vpack.c.b16 %v1420, %v1414
        %v2033 = vpack.c.b16 %v1421, %v1415
        %v2034 = vpack.c.b16 %v1422, %v1416
        %v2035 = vpack.c.b16 %v1423, %v1417
        %v2036 = vpack.c.b16 %v1424, %v1418
        %v2037 = vpack.c.b16 %v1425, %v1419
        %v2038 = vpack.c.b16 %v1432, %v1426
        %v2039 = vpack.c.b16 %v1433, %v1427
        %v2040 = vpack.c.b16 %v1434, %v1428
        %v2041 = vpack.c.b16 %v1435, %v1429
        %v2042 = vpack.c.b16 %v1436, %v1430
        %v2043 = vpack.c.b16 %v1437, %v1431
        %v2044 = vpack.c.b16 %v1444, %v1438
        %v2045 = vpack.c.b16 %v1445, %v1439
        %v2046 = vpack.c.b16 %v1446, %v1440
        %v2047 = vpack.c.b16 %v1447, %v1441
        %v2048 = vpack.c.b16 %v1448, %v1442
        %v2049 = vpack.c.b16 %v1449, %v1443
        %v2050 = vpack.c.b16 %v1456, %v1450
        %v2051 = vpack.c.b16 %v1457, %v1451
        %v2052 = vpack.c.b16 %v1458, %v1452
        %v2053 = vpack.c.b16 %v1459, %v1453
        %v2054 = vpack.c.b16 %v1460, %v1454
        %v2055 = vpack.c.b16 %v1461, %v1455
        %v2056 = vpack.c.b16 %v1468, %v1462
        %v2057 = vpack.c.b16 %v1469, %v1463
        %v2058 = vpack.c.b16 %v1470, %v1464
        %v2059 = vpack.c.b16 %v1471, %v1465
        %v2060 = vpack.c.b16 %v1472, %v1466
        %v2061 = vpack.c.b16 %v1473, %v1467
        %v2062 = vpack.c.b16 %v1480, %v1474
        %v2063 = vpack.c.b16 %v1481, %v1475
        %v2064 = vpack.c.b16 %v1482, %v1476
        %v2065 = vpack.c.b16 %v1483, %v1477
        %v2066 = vpack.c.b16 %v1484, %v1478
        %v2067 = vpack.c.b16 %v1485, %v1479
        %v2068 = vpack.c.b16 %v1492, %v1486
        %v2069 = vpack.c.b16 %v1493, %v1487
        %v2070 = vpack.c.b16 %v1494, %v1488
        %v2071 = vpack.c.b16 %v1495, %v1489
        %v2072 = vpack.c.b16 %v1496, %v1490
        %v2073 = vpack.c.b16 %v1497, %v1491
        %v2074 = vpack.c.b16 %v1504, %v1498
        %v2075 = vpack.c.b16 %v1505, %v1499
        %v2076 = vpack.c.b16 %v1506, %v1500
        %v2077 = vpack.c.b16 %v1507, %v1501
        %v2078 = vpack.c.b16 %v1508, %v1502
        %v2079 = vpack.c.b16 %v1509, %v1503
        %v2080 = vpack.c.b16 %v1516, %v1510
        %v2081 = vpack.c.b16 %v1517, %v1511
        %v2082 = vpack.c.b16 %v1518, %v1512
        %v2083 = vpack.c.b16 %v1519, %v1513
        %v2084 = vpack.c.b16 %v1520, %v1514
        %v2085 = vpack.c.b16 %v1521, %v1515
        %v2086 = vpack.c.b16 %v1528, %v1522
        %v2087 = vpack.c.b16 %v1529, %v1523
        %v2088 = vpack.c.b16 %v1530, %v1524
        %v2089 = vpack.c.b16 %v1531, %v1525
        %v2090 = vpack.c.b16 %v1532, %v1526
        %v2091 = vpack.c.b16 %v1533, %v1527
        %v2092 = vpack.c.b16 %v1540, %v1534
        %v2093 = vpack.c.b16 %v1541, %v1535
        %v2094 = vpack.c.b16 %v1542, %v1536
        %v2095 = vpack.c.b16 %v1543, %v1537
        %v2096 = vpack.c.b16 %v1544, %v1538
        %v2097 = vpack.c.b16 %v1545, %v1539
        %v2098 = vpack.c.b16 %v1552, %v1546
        %v2099 = vpack.c.b16 %v1553, %v1547
        %v2100 = vpack.c.b16 %v1554, %v1548
        %v2101 = vpack.c.b16 %v1555, %v1549
        %v2102 = vpack.c.b16 %v1556, %v1550
        %v2103 = vpack.c.b16 %v1557, %v1551
        %v2104 = vpack.c.b16 %v1564, %v1558
        %v2105 = vpack.c.b16 %v1565, %v1559
        %v2106 = vpack.c.b16 %v1566, %v1560
        %v2107 = vpack.c.b16 %v1567, %v1561
        %v2108 = vpack.c.b16 %v1568, %v1562
        %v2109 = vpack.c.b16 %v1569, %v1563
        %v2110 = vpack.c.b16 %v1576, %v1570
        %v2111 = vpack.c.b16 %v1577, %v1571
        %v2112 = vpack.c.b16 %v1578, %v1572
        %v2113 = vpack.c.b16 %v1579, %v1573
        %v2114 = vpack.c.b16 %v1580, %v1574
        %v2115 = vpack.c.b16 %v1581, %v1575
        %v2116 = vpack.c.b16 %v1588, %v1582
        %v2117 = vpack.c.b16 %v1589, %v1583
        %v2118 = vpack.c.b16 %v1590, %v1584
        %v2119 = vpack.c.b16 %v1591, %v1585
        %v2120 = vpack.c.b16 %v1592, %v1586
        %v2121 = vpack.c.b16 %v1593, %v1587
        %v2122 = vpack.c.b16 %v1600, %v1594
        %v2123 = vpack.c.b16 %v1601, %v1595
        %v2124 = vpack.c.b16 %v1602, %v1596
        %v2125 = vpack.c.b16 %v1603, %v1597
        %v2126 = vpack.c.b16 %v1604, %v1598
        %v2127 = vpack.c.b16 %v1605, %v1599
        %v2128 = vpack.c.b16 %v1612, %v1606
        %v2129 = vpack.c.b16 %v1613, %v1607
        %v2130 = vpack.c.b16 %v1614, %v1608
        %v2131 = vpack.c.b16 %v1615, %v1609
        %v2132 = vpack.c.b16 %v1616, %v1610
        %v2133 = vpack.c.b16 %v1617, %v1611
        %v2134 = vpack.c.b16 %v1624, %v1618
        %v2135 = vpack.c.b16 %v1625, %v1619
        %v2136 = vpack.c.b16 %v1626, %v1620
        %v2137 = vpack.c.b16 %v1627, %v1621
        %v2138 = vpack.c.b16 %v1628, %v1622
        %v2139 = vpack.c.b16 %v1629, %v1623
        %v2140 = vpack.c.b16 %v1636, %v1630
        %v2141 = vpack.c.b16 %v1637, %v1631
        %v2142 = vpack.c.b16 %v1638, %v1632
        %v2143 = vpack.c.b16 %v1639, %v1633
        %v2144 = vpack.c.b16 %v1640, %v1634
        %v2145 = vpack.c.b16 %v1641, %v1635
        %v2146 = vpack.c.b16 %v1648, %v1642
        %v2147 = vpack.c.b16 %v1649, %v1643
        %v2148 = vpack.c.b16 %v1650, %v1644
        %v2149 = vpack.c.b16 %v1651, %v1645
        %v2150 = vpack.c.b16 %v1652, %v1646
        %v2151 = vpack.c.b16 %v1653, %v1647
        %v2152 = vpack.c.b16 %v1660, %v1654
        %v2153 = vpack.c.b16 %v1661, %v1655
        %v2154 = vpack.c.b16 %v1662, %v1656
        %v2155 = vpack.c.b16 %v1663, %v1657
        %v2156 = vpack.c.b16 %v1664, %v1658
        %v2157 = vpack.c.b16 %v1665, %v1659
        %v2158 = vpack.c.b16 %v1672, %v1666
        %v2159 = vpack.c.b16 %v1673, %v1667
        %v2160 = vpack.c.b16 %v1674, %v1668
        %v2161 = vpack.c.b16 %v1675, %v1669
        %v2162 = vpack.c.b16 %v1676, %v1670
        %v2163 = vpack.c.b16 %v1677, %v1671
        %v2164 = vpack.c.b16 %v1684, %v1678
        %v2165 = vpack.c.b16 %v1685, %v1679
        %v2166 = vpack.c.b16 %v1686, %v1680
        %v2167 = vpack.c.b16 %v1687, %v1681
        %v2168 = vpack.c.b16 %v1688, %v1682
        %v2169 = vpack.c.b16 %v1689, %v1683
        %v2170 = vpack.c.b16 %v1696, %v1690
        %v2171 = vpack.c.b16 %v1697, %v1691
        %v2172 = vpack.c.b16 %v1698, %v1692
        %v2173 = vpack.c.b16 %v1699, %v1693
        %v2174 = vpack.c.b16 %v1700, %v1694
        %v2175 = vpack.c.b16 %v1701, %v1695
        %v2176 = vpack.c.b16 %v1708, %v1702
        %v2177 = vpack.c.b16 %v1709, %v1703
        %v2178 = vpack.c.b16 %v1710, %v1704
        %v2179 = vpack.c.b16 %v1711, %v1705
        %v2180 = vpack.c.b16 %v1712, %v1706
        %v2181 = vpack.c.b16 %v1713, %v1707
        %v2182 = vpack.c.b16 %v1720, %v1714
        %v2183 = vpack.c.b16 %v1721, %v1715
        %v2184 = vpack.c.b16 %v1722, %v1716
        %v2185 = vpack.c.b16 %v1723, %v1717
        %v2186 = vpack.c.b16 %v1724, %v1718
        %v2187 = vpack.c.b16 %v1725, %v1719
        %v2188 = vpack.c.b16 %v1732, %v1726
        %v2189 = vpack.c.b16 %v1733, %v1727
        %v2190 = vpack.c.b16 %v1734, %v1728
        %v2191 = vpack.c.b16 %v1735, %v1729
        %v2192 = vpack.c.b16 %v1736, %v1730
        %v2193 = vpack.c.b16 %v1737, %v1731
        %v2194 = vpack.c.b16 %v1744, %v1738
        %v2195 = vpack.c.b16 %v1745, %v1739
        %v2196 = vpack.c.b16 %v1746, %v1740
        %v2197 = vpack.c.b16 %v1747, %v1741
        %v2198 = vpack.c.b16 %v1748, %v1742
        %v2199 = vpack.c.b16 %v1749, %v1743
        %v2200 = vpack.c.b16 %v1756, %v1750
        %v2201 = vpack.c.b16 %v1757, %v1751
        %v2202 = vpack.c.b16 %v1758, %v1752
        %v2203 = vpack.c.b16 %v1759, %v1753
        %v2204 = vpack.c.b16 %v1760, %v1754
        %v2205 = vpack.c.b16 %v1761, %v1755
        %v2206 = vpack.c.b16 %v1768, %v1762
        %v2207 = vpack.c.b16 %v1769, %v1763
        %v2208 = vpack.c.b16 %v1770, %v1764
        %v2209 = vpack.c.b16 %v1771, %v1765
        %v2210 = vpack.c.b16 %v1772, %v1766
        %v2211 = vpack.c.b16 %v1773, %v1767
        %v2212 = vpack.c.b16 %v1780, %v1774
        %v2213 = vpack.c.b16 %v1781, %v1775
        %v2214 = vpack.c.b16 %v1782, %v1776
        %v2215 = vpack.c.b16 %v1783, %v1777
        %v2216 = vpack.c.b16 %v1784, %v1778
        %v2217 = vpack.c.b16 %v1785, %v1779
        %v2218 = vpack.c.b16 %v1792, %v1786
        %v2219 = vpack.c.b16 %v1793, %v1787
        %v2220 = vpack.c.b16 %v1794, %v1788
        %v2221 = vpack.c.b16 %v1795, %v1789
        %v2222 = vpack.c.b16 %v1796, %v1790
        %v2223 = vpack.c.b16 %v1797, %v1791
        %v2224 = vpack.c.b16 %v1804, %v1798
        %v2225 = vpack.c.b16 %v1805, %v1799
        %v2226 = vpack.c.b16 %v1806, %v1800
        %v2227 = vpack.c.b16 %v1807, %v1801
        %v2228 = vpack.c.b16 %v1808, %v1802
        %v2229 = vpack.c.b16 %v1809, %v1803
        %v2230 = vpack.c.b16 %v1816, %v1810
        %v2231 = vpack.c.b16 %v1817, %v1811
        %v2232 = vpack.c.b16 %v1818, %v1812
        %v2233 = vpack.c.b16 %v1819, %v1813
        %v2234 = vpack.c.b16 %v1820, %v1814
        %v2235 = vpack.c.b16 %v1821, %v1815
        %v2236 = vpack.c.b16 %v1828, %v1822
        %v2237 = vpack.c.b16 %v1829, %v1823
        %v2238 = vpack.c.b16 %v1830, %v1824
        %v2239 = vpack.c.b16 %v1831, %v1825
        %v2240 = vpack.c.b16 %v1832, %v1826
        %v2241 = vpack.c.b16 %v1833, %v1827
        %v2242 = vpack.c.b16 %v1840, %v1834
        %v2243 = vpack.c.b16 %v1841, %v1835
        %v2244 = vpack.c.b16 %v1842, %v1836
        %v2245 = vpack.c.b16 %v1843, %v1837
        %v2246 = vpack.c.b16 %v1844, %v1838
        %v2247 = vpack.c.b16 %v1845, %v1839
        %v2248 = vpack.c.b16 %v1852, %v1846
        %v2249 = vpack.c.b16 %v1853, %v1847
        %v2250 = vpack.c.b16 %v1854, %v1848
        %v2251 = vpack.c.b16 %v1855, %v1849
        %v2252 = vpack.c.b16 %v1856, %v1850
        %v2253 = vpack.c.b16 %v1857, %v1851
        %v2254 = vpack.c.b16 %v1864, %v1858
        %v2255 = vpack.c.b16 %v1865, %v1859
        %v2256 = vpack.c.b16 %v1866, %v1860
        %v2257 = vpack.c.b16 %v1867, %v1861
        %v2258 = vpack.c.b16 %v1868, %v1862
        %v2259 = vpack.c.b16 %v1869, %v1863
        %v2260 = vpack.c.b16 %v1876, %v1870
        %v2261 = vpack.c.b16 %v1877, %v1871
        %v2262 = vpack.c.b16 %v1878, %v1872
        %v2263 = vpack.c.b16 %v1879, %v1873
        %v2264 = vpack.c.b16 %v1880, %v1874
        %v2265 = vpack.c.b16 %v1881, %v1875
        %2650 = vmatpush.bf16.msra.mxu0 %v1924
        %2651 = vmatpush.bf16.msra.mxu0 %v1918
        %2652 = vmatpush.bf16.msra.mxu0 %v1912
        %2653 = vmatpush.bf16.msra.mxu0 %v1906
        %2654 = vmatpush.bf16.msra.mxu0 %v1900
        %2655 = vmatpush.bf16.msra.mxu0 %v1894
        %2656 = vmatpush.bf16.msra.mxu0 %v1888
        %2657 = vmatpush.bf16.msra.mxu0 %v1882
        %2658 = vmatmul.bf16.gmra.mxu0 %v611
        %v2659 = vpop.f32.mrf.mxu0
        %v2660 = vadd.f32 0.0, %v2659
        %v2661 = vpop.f32.mrf.mxu0
        %v2662 = vadd.f32 0.0, %v2661
        %2663 = vmatmul.bf16.gmra.mxu0 %v612
        %v2664 = vpop.f32.mrf.mxu0
        %v2665 = vadd.f32 0.0, %v2664
        %v2666 = vpop.f32.mrf.mxu0
        %v2667 = vadd.f32 0.0, %v2666
        %2668 = vdwg.mxu0
        %2669 = vmatpush.bf16.msra.mxu0 %v1972
        %2670 = vmatpush.bf16.msra.mxu0 %v1966
        %2671 = vmatpush.bf16.msra.mxu0 %v1960
        %2672 = vmatpush.bf16.msra.mxu0 %v1954
        %2673 = vmatpush.bf16.msra.mxu0 %v1948
        %2674 = vmatpush.bf16.msra.mxu0 %v1942
        %2675 = vmatpush.bf16.msra.mxu0 %v1936
        %2676 = vmatpush.bf16.msra.mxu0 %v1930
        %2677 = vmatmul.bf16.gmra.mxu0 %v623
        %v2678 = vpop.f32.mrf.mxu0
        %v2679 = vadd.f32 %v2660, %v2678
        %v2680 = vpop.f32.mrf.mxu0
        %v2681 = vadd.f32 %v2662, %v2680
        %2682 = vmatmul.bf16.gmra.mxu0 %v624
        %v2683 = vpop.f32.mrf.mxu0
        %v2684 = vadd.f32 %v2665, %v2683
        %v2685 = vpop.f32.mrf.mxu0
        %v2686 = vadd.f32 %v2667, %v2685
        %2687 = vdwg.mxu0
        %2688 = vmatpush.bf16.msra.mxu0 %v2020
        %2689 = vmatpush.bf16.msra.mxu0 %v2014
        %2690 = vmatpush.bf16.msra.mxu0 %v2008
        %2691 = vmatpush.bf16.msra.mxu0 %v2002
        %2692 = vmatpush.bf16.msra.mxu0 %v1996
        %2693 = vmatpush.bf16.msra.mxu0 %v1990
        %2694 = vmatpush.bf16.msra.mxu0 %v1984
        %2695 = vmatpush.bf16.msra.mxu0 %v1978
        %2696 = vmatmul.bf16.gmra.mxu0 %v642
        %v2697 = vpop.f32.mrf.mxu0
        %v2698 = vadd.f32 %v2679, %v2697
        %v2699 = vpop.f32.mrf.mxu0
        %v2700 = vadd.f32 %v2681, %v2699
        %2701 = vmatmul.bf16.gmra.mxu0 %v645
        %v2702 = vpop.f32.mrf.mxu0
        %v2703 = vadd.f32 %v2684, %v2702
        %v2704 = vpop.f32.mrf.mxu0
        %v2705 = vadd.f32 %v2686, %v2704
        %2706 = vdwg.mxu0
        %2707 = vmatpush.bf16.msra.mxu0 %v2068
        %2708 = vmatpush.bf16.msra.mxu0 %v2062
        %2709 = vmatpush.bf16.msra.mxu0 %v2056
        %2710 = vmatpush.bf16.msra.mxu0 %v2050
        %2711 = vmatpush.bf16.msra.mxu0 %v2044
        %2712 = vmatpush.bf16.msra.mxu0 %v2038
        %2713 = vmatpush.bf16.msra.mxu0 %v2032
        %2714 = vmatpush.bf16.msra.mxu0 %v2026
        %2715 = vmatmul.bf16.gmra.mxu0 %v662
        %v2716 = vpop.f32.mrf.mxu0
        %v2717 = vadd.f32 %v2698, %v2716
        %v2718 = vpop.f32.mrf.mxu0
        %v2719 = vadd.f32 %v2700, %v2718
        %2720 = vmatmul.bf16.gmra.mxu0 %v665
        %v2721 = vpop.f32.mrf.mxu0
        %v2722 = vadd.f32 %v2703, %v2721
        %v2723 = vpop.f32.mrf.mxu0
        %v2724 = vadd.f32 %v2705, %v2723
        %2725 = vdwg.mxu0
        %2726 = vmatpush.bf16.msra.mxu0 %v2116
        %2727 = vmatpush.bf16.msra.mxu0 %v2110
        %2728 = vmatpush.bf16.msra.mxu0 %v2104
        %2729 = vmatpush.bf16.msra.mxu0 %v2098
        %2730 = vmatpush.bf16.msra.mxu0 %v2092
        %2731 = vmatpush.bf16.msra.mxu0 %v2086
        %2732 = vmatpush.bf16.msra.mxu0 %v2080
        %2733 = vmatpush.bf16.msra.mxu0 %v2074
        %2734 = vmatmul.bf16.gmra.mxu0 %v674
        %v2735 = vpop.f32.mrf.mxu0
        %v2736 = vadd.f32 %v2717, %v2735
        %v2737 = vpop.f32.mrf.mxu0
        %v2738 = vadd.f32 %v2719, %v2737
        %2739 = vmatmul.bf16.gmra.mxu0 %v673
        %v2740 = vpop.f32.mrf.mxu0
        %v2741 = vadd.f32 %v2722, %v2740
        %v2742 = vpop.f32.mrf.mxu0
        %v2743 = vadd.f32 %v2724, %v2742
        %2744 = vdwg.mxu0
        %2745 = vmatpush.bf16.msra.mxu0 %v2164
        %2746 = vmatpush.bf16.msra.mxu0 %v2158
        %2747 = vmatpush.bf16.msra.mxu0 %v2152
        %2748 = vmatpush.bf16.msra.mxu0 %v2146
        %2749 = vmatpush.bf16.msra.mxu0 %v2140
        %2750 = vmatpush.bf16.msra.mxu0 %v2134
        %2751 = vmatpush.bf16.msra.mxu0 %v2128
        %2752 = vmatpush.bf16.msra.mxu0 %v2122
        %2753 = vmatmul.bf16.gmra.mxu0 %v682
        %v2754 = vpop.f32.mrf.mxu0
        %v2755 = vadd.f32 %v2736, %v2754
        %v2756 = vpop.f32.mrf.mxu0
        %v2757 = vadd.f32 %v2738, %v2756
        %2758 = vmatmul.bf16.gmra.mxu0 %v681
        %v2759 = vpop.f32.mrf.mxu0
        %v2760 = vadd.f32 %v2741, %v2759
        %v2761 = vpop.f32.mrf.mxu0
        %v2762 = vadd.f32 %v2743, %v2761
        %2763 = vdwg.mxu0
        %2764 = vmatpush.bf16.msra.mxu0 %v2212
        %2765 = vmatpush.bf16.msra.mxu0 %v2206
        %2766 = vmatpush.bf16.msra.mxu0 %v2200
        %2767 = vmatpush.bf16.msra.mxu0 %v2194
        %2768 = vmatpush.bf16.msra.mxu0 %v2188
        %2769 = vmatpush.bf16.msra.mxu0 %v2182
        %2770 = vmatpush.bf16.msra.mxu0 %v2176
        %2771 = vmatpush.bf16.msra.mxu0 %v2170
        %2772 = vmatmul.bf16.gmra.mxu0 %v705
        %v2773 = vpop.f32.mrf.mxu0
        %v2774 = vadd.f32 %v2755, %v2773
        %v2775 = vpop.f32.mrf.mxu0
        %v2776 = vadd.f32 %v2757, %v2775
        %2777 = vmatmul.bf16.gmra.mxu0 %v704
        %v2778 = vpop.f32.mrf.mxu0
        %v2779 = vadd.f32 %v2760, %v2778
        %v2780 = vpop.f32.mrf.mxu0
        %v2781 = vadd.f32 %v2762, %v2780
        %2782 = vdwg.mxu0
        %2783 = vmatpush.bf16.msra.mxu0 %v2260
        %2784 = vmatpush.bf16.msra.mxu0 %v2254
        %2785 = vmatpush.bf16.msra.mxu0 %v2248
        %2786 = vmatpush.bf16.msra.mxu0 %v2242
        %2787 = vmatpush.bf16.msra.mxu0 %v2236
        %2788 = vmatpush.bf16.msra.mxu0 %v2230
        %2789 = vmatpush.bf16.msra.mxu0 %v2224
        %2790 = vmatpush.bf16.msra.mxu0 %v2218
        %2791 = vmatmul.bf16.gmra.mxu0 %v727
        %v2792 = vpop.f32.mrf.mxu0
        %v2793 = vadd.f32 %v2774, %v2792
        %v2794 = vpop.f32.mrf.mxu0
        %v2795 = vadd.f32 %v2776, %v2794
        %2796 = vmatmul.bf16.gmra.mxu0 %v726
        %v2797 = vpop.f32.mrf.mxu0
        %v2798 = vadd.f32 %v2779, %v2797
        %v2799 = vpop.f32.mrf.mxu0
        %v2800 = vadd.f32 %v2781, %v2799
        %2801 = vdwg.mxu0
        %2802 = vmatpush.bf16.msra.mxu0 %v1925
        %2803 = vmatpush.bf16.msra.mxu0 %v1919
        %2804 = vmatpush.bf16.msra.mxu0 %v1913
        %2805 = vmatpush.bf16.msra.mxu0 %v1907
        %2806 = vmatpush.bf16.msra.mxu0 %v1901
        %2807 = vmatpush.bf16.msra.mxu0 %v1895
        %2808 = vmatpush.bf16.msra.mxu0 %v1889
        %2809 = vmatpush.bf16.msra.mxu0 %v1883
        %2810 = vmatmul.bf16.gmra.mxu0 %v611
        %v2811 = vpop.f32.mrf.mxu0
        %v2812 = vadd.f32 0.0, %v2811
        %v2813 = vpop.f32.mrf.mxu0
        %v2814 = vadd.f32 0.0, %v2813
        %2815 = vmatmul.bf16.gmra.mxu0 %v612
        %v2816 = vpop.f32.mrf.mxu0
        %v2817 = vadd.f32 0.0, %v2816
        %v2818 = vpop.f32.mrf.mxu0
        %v2819 = vadd.f32 0.0, %v2818
        %2820 = vdwg.mxu0
        %2821 = vmatpush.bf16.msra.mxu0 %v1973
        %2822 = vmatpush.bf16.msra.mxu0 %v1967
        %2823 = vmatpush.bf16.msra.mxu0 %v1961
        %2824 = vmatpush.bf16.msra.mxu0 %v1955
        %2825 = vmatpush.bf16.msra.mxu0 %v1949
        %2826 = vmatpush.bf16.msra.mxu0 %v1943
        %2827 = vmatpush.bf16.msra.mxu0 %v1937
        %2828 = vmatpush.bf16.msra.mxu0 %v1931
        %2829 = vmatmul.bf16.gmra.mxu0 %v623
        %v2830 = vpop.f32.mrf.mxu0
        %v2831 = vadd.f32 %v2812, %v2830
        %v2832 = vpop.f32.mrf.mxu0
        %v2833 = vadd.f32 %v2814, %v2832
        %2834 = vmatmul.bf16.gmra.mxu0 %v624
        %v2835 = vpop.f32.mrf.mxu0
        %v2836 = vadd.f32 %v2817, %v2835
        %v2837 = vpop.f32.mrf.mxu0
        %v2838 = vadd.f32 %v2819, %v2837
        %2839 = vdwg.mxu0
        %2840 = vmatpush.bf16.msra.mxu0 %v2021
        %2841 = vmatpush.bf16.msra.mxu0 %v2015
        %2842 = vmatpush.bf16.msra.mxu0 %v2009
        %2843 = vmatpush.bf16.msra.mxu0 %v2003
        %2844 = vmatpush.bf16.msra.mxu0 %v1997
        %2845 = vmatpush.bf16.msra.mxu0 %v1991
        %2846 = vmatpush.bf16.msra.mxu0 %v1985
        %2847 = vmatpush.bf16.msra.mxu0 %v1979
        %2848 = vmatmul.bf16.gmra.mxu0 %v642
        %v2849 = vpop.f32.mrf.mxu0
        %v2850 = vadd.f32 %v2831, %v2849
        %v2851 = vpop.f32.mrf.mxu0
        %v2852 = vadd.f32 %v2833, %v2851
        %2853 = vmatmul.bf16.gmra.mxu0 %v645
        %v2854 = vpop.f32.mrf.mxu0
        %v2855 = vadd.f32 %v2836, %v2854
        %v2856 = vpop.f32.mrf.mxu0
        %v2857 = vadd.f32 %v2838, %v2856
        %2858 = vdwg.mxu0
        %2859 = vmatpush.bf16.msra.mxu0 %v2069
        %2860 = vmatpush.bf16.msra.mxu0 %v2063
        %2861 = vmatpush.bf16.msra.mxu0 %v2057
        %2862 = vmatpush.bf16.msra.mxu0 %v2051
        %2863 = vmatpush.bf16.msra.mxu0 %v2045
        %2864 = vmatpush.bf16.msra.mxu0 %v2039
        %2865 = vmatpush.bf16.msra.mxu0 %v2033
        %2866 = vmatpush.bf16.msra.mxu0 %v2027
        %2867 = vmatmul.bf16.gmra.mxu0 %v662
        %v2868 = vpop.f32.mrf.mxu0
        %v2869 = vadd.f32 %v2850, %v2868
        %v2870 = vpop.f32.mrf.mxu0
        %v2871 = vadd.f32 %v2852, %v2870
        %2872 = vmatmul.bf16.gmra.mxu0 %v665
        %v2873 = vpop.f32.mrf.mxu0
        %v2874 = vadd.f32 %v2855, %v2873
        %v2875 = vpop.f32.mrf.mxu0
        %v2876 = vadd.f32 %v2857, %v2875
        %2877 = vdwg.mxu0
        %2878 = vmatpush.bf16.msra.mxu0 %v2117
        %2879 = vmatpush.bf16.msra.mxu0 %v2111
        %2880 = vmatpush.bf16.msra.mxu0 %v2105
        %2881 = vmatpush.bf16.msra.mxu0 %v2099
        %2882 = vmatpush.bf16.msra.mxu0 %v2093
        %2883 = vmatpush.bf16.msra.mxu0 %v2087
        %2884 = vmatpush.bf16.msra.mxu0 %v2081
        %2885 = vmatpush.bf16.msra.mxu0 %v2075
        %2886 = vmatmul.bf16.gmra.mxu0 %v674
        %v2887 = vpop.f32.mrf.mxu0
        %v2888 = vadd.f32 %v2869, %v2887
        %v2889 = vpop.f32.mrf.mxu0
        %v2890 = vadd.f32 %v2871, %v2889
        %2891 = vmatmul.bf16.gmra.mxu0 %v673
        %v2892 = vpop.f32.mrf.mxu0
        %v2893 = vadd.f32 %v2874, %v2892
        %v2894 = vpop.f32.mrf.mxu0
        %v2895 = vadd.f32 %v2876, %v2894
        %2896 = vdwg.mxu0
        %2897 = vmatpush.bf16.msra.mxu0 %v2165
        %2898 = vmatpush.bf16.msra.mxu0 %v2159
        %2899 = vmatpush.bf16.msra.mxu0 %v2153
        %2900 = vmatpush.bf16.msra.mxu0 %v2147
        %2901 = vmatpush.bf16.msra.mxu0 %v2141
        %2902 = vmatpush.bf16.msra.mxu0 %v2135
        %2903 = vmatpush.bf16.msra.mxu0 %v2129
        %2904 = vmatpush.bf16.msra.mxu0 %v2123
        %2905 = vmatmul.bf16.gmra.mxu0 %v682
        %v2906 = vpop.f32.mrf.mxu0
        %v2907 = vadd.f32 %v2888, %v2906
        %v2908 = vpop.f32.mrf.mxu0
        %v2909 = vadd.f32 %v2890, %v2908
        %2910 = vmatmul.bf16.gmra.mxu0 %v681
        %v2911 = vpop.f32.mrf.mxu0
        %v2912 = vadd.f32 %v2893, %v2911
        %v2913 = vpop.f32.mrf.mxu0
        %v2914 = vadd.f32 %v2895, %v2913
        %2915 = vdwg.mxu0
        %2916 = vmatpush.bf16.msra.mxu0 %v2213
        %2917 = vmatpush.bf16.msra.mxu0 %v2207
        %2918 = vmatpush.bf16.msra.mxu0 %v2201
        %2919 = vmatpush.bf16.msra.mxu0 %v2195
        %2920 = vmatpush.bf16.msra.mxu0 %v2189
        %2921 = vmatpush.bf16.msra.mxu0 %v2183
        %2922 = vmatpush.bf16.msra.mxu0 %v2177
        %2923 = vmatpush.bf16.msra.mxu0 %v2171
        %2924 = vmatmul.bf16.gmra.mxu0 %v705
        %v2925 = vpop.f32.mrf.mxu0
        %v2926 = vadd.f32 %v2907, %v2925
        %v2927 = vpop.f32.mrf.mxu0
        %v2928 = vadd.f32 %v2909, %v2927
        %2929 = vmatmul.bf16.gmra.mxu0 %v704
        %v2930 = vpop.f32.mrf.mxu0
        %v2931 = vadd.f32 %v2912, %v2930
        %v2932 = vpop.f32.mrf.mxu0
        %v2933 = vadd.f32 %v2914, %v2932
        %2934 = vdwg.mxu0
        %2935 = vmatpush.bf16.msra.mxu0 %v2261
        %2936 = vmatpush.bf16.msra.mxu0 %v2255
        %2937 = vmatpush.bf16.msra.mxu0 %v2249
        %2938 = vmatpush.bf16.msra.mxu0 %v2243
        %2939 = vmatpush.bf16.msra.mxu0 %v2237
        %2940 = vmatpush.bf16.msra.mxu0 %v2231
        %2941 = vmatpush.bf16.msra.mxu0 %v2225
        %2942 = vmatpush.bf16.msra.mxu0 %v2219
        %2943 = vmatmul.bf16.gmra.mxu0 %v727
        %v2944 = vpop.f32.mrf.mxu0
        %v2945 = vadd.f32 %v2926, %v2944
        %v2946 = vpop.f32.mrf.mxu0
        %v2947 = vadd.f32 %v2928, %v2946
        %2948 = vmatmul.bf16.gmra.mxu0 %v726
        %v2949 = vpop.f32.mrf.mxu0
        %v2950 = vadd.f32 %v2931, %v2949
        %v2951 = vpop.f32.mrf.mxu0
        %v2952 = vadd.f32 %v2933, %v2951
        %2953 = vdwg.mxu0
        %2954 = vmatpush.bf16.msra.mxu0 %v1926
        %2955 = vmatpush.bf16.msra.mxu0 %v1920
        %2956 = vmatpush.bf16.msra.mxu0 %v1914
        %2957 = vmatpush.bf16.msra.mxu0 %v1908
        %2958 = vmatpush.bf16.msra.mxu0 %v1902
        %2959 = vmatpush.bf16.msra.mxu0 %v1896
        %2960 = vmatpush.bf16.msra.mxu0 %v1890
        %2961 = vmatpush.bf16.msra.mxu0 %v1884
        %2962 = vmatmul.bf16.gmra.mxu0 %v611
        %v2963 = vpop.f32.mrf.mxu0
        %v2964 = vadd.f32 0.0, %v2963
        %v2965 = vpop.f32.mrf.mxu0
        %v2966 = vadd.f32 0.0, %v2965
        %2967 = vmatmul.bf16.gmra.mxu0 %v612
        %v2968 = vpop.f32.mrf.mxu0
        %v2969 = vadd.f32 0.0, %v2968
        %v2970 = vpop.f32.mrf.mxu0
        %v2971 = vadd.f32 0.0, %v2970
        %2972 = vdwg.mxu0
        %2973 = vmatpush.bf16.msra.mxu0 %v1974
        %2974 = vmatpush.bf16.msra.mxu0 %v1968
        %2975 = vmatpush.bf16.msra.mxu0 %v1962
        %2976 = vmatpush.bf16.msra.mxu0 %v1956
        %2977 = vmatpush.bf16.msra.mxu0 %v1950
        %2978 = vmatpush.bf16.msra.mxu0 %v1944
        %2979 = vmatpush.bf16.msra.mxu0 %v1938
        %2980 = vmatpush.bf16.msra.mxu0 %v1932
        %2981 = vmatmul.bf16.gmra.mxu0 %v623
        %v2982 = vpop.f32.mrf.mxu0
        %v2983 = vadd.f32 %v2964, %v2982
        %v2984 = vpop.f32.mrf.mxu0
        %v2985 = vadd.f32 %v2966, %v2984
        %2986 = vmatmul.bf16.gmra.mxu0 %v624
        %v2987 = vpop.f32.mrf.mxu0
        %v2988 = vadd.f32 %v2969, %v2987
        %v2989 = vpop.f32.mrf.mxu0
        %v2990 = vadd.f32 %v2971, %v2989
        %2991 = vdwg.mxu0
        %2992 = vmatpush.bf16.msra.mxu0 %v2022
        %2993 = vmatpush.bf16.msra.mxu0 %v2016
        %2994 = vmatpush.bf16.msra.mxu0 %v2010
        %2995 = vmatpush.bf16.msra.mxu0 %v2004
        %2996 = vmatpush.bf16.msra.mxu0 %v1998
        %2997 = vmatpush.bf16.msra.mxu0 %v1992
        %2998 = vmatpush.bf16.msra.mxu0 %v1986
        %2999 = vmatpush.bf16.msra.mxu0 %v1980
        %3000 = vmatmul.bf16.gmra.mxu0 %v642
        %v3001 = vpop.f32.mrf.mxu0
        %v3002 = vadd.f32 %v2983, %v3001
        %v3003 = vpop.f32.mrf.mxu0
        %v3004 = vadd.f32 %v2985, %v3003
        %3005 = vmatmul.bf16.gmra.mxu0 %v645
        %v3006 = vpop.f32.mrf.mxu0
        %v3007 = vadd.f32 %v2988, %v3006
        %v3008 = vpop.f32.mrf.mxu0
        %v3009 = vadd.f32 %v2990, %v3008
        %3010 = vdwg.mxu0
        %3011 = vmatpush.bf16.msra.mxu0 %v2070
        %3012 = vmatpush.bf16.msra.mxu0 %v2064
        %3013 = vmatpush.bf16.msra.mxu0 %v2058
        %3014 = vmatpush.bf16.msra.mxu0 %v2052
        %3015 = vmatpush.bf16.msra.mxu0 %v2046
        %3016 = vmatpush.bf16.msra.mxu0 %v2040
        %3017 = vmatpush.bf16.msra.mxu0 %v2034
        %3018 = vmatpush.bf16.msra.mxu0 %v2028
        %3019 = vmatmul.bf16.gmra.mxu0 %v662
        %v3020 = vpop.f32.mrf.mxu0
        %v3021 = vadd.f32 %v3002, %v3020
        %v3022 = vpop.f32.mrf.mxu0
        %v3023 = vadd.f32 %v3004, %v3022
        %3024 = vmatmul.bf16.gmra.mxu0 %v665
        %v3025 = vpop.f32.mrf.mxu0
        %v3026 = vadd.f32 %v3007, %v3025
        %v3027 = vpop.f32.mrf.mxu0
        %v3028 = vadd.f32 %v3009, %v3027
        %3029 = vdwg.mxu0
        %3030 = vmatpush.bf16.msra.mxu0 %v2118
        %3031 = vmatpush.bf16.msra.mxu0 %v2112
        %3032 = vmatpush.bf16.msra.mxu0 %v2106
        %3033 = vmatpush.bf16.msra.mxu0 %v2100
        %3034 = vmatpush.bf16.msra.mxu0 %v2094
        %3035 = vmatpush.bf16.msra.mxu0 %v2088
        %3036 = vmatpush.bf16.msra.mxu0 %v2082
        %3037 = vmatpush.bf16.msra.mxu0 %v2076
        %3038 = vmatmul.bf16.gmra.mxu0 %v674
        %v3039 = vpop.f32.mrf.mxu0
        %v3040 = vadd.f32 %v3021, %v3039
        %v3041 = vpop.f32.mrf.mxu0
        %v3042 = vadd.f32 %v3023, %v3041
        %3043 = vmatmul.bf16.gmra.mxu0 %v673
        %v3044 = vpop.f32.mrf.mxu0
        %v3045 = vadd.f32 %v3026, %v3044
        %v3046 = vpop.f32.mrf.mxu0
        %v3047 = vadd.f32 %v3028, %v3046
        %3048 = vdwg.mxu0
        %3049 = vmatpush.bf16.msra.mxu0 %v2166
        %3050 = vmatpush.bf16.msra.mxu0 %v2160
        %3051 = vmatpush.bf16.msra.mxu0 %v2154
        %3052 = vmatpush.bf16.msra.mxu0 %v2148
        %3053 = vmatpush.bf16.msra.mxu0 %v2142
        %3054 = vmatpush.bf16.msra.mxu0 %v2136
        %3055 = vmatpush.bf16.msra.mxu0 %v2130
        %3056 = vmatpush.bf16.msra.mxu0 %v2124
        %3057 = vmatmul.bf16.gmra.mxu0 %v682
        %v3058 = vpop.f32.mrf.mxu0
        %v3059 = vadd.f32 %v3040, %v3058
        %v3060 = vpop.f32.mrf.mxu0
        %v3061 = vadd.f32 %v3042, %v3060
        %3062 = vmatmul.bf16.gmra.mxu0 %v681
        %v3063 = vpop.f32.mrf.mxu0
        %v3064 = vadd.f32 %v3045, %v3063
        %v3065 = vpop.f32.mrf.mxu0
        %v3066 = vadd.f32 %v3047, %v3065
        %3067 = vdwg.mxu0
        %3068 = vmatpush.bf16.msra.mxu0 %v2214
        %3069 = vmatpush.bf16.msra.mxu0 %v2208
        %3070 = vmatpush.bf16.msra.mxu0 %v2202
        %3071 = vmatpush.bf16.msra.mxu0 %v2196
        %3072 = vmatpush.bf16.msra.mxu0 %v2190
        %3073 = vmatpush.bf16.msra.mxu0 %v2184
        %3074 = vmatpush.bf16.msra.mxu0 %v2178
        %3075 = vmatpush.bf16.msra.mxu0 %v2172
        %3076 = vmatmul.bf16.gmra.mxu0 %v705
        %v3077 = vpop.f32.mrf.mxu0
        %v3078 = vadd.f32 %v3059, %v3077
        %v3079 = vpop.f32.mrf.mxu0
        %v3080 = vadd.f32 %v3061, %v3079
        %3081 = vmatmul.bf16.gmra.mxu0 %v704
        %v3082 = vpop.f32.mrf.mxu0
        %v3083 = vadd.f32 %v3064, %v3082
        %v3084 = vpop.f32.mrf.mxu0
        %v3085 = vadd.f32 %v3066, %v3084
        %3086 = vdwg.mxu0
        %3087 = vmatpush.bf16.msra.mxu0 %v2262
        %3088 = vmatpush.bf16.msra.mxu0 %v2256
        %3089 = vmatpush.bf16.msra.mxu0 %v2250
        %3090 = vmatpush.bf16.msra.mxu0 %v2244
        %3091 = vmatpush.bf16.msra.mxu0 %v2238
        %3092 = vmatpush.bf16.msra.mxu0 %v2232
        %3093 = vmatpush.bf16.msra.mxu0 %v2226
        %3094 = vmatpush.bf16.msra.mxu0 %v2220
        %3095 = vmatmul.bf16.gmra.mxu0 %v727
        %v3096 = vpop.f32.mrf.mxu0
        %v3097 = vadd.f32 %v3078, %v3096
        %v3098 = vpop.f32.mrf.mxu0
        %v3099 = vadd.f32 %v3080, %v3098
        %3100 = vmatmul.bf16.gmra.mxu0 %v726
        %v3101 = vpop.f32.mrf.mxu0
        %v3102 = vadd.f32 %v3083, %v3101
        %v3103 = vpop.f32.mrf.mxu0
        %v3104 = vadd.f32 %v3085, %v3103
        %3105 = vdwg.mxu0
        %3106 = vmatpush.bf16.msra.mxu0 %v1927
        %3107 = vmatpush.bf16.msra.mxu0 %v1921
        %3108 = vmatpush.bf16.msra.mxu0 %v1915
        %3109 = vmatpush.bf16.msra.mxu0 %v1909
        %3110 = vmatpush.bf16.msra.mxu0 %v1903
        %3111 = vmatpush.bf16.msra.mxu0 %v1897
        %3112 = vmatpush.bf16.msra.mxu0 %v1891
        %3113 = vmatpush.bf16.msra.mxu0 %v1885
        %3114 = vmatmul.bf16.gmra.mxu0 %v611
        %v3115 = vpop.f32.mrf.mxu0
        %v3116 = vadd.f32 0.0, %v3115
        %v3117 = vpop.f32.mrf.mxu0
        %v3118 = vadd.f32 0.0, %v3117
        %3119 = vmatmul.bf16.gmra.mxu0 %v612
        %v3120 = vpop.f32.mrf.mxu0
        %v3121 = vadd.f32 0.0, %v3120
        %v3122 = vpop.f32.mrf.mxu0
        %v3123 = vadd.f32 0.0, %v3122
        %3124 = vdwg.mxu0
        %3125 = vmatpush.bf16.msra.mxu0 %v1975
        %3126 = vmatpush.bf16.msra.mxu0 %v1969
        %3127 = vmatpush.bf16.msra.mxu0 %v1963
        %3128 = vmatpush.bf16.msra.mxu0 %v1957
        %3129 = vmatpush.bf16.msra.mxu0 %v1951
        %3130 = vmatpush.bf16.msra.mxu0 %v1945
        %3131 = vmatpush.bf16.msra.mxu0 %v1939
        %3132 = vmatpush.bf16.msra.mxu0 %v1933
        %3133 = vmatmul.bf16.gmra.mxu0 %v623
        %v3134 = vpop.f32.mrf.mxu0
        %v3135 = vadd.f32 %v3116, %v3134
        %v3136 = vpop.f32.mrf.mxu0
        %v3137 = vadd.f32 %v3118, %v3136
        %3138 = vmatmul.bf16.gmra.mxu0 %v624
        %v3139 = vpop.f32.mrf.mxu0
        %v3140 = vadd.f32 %v3121, %v3139
        %v3141 = vpop.f32.mrf.mxu0
        %v3142 = vadd.f32 %v3123, %v3141
        %3143 = vdwg.mxu0
        %3144 = vmatpush.bf16.msra.mxu0 %v2023
        %3145 = vmatpush.bf16.msra.mxu0 %v2017
        %3146 = vmatpush.bf16.msra.mxu0 %v2011
        %3147 = vmatpush.bf16.msra.mxu0 %v2005
        %3148 = vmatpush.bf16.msra.mxu0 %v1999
        %3149 = vmatpush.bf16.msra.mxu0 %v1993
        %3150 = vmatpush.bf16.msra.mxu0 %v1987
        %3151 = vmatpush.bf16.msra.mxu0 %v1981
        %3152 = vmatmul.bf16.gmra.mxu0 %v642
        %v3153 = vpop.f32.mrf.mxu0
        %v3154 = vadd.f32 %v3135, %v3153
        %v3155 = vpop.f32.mrf.mxu0
        %v3156 = vadd.f32 %v3137, %v3155
        %3157 = vmatmul.bf16.gmra.mxu0 %v645
        %v3158 = vpop.f32.mrf.mxu0
        %v3159 = vadd.f32 %v3140, %v3158
        %v3160 = vpop.f32.mrf.mxu0
        %v3161 = vadd.f32 %v3142, %v3160
        %3162 = vdwg.mxu0
        %3163 = vmatpush.bf16.msra.mxu0 %v2071
        %3164 = vmatpush.bf16.msra.mxu0 %v2065
        %3165 = vmatpush.bf16.msra.mxu0 %v2059
        %3166 = vmatpush.bf16.msra.mxu0 %v2053
        %3167 = vmatpush.bf16.msra.mxu0 %v2047
        %3168 = vmatpush.bf16.msra.mxu0 %v2041
        %3169 = vmatpush.bf16.msra.mxu0 %v2035
        %3170 = vmatpush.bf16.msra.mxu0 %v2029
        %3171 = vmatmul.bf16.gmra.mxu0 %v662
        %v3172 = vpop.f32.mrf.mxu0
        %v3173 = vadd.f32 %v3154, %v3172
        %v3174 = vpop.f32.mrf.mxu0
        %v3175 = vadd.f32 %v3156, %v3174
        %3176 = vmatmul.bf16.gmra.mxu0 %v665
        %v3177 = vpop.f32.mrf.mxu0
        %v3178 = vadd.f32 %v3159, %v3177
        %v3179 = vpop.f32.mrf.mxu0
        %v3180 = vadd.f32 %v3161, %v3179
        %3181 = vdwg.mxu0
        %3182 = vmatpush.bf16.msra.mxu0 %v2119
        %3183 = vmatpush.bf16.msra.mxu0 %v2113
        %3184 = vmatpush.bf16.msra.mxu0 %v2107
        %3185 = vmatpush.bf16.msra.mxu0 %v2101
        %3186 = vmatpush.bf16.msra.mxu0 %v2095
        %3187 = vmatpush.bf16.msra.mxu0 %v2089
        %3188 = vmatpush.bf16.msra.mxu0 %v2083
        %3189 = vmatpush.bf16.msra.mxu0 %v2077
        %3190 = vmatmul.bf16.gmra.mxu0 %v674
        %v3191 = vpop.f32.mrf.mxu0
        %v3192 = vadd.f32 %v3173, %v3191
        %v3193 = vpop.f32.mrf.mxu0
        %v3194 = vadd.f32 %v3175, %v3193
        %3195 = vmatmul.bf16.gmra.mxu0 %v673
        %v3196 = vpop.f32.mrf.mxu0
        %v3197 = vadd.f32 %v3178, %v3196
        %v3198 = vpop.f32.mrf.mxu0
        %v3199 = vadd.f32 %v3180, %v3198
        %3200 = vdwg.mxu0
        %3201 = vmatpush.bf16.msra.mxu0 %v2167
        %3202 = vmatpush.bf16.msra.mxu0 %v2161
        %3203 = vmatpush.bf16.msra.mxu0 %v2155
        %3204 = vmatpush.bf16.msra.mxu0 %v2149
        %3205 = vmatpush.bf16.msra.mxu0 %v2143
        %3206 = vmatpush.bf16.msra.mxu0 %v2137
        %3207 = vmatpush.bf16.msra.mxu0 %v2131
        %3208 = vmatpush.bf16.msra.mxu0 %v2125
        %3209 = vmatmul.bf16.gmra.mxu0 %v682
        %v3210 = vpop.f32.mrf.mxu0
        %v3211 = vadd.f32 %v3192, %v3210
        %v3212 = vpop.f32.mrf.mxu0
        %v3213 = vadd.f32 %v3194, %v3212
        %3214 = vmatmul.bf16.gmra.mxu0 %v681
        %v3215 = vpop.f32.mrf.mxu0
        %v3216 = vadd.f32 %v3197, %v3215
        %v3217 = vpop.f32.mrf.mxu0
        %v3218 = vadd.f32 %v3199, %v3217
        %3219 = vdwg.mxu0
        %3220 = vmatpush.bf16.msra.mxu0 %v2215
        %3221 = vmatpush.bf16.msra.mxu0 %v2209
        %3222 = vmatpush.bf16.msra.mxu0 %v2203
        %3223 = vmatpush.bf16.msra.mxu0 %v2197
        %3224 = vmatpush.bf16.msra.mxu0 %v2191
        %3225 = vmatpush.bf16.msra.mxu0 %v2185
        %3226 = vmatpush.bf16.msra.mxu0 %v2179
        %3227 = vmatpush.bf16.msra.mxu0 %v2173
        %3228 = vmatmul.bf16.gmra.mxu0 %v705
        %v3229 = vpop.f32.mrf.mxu0
        %v3230 = vadd.f32 %v3211, %v3229
        %v3231 = vpop.f32.mrf.mxu0
        %v3232 = vadd.f32 %v3213, %v3231
        %3233 = vmatmul.bf16.gmra.mxu0 %v704
        %v3234 = vpop.f32.mrf.mxu0
        %v3235 = vadd.f32 %v3216, %v3234
        %v3236 = vpop.f32.mrf.mxu0
        %v3237 = vadd.f32 %v3218, %v3236
        %3238 = vdwg.mxu0
        %3239 = vmatpush.bf16.msra.mxu0 %v2263
        %3240 = vmatpush.bf16.msra.mxu0 %v2257
        %3241 = vmatpush.bf16.msra.mxu0 %v2251
        %3242 = vmatpush.bf16.msra.mxu0 %v2245
        %3243 = vmatpush.bf16.msra.mxu0 %v2239
        %3244 = vmatpush.bf16.msra.mxu0 %v2233
        %3245 = vmatpush.bf16.msra.mxu0 %v2227
        %3246 = vmatpush.bf16.msra.mxu0 %v2221
        %3247 = vmatmul.bf16.gmra.mxu0 %v727
        %v3248 = vpop.f32.mrf.mxu0
        %v3249 = vadd.f32 %v3230, %v3248
        %v3250 = vpop.f32.mrf.mxu0
        %v3251 = vadd.f32 %v3232, %v3250
        %3252 = vmatmul.bf16.gmra.mxu0 %v726
        %v3253 = vpop.f32.mrf.mxu0
        %v3254 = vadd.f32 %v3235, %v3253
        %v3255 = vpop.f32.mrf.mxu0
        %v3256 = vadd.f32 %v3237, %v3255
        %3257 = vdwg.mxu0
        %3258 = vmatpush.bf16.msra.mxu0 %v1928
        %3259 = vmatpush.bf16.msra.mxu0 %v1922
        %3260 = vmatpush.bf16.msra.mxu0 %v1916
        %3261 = vmatpush.bf16.msra.mxu0 %v1910
        %3262 = vmatpush.bf16.msra.mxu0 %v1904
        %3263 = vmatpush.bf16.msra.mxu0 %v1898
        %3264 = vmatpush.bf16.msra.mxu0 %v1892
        %3265 = vmatpush.bf16.msra.mxu0 %v1886
        %3266 = vmatmul.bf16.gmra.mxu0 %v611
        %v3267 = vpop.f32.mrf.mxu0
        %v3268 = vadd.f32 0.0, %v3267
        %v3269 = vpop.f32.mrf.mxu0
        %v3270 = vadd.f32 0.0, %v3269
        %3271 = vmatmul.bf16.gmra.mxu0 %v612
        %v3272 = vpop.f32.mrf.mxu0
        %v3273 = vadd.f32 0.0, %v3272
        %v3274 = vpop.f32.mrf.mxu0
        %v3275 = vadd.f32 0.0, %v3274
        %3276 = vdwg.mxu0
        %3277 = vmatpush.bf16.msra.mxu0 %v1976
        %3278 = vmatpush.bf16.msra.mxu0 %v1970
        %3279 = vmatpush.bf16.msra.mxu0 %v1964
        %3280 = vmatpush.bf16.msra.mxu0 %v1958
        %3281 = vmatpush.bf16.msra.mxu0 %v1952
        %3282 = vmatpush.bf16.msra.mxu0 %v1946
        %3283 = vmatpush.bf16.msra.mxu0 %v1940
        %3284 = vmatpush.bf16.msra.mxu0 %v1934
        %3285 = vmatmul.bf16.gmra.mxu0 %v623
        %v3286 = vpop.f32.mrf.mxu0
        %v3287 = vadd.f32 %v3268, %v3286
        %v3288 = vpop.f32.mrf.mxu0
        %v3289 = vadd.f32 %v3270, %v3288
        %3290 = vmatmul.bf16.gmra.mxu0 %v624
        %v3291 = vpop.f32.mrf.mxu0
        %v3292 = vadd.f32 %v3273, %v3291
        %v3293 = vpop.f32.mrf.mxu0
        %v3294 = vadd.f32 %v3275, %v3293
        %3295 = vdwg.mxu0
        %3296 = vmatpush.bf16.msra.mxu0 %v2024
        %3297 = vmatpush.bf16.msra.mxu0 %v2018
        %3298 = vmatpush.bf16.msra.mxu0 %v2012
        %3299 = vmatpush.bf16.msra.mxu0 %v2006
        %3300 = vmatpush.bf16.msra.mxu0 %v2000
        %3301 = vmatpush.bf16.msra.mxu0 %v1994
        %3302 = vmatpush.bf16.msra.mxu0 %v1988
        %3303 = vmatpush.bf16.msra.mxu0 %v1982
        %3304 = vmatmul.bf16.gmra.mxu0 %v642
        %v3305 = vpop.f32.mrf.mxu0
        %v3306 = vadd.f32 %v3287, %v3305
        %v3307 = vpop.f32.mrf.mxu0
        %v3308 = vadd.f32 %v3289, %v3307
        %3309 = vmatmul.bf16.gmra.mxu0 %v645
        %v3310 = vpop.f32.mrf.mxu0
        %v3311 = vadd.f32 %v3292, %v3310
        %v3312 = vpop.f32.mrf.mxu0
        %v3313 = vadd.f32 %v3294, %v3312
        %3314 = vdwg.mxu0
        %3315 = vmatpush.bf16.msra.mxu0 %v2072
        %3316 = vmatpush.bf16.msra.mxu0 %v2066
        %3317 = vmatpush.bf16.msra.mxu0 %v2060
        %3318 = vmatpush.bf16.msra.mxu0 %v2054
        %3319 = vmatpush.bf16.msra.mxu0 %v2048
        %3320 = vmatpush.bf16.msra.mxu0 %v2042
        %3321 = vmatpush.bf16.msra.mxu0 %v2036
        %3322 = vmatpush.bf16.msra.mxu0 %v2030
        %3323 = vmatmul.bf16.gmra.mxu0 %v662
        %v3324 = vpop.f32.mrf.mxu0
        %v3325 = vadd.f32 %v3306, %v3324
        %v3326 = vpop.f32.mrf.mxu0
        %v3327 = vadd.f32 %v3308, %v3326
        %3328 = vmatmul.bf16.gmra.mxu0 %v665
        %v3329 = vpop.f32.mrf.mxu0
        %v3330 = vadd.f32 %v3311, %v3329
        %v3331 = vpop.f32.mrf.mxu0
        %v3332 = vadd.f32 %v3313, %v3331
        %3333 = vdwg.mxu0
        %3334 = vmatpush.bf16.msra.mxu0 %v2120
        %3335 = vmatpush.bf16.msra.mxu0 %v2114
        %3336 = vmatpush.bf16.msra.mxu0 %v2108
        %3337 = vmatpush.bf16.msra.mxu0 %v2102
        %3338 = vmatpush.bf16.msra.mxu0 %v2096
        %3339 = vmatpush.bf16.msra.mxu0 %v2090
        %3340 = vmatpush.bf16.msra.mxu0 %v2084
        %3341 = vmatpush.bf16.msra.mxu0 %v2078
        %3342 = vmatmul.bf16.gmra.mxu0 %v674
        %v3343 = vpop.f32.mrf.mxu0
        %v3344 = vadd.f32 %v3325, %v3343
        %v3345 = vpop.f32.mrf.mxu0
        %v3346 = vadd.f32 %v3327, %v3345
        %3347 = vmatmul.bf16.gmra.mxu0 %v673
        %v3348 = vpop.f32.mrf.mxu0
        %v3349 = vadd.f32 %v3330, %v3348
        %v3350 = vpop.f32.mrf.mxu0
        %v3351 = vadd.f32 %v3332, %v3350
        %3352 = vdwg.mxu0
        %3353 = vmatpush.bf16.msra.mxu0 %v2168
        %3354 = vmatpush.bf16.msra.mxu0 %v2162
        %3355 = vmatpush.bf16.msra.mxu0 %v2156
        %3356 = vmatpush.bf16.msra.mxu0 %v2150
        %3357 = vmatpush.bf16.msra.mxu0 %v2144
        %3358 = vmatpush.bf16.msra.mxu0 %v2138
        %3359 = vmatpush.bf16.msra.mxu0 %v2132
        %3360 = vmatpush.bf16.msra.mxu0 %v2126
        %3361 = vmatmul.bf16.gmra.mxu0 %v682
        %v3362 = vpop.f32.mrf.mxu0
        %v3363 = vadd.f32 %v3344, %v3362
        %v3364 = vpop.f32.mrf.mxu0
        %v3365 = vadd.f32 %v3346, %v3364
        %3366 = vmatmul.bf16.gmra.mxu0 %v681
        %v3367 = vpop.f32.mrf.mxu0
        %v3368 = vadd.f32 %v3349, %v3367
        %v3369 = vpop.f32.mrf.mxu0
        %v3370 = vadd.f32 %v3351, %v3369
        %3371 = vdwg.mxu0
        %3372 = vmatpush.bf16.msra.mxu0 %v2216
        %3373 = vmatpush.bf16.msra.mxu0 %v2210
        %3374 = vmatpush.bf16.msra.mxu0 %v2204
        %3375 = vmatpush.bf16.msra.mxu0 %v2198
        %3376 = vmatpush.bf16.msra.mxu0 %v2192
        %3377 = vmatpush.bf16.msra.mxu0 %v2186
        %3378 = vmatpush.bf16.msra.mxu0 %v2180
        %3379 = vmatpush.bf16.msra.mxu0 %v2174
        %3380 = vmatmul.bf16.gmra.mxu0 %v705
        %v3381 = vpop.f32.mrf.mxu0
        %v3382 = vadd.f32 %v3363, %v3381
        %v3383 = vpop.f32.mrf.mxu0
        %v3384 = vadd.f32 %v3365, %v3383
        %3385 = vmatmul.bf16.gmra.mxu0 %v704
        %v3386 = vpop.f32.mrf.mxu0
        %v3387 = vadd.f32 %v3368, %v3386
        %v3388 = vpop.f32.mrf.mxu0
        %v3389 = vadd.f32 %v3370, %v3388
        %3390 = vdwg.mxu0
        %3391 = vmatpush.bf16.msra.mxu0 %v2264
        %3392 = vmatpush.bf16.msra.mxu0 %v2258
        %3393 = vmatpush.bf16.msra.mxu0 %v2252
        %3394 = vmatpush.bf16.msra.mxu0 %v2246
        %3395 = vmatpush.bf16.msra.mxu0 %v2240
        %3396 = vmatpush.bf16.msra.mxu0 %v2234
        %3397 = vmatpush.bf16.msra.mxu0 %v2228
        %3398 = vmatpush.bf16.msra.mxu0 %v2222
        %3399 = vmatmul.bf16.gmra.mxu0 %v727
        %v3400 = vpop.f32.mrf.mxu0
        %v3401 = vadd.f32 %v3382, %v3400
        %v3402 = vpop.f32.mrf.mxu0
        %v3403 = vadd.f32 %v3384, %v3402
        %3404 = vmatmul.bf16.gmra.mxu0 %v726
        %v3405 = vpop.f32.mrf.mxu0
        %v3406 = vadd.f32 %v3387, %v3405
        %v3407 = vpop.f32.mrf.mxu0
        %v3408 = vadd.f32 %v3389, %v3407
        %3409 = vdwg.mxu0
        %3410 = vmatpush.bf16.msra.mxu0 %v1929
        %3411 = vmatpush.bf16.msra.mxu0 %v1923
        %3412 = vmatpush.bf16.msra.mxu0 %v1917
        %3413 = vmatpush.bf16.msra.mxu0 %v1911
        %3414 = vmatpush.bf16.msra.mxu0 %v1905
        %3415 = vmatpush.bf16.msra.mxu0 %v1899
        %3416 = vmatpush.bf16.msra.mxu0 %v1893
        %3417 = vmatpush.bf16.msra.mxu0 %v1887
        %3418 = vmatmul.bf16.gmra.mxu0 %v611
        %v3419 = vpop.f32.mrf.mxu0
        %v3420 = vadd.f32 0.0, %v3419
        %v3421 = vpop.f32.mrf.mxu0
        %v3422 = vadd.f32 0.0, %v3421
        %3423 = vmatmul.bf16.gmra.mxu0 %v612
        %v3424 = vpop.f32.mrf.mxu0
        %v3425 = vadd.f32 0.0, %v3424
        %v3426 = vpop.f32.mrf.mxu0
        %v3427 = vadd.f32 0.0, %v3426
        %3428 = vdwg.mxu0
        %3429 = vmatpush.bf16.msra.mxu0 %v1977
        %3430 = vmatpush.bf16.msra.mxu0 %v1971
        %3431 = vmatpush.bf16.msra.mxu0 %v1965
        %3432 = vmatpush.bf16.msra.mxu0 %v1959
        %3433 = vmatpush.bf16.msra.mxu0 %v1953
        %3434 = vmatpush.bf16.msra.mxu0 %v1947
        %3435 = vmatpush.bf16.msra.mxu0 %v1941
        %3436 = vmatpush.bf16.msra.mxu0 %v1935
        %3437 = vmatmul.bf16.gmra.mxu0 %v623
        %v3438 = vpop.f32.mrf.mxu0
        %v3439 = vadd.f32 %v3420, %v3438
        %v3440 = vpop.f32.mrf.mxu0
        %v3441 = vadd.f32 %v3422, %v3440
        %3442 = vmatmul.bf16.gmra.mxu0 %v624
        %v3443 = vpop.f32.mrf.mxu0
        %v3444 = vadd.f32 %v3425, %v3443
        %v3445 = vpop.f32.mrf.mxu0
        %v3446 = vadd.f32 %v3427, %v3445
        %3447 = vdwg.mxu0
        %3448 = vmatpush.bf16.msra.mxu0 %v2025
        %3449 = vmatpush.bf16.msra.mxu0 %v2019
        %3450 = vmatpush.bf16.msra.mxu0 %v2013
        %3451 = vmatpush.bf16.msra.mxu0 %v2007
        %3452 = vmatpush.bf16.msra.mxu0 %v2001
        %3453 = vmatpush.bf16.msra.mxu0 %v1995
        %3454 = vmatpush.bf16.msra.mxu0 %v1989
        %3455 = vmatpush.bf16.msra.mxu0 %v1983
        %3456 = vmatmul.bf16.gmra.mxu0 %v642
        %v3457 = vpop.f32.mrf.mxu0
        %v3458 = vadd.f32 %v3439, %v3457
        %v3459 = vpop.f32.mrf.mxu0
        %v3460 = vadd.f32 %v3441, %v3459
        %3461 = vmatmul.bf16.gmra.mxu0 %v645
        %v3462 = vpop.f32.mrf.mxu0
        %v3463 = vadd.f32 %v3444, %v3462
        %v3464 = vpop.f32.mrf.mxu0
        %v3465 = vadd.f32 %v3446, %v3464
        %3466 = vdwg.mxu0
        %3467 = vmatpush.bf16.msra.mxu0 %v2073
        %3468 = vmatpush.bf16.msra.mxu0 %v2067
        %3469 = vmatpush.bf16.msra.mxu0 %v2061
        %3470 = vmatpush.bf16.msra.mxu0 %v2055
        %3471 = vmatpush.bf16.msra.mxu0 %v2049
        %3472 = vmatpush.bf16.msra.mxu0 %v2043
        %3473 = vmatpush.bf16.msra.mxu0 %v2037
        %3474 = vmatpush.bf16.msra.mxu0 %v2031
        %3475 = vmatmul.bf16.gmra.mxu0 %v662
        %v3476 = vpop.f32.mrf.mxu0
        %v3477 = vadd.f32 %v3458, %v3476
        %v3478 = vpop.f32.mrf.mxu0
        %v3479 = vadd.f32 %v3460, %v3478
        %3480 = vmatmul.bf16.gmra.mxu0 %v665
        %v3481 = vpop.f32.mrf.mxu0
        %v3482 = vadd.f32 %v3463, %v3481
        %v3483 = vpop.f32.mrf.mxu0
        %v3484 = vadd.f32 %v3465, %v3483
        %3485 = vdwg.mxu0
        %3486 = vmatpush.bf16.msra.mxu0 %v2121
        %3487 = vmatpush.bf16.msra.mxu0 %v2115
        %3488 = vmatpush.bf16.msra.mxu0 %v2109
        %3489 = vmatpush.bf16.msra.mxu0 %v2103
        %3490 = vmatpush.bf16.msra.mxu0 %v2097
        %3491 = vmatpush.bf16.msra.mxu0 %v2091
        %3492 = vmatpush.bf16.msra.mxu0 %v2085
        %3493 = vmatpush.bf16.msra.mxu0 %v2079
        %3494 = vmatmul.bf16.gmra.mxu0 %v674
        %v3495 = vpop.f32.mrf.mxu0
        %v3496 = vadd.f32 %v3477, %v3495
        %v3497 = vpop.f32.mrf.mxu0
        %v3498 = vadd.f32 %v3479, %v3497
        %3499 = vmatmul.bf16.gmra.mxu0 %v673
        %v3500 = vpop.f32.mrf.mxu0
        %v3501 = vadd.f32 %v3482, %v3500
        %v3502 = vpop.f32.mrf.mxu0
        %v3503 = vadd.f32 %v3484, %v3502
        %3504 = vdwg.mxu0
        %3505 = vmatpush.bf16.msra.mxu0 %v2169
        %3506 = vmatpush.bf16.msra.mxu0 %v2163
        %3507 = vmatpush.bf16.msra.mxu0 %v2157
        %3508 = vmatpush.bf16.msra.mxu0 %v2151
        %3509 = vmatpush.bf16.msra.mxu0 %v2145
        %3510 = vmatpush.bf16.msra.mxu0 %v2139
        %3511 = vmatpush.bf16.msra.mxu0 %v2133
        %3512 = vmatpush.bf16.msra.mxu0 %v2127
        %3513 = vmatmul.bf16.gmra.mxu0 %v682
        %v3514 = vpop.f32.mrf.mxu0
        %v3515 = vadd.f32 %v3496, %v3514
        %v3516 = vpop.f32.mrf.mxu0
        %v3517 = vadd.f32 %v3498, %v3516
        %3518 = vmatmul.bf16.gmra.mxu0 %v681
        %v3519 = vpop.f32.mrf.mxu0
        %v3520 = vadd.f32 %v3501, %v3519
        %v3521 = vpop.f32.mrf.mxu0
        %v3522 = vadd.f32 %v3503, %v3521
        %3523 = vdwg.mxu0
        %3524 = vmatpush.bf16.msra.mxu0 %v2217
        %3525 = vmatpush.bf16.msra.mxu0 %v2211
        %3526 = vmatpush.bf16.msra.mxu0 %v2205
        %3527 = vmatpush.bf16.msra.mxu0 %v2199
        %3528 = vmatpush.bf16.msra.mxu0 %v2193
        %3529 = vmatpush.bf16.msra.mxu0 %v2187
        %3530 = vmatpush.bf16.msra.mxu0 %v2181
        %3531 = vmatpush.bf16.msra.mxu0 %v2175
        %3532 = vmatmul.bf16.gmra.mxu0 %v705
        %v3533 = vpop.f32.mrf.mxu0
        %v3534 = vadd.f32 %v3515, %v3533
        %v3535 = vpop.f32.mrf.mxu0
        %v3536 = vadd.f32 %v3517, %v3535
        %3537 = vmatmul.bf16.gmra.mxu0 %v704
        %v3538 = vpop.f32.mrf.mxu0
        %v3539 = vadd.f32 %v3520, %v3538
        %v3540 = vpop.f32.mrf.mxu0
        %v3541 = vadd.f32 %v3522, %v3540
        %3542 = vdwg.mxu0
        %3543 = vmatpush.bf16.msra.mxu0 %v2265
        %3544 = vmatpush.bf16.msra.mxu0 %v2259
        %3545 = vmatpush.bf16.msra.mxu0 %v2253
        %3546 = vmatpush.bf16.msra.mxu0 %v2247
        %3547 = vmatpush.bf16.msra.mxu0 %v2241
        %3548 = vmatpush.bf16.msra.mxu0 %v2235
        %3549 = vmatpush.bf16.msra.mxu0 %v2229
        %3550 = vmatpush.bf16.msra.mxu0 %v2223
        %3551 = vmatmul.bf16.gmra.mxu0 %v727
        %v3552 = vpop.f32.mrf.mxu0
        %v3553 = vadd.f32 %v3534, %v3552
        %v3554 = vpop.f32.mrf.mxu0
        %v3555 = vadd.f32 %v3536, %v3554
        %3556 = vmatmul.bf16.gmra.mxu0 %v726
        %v3557 = vpop.f32.mrf.mxu0
        %v3558 = vadd.f32 %v3539, %v3557
        %v3559 = vpop.f32.mrf.mxu0
        %v3560 = vadd.f32 %v3541, %v3559
        %3561 = vdwg.mxu0
        %v3563 = vunpack.c.l.b16 %v602
        %v3564 = vpack.c.b16 %v608, %v3563
        %vm3565 = vcmask 1045504
        %v3566 = vrot.slane %v3564, 2
        %v3567 = vrot.slane %v687, 2
        %v3568 = vsel %vm3565, %v3566, %v3567
        %3571 = vmatpush.bf16.msra.mxu0 %v1924
        %3572 = vmatpush.bf16.msra.mxu0 %v1918
        %3573 = vmatpush.bf16.msra.mxu0 %v1912
        %3574 = vmatpush.bf16.msra.mxu0 %v1906
        %3575 = vmatpush.bf16.msra.mxu0 %v1900
        %3576 = vmatpush.bf16.msra.mxu0 %v1894
        %3577 = vmatpush.bf16.msra.mxu0 %v1888
        %3578 = vmatpush.bf16.msra.mxu0 %v1882
        %3579 = vmatmul.bf16.gmra.mxu0 %v623
        %v3580 = vpop.f32.mrf.mxu0
        %v3581 = vadd.f32 0.0, %v3580
        %v3582 = vpop.f32.mrf.mxu0
        %v3583 = vadd.f32 0.0, %v3582
        %3584 = vmatmul.bf16.gmra.mxu0 %v624
        %v3585 = vpop.f32.mrf.mxu0
        %v3586 = vadd.f32 0.0, %v3585
        %v3587 = vpop.f32.mrf.mxu0
        %v3588 = vadd.f32 0.0, %v3587
        %3589 = vdwg.mxu0
        %3590 = vmatpush.bf16.msra.mxu0 %v1972
        %3591 = vmatpush.bf16.msra.mxu0 %v1966
        %3592 = vmatpush.bf16.msra.mxu0 %v1960
        %3593 = vmatpush.bf16.msra.mxu0 %v1954
        %3594 = vmatpush.bf16.msra.mxu0 %v1948
        %3595 = vmatpush.bf16.msra.mxu0 %v1942
        %3596 = vmatpush.bf16.msra.mxu0 %v1936
        %3597 = vmatpush.bf16.msra.mxu0 %v1930
        %3598 = vmatmul.bf16.gmra.mxu0 %v642
        %v3599 = vpop.f32.mrf.mxu0
        %v3600 = vadd.f32 %v3581, %v3599
        %v3601 = vpop.f32.mrf.mxu0
        %v3602 = vadd.f32 %v3583, %v3601
        %3603 = vmatmul.bf16.gmra.mxu0 %v645
        %v3604 = vpop.f32.mrf.mxu0
        %v3605 = vadd.f32 %v3586, %v3604
        %v3606 = vpop.f32.mrf.mxu0
        %v3607 = vadd.f32 %v3588, %v3606
        %3608 = vdwg.mxu0
        %3609 = vmatpush.bf16.msra.mxu0 %v2020
        %3610 = vmatpush.bf16.msra.mxu0 %v2014
        %3611 = vmatpush.bf16.msra.mxu0 %v2008
        %3612 = vmatpush.bf16.msra.mxu0 %v2002
        %3613 = vmatpush.bf16.msra.mxu0 %v1996
        %3614 = vmatpush.bf16.msra.mxu0 %v1990
        %3615 = vmatpush.bf16.msra.mxu0 %v1984
        %3616 = vmatpush.bf16.msra.mxu0 %v1978
        %3617 = vmatmul.bf16.gmra.mxu0 %v662
        %v3618 = vpop.f32.mrf.mxu0
        %v3619 = vadd.f32 %v3600, %v3618
        %v3620 = vpop.f32.mrf.mxu0
        %v3621 = vadd.f32 %v3602, %v3620
        %3622 = vmatmul.bf16.gmra.mxu0 %v665
        %v3623 = vpop.f32.mrf.mxu0
        %v3624 = vadd.f32 %v3605, %v3623
        %v3625 = vpop.f32.mrf.mxu0
        %v3626 = vadd.f32 %v3607, %v3625
        %3627 = vdwg.mxu0
        %3628 = vmatpush.bf16.msra.mxu0 %v2068
        %3629 = vmatpush.bf16.msra.mxu0 %v2062
        %3630 = vmatpush.bf16.msra.mxu0 %v2056
        %3631 = vmatpush.bf16.msra.mxu0 %v2050
        %3632 = vmatpush.bf16.msra.mxu0 %v2044
        %3633 = vmatpush.bf16.msra.mxu0 %v2038
        %3634 = vmatpush.bf16.msra.mxu0 %v2032
        %3635 = vmatpush.bf16.msra.mxu0 %v2026
        %3636 = vmatmul.bf16.gmra.mxu0 %v674
        %v3637 = vpop.f32.mrf.mxu0
        %v3638 = vadd.f32 %v3619, %v3637
        %v3639 = vpop.f32.mrf.mxu0
        %v3640 = vadd.f32 %v3621, %v3639
        %3641 = vmatmul.bf16.gmra.mxu0 %v673
        %v3642 = vpop.f32.mrf.mxu0
        %v3643 = vadd.f32 %v3624, %v3642
        %v3644 = vpop.f32.mrf.mxu0
        %v3645 = vadd.f32 %v3626, %v3644
        %3646 = vdwg.mxu0
        %3647 = vmatpush.bf16.msra.mxu0 %v2116
        %3648 = vmatpush.bf16.msra.mxu0 %v2110
        %3649 = vmatpush.bf16.msra.mxu0 %v2104
        %3650 = vmatpush.bf16.msra.mxu0 %v2098
        %3651 = vmatpush.bf16.msra.mxu0 %v2092
        %3652 = vmatpush.bf16.msra.mxu0 %v2086
        %3653 = vmatpush.bf16.msra.mxu0 %v2080
        %3654 = vmatpush.bf16.msra.mxu0 %v2074
        %3655 = vmatmul.bf16.gmra.mxu0 %v682
        %v3656 = vpop.f32.mrf.mxu0
        %v3657 = vadd.f32 %v3638, %v3656
        %v3658 = vpop.f32.mrf.mxu0
        %v3659 = vadd.f32 %v3640, %v3658
        %3660 = vmatmul.bf16.gmra.mxu0 %v681
        %v3661 = vpop.f32.mrf.mxu0
        %v3662 = vadd.f32 %v3643, %v3661
        %v3663 = vpop.f32.mrf.mxu0
        %v3664 = vadd.f32 %v3645, %v3663
        %3665 = vdwg.mxu0
        %3666 = vmatpush.bf16.msra.mxu0 %v2164
        %3667 = vmatpush.bf16.msra.mxu0 %v2158
        %3668 = vmatpush.bf16.msra.mxu0 %v2152
        %3669 = vmatpush.bf16.msra.mxu0 %v2146
        %3670 = vmatpush.bf16.msra.mxu0 %v2140
        %3671 = vmatpush.bf16.msra.mxu0 %v2134
        %3672 = vmatpush.bf16.msra.mxu0 %v2128
        %3673 = vmatpush.bf16.msra.mxu0 %v2122
        %3674 = vmatmul.bf16.gmra.mxu0 %v705
        %v3675 = vpop.f32.mrf.mxu0
        %v3676 = vadd.f32 %v3657, %v3675
        %v3677 = vpop.f32.mrf.mxu0
        %v3678 = vadd.f32 %v3659, %v3677
        %3679 = vmatmul.bf16.gmra.mxu0 %v704
        %v3680 = vpop.f32.mrf.mxu0
        %v3681 = vadd.f32 %v3662, %v3680
        %v3682 = vpop.f32.mrf.mxu0
        %v3683 = vadd.f32 %v3664, %v3682
        %3684 = vdwg.mxu0
        %3685 = vmatpush.bf16.msra.mxu0 %v2212
        %3686 = vmatpush.bf16.msra.mxu0 %v2206
        %3687 = vmatpush.bf16.msra.mxu0 %v2200
        %3688 = vmatpush.bf16.msra.mxu0 %v2194
        %3689 = vmatpush.bf16.msra.mxu0 %v2188
        %3690 = vmatpush.bf16.msra.mxu0 %v2182
        %3691 = vmatpush.bf16.msra.mxu0 %v2176
        %3692 = vmatpush.bf16.msra.mxu0 %v2170
        %3693 = vmatmul.bf16.gmra.mxu0 %v727
        %v3694 = vpop.f32.mrf.mxu0
        %v3695 = vadd.f32 %v3676, %v3694
        %v3696 = vpop.f32.mrf.mxu0
        %v3697 = vadd.f32 %v3678, %v3696
        %3698 = vmatmul.bf16.gmra.mxu0 %v726
        %v3699 = vpop.f32.mrf.mxu0
        %v3700 = vadd.f32 %v3681, %v3699
        %v3701 = vpop.f32.mrf.mxu0
        %v3702 = vadd.f32 %v3683, %v3701
        %3703 = vdwg.mxu0
        %3704 = vmatpush.bf16.msra.mxu0 %v2260
        %3705 = vmatpush.bf16.msra.mxu0 %v2254
        %3706 = vmatpush.bf16.msra.mxu0 %v2248
        %3707 = vmatpush.bf16.msra.mxu0 %v2242
        %3708 = vmatpush.bf16.msra.mxu0 %v2236
        %3709 = vmatpush.bf16.msra.mxu0 %v2230
        %3710 = vmatpush.bf16.msra.mxu0 %v2224
        %3711 = vmatpush.bf16.msra.mxu0 %v2218
        %3712 = vmatmul.bf16.gmra.mxu0 %v3568
        %v3713 = vpop.f32.mrf.mxu0
        %v3714 = vadd.f32 %v3695, %v3713
        %v3715 = vpop.f32.mrf.mxu0
        %v3716 = vadd.f32 %v3697, %v3715
        %3717 = vmatmul.bf16.gmra.mxu0 %v3567
        %v3718 = vpop.f32.mrf.mxu0
        %v3719 = vadd.f32 %v3700, %v3718
        %v3720 = vpop.f32.mrf.mxu0
        %v3721 = vadd.f32 %v3702, %v3720
        %3722 = vdwg.mxu0
        %3723 = vmatpush.bf16.msra.mxu0 %v1925
        %3724 = vmatpush.bf16.msra.mxu0 %v1919
        %3725 = vmatpush.bf16.msra.mxu0 %v1913
        %3726 = vmatpush.bf16.msra.mxu0 %v1907
        %3727 = vmatpush.bf16.msra.mxu0 %v1901
        %3728 = vmatpush.bf16.msra.mxu0 %v1895
        %3729 = vmatpush.bf16.msra.mxu0 %v1889
        %3730 = vmatpush.bf16.msra.mxu0 %v1883
        %3731 = vmatmul.bf16.gmra.mxu0 %v623
        %v3732 = vpop.f32.mrf.mxu0
        %v3733 = vadd.f32 0.0, %v3732
        %v3734 = vpop.f32.mrf.mxu0
        %v3735 = vadd.f32 0.0, %v3734
        %3736 = vmatmul.bf16.gmra.mxu0 %v624
        %v3737 = vpop.f32.mrf.mxu0
        %v3738 = vadd.f32 0.0, %v3737
        %v3739 = vpop.f32.mrf.mxu0
        %v3740 = vadd.f32 0.0, %v3739
        %3741 = vdwg.mxu0
        %3742 = vmatpush.bf16.msra.mxu0 %v1973
        %3743 = vmatpush.bf16.msra.mxu0 %v1967
        %3744 = vmatpush.bf16.msra.mxu0 %v1961
        %3745 = vmatpush.bf16.msra.mxu0 %v1955
        %3746 = vmatpush.bf16.msra.mxu0 %v1949
        %3747 = vmatpush.bf16.msra.mxu0 %v1943
        %3748 = vmatpush.bf16.msra.mxu0 %v1937
        %3749 = vmatpush.bf16.msra.mxu0 %v1931
        %3750 = vmatmul.bf16.gmra.mxu0 %v642
        %v3751 = vpop.f32.mrf.mxu0
        %v3752 = vadd.f32 %v3733, %v3751
        %v3753 = vpop.f32.mrf.mxu0
        %v3754 = vadd.f32 %v3735, %v3753
        %3755 = vmatmul.bf16.gmra.mxu0 %v645
        %v3756 = vpop.f32.mrf.mxu0
        %v3757 = vadd.f32 %v3738, %v3756
        %v3758 = vpop.f32.mrf.mxu0
        %v3759 = vadd.f32 %v3740, %v3758
        %3760 = vdwg.mxu0
        %3761 = vmatpush.bf16.msra.mxu0 %v2021
        %3762 = vmatpush.bf16.msra.mxu0 %v2015
        %3763 = vmatpush.bf16.msra.mxu0 %v2009
        %3764 = vmatpush.bf16.msra.mxu0 %v2003
        %3765 = vmatpush.bf16.msra.mxu0 %v1997
        %3766 = vmatpush.bf16.msra.mxu0 %v1991
        %3767 = vmatpush.bf16.msra.mxu0 %v1985
        %3768 = vmatpush.bf16.msra.mxu0 %v1979
        %3769 = vmatmul.bf16.gmra.mxu0 %v662
        %v3770 = vpop.f32.mrf.mxu0
        %v3771 = vadd.f32 %v3752, %v3770
        %v3772 = vpop.f32.mrf.mxu0
        %v3773 = vadd.f32 %v3754, %v3772
        %3774 = vmatmul.bf16.gmra.mxu0 %v665
        %v3775 = vpop.f32.mrf.mxu0
        %v3776 = vadd.f32 %v3757, %v3775
        %v3777 = vpop.f32.mrf.mxu0
        %v3778 = vadd.f32 %v3759, %v3777
        %3779 = vdwg.mxu0
        %3780 = vmatpush.bf16.msra.mxu0 %v2069
        %3781 = vmatpush.bf16.msra.mxu0 %v2063
        %3782 = vmatpush.bf16.msra.mxu0 %v2057
        %3783 = vmatpush.bf16.msra.mxu0 %v2051
        %3784 = vmatpush.bf16.msra.mxu0 %v2045
        %3785 = vmatpush.bf16.msra.mxu0 %v2039
        %3786 = vmatpush.bf16.msra.mxu0 %v2033
        %3787 = vmatpush.bf16.msra.mxu0 %v2027
        %3788 = vmatmul.bf16.gmra.mxu0 %v674
        %v3789 = vpop.f32.mrf.mxu0
        %v3790 = vadd.f32 %v3771, %v3789
        %v3791 = vpop.f32.mrf.mxu0
        %v3792 = vadd.f32 %v3773, %v3791
        %3793 = vmatmul.bf16.gmra.mxu0 %v673
        %v3794 = vpop.f32.mrf.mxu0
        %v3795 = vadd.f32 %v3776, %v3794
        %v3796 = vpop.f32.mrf.mxu0
        %v3797 = vadd.f32 %v3778, %v3796
        %3798 = vdwg.mxu0
        %3799 = vmatpush.bf16.msra.mxu0 %v2117
        %3800 = vmatpush.bf16.msra.mxu0 %v2111
        %3801 = vmatpush.bf16.msra.mxu0 %v2105
        %3802 = vmatpush.bf16.msra.mxu0 %v2099
        %3803 = vmatpush.bf16.msra.mxu0 %v2093
        %3804 = vmatpush.bf16.msra.mxu0 %v2087
        %3805 = vmatpush.bf16.msra.mxu0 %v2081
        %3806 = vmatpush.bf16.msra.mxu0 %v2075
        %3807 = vmatmul.bf16.gmra.mxu0 %v682
        %v3808 = vpop.f32.mrf.mxu0
        %v3809 = vadd.f32 %v3790, %v3808
        %v3810 = vpop.f32.mrf.mxu0
        %v3811 = vadd.f32 %v3792, %v3810
        %3812 = vmatmul.bf16.gmra.mxu0 %v681
        %v3813 = vpop.f32.mrf.mxu0
        %v3814 = vadd.f32 %v3795, %v3813
        %v3815 = vpop.f32.mrf.mxu0
        %v3816 = vadd.f32 %v3797, %v3815
        %3817 = vdwg.mxu0
        %3818 = vmatpush.bf16.msra.mxu0 %v2165
        %3819 = vmatpush.bf16.msra.mxu0 %v2159
        %3820 = vmatpush.bf16.msra.mxu0 %v2153
        %3821 = vmatpush.bf16.msra.mxu0 %v2147
        %3822 = vmatpush.bf16.msra.mxu0 %v2141
        %3823 = vmatpush.bf16.msra.mxu0 %v2135
        %3824 = vmatpush.bf16.msra.mxu0 %v2129
        %3825 = vmatpush.bf16.msra.mxu0 %v2123
        %3826 = vmatmul.bf16.gmra.mxu0 %v705
        %v3827 = vpop.f32.mrf.mxu0
        %v3828 = vadd.f32 %v3809, %v3827
        %v3829 = vpop.f32.mrf.mxu0
        %v3830 = vadd.f32 %v3811, %v3829
        %3831 = vmatmul.bf16.gmra.mxu0 %v704
        %v3832 = vpop.f32.mrf.mxu0
        %v3833 = vadd.f32 %v3814, %v3832
        %v3834 = vpop.f32.mrf.mxu0
        %v3835 = vadd.f32 %v3816, %v3834
        %3836 = vdwg.mxu0
        %3837 = vmatpush.bf16.msra.mxu0 %v2213
        %3838 = vmatpush.bf16.msra.mxu0 %v2207
        %3839 = vmatpush.bf16.msra.mxu0 %v2201
        %3840 = vmatpush.bf16.msra.mxu0 %v2195
        %3841 = vmatpush.bf16.msra.mxu0 %v2189
        %3842 = vmatpush.bf16.msra.mxu0 %v2183
        %3843 = vmatpush.bf16.msra.mxu0 %v2177
        %3844 = vmatpush.bf16.msra.mxu0 %v2171
        %3845 = vmatmul.bf16.gmra.mxu0 %v727
        %v3846 = vpop.f32.mrf.mxu0
        %v3847 = vadd.f32 %v3828, %v3846
        %v3848 = vpop.f32.mrf.mxu0
        %v3849 = vadd.f32 %v3830, %v3848
        %3850 = vmatmul.bf16.gmra.mxu0 %v726
        %v3851 = vpop.f32.mrf.mxu0
        %v3852 = vadd.f32 %v3833, %v3851
        %v3853 = vpop.f32.mrf.mxu0
        %v3854 = vadd.f32 %v3835, %v3853
        %3855 = vdwg.mxu0
        %3856 = vmatpush.bf16.msra.mxu0 %v2261
        %3857 = vmatpush.bf16.msra.mxu0 %v2255
        %3858 = vmatpush.bf16.msra.mxu0 %v2249
        %3859 = vmatpush.bf16.msra.mxu0 %v2243
        %3860 = vmatpush.bf16.msra.mxu0 %v2237
        %3861 = vmatpush.bf16.msra.mxu0 %v2231
        %3862 = vmatpush.bf16.msra.mxu0 %v2225
        %3863 = vmatpush.bf16.msra.mxu0 %v2219
        %3864 = vmatmul.bf16.gmra.mxu0 %v3568
        %v3865 = vpop.f32.mrf.mxu0
        %v3866 = vadd.f32 %v3847, %v3865
        %v3867 = vpop.f32.mrf.mxu0
        %v3868 = vadd.f32 %v3849, %v3867
        %3869 = vmatmul.bf16.gmra.mxu0 %v3567
        %v3870 = vpop.f32.mrf.mxu0
        %v3871 = vadd.f32 %v3852, %v3870
        %v3872 = vpop.f32.mrf.mxu0
        %v3873 = vadd.f32 %v3854, %v3872
        %3874 = vdwg.mxu0
        %3875 = vmatpush.bf16.msra.mxu0 %v1926
        %3876 = vmatpush.bf16.msra.mxu0 %v1920
        %3877 = vmatpush.bf16.msra.mxu0 %v1914
        %3878 = vmatpush.bf16.msra.mxu0 %v1908
        %3879 = vmatpush.bf16.msra.mxu0 %v1902
        %3880 = vmatpush.bf16.msra.mxu0 %v1896
        %3881 = vmatpush.bf16.msra.mxu0 %v1890
        %3882 = vmatpush.bf16.msra.mxu0 %v1884
        %3883 = vmatmul.bf16.gmra.mxu0 %v623
        %v3884 = vpop.f32.mrf.mxu0
        %v3885 = vadd.f32 0.0, %v3884
        %v3886 = vpop.f32.mrf.mxu0
        %v3887 = vadd.f32 0.0, %v3886
        %3888 = vmatmul.bf16.gmra.mxu0 %v624
        %v3889 = vpop.f32.mrf.mxu0
        %v3890 = vadd.f32 0.0, %v3889
        %v3891 = vpop.f32.mrf.mxu0
        %v3892 = vadd.f32 0.0, %v3891
        %3893 = vdwg.mxu0
        %3894 = vmatpush.bf16.msra.mxu0 %v1974
        %3895 = vmatpush.bf16.msra.mxu0 %v1968
        %3896 = vmatpush.bf16.msra.mxu0 %v1962
        %3897 = vmatpush.bf16.msra.mxu0 %v1956
        %3898 = vmatpush.bf16.msra.mxu0 %v1950
        %3899 = vmatpush.bf16.msra.mxu0 %v1944
        %3900 = vmatpush.bf16.msra.mxu0 %v1938
        %3901 = vmatpush.bf16.msra.mxu0 %v1932
        %3902 = vmatmul.bf16.gmra.mxu0 %v642
        %v3903 = vpop.f32.mrf.mxu0
        %v3904 = vadd.f32 %v3885, %v3903
        %v3905 = vpop.f32.mrf.mxu0
        %v3906 = vadd.f32 %v3887, %v3905
        %3907 = vmatmul.bf16.gmra.mxu0 %v645
        %v3908 = vpop.f32.mrf.mxu0
        %v3909 = vadd.f32 %v3890, %v3908
        %v3910 = vpop.f32.mrf.mxu0
        %v3911 = vadd.f32 %v3892, %v3910
        %3912 = vdwg.mxu0
        %3913 = vmatpush.bf16.msra.mxu0 %v2022
        %3914 = vmatpush.bf16.msra.mxu0 %v2016
        %3915 = vmatpush.bf16.msra.mxu0 %v2010
        %3916 = vmatpush.bf16.msra.mxu0 %v2004
        %3917 = vmatpush.bf16.msra.mxu0 %v1998
        %3918 = vmatpush.bf16.msra.mxu0 %v1992
        %3919 = vmatpush.bf16.msra.mxu0 %v1986
        %3920 = vmatpush.bf16.msra.mxu0 %v1980
        %3921 = vmatmul.bf16.gmra.mxu0 %v662
        %v3922 = vpop.f32.mrf.mxu0
        %v3923 = vadd.f32 %v3904, %v3922
        %v3924 = vpop.f32.mrf.mxu0
        %v3925 = vadd.f32 %v3906, %v3924
        %3926 = vmatmul.bf16.gmra.mxu0 %v665
        %v3927 = vpop.f32.mrf.mxu0
        %v3928 = vadd.f32 %v3909, %v3927
        %v3929 = vpop.f32.mrf.mxu0
        %v3930 = vadd.f32 %v3911, %v3929
        %3931 = vdwg.mxu0
        %3932 = vmatpush.bf16.msra.mxu0 %v2070
        %3933 = vmatpush.bf16.msra.mxu0 %v2064
        %3934 = vmatpush.bf16.msra.mxu0 %v2058
        %3935 = vmatpush.bf16.msra.mxu0 %v2052
        %3936 = vmatpush.bf16.msra.mxu0 %v2046
        %3937 = vmatpush.bf16.msra.mxu0 %v2040
        %3938 = vmatpush.bf16.msra.mxu0 %v2034
        %3939 = vmatpush.bf16.msra.mxu0 %v2028
        %3940 = vmatmul.bf16.gmra.mxu0 %v674
        %v3941 = vpop.f32.mrf.mxu0
        %v3942 = vadd.f32 %v3923, %v3941
        %v3943 = vpop.f32.mrf.mxu0
        %v3944 = vadd.f32 %v3925, %v3943
        %3945 = vmatmul.bf16.gmra.mxu0 %v673
        %v3946 = vpop.f32.mrf.mxu0
        %v3947 = vadd.f32 %v3928, %v3946
        %v3948 = vpop.f32.mrf.mxu0
        %v3949 = vadd.f32 %v3930, %v3948
        %3950 = vdwg.mxu0
        %3951 = vmatpush.bf16.msra.mxu0 %v2118
        %3952 = vmatpush.bf16.msra.mxu0 %v2112
        %3953 = vmatpush.bf16.msra.mxu0 %v2106
        %3954 = vmatpush.bf16.msra.mxu0 %v2100
        %3955 = vmatpush.bf16.msra.mxu0 %v2094
        %3956 = vmatpush.bf16.msra.mxu0 %v2088
        %3957 = vmatpush.bf16.msra.mxu0 %v2082
        %3958 = vmatpush.bf16.msra.mxu0 %v2076
        %3959 = vmatmul.bf16.gmra.mxu0 %v682
        %v3960 = vpop.f32.mrf.mxu0
        %v3961 = vadd.f32 %v3942, %v3960
        %v3962 = vpop.f32.mrf.mxu0
        %v3963 = vadd.f32 %v3944, %v3962
        %3964 = vmatmul.bf16.gmra.mxu0 %v681
        %v3965 = vpop.f32.mrf.mxu0
        %v3966 = vadd.f32 %v3947, %v3965
        %v3967 = vpop.f32.mrf.mxu0
        %v3968 = vadd.f32 %v3949, %v3967
        %3969 = vdwg.mxu0
        %3970 = vmatpush.bf16.msra.mxu0 %v2166
        %3971 = vmatpush.bf16.msra.mxu0 %v2160
        %3972 = vmatpush.bf16.msra.mxu0 %v2154
        %3973 = vmatpush.bf16.msra.mxu0 %v2148
        %3974 = vmatpush.bf16.msra.mxu0 %v2142
        %3975 = vmatpush.bf16.msra.mxu0 %v2136
        %3976 = vmatpush.bf16.msra.mxu0 %v2130
        %3977 = vmatpush.bf16.msra.mxu0 %v2124
        %3978 = vmatmul.bf16.gmra.mxu0 %v705
        %v3979 = vpop.f32.mrf.mxu0
        %v3980 = vadd.f32 %v3961, %v3979
        %v3981 = vpop.f32.mrf.mxu0
        %v3982 = vadd.f32 %v3963, %v3981
        %3983 = vmatmul.bf16.gmra.mxu0 %v704
        %v3984 = vpop.f32.mrf.mxu0
        %v3985 = vadd.f32 %v3966, %v3984
        %v3986 = vpop.f32.mrf.mxu0
        %v3987 = vadd.f32 %v3968, %v3986
        %3988 = vdwg.mxu0
        %3989 = vmatpush.bf16.msra.mxu0 %v2214
        %3990 = vmatpush.bf16.msra.mxu0 %v2208
        %3991 = vmatpush.bf16.msra.mxu0 %v2202
        %3992 = vmatpush.bf16.msra.mxu0 %v2196
        %3993 = vmatpush.bf16.msra.mxu0 %v2190
        %3994 = vmatpush.bf16.msra.mxu0 %v2184
        %3995 = vmatpush.bf16.msra.mxu0 %v2178
        %3996 = vmatpush.bf16.msra.mxu0 %v2172
        %3997 = vmatmul.bf16.gmra.mxu0 %v727
        %v3998 = vpop.f32.mrf.mxu0
        %v3999 = vadd.f32 %v3980, %v3998
        %v4000 = vpop.f32.mrf.mxu0
        %v4001 = vadd.f32 %v3982, %v4000
        %4002 = vmatmul.bf16.gmra.mxu0 %v726
        %v4003 = vpop.f32.mrf.mxu0
        %v4004 = vadd.f32 %v3985, %v4003
        %v4005 = vpop.f32.mrf.mxu0
        %v4006 = vadd.f32 %v3987, %v4005
        %4007 = vdwg.mxu0
        %4008 = vmatpush.bf16.msra.mxu0 %v2262
        %4009 = vmatpush.bf16.msra.mxu0 %v2256
        %4010 = vmatpush.bf16.msra.mxu0 %v2250
        %4011 = vmatpush.bf16.msra.mxu0 %v2244
        %4012 = vmatpush.bf16.msra.mxu0 %v2238
        %4013 = vmatpush.bf16.msra.mxu0 %v2232
        %4014 = vmatpush.bf16.msra.mxu0 %v2226
        %4015 = vmatpush.bf16.msra.mxu0 %v2220
        %4016 = vmatmul.bf16.gmra.mxu0 %v3568
        %v4017 = vpop.f32.mrf.mxu0
        %v4018 = vadd.f32 %v3999, %v4017
        %v4019 = vpop.f32.mrf.mxu0
        %v4020 = vadd.f32 %v4001, %v4019
        %4021 = vmatmul.bf16.gmra.mxu0 %v3567
        %v4022 = vpop.f32.mrf.mxu0
        %v4023 = vadd.f32 %v4004, %v4022
        %v4024 = vpop.f32.mrf.mxu0
        %v4025 = vadd.f32 %v4006, %v4024
        %4026 = vdwg.mxu0
        %4027 = vmatpush.bf16.msra.mxu0 %v1927
        %4028 = vmatpush.bf16.msra.mxu0 %v1921
        %4029 = vmatpush.bf16.msra.mxu0 %v1915
        %4030 = vmatpush.bf16.msra.mxu0 %v1909
        %4031 = vmatpush.bf16.msra.mxu0 %v1903
        %4032 = vmatpush.bf16.msra.mxu0 %v1897
        %4033 = vmatpush.bf16.msra.mxu0 %v1891
        %4034 = vmatpush.bf16.msra.mxu0 %v1885
        %4035 = vmatmul.bf16.gmra.mxu0 %v623
        %v4036 = vpop.f32.mrf.mxu0
        %v4037 = vadd.f32 0.0, %v4036
        %v4038 = vpop.f32.mrf.mxu0
        %v4039 = vadd.f32 0.0, %v4038
        %4040 = vmatmul.bf16.gmra.mxu0 %v624
        %v4041 = vpop.f32.mrf.mxu0
        %v4042 = vadd.f32 0.0, %v4041
        %v4043 = vpop.f32.mrf.mxu0
        %v4044 = vadd.f32 0.0, %v4043
        %4045 = vdwg.mxu0
        %4046 = vmatpush.bf16.msra.mxu0 %v1975
        %4047 = vmatpush.bf16.msra.mxu0 %v1969
        %4048 = vmatpush.bf16.msra.mxu0 %v1963
        %4049 = vmatpush.bf16.msra.mxu0 %v1957
        %4050 = vmatpush.bf16.msra.mxu0 %v1951
        %4051 = vmatpush.bf16.msra.mxu0 %v1945
        %4052 = vmatpush.bf16.msra.mxu0 %v1939
        %4053 = vmatpush.bf16.msra.mxu0 %v1933
        %4054 = vmatmul.bf16.gmra.mxu0 %v642
        %v4055 = vpop.f32.mrf.mxu0
        %v4056 = vadd.f32 %v4037, %v4055
        %v4057 = vpop.f32.mrf.mxu0
        %v4058 = vadd.f32 %v4039, %v4057
        %4059 = vmatmul.bf16.gmra.mxu0 %v645
        %v4060 = vpop.f32.mrf.mxu0
        %v4061 = vadd.f32 %v4042, %v4060
        %v4062 = vpop.f32.mrf.mxu0
        %v4063 = vadd.f32 %v4044, %v4062
        %4064 = vdwg.mxu0
        %4065 = vmatpush.bf16.msra.mxu0 %v2023
        %4066 = vmatpush.bf16.msra.mxu0 %v2017
        %4067 = vmatpush.bf16.msra.mxu0 %v2011
        %4068 = vmatpush.bf16.msra.mxu0 %v2005
        %4069 = vmatpush.bf16.msra.mxu0 %v1999
        %4070 = vmatpush.bf16.msra.mxu0 %v1993
        %4071 = vmatpush.bf16.msra.mxu0 %v1987
        %4072 = vmatpush.bf16.msra.mxu0 %v1981
        %4073 = vmatmul.bf16.gmra.mxu0 %v662
        %v4074 = vpop.f32.mrf.mxu0
        %v4075 = vadd.f32 %v4056, %v4074
        %v4076 = vpop.f32.mrf.mxu0
        %v4077 = vadd.f32 %v4058, %v4076
        %4078 = vmatmul.bf16.gmra.mxu0 %v665
        %v4079 = vpop.f32.mrf.mxu0
        %v4080 = vadd.f32 %v4061, %v4079
        %v4081 = vpop.f32.mrf.mxu0
        %v4082 = vadd.f32 %v4063, %v4081
        %4083 = vdwg.mxu0
        %4084 = vmatpush.bf16.msra.mxu0 %v2071
        %4085 = vmatpush.bf16.msra.mxu0 %v2065
        %4086 = vmatpush.bf16.msra.mxu0 %v2059
        %4087 = vmatpush.bf16.msra.mxu0 %v2053
        %4088 = vmatpush.bf16.msra.mxu0 %v2047
        %4089 = vmatpush.bf16.msra.mxu0 %v2041
        %4090 = vmatpush.bf16.msra.mxu0 %v2035
        %4091 = vmatpush.bf16.msra.mxu0 %v2029
        %4092 = vmatmul.bf16.gmra.mxu0 %v674
        %v4093 = vpop.f32.mrf.mxu0
        %v4094 = vadd.f32 %v4075, %v4093
        %v4095 = vpop.f32.mrf.mxu0
        %v4096 = vadd.f32 %v4077, %v4095
        %4097 = vmatmul.bf16.gmra.mxu0 %v673
        %v4098 = vpop.f32.mrf.mxu0
        %v4099 = vadd.f32 %v4080, %v4098
        %v4100 = vpop.f32.mrf.mxu0
        %v4101 = vadd.f32 %v4082, %v4100
        %4102 = vdwg.mxu0
        %4103 = vmatpush.bf16.msra.mxu0 %v2119
        %4104 = vmatpush.bf16.msra.mxu0 %v2113
        %4105 = vmatpush.bf16.msra.mxu0 %v2107
        %4106 = vmatpush.bf16.msra.mxu0 %v2101
        %4107 = vmatpush.bf16.msra.mxu0 %v2095
        %4108 = vmatpush.bf16.msra.mxu0 %v2089
        %4109 = vmatpush.bf16.msra.mxu0 %v2083
        %4110 = vmatpush.bf16.msra.mxu0 %v2077
        %4111 = vmatmul.bf16.gmra.mxu0 %v682
        %v4112 = vpop.f32.mrf.mxu0
        %v4113 = vadd.f32 %v4094, %v4112
        %v4114 = vpop.f32.mrf.mxu0
        %v4115 = vadd.f32 %v4096, %v4114
        %4116 = vmatmul.bf16.gmra.mxu0 %v681
        %v4117 = vpop.f32.mrf.mxu0
        %v4118 = vadd.f32 %v4099, %v4117
        %v4119 = vpop.f32.mrf.mxu0
        %v4120 = vadd.f32 %v4101, %v4119
        %4121 = vdwg.mxu0
        %4122 = vmatpush.bf16.msra.mxu0 %v2167
        %4123 = vmatpush.bf16.msra.mxu0 %v2161
        %4124 = vmatpush.bf16.msra.mxu0 %v2155
        %4125 = vmatpush.bf16.msra.mxu0 %v2149
        %4126 = vmatpush.bf16.msra.mxu0 %v2143
        %4127 = vmatpush.bf16.msra.mxu0 %v2137
        %4128 = vmatpush.bf16.msra.mxu0 %v2131
        %4129 = vmatpush.bf16.msra.mxu0 %v2125
        %4130 = vmatmul.bf16.gmra.mxu0 %v705
        %v4131 = vpop.f32.mrf.mxu0
        %v4132 = vadd.f32 %v4113, %v4131
        %v4133 = vpop.f32.mrf.mxu0
        %v4134 = vadd.f32 %v4115, %v4133
        %4135 = vmatmul.bf16.gmra.mxu0 %v704
        %v4136 = vpop.f32.mrf.mxu0
        %v4137 = vadd.f32 %v4118, %v4136
        %v4138 = vpop.f32.mrf.mxu0
        %v4139 = vadd.f32 %v4120, %v4138
        %4140 = vdwg.mxu0
        %4141 = vmatpush.bf16.msra.mxu0 %v2215
        %4142 = vmatpush.bf16.msra.mxu0 %v2209
        %4143 = vmatpush.bf16.msra.mxu0 %v2203
        %4144 = vmatpush.bf16.msra.mxu0 %v2197
        %4145 = vmatpush.bf16.msra.mxu0 %v2191
        %4146 = vmatpush.bf16.msra.mxu0 %v2185
        %4147 = vmatpush.bf16.msra.mxu0 %v2179
        %4148 = vmatpush.bf16.msra.mxu0 %v2173
        %4149 = vmatmul.bf16.gmra.mxu0 %v727
        %v4150 = vpop.f32.mrf.mxu0
        %v4151 = vadd.f32 %v4132, %v4150
        %v4152 = vpop.f32.mrf.mxu0
        %v4153 = vadd.f32 %v4134, %v4152
        %4154 = vmatmul.bf16.gmra.mxu0 %v726
        %v4155 = vpop.f32.mrf.mxu0
        %v4156 = vadd.f32 %v4137, %v4155
        %v4157 = vpop.f32.mrf.mxu0
        %v4158 = vadd.f32 %v4139, %v4157
        %4159 = vdwg.mxu0
        %4160 = vmatpush.bf16.msra.mxu0 %v2263
        %4161 = vmatpush.bf16.msra.mxu0 %v2257
        %4162 = vmatpush.bf16.msra.mxu0 %v2251
        %4163 = vmatpush.bf16.msra.mxu0 %v2245
        %4164 = vmatpush.bf16.msra.mxu0 %v2239
        %4165 = vmatpush.bf16.msra.mxu0 %v2233
        %4166 = vmatpush.bf16.msra.mxu0 %v2227
        %4167 = vmatpush.bf16.msra.mxu0 %v2221
        %4168 = vmatmul.bf16.gmra.mxu0 %v3568
        %v4169 = vpop.f32.mrf.mxu0
        %v4170 = vadd.f32 %v4151, %v4169
        %v4171 = vpop.f32.mrf.mxu0
        %v4172 = vadd.f32 %v4153, %v4171
        %4173 = vmatmul.bf16.gmra.mxu0 %v3567
        %v4174 = vpop.f32.mrf.mxu0
        %v4175 = vadd.f32 %v4156, %v4174
        %v4176 = vpop.f32.mrf.mxu0
        %v4177 = vadd.f32 %v4158, %v4176
        %4178 = vdwg.mxu0
        %4179 = vmatpush.bf16.msra.mxu0 %v1928
        %4180 = vmatpush.bf16.msra.mxu0 %v1922
        %4181 = vmatpush.bf16.msra.mxu0 %v1916
        %4182 = vmatpush.bf16.msra.mxu0 %v1910
        %4183 = vmatpush.bf16.msra.mxu0 %v1904
        %4184 = vmatpush.bf16.msra.mxu0 %v1898
        %4185 = vmatpush.bf16.msra.mxu0 %v1892
        %4186 = vmatpush.bf16.msra.mxu0 %v1886
        %4187 = vmatmul.bf16.gmra.mxu0 %v623
        %v4188 = vpop.f32.mrf.mxu0
        %v4189 = vadd.f32 0.0, %v4188
        %v4190 = vpop.f32.mrf.mxu0
        %v4191 = vadd.f32 0.0, %v4190
        %4192 = vmatmul.bf16.gmra.mxu0 %v624
        %v4193 = vpop.f32.mrf.mxu0
        %v4194 = vadd.f32 0.0, %v4193
        %v4195 = vpop.f32.mrf.mxu0
        %v4196 = vadd.f32 0.0, %v4195
        %4197 = vdwg.mxu0
        %4198 = vmatpush.bf16.msra.mxu0 %v1976
        %4199 = vmatpush.bf16.msra.mxu0 %v1970
        %4200 = vmatpush.bf16.msra.mxu0 %v1964
        %4201 = vmatpush.bf16.msra.mxu0 %v1958
        %4202 = vmatpush.bf16.msra.mxu0 %v1952
        %4203 = vmatpush.bf16.msra.mxu0 %v1946
        %4204 = vmatpush.bf16.msra.mxu0 %v1940
        %4205 = vmatpush.bf16.msra.mxu0 %v1934
        %4206 = vmatmul.bf16.gmra.mxu0 %v642
        %v4207 = vpop.f32.mrf.mxu0
        %v4208 = vadd.f32 %v4189, %v4207
        %v4209 = vpop.f32.mrf.mxu0
        %v4210 = vadd.f32 %v4191, %v4209
        %4211 = vmatmul.bf16.gmra.mxu0 %v645
        %v4212 = vpop.f32.mrf.mxu0
        %v4213 = vadd.f32 %v4194, %v4212
        %v4214 = vpop.f32.mrf.mxu0
        %v4215 = vadd.f32 %v4196, %v4214
        %4216 = vdwg.mxu0
        %4217 = vmatpush.bf16.msra.mxu0 %v2024
        %4218 = vmatpush.bf16.msra.mxu0 %v2018
        %4219 = vmatpush.bf16.msra.mxu0 %v2012
        %4220 = vmatpush.bf16.msra.mxu0 %v2006
        %4221 = vmatpush.bf16.msra.mxu0 %v2000
        %4222 = vmatpush.bf16.msra.mxu0 %v1994
        %4223 = vmatpush.bf16.msra.mxu0 %v1988
        %4224 = vmatpush.bf16.msra.mxu0 %v1982
        %4225 = vmatmul.bf16.gmra.mxu0 %v662
        %v4226 = vpop.f32.mrf.mxu0
        %v4227 = vadd.f32 %v4208, %v4226
        %v4228 = vpop.f32.mrf.mxu0
        %v4229 = vadd.f32 %v4210, %v4228
        %4230 = vmatmul.bf16.gmra.mxu0 %v665
        %v4231 = vpop.f32.mrf.mxu0
        %v4232 = vadd.f32 %v4213, %v4231
        %v4233 = vpop.f32.mrf.mxu0
        %v4234 = vadd.f32 %v4215, %v4233
        %4235 = vdwg.mxu0
        %4236 = vmatpush.bf16.msra.mxu0 %v2072
        %4237 = vmatpush.bf16.msra.mxu0 %v2066
        %4238 = vmatpush.bf16.msra.mxu0 %v2060
        %4239 = vmatpush.bf16.msra.mxu0 %v2054
        %4240 = vmatpush.bf16.msra.mxu0 %v2048
        %4241 = vmatpush.bf16.msra.mxu0 %v2042
        %4242 = vmatpush.bf16.msra.mxu0 %v2036
        %4243 = vmatpush.bf16.msra.mxu0 %v2030
        %4244 = vmatmul.bf16.gmra.mxu0 %v674
        %v4245 = vpop.f32.mrf.mxu0
        %v4246 = vadd.f32 %v4227, %v4245
        %v4247 = vpop.f32.mrf.mxu0
        %v4248 = vadd.f32 %v4229, %v4247
        %4249 = vmatmul.bf16.gmra.mxu0 %v673
        %v4250 = vpop.f32.mrf.mxu0
        %v4251 = vadd.f32 %v4232, %v4250
        %v4252 = vpop.f32.mrf.mxu0
        %v4253 = vadd.f32 %v4234, %v4252
        %4254 = vdwg.mxu0
        %4255 = vmatpush.bf16.msra.mxu0 %v2120
        %4256 = vmatpush.bf16.msra.mxu0 %v2114
        %4257 = vmatpush.bf16.msra.mxu0 %v2108
        %4258 = vmatpush.bf16.msra.mxu0 %v2102
        %4259 = vmatpush.bf16.msra.mxu0 %v2096
        %4260 = vmatpush.bf16.msra.mxu0 %v2090
        %4261 = vmatpush.bf16.msra.mxu0 %v2084
        %4262 = vmatpush.bf16.msra.mxu0 %v2078
        %4263 = vmatmul.bf16.gmra.mxu0 %v682
        %v4264 = vpop.f32.mrf.mxu0
        %v4265 = vadd.f32 %v4246, %v4264
        %v4266 = vpop.f32.mrf.mxu0
        %v4267 = vadd.f32 %v4248, %v4266
        %4268 = vmatmul.bf16.gmra.mxu0 %v681
        %v4269 = vpop.f32.mrf.mxu0
        %v4270 = vadd.f32 %v4251, %v4269
        %v4271 = vpop.f32.mrf.mxu0
        %v4272 = vadd.f32 %v4253, %v4271
        %4273 = vdwg.mxu0
        %4274 = vmatpush.bf16.msra.mxu0 %v2168
        %4275 = vmatpush.bf16.msra.mxu0 %v2162
        %4276 = vmatpush.bf16.msra.mxu0 %v2156
        %4277 = vmatpush.bf16.msra.mxu0 %v2150
        %4278 = vmatpush.bf16.msra.mxu0 %v2144
        %4279 = vmatpush.bf16.msra.mxu0 %v2138
        %4280 = vmatpush.bf16.msra.mxu0 %v2132
        %4281 = vmatpush.bf16.msra.mxu0 %v2126
        %4282 = vmatmul.bf16.gmra.mxu0 %v705
        %v4283 = vpop.f32.mrf.mxu0
        %v4284 = vadd.f32 %v4265, %v4283
        %v4285 = vpop.f32.mrf.mxu0
        %v4286 = vadd.f32 %v4267, %v4285
        %4287 = vmatmul.bf16.gmra.mxu0 %v704
        %v4288 = vpop.f32.mrf.mxu0
        %v4289 = vadd.f32 %v4270, %v4288
        %v4290 = vpop.f32.mrf.mxu0
        %v4291 = vadd.f32 %v4272, %v4290
        %4292 = vdwg.mxu0
        %4293 = vmatpush.bf16.msra.mxu0 %v2216
        %4294 = vmatpush.bf16.msra.mxu0 %v2210
        %4295 = vmatpush.bf16.msra.mxu0 %v2204
        %4296 = vmatpush.bf16.msra.mxu0 %v2198
        %4297 = vmatpush.bf16.msra.mxu0 %v2192
        %4298 = vmatpush.bf16.msra.mxu0 %v2186
        %4299 = vmatpush.bf16.msra.mxu0 %v2180
        %4300 = vmatpush.bf16.msra.mxu0 %v2174
        %4301 = vmatmul.bf16.gmra.mxu0 %v727
        %v4302 = vpop.f32.mrf.mxu0
        %v4303 = vadd.f32 %v4284, %v4302
        %v4304 = vpop.f32.mrf.mxu0
        %v4305 = vadd.f32 %v4286, %v4304
        %4306 = vmatmul.bf16.gmra.mxu0 %v726
        %v4307 = vpop.f32.mrf.mxu0
        %v4308 = vadd.f32 %v4289, %v4307
        %v4309 = vpop.f32.mrf.mxu0
        %v4310 = vadd.f32 %v4291, %v4309
        %4311 = vdwg.mxu0
        %4312 = vmatpush.bf16.msra.mxu0 %v2264
        %4313 = vmatpush.bf16.msra.mxu0 %v2258
        %4314 = vmatpush.bf16.msra.mxu0 %v2252
        %4315 = vmatpush.bf16.msra.mxu0 %v2246
        %4316 = vmatpush.bf16.msra.mxu0 %v2240
        %4317 = vmatpush.bf16.msra.mxu0 %v2234
        %4318 = vmatpush.bf16.msra.mxu0 %v2228
        %4319 = vmatpush.bf16.msra.mxu0 %v2222
        %4320 = vmatmul.bf16.gmra.mxu0 %v3568
        %v4321 = vpop.f32.mrf.mxu0
        %v4322 = vadd.f32 %v4303, %v4321
        %v4323 = vpop.f32.mrf.mxu0
        %v4324 = vadd.f32 %v4305, %v4323
        %4325 = vmatmul.bf16.gmra.mxu0 %v3567
        %v4326 = vpop.f32.mrf.mxu0
        %v4327 = vadd.f32 %v4308, %v4326
        %v4328 = vpop.f32.mrf.mxu0
        %v4329 = vadd.f32 %v4310, %v4328
        %4330 = vdwg.mxu0
        %4331 = vmatpush.bf16.msra.mxu0 %v1929
        %4332 = vmatpush.bf16.msra.mxu0 %v1923
        %4333 = vmatpush.bf16.msra.mxu0 %v1917
        %4334 = vmatpush.bf16.msra.mxu0 %v1911
        %4335 = vmatpush.bf16.msra.mxu0 %v1905
        %4336 = vmatpush.bf16.msra.mxu0 %v1899
        %4337 = vmatpush.bf16.msra.mxu0 %v1893
        %4338 = vmatpush.bf16.msra.mxu0 %v1887
        %4339 = vmatmul.bf16.gmra.mxu0 %v623
        %v4340 = vpop.f32.mrf.mxu0
        %v4341 = vadd.f32 0.0, %v4340
        %v4342 = vpop.f32.mrf.mxu0
        %v4343 = vadd.f32 0.0, %v4342
        %4344 = vmatmul.bf16.gmra.mxu0 %v624
        %v4345 = vpop.f32.mrf.mxu0
        %v4346 = vadd.f32 0.0, %v4345
        %v4347 = vpop.f32.mrf.mxu0
        %v4348 = vadd.f32 0.0, %v4347
        %4349 = vdwg.mxu0
        %4350 = vmatpush.bf16.msra.mxu0 %v1977
        %4351 = vmatpush.bf16.msra.mxu0 %v1971
        %4352 = vmatpush.bf16.msra.mxu0 %v1965
        %4353 = vmatpush.bf16.msra.mxu0 %v1959
        %4354 = vmatpush.bf16.msra.mxu0 %v1953
        %4355 = vmatpush.bf16.msra.mxu0 %v1947
        %4356 = vmatpush.bf16.msra.mxu0 %v1941
        %4357 = vmatpush.bf16.msra.mxu0 %v1935
        %4358 = vmatmul.bf16.gmra.mxu0 %v642
        %v4359 = vpop.f32.mrf.mxu0
        %v4360 = vadd.f32 %v4341, %v4359
        %v4361 = vpop.f32.mrf.mxu0
        %v4362 = vadd.f32 %v4343, %v4361
        %4363 = vmatmul.bf16.gmra.mxu0 %v645
        %v4364 = vpop.f32.mrf.mxu0
        %v4365 = vadd.f32 %v4346, %v4364
        %v4366 = vpop.f32.mrf.mxu0
        %v4367 = vadd.f32 %v4348, %v4366
        %4368 = vdwg.mxu0
        %4369 = vmatpush.bf16.msra.mxu0 %v2025
        %4370 = vmatpush.bf16.msra.mxu0 %v2019
        %4371 = vmatpush.bf16.msra.mxu0 %v2013
        %4372 = vmatpush.bf16.msra.mxu0 %v2007
        %4373 = vmatpush.bf16.msra.mxu0 %v2001
        %4374 = vmatpush.bf16.msra.mxu0 %v1995
        %4375 = vmatpush.bf16.msra.mxu0 %v1989
        %4376 = vmatpush.bf16.msra.mxu0 %v1983
        %4377 = vmatmul.bf16.gmra.mxu0 %v662
        %v4378 = vpop.f32.mrf.mxu0
        %v4379 = vadd.f32 %v4360, %v4378
        %v4380 = vpop.f32.mrf.mxu0
        %v4381 = vadd.f32 %v4362, %v4380
        %4382 = vmatmul.bf16.gmra.mxu0 %v665
        %v4383 = vpop.f32.mrf.mxu0
        %v4384 = vadd.f32 %v4365, %v4383
        %v4385 = vpop.f32.mrf.mxu0
        %v4386 = vadd.f32 %v4367, %v4385
        %4387 = vdwg.mxu0
        %4388 = vmatpush.bf16.msra.mxu0 %v2073
        %4389 = vmatpush.bf16.msra.mxu0 %v2067
        %4390 = vmatpush.bf16.msra.mxu0 %v2061
        %4391 = vmatpush.bf16.msra.mxu0 %v2055
        %4392 = vmatpush.bf16.msra.mxu0 %v2049
        %4393 = vmatpush.bf16.msra.mxu0 %v2043
        %4394 = vmatpush.bf16.msra.mxu0 %v2037
        %4395 = vmatpush.bf16.msra.mxu0 %v2031
        %4396 = vmatmul.bf16.gmra.mxu0 %v674
        %v4397 = vpop.f32.mrf.mxu0
        %v4398 = vadd.f32 %v4379, %v4397
        %v4399 = vpop.f32.mrf.mxu0
        %v4400 = vadd.f32 %v4381, %v4399
        %4401 = vmatmul.bf16.gmra.mxu0 %v673
        %v4402 = vpop.f32.mrf.mxu0
        %v4403 = vadd.f32 %v4384, %v4402
        %v4404 = vpop.f32.mrf.mxu0
        %v4405 = vadd.f32 %v4386, %v4404
        %4406 = vdwg.mxu0
        %4407 = vmatpush.bf16.msra.mxu0 %v2121
        %4408 = vmatpush.bf16.msra.mxu0 %v2115
        %4409 = vmatpush.bf16.msra.mxu0 %v2109
        %4410 = vmatpush.bf16.msra.mxu0 %v2103
        %4411 = vmatpush.bf16.msra.mxu0 %v2097
        %4412 = vmatpush.bf16.msra.mxu0 %v2091
        %4413 = vmatpush.bf16.msra.mxu0 %v2085
        %4414 = vmatpush.bf16.msra.mxu0 %v2079
        %4415 = vmatmul.bf16.gmra.mxu0 %v682
        %v4416 = vpop.f32.mrf.mxu0
        %v4417 = vadd.f32 %v4398, %v4416
        %v4418 = vpop.f32.mrf.mxu0
        %v4419 = vadd.f32 %v4400, %v4418
        %4420 = vmatmul.bf16.gmra.mxu0 %v681
        %v4421 = vpop.f32.mrf.mxu0
        %v4422 = vadd.f32 %v4403, %v4421
        %v4423 = vpop.f32.mrf.mxu0
        %v4424 = vadd.f32 %v4405, %v4423
        %4425 = vdwg.mxu0
        %4426 = vmatpush.bf16.msra.mxu0 %v2169
        %4427 = vmatpush.bf16.msra.mxu0 %v2163
        %4428 = vmatpush.bf16.msra.mxu0 %v2157
        %4429 = vmatpush.bf16.msra.mxu0 %v2151
        %4430 = vmatpush.bf16.msra.mxu0 %v2145
        %4431 = vmatpush.bf16.msra.mxu0 %v2139
        %4432 = vmatpush.bf16.msra.mxu0 %v2133
        %4433 = vmatpush.bf16.msra.mxu0 %v2127
        %4434 = vmatmul.bf16.gmra.mxu0 %v705
        %v4435 = vpop.f32.mrf.mxu0
        %v4436 = vadd.f32 %v4417, %v4435
        %v4437 = vpop.f32.mrf.mxu0
        %v4438 = vadd.f32 %v4419, %v4437
        %4439 = vmatmul.bf16.gmra.mxu0 %v704
        %v4440 = vpop.f32.mrf.mxu0
        %v4441 = vadd.f32 %v4422, %v4440
        %v4442 = vpop.f32.mrf.mxu0
        %v4443 = vadd.f32 %v4424, %v4442
        %4444 = vdwg.mxu0
        %4445 = vmatpush.bf16.msra.mxu0 %v2217
        %4446 = vmatpush.bf16.msra.mxu0 %v2211
        %4447 = vmatpush.bf16.msra.mxu0 %v2205
        %4448 = vmatpush.bf16.msra.mxu0 %v2199
        %4449 = vmatpush.bf16.msra.mxu0 %v2193
        %4450 = vmatpush.bf16.msra.mxu0 %v2187
        %4451 = vmatpush.bf16.msra.mxu0 %v2181
        %4452 = vmatpush.bf16.msra.mxu0 %v2175
        %4453 = vmatmul.bf16.gmra.mxu0 %v727
        %v4454 = vpop.f32.mrf.mxu0
        %v4455 = vadd.f32 %v4436, %v4454
        %v4456 = vpop.f32.mrf.mxu0
        %v4457 = vadd.f32 %v4438, %v4456
        %4458 = vmatmul.bf16.gmra.mxu0 %v726
        %v4459 = vpop.f32.mrf.mxu0
        %v4460 = vadd.f32 %v4441, %v4459
        %v4461 = vpop.f32.mrf.mxu0
        %v4462 = vadd.f32 %v4443, %v4461
        %4463 = vdwg.mxu0
        %4464 = vmatpush.bf16.msra.mxu0 %v2265
        %4465 = vmatpush.bf16.msra.mxu0 %v2259
        %4466 = vmatpush.bf16.msra.mxu0 %v2253
        %4467 = vmatpush.bf16.msra.mxu0 %v2247
        %4468 = vmatpush.bf16.msra.mxu0 %v2241
        %4469 = vmatpush.bf16.msra.mxu0 %v2235
        %4470 = vmatpush.bf16.msra.mxu0 %v2229
        %4471 = vmatpush.bf16.msra.mxu0 %v2223
        %4472 = vmatmul.bf16.gmra.mxu0 %v3568
        %v4473 = vpop.f32.mrf.mxu0
        %v4474 = vadd.f32 %v4455, %v4473
        %v4475 = vpop.f32.mrf.mxu0
        %v4476 = vadd.f32 %v4457, %v4475
        %4477 = vmatmul.bf16.gmra.mxu0 %v3567
        %v4478 = vpop.f32.mrf.mxu0
        %v4479 = vadd.f32 %v4460, %v4478
        %v4480 = vpop.f32.mrf.mxu0
        %v4481 = vadd.f32 %v4462, %v4480
        %4482 = vdwg.mxu0
        %v4483 = vmax.f32 %v2793, %v3714
        %v4484 = vmax.f32 %v2945, %v3866
        %v4485 = vmax.f32 %v3097, %v4018
        %v4486 = vmax.f32 %v3249, %v4170
        %v4487 = vmax.f32 %v3401, %v4322
        %v4488 = vmax.f32 %v3553, %v4474
        %v4489 = vmax.f32 %v2795, %v3716
        %v4490 = vmax.f32 %v2947, %v3868
        %v4491 = vmax.f32 %v3099, %v4020
        %v4492 = vmax.f32 %v3251, %v4172
        %v4493 = vmax.f32 %v3403, %v4324
        %v4494 = vmax.f32 %v3555, %v4476
        %v4495 = vmax.f32 %v2798, %v3719
        %v4496 = vmax.f32 %v2950, %v3871
        %v4497 = vmax.f32 %v3102, %v4023
        %v4498 = vmax.f32 %v3254, %v4175
        %v4499 = vmax.f32 %v3406, %v4327
        %v4500 = vmax.f32 %v3558, %v4479
        %v4501 = vmax.f32 %v2800, %v3721
        %v4502 = vmax.f32 %v2952, %v3873
        %v4503 = vmax.f32 %v3104, %v4025
        %v4504 = vmax.f32 %v3256, %v4177
        %v4505 = vmax.f32 %v3408, %v4329
        %v4506 = vmax.f32 %v3560, %v4481
        %v4507 = vmax.f32 %v4483, %v4486
        %v4508 = vmax.f32 %v4484, %v4487
        %v4509 = vmax.f32 %v4485, %v4488
        %v4510 = vmax.f32 %v4489, %v4492
        %v4511 = vmax.f32 %v4490, %v4493
        %v4512 = vmax.f32 %v4491, %v4494
        %v4513 = vmax.f32 %v4495, %v4498
        %v4514 = vmax.f32 %v4496, %v4499
        %v4515 = vmax.f32 %v4497, %v4500
        %v4516 = vmax.f32 %v4501, %v4504
        %v4517 = vmax.f32 %v4502, %v4505
        %v4518 = vmax.f32 %v4503, %v4506
        %v4520 = vperm.slane %v587, 0
        %v4521 = vperm.slane %v587, 1
        %v4522 = vperm.slane %v587, 2
        %v4526 = vadd.f32 %v4507, %v4520
        %v4527 = vadd.f32 %v4508, %v4521
        %v4528 = vadd.f32 %v4509, %v4522
        %v4529 = vadd.f32 %v4510, %v4520
        %v4530 = vadd.f32 %v4511, %v4521
        %v4531 = vadd.f32 %v4512, %v4522
        %v4532 = vadd.f32 %v4513, %v4520
        %v4533 = vadd.f32 %v4514, %v4521
        %v4534 = vadd.f32 %v4515, %v4522
        %v4535 = vadd.f32 %v4516, %v4520
        %v4536 = vadd.f32 %v4517, %v4521
        %v4537 = vadd.f32 %v4518, %v4522
        %v4538 = vmax.f32 %v4526, 0.0
        %v4539 = vmax.f32 %v4527, 0.0
        %v4540 = vmax.f32 %v4528, 0.0
        %v4541 = vmax.f32 %v4529, 0.0
        %v4542 = vmax.f32 %v4530, 0.0
        %v4543 = vmax.f32 %v4531, 0.0
        %v4544 = vmax.f32 %v4532, 0.0
        %v4545 = vmax.f32 %v4533, 0.0
        %v4546 = vmax.f32 %v4534, 0.0
        %v4547 = vmax.f32 %v4535, 0.0
        %v4548 = vmax.f32 %v4536, 0.0
        %v4549 = vmax.f32 %v4537, 0.0
        %v4550 = vpack.c.bf16 %v4539, %v4538
        %v4551 = vpack.c.bf16 %v4540, %v4540
        %v4552 = vpack.c.bf16 %v4542, %v4541
        %v4553 = vpack.c.bf16 %v4543, %v4543
        %v4554 = vpack.c.bf16 %v4545, %v4544
        %v4555 = vpack.c.bf16 %v4546, %v4546
        %v4556 = vpack.c.bf16 %v4548, %v4547
        %v4557 = vpack.c.bf16 %v4549, %v4549
        %4558 = vst [vmem:[%s202] sm:$0xff] %v4550
        %4559 = vst [vmem:[%s202 + $0x8] sm:$0xf] %v4551
        %4560 = vst [vmem:[%s202 + $0xc] sm:$0xff] %v4552
        %4561 = vst [vmem:[%s202 + $0x14] sm:$0xf] %v4553
        %4562 = vst [vmem:[%s202 + $0x18] sm:$0xff] %v4554
        %4563 = vst [vmem:[%s202 + $0x20] sm:$0xf] %v4555
        %4564 = vst [vmem:[%s202 + $0x24] sm:$0x33] %v4556
        %4565 = vst [vmem:[%s202 + $0x2c] sm:$0x3] %v4557
        %p4566 = scmp.lt.s32.totalorder %s16, 1
        %s4567 = scalar_select %p4566, %s16, 1
        %s4568 = smul.addr %s4567, 12
        %s4569 = smul.addr %s4568, 4
        %s4570 = scalar_lea.vmem %s3, %s4569
        // Predicated region
        $region41: #{_lambda_.4} parent=31 // pred_check
          %p4571 = pneg %p102
        $region42: #{_lambda_.4} parent=31 // pred_check_branch
          %4573 = sbr.rel (%p4571) target = $region44
        $region43: #{_lambda_.4} parent=31 // pred_region
          _
        $region44: #{_lambda_.4} parent=31 // pred_fallthru
          _
      $region32: #{_lambda_.4} parent=5 // pred_fallthru
        _
      %p4574 = scmp.le.s32.totalorder 2, %s11
      // Predicated region
      $region45: #{_lambda_.4} parent=5 // pred_check
        %p4575 = pneg %p4574
      $region46: #{_lambda_.4} parent=5 // pred_check_branch
        %4577 = sbr.rel (%p4575) target = $region48
      $region47: #{_lambda_.4} parent=5 // pred_region
        %s4578 = ssub.s32 %s11, 2
        // Predicated region
        $region49: #{_lambda_.4} parent=47 // pred_check
          %p4579 = pneg %p108
        $region50: #{_lambda_.4} parent=47 // pred_check_branch
          %4581 = sbr.rel (%p4579) target = $region52
        $region51: #{_lambda_.4} parent=47 // pred_region
          %p4582 = scmp.lt.s32.totalorder %s17, 1
          %s4583 = scalar_select %p4582, %s17, 1
          %s4584 = smul.addr %s4583, 12
          %s4585 = smul.addr %s4584, 4
          %s4586 = scalar_lea.vmem %s3, %s4585
        $region52: #{_lambda_.4} parent=47 // pred_fallthru
          _
      $region48: #{_lambda_.4} parent=5 // pred_fallthru
        _
    $region6: #{_lambda_.4} parent=1 // loop_footer
      %s15 = sadd.s32 1, %s11
    $region7: #{_lambda_.4} parent=1 // loop_footer_branch
      %10 = sbr.rel target = $region3
    $region8: #{_lambda_.4} parent=1 // loop_exit
      _
    %4587 = vsyncpa [#allocation3], 1
    %s4588 = scalar_lea.sflag [#allocation3], 1
    %4589 = vsyncpa %s4588, 1
    %4590 = vsyncpa [#allocation5], 1

</llo_original>
